<compile_context>
chip_gen: v7x
topology: tpu7x:2x2x1
jax: 0.10.0
libtpu: 0.0.40
codegen_flags: <defaults>
</compile_context>

<pallas_src>
import jax
import jax.numpy as jnp
from jax.experimental import pallas as pl
from jax.experimental.pallas import tpu as pltpu

BN_EPS = 1e-5          # nn.BatchNorm1d default
BYPASS_SCALE = 0.66    # pkwrap TDNNF default bypass scale

# ----- Net hyper-parameters (small, consistent with the module) -----
FEAT_DIM = 16
OUTPUT_DIM = 32
HIDDEN_DIM = 128
BOTTLENECK_DIM = 32
PREFINAL_BOTTLENECK_DIM = 64
KERNEL_SIZE_LIST = [3, 3, 3, 1, 3, 3, 3, 3, 3, 3, 3, 3]
SUBSAMPLING_FACTOR_LIST = [1, 1, 1, 3, 1, 1, 1, 1, 1, 1, 1, 1]
FRAME_SUBSAMPLING_FACTOR = 3
PADDING = 27

# bf16 matmul operands (MXU-native on all generations); f32 accumulate + epilogue.
MATMUL_DTYPE = jnp.bfloat16


def _stack_layer_cfgs():
    """Static configs for the 12 stacked TDNNF layers (tdnn1 + tdnnfs)."""
    cfgs = [dict(din=FEAT_DIM, dout=HIDDEN_DIM, bott=BOTTLENECK_DIM,
                 k=KERNEL_SIZE_LIST[0], s=SUBSAMPLING_FACTOR_LIST[0])]
    for i in range(1, len(KERNEL_SIZE_LIST)):
        cfgs.append(dict(din=HIDDEN_DIM, dout=HIDDEN_DIM, bott=BOTTLENECK_DIM,
                         k=KERNEL_SIZE_LIST[i], s=SUBSAMPLING_FACTOR_LIST[i]))
    return cfgs


def _output_frames(t_pad, cfgs):
    t = t_pad
    for c in cfgs:
        t = (t - c["k"]) // c["s"] + 1
    return t   # prefinal layers are k=1, s=1 (no change)


# ------------------------- single fused Pallas kernel -------------------------

def _make_net_kernel(n_batch, t_pad, cfgs):
    n_stack = len(cfgs)

    def bn_relu(y, m_rows):
        # One-pass BN(affine=False) batch stats over all m_rows rows + ReLU.
        s1 = jnp.sum(y, axis=0, keepdims=True)
        s2 = jnp.sum(y * y, axis=0, keepdims=True)
        mean = s1 * (1.0 / m_rows)
        var = jnp.maximum(s2 * (1.0 / m_rows) - mean * mean, 0.0)
        inv = jax.lax.rsqrt(var + BN_EPS)
        return jnp.maximum((y - mean) * inv, 0.0)

    def kernel(*refs):
        x_ref = refs[0]
        stack_w = [refs[1 + 2 * i: 1 + 2 * (i + 1)] for i in range(n_stack)]
        off = 1 + 2 * n_stack
        (wb_pre_ref, wa_pre_ref,
         chain_w_ref, chain_b_ref, xent_w_ref, xent_b_ref) = refs[off:off + 6]
        chain_out_ref, xent_out_ref = refs[off + 6], refs[off + 7]

        # Activations are kept as ONE batch-stacked (n*t, d) f32 slab; batch b
        # occupies rows [b*t, (b+1)*t).  Only one slab is live between layers.
        h = x_ref[...]
        t_in = t_pad

        for li in range(n_stack):
            cfg = cfgs[li]
            wb_ref, wa_ref = stack_w[li]
            k, s = cfg["k"], cfg["s"]
            din, dout = cfg["din"], cfg["dout"]
            tp = (t_in - k) // s + 1
            use_byp = (din == dout) and (BYPASS_SCALE > 0.0)
            mid = k // 2

            if s == 1:
                # --- matmul-first on the aligned, un-shifted slab ---
                h_mm = h.astype(MATMUL_DTYPE)
                ys = [jnp.dot(h_mm, wb_ref[t * din:(t + 1) * din, :],
                              preferred_element_type=jnp.float32)
                      for t in range(k)]
                # --- shift-after-matmul: per-utterance shifted slices of the
                #     NARROW (bott-lane) tap results; bypass = one wide slice ---
                accs, byps = [], []
                for b in range(n_batch):
                    base = b * t_in
                    a = ys[0][base:base + tp, :]
                    for t in range(1, k):
                        a = a + ys[t][base + t:base + t + tp, :]
                    accs.append(a)
                    if use_byp:
                        byps.append(h[base + mid:base + mid + tp, :])
                acc = accs[0] if n_batch == 1 else jnp.concatenate(accs, axis=0)
                byp = None
                if use_byp:
                    byp = byps[0] if n_batch == 1 else jnp.concatenate(byps, axis=0)
            else:
                # k == 1, stride s (the single frame-subsampling layer).
                # One exact 0/1 block-diagonal selection matmul on the stacked
                # slab selects every s-th frame per utterance.
                assert k == 1
                nr, nc = n_batch * tp, n_batch * t_in
                rows = jax.lax.broadcasted_iota(jnp.int32, (nr, nc), 0)
                cols = jax.lax.broadcasted_iota(jnp.int32, (nr, nc), 1)
                cond = None
                for b in range(n_batch):
                    in_blk = (rows >= b * tp) & (rows < (b + 1) * tp)
                    hit = in_blk & (cols == b * t_in + (rows - b * tp) * s)
                    cond = hit if cond is None else (cond | hit)
                sel = cond.astype(jnp.float32).astype(MATMUL_DTYPE)
                x_sel = jnp.dot(sel, h.astype(MATMUL_DTYPE),
                                preferred_element_type=jnp.float32)    # (n*tp, din)
                acc = jnp.dot(x_sel.astype(MATMUL_DTYPE), wb_ref[...],
                              preferred_element_type=jnp.float32)
                byp = x_sel if use_byp else None

            # linearA (one stacked matmul).  NOTE: bb/ba biases are omitted —
            # they are constant per-feature shifts that BN(affine=False)
            # cancels exactly.
            y = jnp.dot(acc.astype(MATMUL_DTYPE), wa_ref[...],
                        preferred_element_type=jnp.float32)
            if use_byp:
                y = y + BYPASS_SCALE * byp
            h = bn_relu(y, n_batch * tp)
            t_in = tp
            # TODO(synk): nn.Dropout(p=0.1) after each layer is identity here
            # (forward with dropout=0.0).

        # ---- fused prefinal_chain + prefinal_xent (both k=1, s=1, same input) ----
        tp = t_in
        h_mm = h.astype(MATMUL_DTYPE)
        acc_cx = jnp.dot(h_mm, wb_pre_ref[...],
                         preferred_element_type=jnp.float32)            # (n*tp, 128)
        y_cx = jnp.dot(acc_cx.astype(MATMUL_DTYPE), wa_pre_ref[...],
                       preferred_element_type=jnp.float32)              # (n*tp, 256)
        y_cx = y_cx + BYPASS_SCALE * jnp.concatenate([h, h], axis=1)
        # Per-feature stats over 256 lanes == independent BN for each head.
        bn_cx = bn_relu(y_cx, n_batch * tp)
        chain_h = bn_cx[:, :HIDDEN_DIM]
        xent_h = bn_cx[:, HIDDEN_DIM:]

        chain = jnp.dot(chain_h.astype(MATMUL_DTYPE), chain_w_ref[...],
                        preferred_element_type=jnp.float32) + chain_b_ref[...]
        chain_out_ref[...] = chain

        logits = jnp.dot(xent_h.astype(MATMUL_DTYPE), xent_w_ref[...],
                         preferred_element_type=jnp.float32) + xent_b_ref[...]
        z = logits - jnp.max(logits, axis=-1, keepdims=True)
        lse = jnp.log(jnp.sum(jnp.exp(z), axis=-1, keepdims=True))
        xent_out_ref[...] = z - lse

    return kernel


# ----------------------------- parameter setup -------------------------------

def init_tdnnf_params(key, in_dim, out_dim, bottleneck, context_len):
    k1, k2, k3, k4 = jax.random.split(key, 4)
    kd = in_dim * context_len
    # linearB: NaturalAffineTransform-like init; linearA: nn.Linear-like init.
    wb = jax.random.normal(k1, (kd, bottleneck), jnp.float32) / ((kd * bottleneck) ** 0.5)
    bb = jax.random.normal(k2, (1, bottleneck), jnp.float32)
    lim = 1.0 / (bottleneck ** 0.5)
    wa = jax.random.uniform(k3, (bottleneck, out_dim), jnp.float32, -lim, lim)
    ba = jax.random.uniform(k4, (1, out_dim), jnp.float32, -lim, lim)
    # NOTE: bb/ba are kept in the param dict for parity with the module, but the
    # forward kernel omits them — BatchNorm1d(affine=False) cancels constant
    # per-feature shifts exactly.
    # TODO(synk): OrthonormalLinear's orthonormal re-projection of wb is a
    # training-time weight-update side effect, not forward math.
    return {"wb": wb, "bb": bb, "wa": wa, "ba": ba}


def init_net_params(key):
    keys = jax.random.split(key, 16)
    params = {}
    params["tdnn1"] = init_tdnnf_params(
        keys[0], FEAT_DIM, HIDDEN_DIM, BOTTLENECK_DIM, KERNEL_SIZE_LIST[0])
    tdnnfs = []
    for i in range(1, len(KERNEL_SIZE_LIST)):
        tdnnfs.append(init_tdnnf_params(
            keys[i], HIDDEN_DIM, HIDDEN_DIM, BOTTLENECK_DIM, KERNEL_SIZE_LIST[i]))
    params["tdnnfs"] = tdnnfs
    params["prefinal_chain"] = init_tdnnf_params(
        keys[12], HIDDEN_DIM, HIDDEN_DIM, PREFINAL_BOTTLENECK_DIM, 1)
    params["prefinal_xent"] = init_tdnnf_params(
        keys[13], HIDDEN_DIM, HIDDEN_DIM, PREFINAL_BOTTLENECK_DIM, 1)
    # chain_output / xent_output weights & biases are zeroed in the module.
    params["chain_w"] = jnp.zeros((HIDDEN_DIM, OUTPUT_DIM), jnp.float32)
    params["chain_b"] = jnp.zeros((1, OUTPUT_DIM), jnp.float32)
    params["xent_w"] = jnp.zeros((HIDDEN_DIM, OUTPUT_DIM), jnp.float32)
    params["xent_b"] = jnp.zeros((1, OUTPUT_DIM), jnp.float32)
    return params


# --------------------------------- forward -----------------------------------

def pad_input(x):
    if PADDING > 0:
        left = jnp.repeat(x[:, 0:1, :], PADDING, axis=1)
        right = jnp.repeat(x[:, -1:, :], PADDING, axis=1)
        x = jnp.concatenate([left, x, right], axis=1)
    return x


def net_forward(params, x):
    assert x.ndim == 3
    x = pad_input(x)                                    # (N, T_pad, FEAT_DIM), f32
    n, t_pad, feat = x.shape
    cfgs = _stack_layer_cfgs()
    t_out = _output_frames(t_pad, cfgs)

    # Batch-stack the input: (N, T_pad, F) -> (N*T_pad, F); batch b occupies
    # rows [b*T_pad, (b+1)*T_pad).
    x_stacked = x.reshape(n * t_pad, feat)

    # Per-layer weights (bf16 for MXU; no bb/ba — BN cancels them exactly).
    all_stack = [params["tdnn1"]] + list(params["tdnnfs"])
    args = [x_stacked]
    for p in all_stack:
        args += [p["wb"].astype(MATMUL_DTYPE), p["wa"].astype(MATMUL_DTYPE)]

    # Fused prefinal weights: linearB columns concatenated (128x128) and a
    # block-diagonal linearA (128x256) -> one matmul each for both heads.
    pc, px = params["prefinal_chain"], params["prefinal_xent"]
    wb_pre = jnp.concatenate([pc["wb"], px["wb"]], axis=1)             # (128, 128)
    wa_pre = jnp.zeros((2 * PREFINAL_BOTTLENECK_DIM, 2 * HIDDEN_DIM), jnp.float32)
    wa_pre = wa_pre.at[:PREFINAL_BOTTLENECK_DIM, :HIDDEN_DIM].set(pc["wa"])
    wa_pre = wa_pre.at[PREFINAL_BOTTLENECK_DIM:, HIDDEN_DIM:].set(px["wa"])
    args += [wb_pre.astype(MATMUL_DTYPE), wa_pre.astype(MATMUL_DTYPE)]

    args += [params["chain_w"].astype(MATMUL_DTYPE), params["chain_b"],
             params["xent_w"].astype(MATMUL_DTYPE), params["xent_b"]]

    kernel = _make_net_kernel(n, t_pad, cfgs)
    vmem_spec = pl.BlockSpec(memory_space=pltpu.MemorySpace.VMEM)
    chain2d, xent2d = pl.pallas_call(
        kernel,
        out_shape=(jax.ShapeDtypeStruct((n * t_out, OUTPUT_DIM), jnp.float32),
                   jax.ShapeDtypeStruct((n * t_out, OUTPUT_DIM), jnp.float32)),
        in_specs=[vmem_spec] * len(args),
        out_specs=(vmem_spec, vmem_spec),
        compiler_params=pltpu.CompilerParams(
            # Explicit budget well under v7x's 64 MiB/TC (also fine on v5e/v6e).
            vmem_limit_bytes=32 * 1024 * 1024),
    )(*args)
    return (chain2d.reshape(n, t_out, OUTPUT_DIM),
            xent2d.reshape(n, t_out, OUTPUT_DIM))


if __name__ == "__main__":
    key = jax.random.PRNGKey(0)
    pkey, xkey = jax.random.split(key)
    params = init_net_params(pkey)

    N = 2
    T = 10 * FRAME_SUBSAMPLING_FACTOR          # 30 input frames -> 10 output frames
    x = jax.random.normal(xkey, (N, T, FEAT_DIM), jnp.float32)

    fwd = jax.jit(net_forward)
    chain_out, xent_out = fwd(params, x)
    chain_out = jax.block_until_ready(chain_out)
    xent_out = jax.block_until_ready(xent_out)

    T_out = T // FRAME_SUBSAMPLING_FACTOR
    assert chain_out.shape == (N, T_out, OUTPUT_DIM), chain_out.shape
    assert xent_out.shape == (N, T_out, OUTPUT_DIM), xent_out.shape
    assert bool(jnp.all(jnp.isfinite(chain_out)))
    assert bool(jnp.all(jnp.isfinite(xent_out)))
    # Heads are zero-initialised in the module: chain == 0, xent == -log(OUTPUT_DIM).
    assert bool(jnp.allclose(chain_out, 0.0, atol=1e-5))
    assert bool(jnp.allclose(xent_out, -jnp.log(float(OUTPUT_DIM)), atol=1e-3))
    print("KERNEL_OK")
</pallas_src>

<mosaic_0001>
module attributes {stable_mosaic.version = 11 : i64} {
  func.func @kernel(%arg0: memref<168x16xf32, #tpu.memory_space<vmem>>, %arg1: memref<48x32xbf16, #tpu.memory_space<vmem>>, %arg2: memref<32x128xbf16, #tpu.memory_space<vmem>>, %arg3: memref<384x32xbf16, #tpu.memory_space<vmem>>, %arg4: memref<32x128xbf16, #tpu.memory_space<vmem>>, %arg5: memref<384x32xbf16, #tpu.memory_space<vmem>>, %arg6: memref<32x128xbf16, #tpu.memory_space<vmem>>, %arg7: memref<128x32xbf16, #tpu.memory_space<vmem>>, %arg8: memref<32x128xbf16, #tpu.memory_space<vmem>>, %arg9: memref<384x32xbf16, #tpu.memory_space<vmem>>, %arg10: memref<32x128xbf16, #tpu.memory_space<vmem>>, %arg11: memref<384x32xbf16, #tpu.memory_space<vmem>>, %arg12: memref<32x128xbf16, #tpu.memory_space<vmem>>, %arg13: memref<384x32xbf16, #tpu.memory_space<vmem>>, %arg14: memref<32x128xbf16, #tpu.memory_space<vmem>>, %arg15: memref<384x32xbf16, #tpu.memory_space<vmem>>, %arg16: memref<32x128xbf16, #tpu.memory_space<vmem>>, %arg17: memref<384x32xbf16, #tpu.memory_space<vmem>>, %arg18: memref<32x128xbf16, #tpu.memory_space<vmem>>, %arg19: memref<384x32xbf16, #tpu.memory_space<vmem>>, %arg20: memref<32x128xbf16, #tpu.memory_space<vmem>>, %arg21: memref<384x32xbf16, #tpu.memory_space<vmem>>, %arg22: memref<32x128xbf16, #tpu.memory_space<vmem>>, %arg23: memref<384x32xbf16, #tpu.memory_space<vmem>>, %arg24: memref<32x128xbf16, #tpu.memory_space<vmem>>, %arg25: memref<128x128xbf16, #tpu.memory_space<vmem>>, %arg26: memref<128x256xbf16, #tpu.memory_space<vmem>>, %arg27: memref<128x32xbf16, #tpu.memory_space<vmem>>, %arg28: memref<1x32xf32, #tpu.memory_space<vmem>>, %arg29: memref<128x32xbf16, #tpu.memory_space<vmem>>, %arg30: memref<1x32xf32, #tpu.memory_space<vmem>>, %arg31: memref<20x32xf32, #tpu.memory_space<vmem>>, %arg32: memref<20x32xf32, #tpu.memory_space<vmem>>) attributes {dimension_semantics = [], scalar_prefetch = 0 : i64, scratch_operands = 0 : i64, tpu.core_type = #tpu.core_type<tc>} {
    %c0 = arith.constant 0 : index
    %c0_0 = arith.constant 0 : index
    %0 = vector.load %arg0[%c0, %c0_0] : memref<168x16xf32, #tpu.memory_space<vmem>>, vector<168x16xf32>
    %1 = arith.truncf %0 : vector<168x16xf32> to vector<168x16xbf16>
    %c0_1 = arith.constant 0 : index
    %c0_2 = arith.constant 0 : index
    %2 = vector.load %arg1[%c0_1, %c0_2] : memref<48x32xbf16, #tpu.memory_space<vmem>>, vector<16x32xbf16>
    %cst = arith.constant dense<0.000000e+00> : vector<168x32xf32>
    %3 = tpu.matmul %1, %2, %cst {dimension_numbers = #tpu.dot_dimension_numbers<[1], [0], [0], [1], [0, 0, 1, 1], [], []>} : vector<168x16xbf16>, vector<16x32xbf16>, vector<168x32xf32> -> vector<168x32xf32>
    %c16 = arith.constant 16 : index
    %c0_3 = arith.constant 0 : index
    %4 = vector.load %arg1[%c16, %c0_3] : memref<48x32xbf16, #tpu.memory_space<vmem>>, vector<16x32xbf16>
    %cst_4 = arith.constant dense<0.000000e+00> : vector<168x32xf32>
    %5 = tpu.matmul %1, %4, %cst_4 {dimension_numbers = #tpu.dot_dimension_numbers<[1], [0], [0], [1], [0, 0, 1, 1], [], []>} : vector<168x16xbf16>, vector<16x32xbf16>, vector<168x32xf32> -> vector<168x32xf32>
    %c32 = arith.constant 32 : index
    %c0_5 = arith.constant 0 : index
    %6 = vector.load %arg1[%c32, %c0_5] : memref<48x32xbf16, #tpu.memory_space<vmem>>, vector<16x32xbf16>
    %cst_6 = arith.constant dense<0.000000e+00> : vector<168x32xf32>
    %7 = tpu.matmul %1, %6, %cst_6 {dimension_numbers = #tpu.dot_dimension_numbers<[1], [0], [0], [1], [0, 0, 1, 1], [], []>} : vector<168x16xbf16>, vector<16x32xbf16>, vector<168x32xf32> -> vector<168x32xf32>
    %8 = vector.extract_strided_slice %3 {offsets = [0, 0], sizes = [82, 32], strides = [1, 1]} : vector<168x32xf32> to vector<82x32xf32>
    %9 = vector.extract_strided_slice %5 {offsets = [1, 0], sizes = [82, 32], strides = [1, 1]} : vector<168x32xf32> to vector<82x32xf32>
    %10 = arith.addf %8, %9 : vector<82x32xf32>
    %11 = vector.extract_strided_slice %7 {offsets = [2, 0], sizes = [82, 32], strides = [1, 1]} : vector<168x32xf32> to vector<82x32xf32>
    %12 = arith.addf %10, %11 : vector<82x32xf32>
    %13 = vector.extract_strided_slice %3 {offsets = [84, 0], sizes = [82, 32], strides = [1, 1]} : vector<168x32xf32> to vector<82x32xf32>
    %14 = vector.extract_strided_slice %5 {offsets = [85, 0], sizes = [82, 32], strides = [1, 1]} : vector<168x32xf32> to vector<82x32xf32>
    %15 = arith.addf %13, %14 : vector<82x32xf32>
    %16 = vector.extract_strided_slice %7 {offsets = [86, 0], sizes = [82, 32], strides = [1, 1]} : vector<168x32xf32> to vector<82x32xf32>
    %17 = arith.addf %15, %16 : vector<82x32xf32>
    %18 = tpu.concatenate %12, %17 in 0 : vector<82x32xf32>, vector<82x32xf32> -> vector<164x32xf32>
    %19 = arith.truncf %18 : vector<164x32xf32> to vector<164x32xbf16>
    %c0_7 = arith.constant 0 : index
    %c0_8 = arith.constant 0 : index
    %20 = vector.load %arg2[%c0_7, %c0_8] : memref<32x128xbf16, #tpu.memory_space<vmem>>, vector<32x128xbf16>
    %cst_9 = arith.constant dense<0.000000e+00> : vector<164x128xf32>
    %21 = tpu.matmul %19, %20, %cst_9 {dimension_numbers = #tpu.dot_dimension_numbers<[1], [0], [0], [1], [0, 0, 1, 1], [], []>} : vector<164x32xbf16>, vector<32x128xbf16>, vector<164x128xf32> -> vector<164x128xf32>
    %cst_10 = arith.constant dense<0.000000e+00> : vector<128xf32>
    %22 = vector.multi_reduction <add>, %21, %cst_10 [0] : vector<164x128xf32> to vector<128xf32>
    %23 = vector.shape_cast %22 : vector<128xf32> to vector<1x128xf32>
    %24 = arith.mulf %21, %21 : vector<164x128xf32>
    %cst_11 = arith.constant dense<0.000000e+00> : vector<128xf32>
    %25 = vector.multi_reduction <add>, %24, %cst_11 [0] : vector<164x128xf32> to vector<128xf32>
    %26 = vector.shape_cast %25 : vector<128xf32> to vector<1x128xf32>
    %cst_12 = arith.constant 0.00609756075 : f32
    %27 = vector.broadcast %cst_12 : f32 to vector<1x128xf32>
    %28 = arith.mulf %23, %27 : vector<1x128xf32>
    %cst_13 = arith.constant 0.00609756075 : f32
    %29 = vector.broadcast %cst_13 : f32 to vector<1x128xf32>
    %30 = arith.mulf %26, %29 : vector<1x128xf32>
    %31 = arith.mulf %28, %28 : vector<1x128xf32>
    %32 = arith.subf %30, %31 : vector<1x128xf32>
    %cst_14 = arith.constant 0.000000e+00 : f32
    %33 = vector.broadcast %cst_14 : f32 to vector<1x128xf32>
    %34 = arith.maximumf %32, %33 : vector<1x128xf32>
    %cst_15 = arith.constant 9.99999974E-6 : f32
    %35 = vector.broadcast %cst_15 : f32 to vector<1x128xf32>
    %36 = arith.addf %34, %35 : vector<1x128xf32>
    %37 = math.rsqrt %36 : vector<1x128xf32>
    %38 = vector.broadcast %28 : vector<1x128xf32> to vector<164x128xf32>
    %39 = arith.subf %21, %38 : vector<164x128xf32>
    %40 = vector.broadcast %37 : vector<1x128xf32> to vector<164x128xf32>
    %41 = arith.mulf %39, %40 : vector<164x128xf32>
    %cst_16 = arith.constant 0.000000e+00 : f32
    %42 = vector.broadcast %cst_16 : f32 to vector<164x128xf32>
    %43 = arith.maximumf %41, %42 : vector<164x128xf32>
    %44 = arith.truncf %43 : vector<164x128xf32> to vector<164x128xbf16>
    %c0_17 = arith.constant 0 : index
    %c0_18 = arith.constant 0 : index
    %45 = vector.load %arg3[%c0_17, %c0_18] : memref<384x32xbf16, #tpu.memory_space<vmem>>, vector<128x32xbf16>
    %cst_19 = arith.constant dense<0.000000e+00> : vector<164x32xf32>
    %46 = tpu.matmul %44, %45, %cst_19 {dimension_numbers = #tpu.dot_dimension_numbers<[1], [0], [0], [1], [0, 0, 1, 1], [], []>} : vector<164x128xbf16>, vector<128x32xbf16>, vector<164x32xf32> -> vector<164x32xf32>
    %c128 = arith.constant 128 : index
    %c0_20 = arith.constant 0 : index
    %47 = vector.load %arg3[%c128, %c0_20] : memref<384x32xbf16, #tpu.memory_space<vmem>>, vector<128x32xbf16>
    %cst_21 = arith.constant dense<0.000000e+00> : vector<164x32xf32>
    %48 = tpu.matmul %44, %47, %cst_21 {dimension_numbers = #tpu.dot_dimension_numbers<[1], [0], [0], [1], [0, 0, 1, 1], [], []>} : vector<164x128xbf16>, vector<128x32xbf16>, vector<164x32xf32> -> vector<164x32xf32>
    %c256 = arith.constant 256 : index
    %c0_22 = arith.constant 0 : index
    %49 = vector.load %arg3[%c256, %c0_22] : memref<384x32xbf16, #tpu.memory_space<vmem>>, vector<128x32xbf16>
    %cst_23 = arith.constant dense<0.000000e+00> : vector<164x32xf32>
    %50 = tpu.matmul %44, %49, %cst_23 {dimension_numbers = #tpu.dot_dimension_numbers<[1], [0], [0], [1], [0, 0, 1, 1], [], []>} : vector<164x128xbf16>, vector<128x32xbf16>, vector<164x32xf32> -> vector<164x32xf32>
    %51 = vector.extract_strided_slice %46 {offsets = [0, 0], sizes = [80, 32], strides = [1, 1]} : vector<164x32xf32> to vector<80x32xf32>
    %52 = vector.extract_strided_slice %48 {offsets = [1, 0], sizes = [80, 32], strides = [1, 1]} : vector<164x32xf32> to vector<80x32xf32>
    %53 = arith.addf %51, %52 : vector<80x32xf32>
    %54 = vector.extract_strided_slice %50 {offsets = [2, 0], sizes = [80, 32], strides = [1, 1]} : vector<164x32xf32> to vector<80x32xf32>
    %55 = arith.addf %53, %54 : vector<80x32xf32>
    %56 = vector.extract_strided_slice %43 {offsets = [1, 0], sizes = [80, 128], strides = [1, 1]} : vector<164x128xf32> to vector<80x128xf32>
    %57 = vector.extract_strided_slice %46 {offsets = [82, 0], sizes = [80, 32], strides = [1, 1]} : vector<164x32xf32> to vector<80x32xf32>
    %58 = vector.extract_strided_slice %48 {offsets = [83, 0], sizes = [80, 32], strides = [1, 1]} : vector<164x32xf32> to vector<80x32xf32>
    %59 = arith.addf %57, %58 : vector<80x32xf32>
    %60 = vector.extract_strided_slice %50 {offsets = [84, 0], sizes = [80, 32], strides = [1, 1]} : vector<164x32xf32> to vector<80x32xf32>
    %61 = arith.addf %59, %60 : vector<80x32xf32>
    %62 = vector.extract_strided_slice %43 {offsets = [83, 0], sizes = [80, 128], strides = [1, 1]} : vector<164x128xf32> to vector<80x128xf32>
    %63 = tpu.concatenate %55, %61 in 0 : vector<80x32xf32>, vector<80x32xf32> -> vector<160x32xf32>
    %64 = tpu.concatenate %56, %62 in 0 : vector<80x128xf32>, vector<80x128xf32> -> vector<160x128xf32>
    %65 = arith.truncf %63 : vector<160x32xf32> to vector<160x32xbf16>
    %c0_24 = arith.constant 0 : index
    %c0_25 = arith.constant 0 : index
    %66 = vector.load %arg4[%c0_24, %c0_25] : memref<32x128xbf16, #tpu.memory_space<vmem>>, vector<32x128xbf16>
    %cst_26 = arith.constant dense<0.000000e+00> : vector<160x128xf32>
    %67 = tpu.matmul %65, %66, %cst_26 {dimension_numbers = #tpu.dot_dimension_numbers<[1], [0], [0], [1], [0, 0, 1, 1], [], []>} : vector<160x32xbf16>, vector<32x128xbf16>, vector<160x128xf32> -> vector<160x128xf32>
    %cst_27 = arith.constant 6.600000e-01 : f32
    %68 = vector.broadcast %cst_27 : f32 to vector<160x128xf32>
    %69 = arith.mulf %68, %64 : vector<160x128xf32>
    %70 = arith.addf %67, %69 : vector<160x128xf32>
    %cst_28 = arith.constant dense<0.000000e+00> : vector<128xf32>
    %71 = vector.multi_reduction <add>, %70, %cst_28 [0] : vector<160x128xf32> to vector<128xf32>
    %72 = vector.shape_cast %71 : vector<128xf32> to vector<1x128xf32>
    %73 = arith.mulf %70, %70 : vector<160x128xf32>
    %cst_29 = arith.constant dense<0.000000e+00> : vector<128xf32>
    %74 = vector.multi_reduction <add>, %73, %cst_29 [0] : vector<160x128xf32> to vector<128xf32>
    %75 = vector.shape_cast %74 : vector<128xf32> to vector<1x128xf32>
    %cst_30 = arith.constant 6.250000e-03 : f32
    %76 = vector.broadcast %cst_30 : f32 to vector<1x128xf32>
    %77 = arith.mulf %72, %76 : vector<1x128xf32>
    %cst_31 = arith.constant 6.250000e-03 : f32
    %78 = vector.broadcast %cst_31 : f32 to vector<1x128xf32>
    %79 = arith.mulf %75, %78 : vector<1x128xf32>
    %80 = arith.mulf %77, %77 : vector<1x128xf32>
    %81 = arith.subf %79, %80 : vector<1x128xf32>
    %cst_32 = arith.constant 0.000000e+00 : f32
    %82 = vector.broadcast %cst_32 : f32 to vector<1x128xf32>
    %83 = arith.maximumf %81, %82 : vector<1x128xf32>
    %cst_33 = arith.constant 9.99999974E-6 : f32
    %84 = vector.broadcast %cst_33 : f32 to vector<1x128xf32>
    %85 = arith.addf %83, %84 : vector<1x128xf32>
    %86 = math.rsqrt %85 : vector<1x128xf32>
    %87 = vector.broadcast %77 : vector<1x128xf32> to vector<160x128xf32>
    %88 = arith.subf %70, %87 : vector<160x128xf32>
    %89 = vector.broadcast %86 : vector<1x128xf32> to vector<160x128xf32>
    %90 = arith.mulf %88, %89 : vector<160x128xf32>
    %cst_34 = arith.constant 0.000000e+00 : f32
    %91 = vector.broadcast %cst_34 : f32 to vector<160x128xf32>
    %92 = arith.maximumf %90, %91 : vector<160x128xf32>
    %93 = arith.truncf %92 : vector<160x128xf32> to vector<160x128xbf16>
    %c0_35 = arith.constant 0 : index
    %c0_36 = arith.constant 0 : index
    %94 = vector.load %arg5[%c0_35, %c0_36] : memref<384x32xbf16, #tpu.memory_space<vmem>>, vector<128x32xbf16>
    %cst_37 = arith.constant dense<0.000000e+00> : vector<160x32xf32>
    %95 = tpu.matmul %93, %94, %cst_37 {dimension_numbers = #tpu.dot_dimension_numbers<[1], [0], [0], [1], [0, 0, 1, 1], [], []>} : vector<160x128xbf16>, vector<128x32xbf16>, vector<160x32xf32> -> vector<160x32xf32>
    %c128_38 = arith.constant 128 : index
    %c0_39 = arith.constant 0 : index
    %96 = vector.load %arg5[%c128_38, %c0_39] : memref<384x32xbf16, #tpu.memory_space<vmem>>, vector<128x32xbf16>
    %cst_40 = arith.constant dense<0.000000e+00> : vector<160x32xf32>
    %97 = tpu.matmul %93, %96, %cst_40 {dimension_numbers = #tpu.dot_dimension_numbers<[1], [0], [0], [1], [0, 0, 1, 1], [], []>} : vector<160x128xbf16>, vector<128x32xbf16>, vector<160x32xf32> -> vector<160x32xf32>
    %c256_41 = arith.constant 256 : index
    %c0_42 = arith.constant 0 : index
    %98 = vector.load %arg5[%c256_41, %c0_42] : memref<384x32xbf16, #tpu.memory_space<vmem>>, vector<128x32xbf16>
    %cst_43 = arith.constant dense<0.000000e+00> : vector<160x32xf32>
    %99 = tpu.matmul %93, %98, %cst_43 {dimension_numbers = #tpu.dot_dimension_numbers<[1], [0], [0], [1], [0, 0, 1, 1], [], []>} : vector<160x128xbf16>, vector<128x32xbf16>, vector<160x32xf32> -> vector<160x32xf32>
    %100 = vector.extract_strided_slice %95 {offsets = [0, 0], sizes = [78, 32], strides = [1, 1]} : vector<160x32xf32> to vector<78x32xf32>
    %101 = vector.extract_strided_slice %97 {offsets = [1, 0], sizes = [78, 32], strides = [1, 1]} : vector<160x32xf32> to vector<78x32xf32>
    %102 = arith.addf %100, %101 : vector<78x32xf32>
    %103 = vector.extract_strided_slice %99 {offsets = [2, 0], sizes = [78, 32], strides = [1, 1]} : vector<160x32xf32> to vector<78x32xf32>
    %104 = arith.addf %102, %103 : vector<78x32xf32>
    %105 = vector.extract_strided_slice %92 {offsets = [1, 0], sizes = [78, 128], strides = [1, 1]} : vector<160x128xf32> to vector<78x128xf32>
    %106 = vector.extract_strided_slice %95 {offsets = [80, 0], sizes = [78, 32], strides = [1, 1]} : vector<160x32xf32> to vector<78x32xf32>
    %107 = vector.extract_strided_slice %97 {offsets = [81, 0], sizes = [78, 32], strides = [1, 1]} : vector<160x32xf32> to vector<78x32xf32>
    %108 = arith.addf %106, %107 : vector<78x32xf32>
    %109 = vector.extract_strided_slice %99 {offsets = [82, 0], sizes = [78, 32], strides = [1, 1]} : vector<160x32xf32> to vector<78x32xf32>
    %110 = arith.addf %108, %109 : vector<78x32xf32>
    %111 = vector.extract_strided_slice %92 {offsets = [81, 0], sizes = [78, 128], strides = [1, 1]} : vector<160x128xf32> to vector<78x128xf32>
    %112 = tpu.concatenate %104, %110 in 0 : vector<78x32xf32>, vector<78x32xf32> -> vector<156x32xf32>
    %113 = tpu.concatenate %105, %111 in 0 : vector<78x128xf32>, vector<78x128xf32> -> vector<156x128xf32>
    %114 = arith.truncf %112 : vector<156x32xf32> to vector<156x32xbf16>
    %c0_44 = arith.constant 0 : index
    %c0_45 = arith.constant 0 : index
    %115 = vector.load %arg6[%c0_44, %c0_45] : memref<32x128xbf16, #tpu.memory_space<vmem>>, vector<32x128xbf16>
    %cst_46 = arith.constant dense<0.000000e+00> : vector<156x128xf32>
    %116 = tpu.matmul %114, %115, %cst_46 {dimension_numbers = #tpu.dot_dimension_numbers<[1], [0], [0], [1], [0, 0, 1, 1], [], []>} : vector<156x32xbf16>, vector<32x128xbf16>, vector<156x128xf32> -> vector<156x128xf32>
    %cst_47 = arith.constant 6.600000e-01 : f32
    %117 = vector.broadcast %cst_47 : f32 to vector<156x128xf32>
    %118 = arith.mulf %117, %113 : vector<156x128xf32>
    %119 = arith.addf %116, %118 : vector<156x128xf32>
    %cst_48 = arith.constant dense<0.000000e+00> : vector<128xf32>
    %120 = vector.multi_reduction <add>, %119, %cst_48 [0] : vector<156x128xf32> to vector<128xf32>
    %121 = vector.shape_cast %120 : vector<128xf32> to vector<1x128xf32>
    %122 = arith.mulf %119, %119 : vector<156x128xf32>
    %cst_49 = arith.constant dense<0.000000e+00> : vector<128xf32>
    %123 = vector.multi_reduction <add>, %122, %cst_49 [0] : vector<156x128xf32> to vector<128xf32>
    %124 = vector.shape_cast %123 : vector<128xf32> to vector<1x128xf32>
    %cst_50 = arith.constant 0.00641025649 : f32
    %125 = vector.broadcast %cst_50 : f32 to vector<1x128xf32>
    %126 = arith.mulf %121, %125 : vector<1x128xf32>
    %cst_51 = arith.constant 0.00641025649 : f32
    %127 = vector.broadcast %cst_51 : f32 to vector<1x128xf32>
    %128 = arith.mulf %124, %127 : vector<1x128xf32>
    %129 = arith.mulf %126, %126 : vector<1x128xf32>
    %130 = arith.subf %128, %129 : vector<1x128xf32>
    %cst_52 = arith.constant 0.000000e+00 : f32
    %131 = vector.broadcast %cst_52 : f32 to vector<1x128xf32>
    %132 = arith.maximumf %130, %131 : vector<1x128xf32>
    %cst_53 = arith.constant 9.99999974E-6 : f32
    %133 = vector.broadcast %cst_53 : f32 to vector<1x128xf32>
    %134 = arith.addf %132, %133 : vector<1x128xf32>
    %135 = math.rsqrt %134 : vector<1x128xf32>
    %136 = vector.broadcast %126 : vector<1x128xf32> to vector<156x128xf32>
    %137 = arith.subf %119, %136 : vector<156x128xf32>
    %138 = vector.broadcast %135 : vector<1x128xf32> to vector<156x128xf32>
    %139 = arith.mulf %137, %138 : vector<156x128xf32>
    %cst_54 = arith.constant 0.000000e+00 : f32
    %140 = vector.broadcast %cst_54 : f32 to vector<156x128xf32>
    %141 = arith.maximumf %139, %140 : vector<156x128xf32>
    %142 = tpu.iota {dimensions = array<i32: 0>} : vector<52x156xi32>
    %143 = tpu.iota {dimensions = array<i32: 1>} : vector<52x156xi32>
    %c0_i32 = arith.constant 0 : i32
    %144 = vector.broadcast %c0_i32 : i32 to vector<52x156xi32>
    %145 = arith.cmpi sge, %142, %144 : vector<52x156xi32>
    %c26_i32 = arith.constant 26 : i32
    %146 = vector.broadcast %c26_i32 : i32 to vector<52x156xi32>
    %147 = arith.cmpi slt, %142, %146 : vector<52x156xi32>
    %148 = arith.andi %145, %147 : vector<52x156xi1>
    %c0_i32_55 = arith.constant 0 : i32
    %149 = vector.broadcast %c0_i32_55 : i32 to vector<52x156xi32>
    %150 = arith.subi %142, %149 : vector<52x156xi32>
    %c3_i32 = arith.constant 3 : i32
    %151 = vector.broadcast %c3_i32 : i32 to vector<52x156xi32>
    %152 = arith.muli %150, %151 : vector<52x156xi32>
    %c0_i32_56 = arith.constant 0 : i32
    %153 = vector.broadcast %c0_i32_56 : i32 to vector<52x156xi32>
    %154 = arith.addi %153, %152 : vector<52x156xi32>
    %155 = arith.cmpi eq, %143, %154 : vector<52x156xi32>
    %156 = arith.andi %148, %155 : vector<52x156xi1>
    %c26_i32_57 = arith.constant 26 : i32
    %157 = vector.broadcast %c26_i32_57 : i32 to vector<52x156xi32>
    %158 = arith.cmpi sge, %142, %157 : vector<52x156xi32>
    %c52_i32 = arith.constant 52 : i32
    %159 = vector.broadcast %c52_i32 : i32 to vector<52x156xi32>
    %160 = arith.cmpi slt, %142, %159 : vector<52x156xi32>
    %161 = arith.andi %158, %160 : vector<52x156xi1>
    %c26_i32_58 = arith.constant 26 : i32
    %162 = vector.broadcast %c26_i32_58 : i32 to vector<52x156xi32>
    %163 = arith.subi %142, %162 : vector<52x156xi32>
    %c3_i32_59 = arith.constant 3 : i32
    %164 = vector.broadcast %c3_i32_59 : i32 to vector<52x156xi32>
    %165 = arith.muli %163, %164 : vector<52x156xi32>
    %c78_i32 = arith.constant 78 : i32
    %166 = vector.broadcast %c78_i32 : i32 to vector<52x156xi32>
    %167 = arith.addi %166, %165 : vector<52x156xi32>
    %168 = arith.cmpi eq, %143, %167 : vector<52x156xi32>
    %169 = arith.andi %161, %168 : vector<52x156xi1>
    %170 = arith.ori %156, %169 : vector<52x156xi1>
    %171 = arith.extui %170 : vector<52x156xi1> to vector<52x156xi32>
    %172 = arith.sitofp %171 : vector<52x156xi32> to vector<52x156xf32>
    %173 = arith.truncf %172 : vector<52x156xf32> to vector<52x156xbf16>
    %174 = arith.truncf %141 : vector<156x128xf32> to vector<156x128xbf16>
    %cst_60 = arith.constant dense<0.000000e+00> : vector<52x128xf32>
    %175 = tpu.matmul %173, %174, %cst_60 {dimension_numbers = #tpu.dot_dimension_numbers<[1], [0], [0], [1], [0, 0, 1, 1], [], []>} : vector<52x156xbf16>, vector<156x128xbf16>, vector<52x128xf32> -> vector<52x128xf32>
    %176 = arith.truncf %175 : vector<52x128xf32> to vector<52x128xbf16>
    %c0_61 = arith.constant 0 : index
    %c0_62 = arith.constant 0 : index
    %177 = vector.load %arg7[%c0_61, %c0_62] : memref<128x32xbf16, #tpu.memory_space<vmem>>, vector<128x32xbf16>
    %cst_63 = arith.constant dense<0.000000e+00> : vector<52x32xf32>
    %178 = tpu.matmul %176, %177, %cst_63 {dimension_numbers = #tpu.dot_dimension_numbers<[1], [0], [0], [1], [0, 0, 1, 1], [], []>} : vector<52x128xbf16>, vector<128x32xbf16>, vector<52x32xf32> -> vector<52x32xf32>
    %179 = arith.truncf %178 : vector<52x32xf32> to vector<52x32xbf16>
    %c0_64 = arith.constant 0 : index
    %c0_65 = arith.constant 0 : index
    %180 = vector.load %arg8[%c0_64, %c0_65] : memref<32x128xbf16, #tpu.memory_space<vmem>>, vector<32x128xbf16>
    %cst_66 = arith.constant dense<0.000000e+00> : vector<52x128xf32>
    %181 = tpu.matmul %179, %180, %cst_66 {dimension_numbers = #tpu.dot_dimension_numbers<[1], [0], [0], [1], [0, 0, 1, 1], [], []>} : vector<52x32xbf16>, vector<32x128xbf16>, vector<52x128xf32> -> vector<52x128xf32>
    %cst_67 = arith.constant 6.600000e-01 : f32
    %182 = vector.broadcast %cst_67 : f32 to vector<52x128xf32>
    %183 = arith.mulf %182, %175 : vector<52x128xf32>
    %184 = arith.addf %181, %183 : vector<52x128xf32>
    %cst_68 = arith.constant dense<0.000000e+00> : vector<128xf32>
    %185 = vector.multi_reduction <add>, %184, %cst_68 [0] : vector<52x128xf32> to vector<128xf32>
    %186 = vector.shape_cast %185 : vector<128xf32> to vector<1x128xf32>
    %187 = arith.mulf %184, %184 : vector<52x128xf32>
    %cst_69 = arith.constant dense<0.000000e+00> : vector<128xf32>
    %188 = vector.multi_reduction <add>, %187, %cst_69 [0] : vector<52x128xf32> to vector<128xf32>
    %189 = vector.shape_cast %188 : vector<128xf32> to vector<1x128xf32>
    %cst_70 = arith.constant 0.0192307699 : f32
    %190 = vector.broadcast %cst_70 : f32 to vector<1x128xf32>
    %191 = arith.mulf %186, %190 : vector<1x128xf32>
    %cst_71 = arith.constant 0.0192307699 : f32
    %192 = vector.broadcast %cst_71 : f32 to vector<1x128xf32>
    %193 = arith.mulf %189, %192 : vector<1x128xf32>
    %194 = arith.mulf %191, %191 : vector<1x128xf32>
    %195 = arith.subf %193, %194 : vector<1x128xf32>
    %cst_72 = arith.constant 0.000000e+00 : f32
    %196 = vector.broadcast %cst_72 : f32 to vector<1x128xf32>
    %197 = arith.maximumf %195, %196 : vector<1x128xf32>
    %cst_73 = arith.constant 9.99999974E-6 : f32
    %198 = vector.broadcast %cst_73 : f32 to vector<1x128xf32>
    %199 = arith.addf %197, %198 : vector<1x128xf32>
    %200 = math.rsqrt %199 : vector<1x128xf32>
    %201 = vector.broadcast %191 : vector<1x128xf32> to vector<52x128xf32>
    %202 = arith.subf %184, %201 : vector<52x128xf32>
    %203 = vector.broadcast %200 : vector<1x128xf32> to vector<52x128xf32>
    %204 = arith.mulf %202, %203 : vector<52x128xf32>
    %cst_74 = arith.constant 0.000000e+00 : f32
    %205 = vector.broadcast %cst_74 : f32 to vector<52x128xf32>
    %206 = arith.maximumf %204, %205 : vector<52x128xf32>
    %207 = arith.truncf %206 : vector<52x128xf32> to vector<52x128xbf16>
    %c0_75 = arith.constant 0 : index
    %c0_76 = arith.constant 0 : index
    %208 = vector.load %arg9[%c0_75, %c0_76] : memref<384x32xbf16, #tpu.memory_space<vmem>>, vector<128x32xbf16>
    %cst_77 = arith.constant dense<0.000000e+00> : vector<52x32xf32>
    %209 = tpu.matmul %207, %208, %cst_77 {dimension_numbers = #tpu.dot_dimension_numbers<[1], [0], [0], [1], [0, 0, 1, 1], [], []>} : vector<52x128xbf16>, vector<128x32xbf16>, vector<52x32xf32> -> vector<52x32xf32>
    %c128_78 = arith.constant 128 : index
    %c0_79 = arith.constant 0 : index
    %210 = vector.load %arg9[%c128_78, %c0_79] : memref<384x32xbf16, #tpu.memory_space<vmem>>, vector<128x32xbf16>
    %cst_80 = arith.constant dense<0.000000e+00> : vector<52x32xf32>
    %211 = tpu.matmul %207, %210, %cst_80 {dimension_numbers = #tpu.dot_dimension_numbers<[1], [0], [0], [1], [0, 0, 1, 1], [], []>} : vector<52x128xbf16>, vector<128x32xbf16>, vector<52x32xf32> -> vector<52x32xf32>
    %c256_81 = arith.constant 256 : index
    %c0_82 = arith.constant 0 : index
    %212 = vector.load %arg9[%c256_81, %c0_82] : memref<384x32xbf16, #tpu.memory_space<vmem>>, vector<128x32xbf16>
    %cst_83 = arith.constant dense<0.000000e+00> : vector<52x32xf32>
    %213 = tpu.matmul %207, %212, %cst_83 {dimension_numbers = #tpu.dot_dimension_numbers<[1], [0], [0], [1], [0, 0, 1, 1], [], []>} : vector<52x128xbf16>, vector<128x32xbf16>, vector<52x32xf32> -> vector<52x32xf32>
    %214 = vector.extract_strided_slice %209 {offsets = [0, 0], sizes = [24, 32], strides = [1, 1]} : vector<52x32xf32> to vector<24x32xf32>
    %215 = vector.extract_strided_slice %211 {offsets = [1, 0], sizes = [24, 32], strides = [1, 1]} : vector<52x32xf32> to vector<24x32xf32>
    %216 = arith.addf %214, %215 : vector<24x32xf32>
    %217 = vector.extract_strided_slice %213 {offsets = [2, 0], sizes = [24, 32], strides = [1, 1]} : vector<52x32xf32> to vector<24x32xf32>
    %218 = arith.addf %216, %217 : vector<24x32xf32>
    %219 = vector.extract_strided_slice %206 {offsets = [1, 0], sizes = [24, 128], strides = [1, 1]} : vector<52x128xf32> to vector<24x128xf32>
    %220 = vector.extract_strided_slice %209 {offsets = [26, 0], sizes = [24, 32], strides = [1, 1]} : vector<52x32xf32> to vector<24x32xf32>
    %221 = vector.extract_strided_slice %211 {offsets = [27, 0], sizes = [24, 32], strides = [1, 1]} : vector<52x32xf32> to vector<24x32xf32>
    %222 = arith.addf %220, %221 : vector<24x32xf32>
    %223 = vector.extract_strided_slice %213 {offsets = [28, 0], sizes = [24, 32], strides = [1, 1]} : vector<52x32xf32> to vector<24x32xf32>
    %224 = arith.addf %222, %223 : vector<24x32xf32>
    %225 = vector.extract_strided_slice %206 {offsets = [27, 0], sizes = [24, 128], strides = [1, 1]} : vector<52x128xf32> to vector<24x128xf32>
    %226 = tpu.concatenate %218, %224 in 0 : vector<24x32xf32>, vector<24x32xf32> -> vector<48x32xf32>
    %227 = tpu.concatenate %219, %225 in 0 : vector<24x128xf32>, vector<24x128xf32> -> vector<48x128xf32>
    %228 = arith.truncf %226 : vector<48x32xf32> to vector<48x32xbf16>
    %c0_84 = arith.constant 0 : index
    %c0_85 = arith.constant 0 : index
    %229 = vector.load %arg10[%c0_84, %c0_85] : memref<32x128xbf16, #tpu.memory_space<vmem>>, vector<32x128xbf16>
    %cst_86 = arith.constant dense<0.000000e+00> : vector<48x128xf32>
    %230 = tpu.matmul %228, %229, %cst_86 {dimension_numbers = #tpu.dot_dimension_numbers<[1], [0], [0], [1], [0, 0, 1, 1], [], []>} : vector<48x32xbf16>, vector<32x128xbf16>, vector<48x128xf32> -> vector<48x128xf32>
    %cst_87 = arith.constant 6.600000e-01 : f32
    %231 = vector.broadcast %cst_87 : f32 to vector<48x128xf32>
    %232 = arith.mulf %231, %227 : vector<48x128xf32>
    %233 = arith.addf %230, %232 : vector<48x128xf32>
    %cst_88 = arith.constant dense<0.000000e+00> : vector<128xf32>
    %234 = vector.multi_reduction <add>, %233, %cst_88 [0] : vector<48x128xf32> to vector<128xf32>
    %235 = vector.shape_cast %234 : vector<128xf32> to vector<1x128xf32>
    %236 = arith.mulf %233, %233 : vector<48x128xf32>
    %cst_89 = arith.constant dense<0.000000e+00> : vector<128xf32>
    %237 = vector.multi_reduction <add>, %236, %cst_89 [0] : vector<48x128xf32> to vector<128xf32>
    %238 = vector.shape_cast %237 : vector<128xf32> to vector<1x128xf32>
    %cst_90 = arith.constant 0.020833334 : f32
    %239 = vector.broadcast %cst_90 : f32 to vector<1x128xf32>
    %240 = arith.mulf %235, %239 : vector<1x128xf32>
    %cst_91 = arith.constant 0.020833334 : f32
    %241 = vector.broadcast %cst_91 : f32 to vector<1x128xf32>
    %242 = arith.mulf %238, %241 : vector<1x128xf32>
    %243 = arith.mulf %240, %240 : vector<1x128xf32>
    %244 = arith.subf %242, %243 : vector<1x128xf32>
    %cst_92 = arith.constant 0.000000e+00 : f32
    %245 = vector.broadcast %cst_92 : f32 to vector<1x128xf32>
    %246 = arith.maximumf %244, %245 : vector<1x128xf32>
    %cst_93 = arith.constant 9.99999974E-6 : f32
    %247 = vector.broadcast %cst_93 : f32 to vector<1x128xf32>
    %248 = arith.addf %246, %247 : vector<1x128xf32>
    %249 = math.rsqrt %248 : vector<1x128xf32>
    %250 = vector.broadcast %240 : vector<1x128xf32> to vector<48x128xf32>
    %251 = arith.subf %233, %250 : vector<48x128xf32>
    %252 = vector.broadcast %249 : vector<1x128xf32> to vector<48x128xf32>
    %253 = arith.mulf %251, %252 : vector<48x128xf32>
    %cst_94 = arith.constant 0.000000e+00 : f32
    %254 = vector.broadcast %cst_94 : f32 to vector<48x128xf32>
    %255 = arith.maximumf %253, %254 : vector<48x128xf32>
    %256 = arith.truncf %255 : vector<48x128xf32> to vector<48x128xbf16>
    %c0_95 = arith.constant 0 : index
    %c0_96 = arith.constant 0 : index
    %257 = vector.load %arg11[%c0_95, %c0_96] : memref<384x32xbf16, #tpu.memory_space<vmem>>, vector<128x32xbf16>
    %cst_97 = arith.constant dense<0.000000e+00> : vector<48x32xf32>
    %258 = tpu.matmul %256, %257, %cst_97 {dimension_numbers = #tpu.dot_dimension_numbers<[1], [0], [0], [1], [0, 0, 1, 1], [], []>} : vector<48x128xbf16>, vector<128x32xbf16>, vector<48x32xf32> -> vector<48x32xf32>
    %c128_98 = arith.constant 128 : index
    %c0_99 = arith.constant 0 : index
    %259 = vector.load %arg11[%c128_98, %c0_99] : memref<384x32xbf16, #tpu.memory_space<vmem>>, vector<128x32xbf16>
    %cst_100 = arith.constant dense<0.000000e+00> : vector<48x32xf32>
    %260 = tpu.matmul %256, %259, %cst_100 {dimension_numbers = #tpu.dot_dimension_numbers<[1], [0], [0], [1], [0, 0, 1, 1], [], []>} : vector<48x128xbf16>, vector<128x32xbf16>, vector<48x32xf32> -> vector<48x32xf32>
    %c256_101 = arith.constant 256 : index
    %c0_102 = arith.constant 0 : index
    %261 = vector.load %arg11[%c256_101, %c0_102] : memref<384x32xbf16, #tpu.memory_space<vmem>>, vector<128x32xbf16>
    %cst_103 = arith.constant dense<0.000000e+00> : vector<48x32xf32>
    %262 = tpu.matmul %256, %261, %cst_103 {dimension_numbers = #tpu.dot_dimension_numbers<[1], [0], [0], [1], [0, 0, 1, 1], [], []>} : vector<48x128xbf16>, vector<128x32xbf16>, vector<48x32xf32> -> vector<48x32xf32>
    %263 = vector.extract_strided_slice %258 {offsets = [0, 0], sizes = [22, 32], strides = [1, 1]} : vector<48x32xf32> to vector<22x32xf32>
    %264 = vector.extract_strided_slice %260 {offsets = [1, 0], sizes = [22, 32], strides = [1, 1]} : vector<48x32xf32> to vector<22x32xf32>
    %265 = arith.addf %263, %264 : vector<22x32xf32>
    %266 = vector.extract_strided_slice %262 {offsets = [2, 0], sizes = [22, 32], strides = [1, 1]} : vector<48x32xf32> to vector<22x32xf32>
    %267 = arith.addf %265, %266 : vector<22x32xf32>
    %268 = vector.extract_strided_slice %255 {offsets = [1, 0], sizes = [22, 128], strides = [1, 1]} : vector<48x128xf32> to vector<22x128xf32>
    %269 = vector.extract_strided_slice %258 {offsets = [24, 0], sizes = [22, 32], strides = [1, 1]} : vector<48x32xf32> to vector<22x32xf32>
    %270 = vector.extract_strided_slice %260 {offsets = [25, 0], sizes = [22, 32], strides = [1, 1]} : vector<48x32xf32> to vector<22x32xf32>
    %271 = arith.addf %269, %270 : vector<22x32xf32>
    %272 = vector.extract_strided_slice %262 {offsets = [26, 0], sizes = [22, 32], strides = [1, 1]} : vector<48x32xf32> to vector<22x32xf32>
    %273 = arith.addf %271, %272 : vector<22x32xf32>
    %274 = vector.extract_strided_slice %255 {offsets = [25, 0], sizes = [22, 128], strides = [1, 1]} : vector<48x128xf32> to vector<22x128xf32>
    %275 = tpu.concatenate %267, %273 in 0 : vector<22x32xf32>, vector<22x32xf32> -> vector<44x32xf32>
    %276 = tpu.concatenate %268, %274 in 0 : vector<22x128xf32>, vector<22x128xf32> -> vector<44x128xf32>
    %277 = arith.truncf %275 : vector<44x32xf32> to vector<44x32xbf16>
    %c0_104 = arith.constant 0 : index
    %c0_105 = arith.constant 0 : index
    %278 = vector.load %arg12[%c0_104, %c0_105] : memref<32x128xbf16, #tpu.memory_space<vmem>>, vector<32x128xbf16>
    %cst_106 = arith.constant dense<0.000000e+00> : vector<44x128xf32>
    %279 = tpu.matmul %277, %278, %cst_106 {dimension_numbers = #tpu.dot_dimension_numbers<[1], [0], [0], [1], [0, 0, 1, 1], [], []>} : vector<44x32xbf16>, vector<32x128xbf16>, vector<44x128xf32> -> vector<44x128xf32>
    %cst_107 = arith.constant 6.600000e-01 : f32
    %280 = vector.broadcast %cst_107 : f32 to vector<44x128xf32>
    %281 = arith.mulf %280, %276 : vector<44x128xf32>
    %282 = arith.addf %279, %281 : vector<44x128xf32>
    %cst_108 = arith.constant dense<0.000000e+00> : vector<128xf32>
    %283 = vector.multi_reduction <add>, %282, %cst_108 [0] : vector<44x128xf32> to vector<128xf32>
    %284 = vector.shape_cast %283 : vector<128xf32> to vector<1x128xf32>
    %285 = arith.mulf %282, %282 : vector<44x128xf32>
    %cst_109 = arith.constant dense<0.000000e+00> : vector<128xf32>
    %286 = vector.multi_reduction <add>, %285, %cst_109 [0] : vector<44x128xf32> to vector<128xf32>
    %287 = vector.shape_cast %286 : vector<128xf32> to vector<1x128xf32>
    %cst_110 = arith.constant 0.0227272734 : f32
    %288 = vector.broadcast %cst_110 : f32 to vector<1x128xf32>
    %289 = arith.mulf %284, %288 : vector<1x128xf32>
    %cst_111 = arith.constant 0.0227272734 : f32
    %290 = vector.broadcast %cst_111 : f32 to vector<1x128xf32>
    %291 = arith.mulf %287, %290 : vector<1x128xf32>
    %292 = arith.mulf %289, %289 : vector<1x128xf32>
    %293 = arith.subf %291, %292 : vector<1x128xf32>
    %cst_112 = arith.constant 0.000000e+00 : f32
    %294 = vector.broadcast %cst_112 : f32 to vector<1x128xf32>
    %295 = arith.maximumf %293, %294 : vector<1x128xf32>
    %cst_113 = arith.constant 9.99999974E-6 : f32
    %296 = vector.broadcast %cst_113 : f32 to vector<1x128xf32>
    %297 = arith.addf %295, %296 : vector<1x128xf32>
    %298 = math.rsqrt %297 : vector<1x128xf32>
    %299 = vector.broadcast %289 : vector<1x128xf32> to vector<44x128xf32>
    %300 = arith.subf %282, %299 : vector<44x128xf32>
    %301 = vector.broadcast %298 : vector<1x128xf32> to vector<44x128xf32>
    %302 = arith.mulf %300, %301 : vector<44x128xf32>
    %cst_114 = arith.constant 0.000000e+00 : f32
    %303 = vector.broadcast %cst_114 : f32 to vector<44x128xf32>
    %304 = arith.maximumf %302, %303 : vector<44x128xf32>
    %305 = arith.truncf %304 : vector<44x128xf32> to vector<44x128xbf16>
    %c0_115 = arith.constant 0 : index
    %c0_116 = arith.constant 0 : index
    %306 = vector.load %arg13[%c0_115, %c0_116] : memref<384x32xbf16, #tpu.memory_space<vmem>>, vector<128x32xbf16>
    %cst_117 = arith.constant dense<0.000000e+00> : vector<44x32xf32>
    %307 = tpu.matmul %305, %306, %cst_117 {dimension_numbers = #tpu.dot_dimension_numbers<[1], [0], [0], [1], [0, 0, 1, 1], [], []>} : vector<44x128xbf16>, vector<128x32xbf16>, vector<44x32xf32> -> vector<44x32xf32>
    %c128_118 = arith.constant 128 : index
    %c0_119 = arith.constant 0 : index
    %308 = vector.load %arg13[%c128_118, %c0_119] : memref<384x32xbf16, #tpu.memory_space<vmem>>, vector<128x32xbf16>
    %cst_120 = arith.constant dense<0.000000e+00> : vector<44x32xf32>
    %309 = tpu.matmul %305, %308, %cst_120 {dimension_numbers = #tpu.dot_dimension_numbers<[1], [0], [0], [1], [0, 0, 1, 1], [], []>} : vector<44x128xbf16>, vector<128x32xbf16>, vector<44x32xf32> -> vector<44x32xf32>
    %c256_121 = arith.constant 256 : index
    %c0_122 = arith.constant 0 : index
    %310 = vector.load %arg13[%c256_121, %c0_122] : memref<384x32xbf16, #tpu.memory_space<vmem>>, vector<128x32xbf16>
    %cst_123 = arith.constant dense<0.000000e+00> : vector<44x32xf32>
    %311 = tpu.matmul %305, %310, %cst_123 {dimension_numbers = #tpu.dot_dimension_numbers<[1], [0], [0], [1], [0, 0, 1, 1], [], []>} : vector<44x128xbf16>, vector<128x32xbf16>, vector<44x32xf32> -> vector<44x32xf32>
    %312 = vector.extract_strided_slice %307 {offsets = [0, 0], sizes = [20, 32], strides = [1, 1]} : vector<44x32xf32> to vector<20x32xf32>
    %313 = vector.extract_strided_slice %309 {offsets = [1, 0], sizes = [20, 32], strides = [1, 1]} : vector<44x32xf32> to vector<20x32xf32>
    %314 = arith.addf %312, %313 : vector<20x32xf32>
    %315 = vector.extract_strided_slice %311 {offsets = [2, 0], sizes = [20, 32], strides = [1, 1]} : vector<44x32xf32> to vector<20x32xf32>
    %316 = arith.addf %314, %315 : vector<20x32xf32>
    %317 = vector.extract_strided_slice %304 {offsets = [1, 0], sizes = [20, 128], strides = [1, 1]} : vector<44x128xf32> to vector<20x128xf32>
    %318 = vector.extract_strided_slice %307 {offsets = [22, 0], sizes = [20, 32], strides = [1, 1]} : vector<44x32xf32> to vector<20x32xf32>
    %319 = vector.extract_strided_slice %309 {offsets = [23, 0], sizes = [20, 32], strides = [1, 1]} : vector<44x32xf32> to vector<20x32xf32>
    %320 = arith.addf %318, %319 : vector<20x32xf32>
    %321 = vector.extract_strided_slice %311 {offsets = [24, 0], sizes = [20, 32], strides = [1, 1]} : vector<44x32xf32> to vector<20x32xf32>
    %322 = arith.addf %320, %321 : vector<20x32xf32>
    %323 = vector.extract_strided_slice %304 {offsets = [23, 0], sizes = [20, 128], strides = [1, 1]} : vector<44x128xf32> to vector<20x128xf32>
    %324 = tpu.concatenate %316, %322 in 0 : vector<20x32xf32>, vector<20x32xf32> -> vector<40x32xf32>
    %325 = tpu.concatenate %317, %323 in 0 : vector<20x128xf32>, vector<20x128xf32> -> vector<40x128xf32>
    %326 = arith.truncf %324 : vector<40x32xf32> to vector<40x32xbf16>
    %c0_124 = arith.constant 0 : index
    %c0_125 = arith.constant 0 : index
    %327 = vector.load %arg14[%c0_124, %c0_125] : memref<32x128xbf16, #tpu.memory_space<vmem>>, vector<32x128xbf16>
    %cst_126 = arith.constant dense<0.000000e+00> : vector<40x128xf32>
    %328 = tpu.matmul %326, %327, %cst_126 {dimension_numbers = #tpu.dot_dimension_numbers<[1], [0], [0], [1], [0, 0, 1, 1], [], []>} : vector<40x32xbf16>, vector<32x128xbf16>, vector<40x128xf32> -> vector<40x128xf32>
    %cst_127 = arith.constant 6.600000e-01 : f32
    %329 = vector.broadcast %cst_127 : f32 to vector<40x128xf32>
    %330 = arith.mulf %329, %325 : vector<40x128xf32>
    %331 = arith.addf %328, %330 : vector<40x128xf32>
    %cst_128 = arith.constant dense<0.000000e+00> : vector<128xf32>
    %332 = vector.multi_reduction <add>, %331, %cst_128 [0] : vector<40x128xf32> to vector<128xf32>
    %333 = vector.shape_cast %332 : vector<128xf32> to vector<1x128xf32>
    %334 = arith.mulf %331, %331 : vector<40x128xf32>
    %cst_129 = arith.constant dense<0.000000e+00> : vector<128xf32>
    %335 = vector.multi_reduction <add>, %334, %cst_129 [0] : vector<40x128xf32> to vector<128xf32>
    %336 = vector.shape_cast %335 : vector<128xf32> to vector<1x128xf32>
    %cst_130 = arith.constant 2.500000e-02 : f32
    %337 = vector.broadcast %cst_130 : f32 to vector<1x128xf32>
    %338 = arith.mulf %333, %337 : vector<1x128xf32>
    %cst_131 = arith.constant 2.500000e-02 : f32
    %339 = vector.broadcast %cst_131 : f32 to vector<1x128xf32>
    %340 = arith.mulf %336, %339 : vector<1x128xf32>
    %341 = arith.mulf %338, %338 : vector<1x128xf32>
    %342 = arith.subf %340, %341 : vector<1x128xf32>
    %cst_132 = arith.constant 0.000000e+00 : f32
    %343 = vector.broadcast %cst_132 : f32 to vector<1x128xf32>
    %344 = arith.maximumf %342, %343 : vector<1x128xf32>
    %cst_133 = arith.constant 9.99999974E-6 : f32
    %345 = vector.broadcast %cst_133 : f32 to vector<1x128xf32>
    %346 = arith.addf %344, %345 : vector<1x128xf32>
    %347 = math.rsqrt %346 : vector<1x128xf32>
    %348 = vector.broadcast %338 : vector<1x128xf32> to vector<40x128xf32>
    %349 = arith.subf %331, %348 : vector<40x128xf32>
    %350 = vector.broadcast %347 : vector<1x128xf32> to vector<40x128xf32>
    %351 = arith.mulf %349, %350 : vector<40x128xf32>
    %cst_134 = arith.constant 0.000000e+00 : f32
    %352 = vector.broadcast %cst_134 : f32 to vector<40x128xf32>
    %353 = arith.maximumf %351, %352 : vector<40x128xf32>
    %354 = arith.truncf %353 : vector<40x128xf32> to vector<40x128xbf16>
    %c0_135 = arith.constant 0 : index
    %c0_136 = arith.constant 0 : index
    %355 = vector.load %arg15[%c0_135, %c0_136] : memref<384x32xbf16, #tpu.memory_space<vmem>>, vector<128x32xbf16>
    %cst_137 = arith.constant dense<0.000000e+00> : vector<40x32xf32>
    %356 = tpu.matmul %354, %355, %cst_137 {dimension_numbers = #tpu.dot_dimension_numbers<[1], [0], [0], [1], [0, 0, 1, 1], [], []>} : vector<40x128xbf16>, vector<128x32xbf16>, vector<40x32xf32> -> vector<40x32xf32>
    %c128_138 = arith.constant 128 : index
    %c0_139 = arith.constant 0 : index
    %357 = vector.load %arg15[%c128_138, %c0_139] : memref<384x32xbf16, #tpu.memory_space<vmem>>, vector<128x32xbf16>
    %cst_140 = arith.constant dense<0.000000e+00> : vector<40x32xf32>
    %358 = tpu.matmul %354, %357, %cst_140 {dimension_numbers = #tpu.dot_dimension_numbers<[1], [0], [0], [1], [0, 0, 1, 1], [], []>} : vector<40x128xbf16>, vector<128x32xbf16>, vector<40x32xf32> -> vector<40x32xf32>
    %c256_141 = arith.constant 256 : index
    %c0_142 = arith.constant 0 : index
    %359 = vector.load %arg15[%c256_141, %c0_142] : memref<384x32xbf16, #tpu.memory_space<vmem>>, vector<128x32xbf16>
    %cst_143 = arith.constant dense<0.000000e+00> : vector<40x32xf32>
    %360 = tpu.matmul %354, %359, %cst_143 {dimension_numbers = #tpu.dot_dimension_numbers<[1], [0], [0], [1], [0, 0, 1, 1], [], []>} : vector<40x128xbf16>, vector<128x32xbf16>, vector<40x32xf32> -> vector<40x32xf32>
    %361 = vector.extract_strided_slice %356 {offsets = [0, 0], sizes = [18, 32], strides = [1, 1]} : vector<40x32xf32> to vector<18x32xf32>
    %362 = vector.extract_strided_slice %358 {offsets = [1, 0], sizes = [18, 32], strides = [1, 1]} : vector<40x32xf32> to vector<18x32xf32>
    %363 = arith.addf %361, %362 : vector<18x32xf32>
    %364 = vector.extract_strided_slice %360 {offsets = [2, 0], sizes = [18, 32], strides = [1, 1]} : vector<40x32xf32> to vector<18x32xf32>
    %365 = arith.addf %363, %364 : vector<18x32xf32>
    %366 = vector.extract_strided_slice %353 {offsets = [1, 0], sizes = [18, 128], strides = [1, 1]} : vector<40x128xf32> to vector<18x128xf32>
    %367 = vector.extract_strided_slice %356 {offsets = [20, 0], sizes = [18, 32], strides = [1, 1]} : vector<40x32xf32> to vector<18x32xf32>
    %368 = vector.extract_strided_slice %358 {offsets = [21, 0], sizes = [18, 32], strides = [1, 1]} : vector<40x32xf32> to vector<18x32xf32>
    %369 = arith.addf %367, %368 : vector<18x32xf32>
    %370 = vector.extract_strided_slice %360 {offsets = [22, 0], sizes = [18, 32], strides = [1, 1]} : vector<40x32xf32> to vector<18x32xf32>
    %371 = arith.addf %369, %370 : vector<18x32xf32>
    %372 = vector.extract_strided_slice %353 {offsets = [21, 0], sizes = [18, 128], strides = [1, 1]} : vector<40x128xf32> to vector<18x128xf32>
    %373 = tpu.concatenate %365, %371 in 0 : vector<18x32xf32>, vector<18x32xf32> -> vector<36x32xf32>
    %374 = tpu.concatenate %366, %372 in 0 : vector<18x128xf32>, vector<18x128xf32> -> vector<36x128xf32>
    %375 = arith.truncf %373 : vector<36x32xf32> to vector<36x32xbf16>
    %c0_144 = arith.constant 0 : index
    %c0_145 = arith.constant 0 : index
    %376 = vector.load %arg16[%c0_144, %c0_145] : memref<32x128xbf16, #tpu.memory_space<vmem>>, vector<32x128xbf16>
    %cst_146 = arith.constant dense<0.000000e+00> : vector<36x128xf32>
    %377 = tpu.matmul %375, %376, %cst_146 {dimension_numbers = #tpu.dot_dimension_numbers<[1], [0], [0], [1], [0, 0, 1, 1], [], []>} : vector<36x32xbf16>, vector<32x128xbf16>, vector<36x128xf32> -> vector<36x128xf32>
    %cst_147 = arith.constant 6.600000e-01 : f32
    %378 = vector.broadcast %cst_147 : f32 to vector<36x128xf32>
    %379 = arith.mulf %378, %374 : vector<36x128xf32>
    %380 = arith.addf %377, %379 : vector<36x128xf32>
    %cst_148 = arith.constant dense<0.000000e+00> : vector<128xf32>
    %381 = vector.multi_reduction <add>, %380, %cst_148 [0] : vector<36x128xf32> to vector<128xf32>
    %382 = vector.shape_cast %381 : vector<128xf32> to vector<1x128xf32>
    %383 = arith.mulf %380, %380 : vector<36x128xf32>
    %cst_149 = arith.constant dense<0.000000e+00> : vector<128xf32>
    %384 = vector.multi_reduction <add>, %383, %cst_149 [0] : vector<36x128xf32> to vector<128xf32>
    %385 = vector.shape_cast %384 : vector<128xf32> to vector<1x128xf32>
    %cst_150 = arith.constant 0.027777778 : f32
    %386 = vector.broadcast %cst_150 : f32 to vector<1x128xf32>
    %387 = arith.mulf %382, %386 : vector<1x128xf32>
    %cst_151 = arith.constant 0.027777778 : f32
    %388 = vector.broadcast %cst_151 : f32 to vector<1x128xf32>
    %389 = arith.mulf %385, %388 : vector<1x128xf32>
    %390 = arith.mulf %387, %387 : vector<1x128xf32>
    %391 = arith.subf %389, %390 : vector<1x128xf32>
    %cst_152 = arith.constant 0.000000e+00 : f32
    %392 = vector.broadcast %cst_152 : f32 to vector<1x128xf32>
    %393 = arith.maximumf %391, %392 : vector<1x128xf32>
    %cst_153 = arith.constant 9.99999974E-6 : f32
    %394 = vector.broadcast %cst_153 : f32 to vector<1x128xf32>
    %395 = arith.addf %393, %394 : vector<1x128xf32>
    %396 = math.rsqrt %395 : vector<1x128xf32>
    %397 = vector.broadcast %387 : vector<1x128xf32> to vector<36x128xf32>
    %398 = arith.subf %380, %397 : vector<36x128xf32>
    %399 = vector.broadcast %396 : vector<1x128xf32> to vector<36x128xf32>
    %400 = arith.mulf %398, %399 : vector<36x128xf32>
    %cst_154 = arith.constant 0.000000e+00 : f32
    %401 = vector.broadcast %cst_154 : f32 to vector<36x128xf32>
    %402 = arith.maximumf %400, %401 : vector<36x128xf32>
    %403 = arith.truncf %402 : vector<36x128xf32> to vector<36x128xbf16>
    %c0_155 = arith.constant 0 : index
    %c0_156 = arith.constant 0 : index
    %404 = vector.load %arg17[%c0_155, %c0_156] : memref<384x32xbf16, #tpu.memory_space<vmem>>, vector<128x32xbf16>
    %cst_157 = arith.constant dense<0.000000e+00> : vector<36x32xf32>
    %405 = tpu.matmul %403, %404, %cst_157 {dimension_numbers = #tpu.dot_dimension_numbers<[1], [0], [0], [1], [0, 0, 1, 1], [], []>} : vector<36x128xbf16>, vector<128x32xbf16>, vector<36x32xf32> -> vector<36x32xf32>
    %c128_158 = arith.constant 128 : index
    %c0_159 = arith.constant 0 : index
    %406 = vector.load %arg17[%c128_158, %c0_159] : memref<384x32xbf16, #tpu.memory_space<vmem>>, vector<128x32xbf16>
    %cst_160 = arith.constant dense<0.000000e+00> : vector<36x32xf32>
    %407 = tpu.matmul %403, %406, %cst_160 {dimension_numbers = #tpu.dot_dimension_numbers<[1], [0], [0], [1], [0, 0, 1, 1], [], []>} : vector<36x128xbf16>, vector<128x32xbf16>, vector<36x32xf32> -> vector<36x32xf32>
    %c256_161 = arith.constant 256 : index
    %c0_162 = arith.constant 0 : index
    %408 = vector.load %arg17[%c256_161, %c0_162] : memref<384x32xbf16, #tpu.memory_space<vmem>>, vector<128x32xbf16>
    %cst_163 = arith.constant dense<0.000000e+00> : vector<36x32xf32>
    %409 = tpu.matmul %403, %408, %cst_163 {dimension_numbers = #tpu.dot_dimension_numbers<[1], [0], [0], [1], [0, 0, 1, 1], [], []>} : vector<36x128xbf16>, vector<128x32xbf16>, vector<36x32xf32> -> vector<36x32xf32>
    %410 = vector.extract_strided_slice %405 {offsets = [0, 0], sizes = [16, 32], strides = [1, 1]} : vector<36x32xf32> to vector<16x32xf32>
    %411 = vector.extract_strided_slice %407 {offsets = [1, 0], sizes = [16, 32], strides = [1, 1]} : vector<36x32xf32> to vector<16x32xf32>
    %412 = arith.addf %410, %411 : vector<16x32xf32>
    %413 = vector.extract_strided_slice %409 {offsets = [2, 0], sizes = [16, 32], strides = [1, 1]} : vector<36x32xf32> to vector<16x32xf32>
    %414 = arith.addf %412, %413 : vector<16x32xf32>
    %415 = vector.extract_strided_slice %402 {offsets = [1, 0], sizes = [16, 128], strides = [1, 1]} : vector<36x128xf32> to vector<16x128xf32>
    %416 = vector.extract_strided_slice %405 {offsets = [18, 0], sizes = [16, 32], strides = [1, 1]} : vector<36x32xf32> to vector<16x32xf32>
    %417 = vector.extract_strided_slice %407 {offsets = [19, 0], sizes = [16, 32], strides = [1, 1]} : vector<36x32xf32> to vector<16x32xf32>
    %418 = arith.addf %416, %417 : vector<16x32xf32>
    %419 = vector.extract_strided_slice %409 {offsets = [20, 0], sizes = [16, 32], strides = [1, 1]} : vector<36x32xf32> to vector<16x32xf32>
    %420 = arith.addf %418, %419 : vector<16x32xf32>
    %421 = vector.extract_strided_slice %402 {offsets = [19, 0], sizes = [16, 128], strides = [1, 1]} : vector<36x128xf32> to vector<16x128xf32>
    %422 = tpu.concatenate %414, %420 in 0 : vector<16x32xf32>, vector<16x32xf32> -> vector<32x32xf32>
    %423 = tpu.concatenate %415, %421 in 0 : vector<16x128xf32>, vector<16x128xf32> -> vector<32x128xf32>
    %424 = arith.truncf %422 : vector<32x32xf32> to vector<32x32xbf16>
    %c0_164 = arith.constant 0 : index
    %c0_165 = arith.constant 0 : index
    %425 = vector.load %arg18[%c0_164, %c0_165] : memref<32x128xbf16, #tpu.memory_space<vmem>>, vector<32x128xbf16>
    %cst_166 = arith.constant dense<0.000000e+00> : vector<32x128xf32>
    %426 = tpu.matmul %424, %425, %cst_166 {dimension_numbers = #tpu.dot_dimension_numbers<[1], [0], [0], [1], [0, 0, 1, 1], [], []>} : vector<32x32xbf16>, vector<32x128xbf16>, vector<32x128xf32> -> vector<32x128xf32>
    %cst_167 = arith.constant 6.600000e-01 : f32
    %427 = vector.broadcast %cst_167 : f32 to vector<32x128xf32>
    %428 = arith.mulf %427, %423 : vector<32x128xf32>
    %429 = arith.addf %426, %428 : vector<32x128xf32>
    %cst_168 = arith.constant dense<0.000000e+00> : vector<128xf32>
    %430 = vector.multi_reduction <add>, %429, %cst_168 [0] : vector<32x128xf32> to vector<128xf32>
    %431 = vector.shape_cast %430 : vector<128xf32> to vector<1x128xf32>
    %432 = arith.mulf %429, %429 : vector<32x128xf32>
    %cst_169 = arith.constant dense<0.000000e+00> : vector<128xf32>
    %433 = vector.multi_reduction <add>, %432, %cst_169 [0] : vector<32x128xf32> to vector<128xf32>
    %434 = vector.shape_cast %433 : vector<128xf32> to vector<1x128xf32>
    %cst_170 = arith.constant 3.125000e-02 : f32
    %435 = vector.broadcast %cst_170 : f32 to vector<1x128xf32>
    %436 = arith.mulf %431, %435 : vector<1x128xf32>
    %cst_171 = arith.constant 3.125000e-02 : f32
    %437 = vector.broadcast %cst_171 : f32 to vector<1x128xf32>
    %438 = arith.mulf %434, %437 : vector<1x128xf32>
    %439 = arith.mulf %436, %436 : vector<1x128xf32>
    %440 = arith.subf %438, %439 : vector<1x128xf32>
    %cst_172 = arith.constant 0.000000e+00 : f32
    %441 = vector.broadcast %cst_172 : f32 to vector<1x128xf32>
    %442 = arith.maximumf %440, %441 : vector<1x128xf32>
    %cst_173 = arith.constant 9.99999974E-6 : f32
    %443 = vector.broadcast %cst_173 : f32 to vector<1x128xf32>
    %444 = arith.addf %442, %443 : vector<1x128xf32>
    %445 = math.rsqrt %444 : vector<1x128xf32>
    %446 = vector.broadcast %436 : vector<1x128xf32> to vector<32x128xf32>
    %447 = arith.subf %429, %446 : vector<32x128xf32>
    %448 = vector.broadcast %445 : vector<1x128xf32> to vector<32x128xf32>
    %449 = arith.mulf %447, %448 : vector<32x128xf32>
    %cst_174 = arith.constant 0.000000e+00 : f32
    %450 = vector.broadcast %cst_174 : f32 to vector<32x128xf32>
    %451 = arith.maximumf %449, %450 : vector<32x128xf32>
    %452 = arith.truncf %451 : vector<32x128xf32> to vector<32x128xbf16>
    %c0_175 = arith.constant 0 : index
    %c0_176 = arith.constant 0 : index
    %453 = vector.load %arg19[%c0_175, %c0_176] : memref<384x32xbf16, #tpu.memory_space<vmem>>, vector<128x32xbf16>
    %cst_177 = arith.constant dense<0.000000e+00> : vector<32x32xf32>
    %454 = tpu.matmul %452, %453, %cst_177 {dimension_numbers = #tpu.dot_dimension_numbers<[1], [0], [0], [1], [0, 0, 1, 1], [], []>} : vector<32x128xbf16>, vector<128x32xbf16>, vector<32x32xf32> -> vector<32x32xf32>
    %c128_178 = arith.constant 128 : index
    %c0_179 = arith.constant 0 : index
    %455 = vector.load %arg19[%c128_178, %c0_179] : memref<384x32xbf16, #tpu.memory_space<vmem>>, vector<128x32xbf16>
    %cst_180 = arith.constant dense<0.000000e+00> : vector<32x32xf32>
    %456 = tpu.matmul %452, %455, %cst_180 {dimension_numbers = #tpu.dot_dimension_numbers<[1], [0], [0], [1], [0, 0, 1, 1], [], []>} : vector<32x128xbf16>, vector<128x32xbf16>, vector<32x32xf32> -> vector<32x32xf32>
    %c256_181 = arith.constant 256 : index
    %c0_182 = arith.constant 0 : index
    %457 = vector.load %arg19[%c256_181, %c0_182] : memref<384x32xbf16, #tpu.memory_space<vmem>>, vector<128x32xbf16>
    %cst_183 = arith.constant dense<0.000000e+00> : vector<32x32xf32>
    %458 = tpu.matmul %452, %457, %cst_183 {dimension_numbers = #tpu.dot_dimension_numbers<[1], [0], [0], [1], [0, 0, 1, 1], [], []>} : vector<32x128xbf16>, vector<128x32xbf16>, vector<32x32xf32> -> vector<32x32xf32>
    %459 = vector.extract_strided_slice %454 {offsets = [0, 0], sizes = [14, 32], strides = [1, 1]} : vector<32x32xf32> to vector<14x32xf32>
    %460 = vector.extract_strided_slice %456 {offsets = [1, 0], sizes = [14, 32], strides = [1, 1]} : vector<32x32xf32> to vector<14x32xf32>
    %461 = arith.addf %459, %460 : vector<14x32xf32>
    %462 = vector.extract_strided_slice %458 {offsets = [2, 0], sizes = [14, 32], strides = [1, 1]} : vector<32x32xf32> to vector<14x32xf32>
    %463 = arith.addf %461, %462 : vector<14x32xf32>
    %464 = vector.extract_strided_slice %451 {offsets = [1, 0], sizes = [14, 128], strides = [1, 1]} : vector<32x128xf32> to vector<14x128xf32>
    %465 = vector.extract_strided_slice %454 {offsets = [16, 0], sizes = [14, 32], strides = [1, 1]} : vector<32x32xf32> to vector<14x32xf32>
    %466 = vector.extract_strided_slice %456 {offsets = [17, 0], sizes = [14, 32], strides = [1, 1]} : vector<32x32xf32> to vector<14x32xf32>
    %467 = arith.addf %465, %466 : vector<14x32xf32>
    %468 = vector.extract_strided_slice %458 {offsets = [18, 0], sizes = [14, 32], strides = [1, 1]} : vector<32x32xf32> to vector<14x32xf32>
    %469 = arith.addf %467, %468 : vector<14x32xf32>
    %470 = vector.extract_strided_slice %451 {offsets = [17, 0], sizes = [14, 128], strides = [1, 1]} : vector<32x128xf32> to vector<14x128xf32>
    %471 = tpu.concatenate %463, %469 in 0 : vector<14x32xf32>, vector<14x32xf32> -> vector<28x32xf32>
    %472 = tpu.concatenate %464, %470 in 0 : vector<14x128xf32>, vector<14x128xf32> -> vector<28x128xf32>
    %473 = arith.truncf %471 : vector<28x32xf32> to vector<28x32xbf16>
    %c0_184 = arith.constant 0 : index
    %c0_185 = arith.constant 0 : index
    %474 = vector.load %arg20[%c0_184, %c0_185] : memref<32x128xbf16, #tpu.memory_space<vmem>>, vector<32x128xbf16>
    %cst_186 = arith.constant dense<0.000000e+00> : vector<28x128xf32>
    %475 = tpu.matmul %473, %474, %cst_186 {dimension_numbers = #tpu.dot_dimension_numbers<[1], [0], [0], [1], [0, 0, 1, 1], [], []>} : vector<28x32xbf16>, vector<32x128xbf16>, vector<28x128xf32> -> vector<28x128xf32>
    %cst_187 = arith.constant 6.600000e-01 : f32
    %476 = vector.broadcast %cst_187 : f32 to vector<28x128xf32>
    %477 = arith.mulf %476, %472 : vector<28x128xf32>
    %478 = arith.addf %475, %477 : vector<28x128xf32>
    %cst_188 = arith.constant dense<0.000000e+00> : vector<128xf32>
    %479 = vector.multi_reduction <add>, %478, %cst_188 [0] : vector<28x128xf32> to vector<128xf32>
    %480 = vector.shape_cast %479 : vector<128xf32> to vector<1x128xf32>
    %481 = arith.mulf %478, %478 : vector<28x128xf32>
    %cst_189 = arith.constant dense<0.000000e+00> : vector<128xf32>
    %482 = vector.multi_reduction <add>, %481, %cst_189 [0] : vector<28x128xf32> to vector<128xf32>
    %483 = vector.shape_cast %482 : vector<128xf32> to vector<1x128xf32>
    %cst_190 = arith.constant 0.0357142873 : f32
    %484 = vector.broadcast %cst_190 : f32 to vector<1x128xf32>
    %485 = arith.mulf %480, %484 : vector<1x128xf32>
    %cst_191 = arith.constant 0.0357142873 : f32
    %486 = vector.broadcast %cst_191 : f32 to vector<1x128xf32>
    %487 = arith.mulf %483, %486 : vector<1x128xf32>
    %488 = arith.mulf %485, %485 : vector<1x128xf32>
    %489 = arith.subf %487, %488 : vector<1x128xf32>
    %cst_192 = arith.constant 0.000000e+00 : f32
    %490 = vector.broadcast %cst_192 : f32 to vector<1x128xf32>
    %491 = arith.maximumf %489, %490 : vector<1x128xf32>
    %cst_193 = arith.constant 9.99999974E-6 : f32
    %492 = vector.broadcast %cst_193 : f32 to vector<1x128xf32>
    %493 = arith.addf %491, %492 : vector<1x128xf32>
    %494 = math.rsqrt %493 : vector<1x128xf32>
    %495 = vector.broadcast %485 : vector<1x128xf32> to vector<28x128xf32>
    %496 = arith.subf %478, %495 : vector<28x128xf32>
    %497 = vector.broadcast %494 : vector<1x128xf32> to vector<28x128xf32>
    %498 = arith.mulf %496, %497 : vector<28x128xf32>
    %cst_194 = arith.constant 0.000000e+00 : f32
    %499 = vector.broadcast %cst_194 : f32 to vector<28x128xf32>
    %500 = arith.maximumf %498, %499 : vector<28x128xf32>
    %501 = arith.truncf %500 : vector<28x128xf32> to vector<28x128xbf16>
    %c0_195 = arith.constant 0 : index
    %c0_196 = arith.constant 0 : index
    %502 = vector.load %arg21[%c0_195, %c0_196] : memref<384x32xbf16, #tpu.memory_space<vmem>>, vector<128x32xbf16>
    %cst_197 = arith.constant dense<0.000000e+00> : vector<28x32xf32>
    %503 = tpu.matmul %501, %502, %cst_197 {dimension_numbers = #tpu.dot_dimension_numbers<[1], [0], [0], [1], [0, 0, 1, 1], [], []>} : vector<28x128xbf16>, vector<128x32xbf16>, vector<28x32xf32> -> vector<28x32xf32>
    %c128_198 = arith.constant 128 : index
    %c0_199 = arith.constant 0 : index
    %504 = vector.load %arg21[%c128_198, %c0_199] : memref<384x32xbf16, #tpu.memory_space<vmem>>, vector<128x32xbf16>
    %cst_200 = arith.constant dense<0.000000e+00> : vector<28x32xf32>
    %505 = tpu.matmul %501, %504, %cst_200 {dimension_numbers = #tpu.dot_dimension_numbers<[1], [0], [0], [1], [0, 0, 1, 1], [], []>} : vector<28x128xbf16>, vector<128x32xbf16>, vector<28x32xf32> -> vector<28x32xf32>
    %c256_201 = arith.constant 256 : index
    %c0_202 = arith.constant 0 : index
    %506 = vector.load %arg21[%c256_201, %c0_202] : memref<384x32xbf16, #tpu.memory_space<vmem>>, vector<128x32xbf16>
    %cst_203 = arith.constant dense<0.000000e+00> : vector<28x32xf32>
    %507 = tpu.matmul %501, %506, %cst_203 {dimension_numbers = #tpu.dot_dimension_numbers<[1], [0], [0], [1], [0, 0, 1, 1], [], []>} : vector<28x128xbf16>, vector<128x32xbf16>, vector<28x32xf32> -> vector<28x32xf32>
    %508 = vector.extract_strided_slice %503 {offsets = [0, 0], sizes = [12, 32], strides = [1, 1]} : vector<28x32xf32> to vector<12x32xf32>
    %509 = vector.extract_strided_slice %505 {offsets = [1, 0], sizes = [12, 32], strides = [1, 1]} : vector<28x32xf32> to vector<12x32xf32>
    %510 = arith.addf %508, %509 : vector<12x32xf32>
    %511 = vector.extract_strided_slice %507 {offsets = [2, 0], sizes = [12, 32], strides = [1, 1]} : vector<28x32xf32> to vector<12x32xf32>
    %512 = arith.addf %510, %511 : vector<12x32xf32>
    %513 = vector.extract_strided_slice %500 {offsets = [1, 0], sizes = [12, 128], strides = [1, 1]} : vector<28x128xf32> to vector<12x128xf32>
    %514 = vector.extract_strided_slice %503 {offsets = [14, 0], sizes = [12, 32], strides = [1, 1]} : vector<28x32xf32> to vector<12x32xf32>
    %515 = vector.extract_strided_slice %505 {offsets = [15, 0], sizes = [12, 32], strides = [1, 1]} : vector<28x32xf32> to vector<12x32xf32>
    %516 = arith.addf %514, %515 : vector<12x32xf32>
    %517 = vector.extract_strided_slice %507 {offsets = [16, 0], sizes = [12, 32], strides = [1, 1]} : vector<28x32xf32> to vector<12x32xf32>
    %518 = arith.addf %516, %517 : vector<12x32xf32>
    %519 = vector.extract_strided_slice %500 {offsets = [15, 0], sizes = [12, 128], strides = [1, 1]} : vector<28x128xf32> to vector<12x128xf32>
    %520 = tpu.concatenate %512, %518 in 0 : vector<12x32xf32>, vector<12x32xf32> -> vector<24x32xf32>
    %521 = tpu.concatenate %513, %519 in 0 : vector<12x128xf32>, vector<12x128xf32> -> vector<24x128xf32>
    %522 = arith.truncf %520 : vector<24x32xf32> to vector<24x32xbf16>
    %c0_204 = arith.constant 0 : index
    %c0_205 = arith.constant 0 : index
    %523 = vector.load %arg22[%c0_204, %c0_205] : memref<32x128xbf16, #tpu.memory_space<vmem>>, vector<32x128xbf16>
    %cst_206 = arith.constant dense<0.000000e+00> : vector<24x128xf32>
    %524 = tpu.matmul %522, %523, %cst_206 {dimension_numbers = #tpu.dot_dimension_numbers<[1], [0], [0], [1], [0, 0, 1, 1], [], []>} : vector<24x32xbf16>, vector<32x128xbf16>, vector<24x128xf32> -> vector<24x128xf32>
    %cst_207 = arith.constant 6.600000e-01 : f32
    %525 = vector.broadcast %cst_207 : f32 to vector<24x128xf32>
    %526 = arith.mulf %525, %521 : vector<24x128xf32>
    %527 = arith.addf %524, %526 : vector<24x128xf32>
    %cst_208 = arith.constant dense<0.000000e+00> : vector<128xf32>
    %528 = vector.multi_reduction <add>, %527, %cst_208 [0] : vector<24x128xf32> to vector<128xf32>
    %529 = vector.shape_cast %528 : vector<128xf32> to vector<1x128xf32>
    %530 = arith.mulf %527, %527 : vector<24x128xf32>
    %cst_209 = arith.constant dense<0.000000e+00> : vector<128xf32>
    %531 = vector.multi_reduction <add>, %530, %cst_209 [0] : vector<24x128xf32> to vector<128xf32>
    %532 = vector.shape_cast %531 : vector<128xf32> to vector<1x128xf32>
    %cst_210 = arith.constant 0.0416666679 : f32
    %533 = vector.broadcast %cst_210 : f32 to vector<1x128xf32>
    %534 = arith.mulf %529, %533 : vector<1x128xf32>
    %cst_211 = arith.constant 0.0416666679 : f32
    %535 = vector.broadcast %cst_211 : f32 to vector<1x128xf32>
    %536 = arith.mulf %532, %535 : vector<1x128xf32>
    %537 = arith.mulf %534, %534 : vector<1x128xf32>
    %538 = arith.subf %536, %537 : vector<1x128xf32>
    %cst_212 = arith.constant 0.000000e+00 : f32
    %539 = vector.broadcast %cst_212 : f32 to vector<1x128xf32>
    %540 = arith.maximumf %538, %539 : vector<1x128xf32>
    %cst_213 = arith.constant 9.99999974E-6 : f32
    %541 = vector.broadcast %cst_213 : f32 to vector<1x128xf32>
    %542 = arith.addf %540, %541 : vector<1x128xf32>
    %543 = math.rsqrt %542 : vector<1x128xf32>
    %544 = vector.broadcast %534 : vector<1x128xf32> to vector<24x128xf32>
    %545 = arith.subf %527, %544 : vector<24x128xf32>
    %546 = vector.broadcast %543 : vector<1x128xf32> to vector<24x128xf32>
    %547 = arith.mulf %545, %546 : vector<24x128xf32>
    %cst_214 = arith.constant 0.000000e+00 : f32
    %548 = vector.broadcast %cst_214 : f32 to vector<24x128xf32>
    %549 = arith.maximumf %547, %548 : vector<24x128xf32>
    %550 = arith.truncf %549 : vector<24x128xf32> to vector<24x128xbf16>
    %c0_215 = arith.constant 0 : index
    %c0_216 = arith.constant 0 : index
    %551 = vector.load %arg23[%c0_215, %c0_216] : memref<384x32xbf16, #tpu.memory_space<vmem>>, vector<128x32xbf16>
    %cst_217 = arith.constant dense<0.000000e+00> : vector<24x32xf32>
    %552 = tpu.matmul %550, %551, %cst_217 {dimension_numbers = #tpu.dot_dimension_numbers<[1], [0], [0], [1], [0, 0, 1, 1], [], []>} : vector<24x128xbf16>, vector<128x32xbf16>, vector<24x32xf32> -> vector<24x32xf32>
    %c128_218 = arith.constant 128 : index
    %c0_219 = arith.constant 0 : index
    %553 = vector.load %arg23[%c128_218, %c0_219] : memref<384x32xbf16, #tpu.memory_space<vmem>>, vector<128x32xbf16>
    %cst_220 = arith.constant dense<0.000000e+00> : vector<24x32xf32>
    %554 = tpu.matmul %550, %553, %cst_220 {dimension_numbers = #tpu.dot_dimension_numbers<[1], [0], [0], [1], [0, 0, 1, 1], [], []>} : vector<24x128xbf16>, vector<128x32xbf16>, vector<24x32xf32> -> vector<24x32xf32>
    %c256_221 = arith.constant 256 : index
    %c0_222 = arith.constant 0 : index
    %555 = vector.load %arg23[%c256_221, %c0_222] : memref<384x32xbf16, #tpu.memory_space<vmem>>, vector<128x32xbf16>
    %cst_223 = arith.constant dense<0.000000e+00> : vector<24x32xf32>
    %556 = tpu.matmul %550, %555, %cst_223 {dimension_numbers = #tpu.dot_dimension_numbers<[1], [0], [0], [1], [0, 0, 1, 1], [], []>} : vector<24x128xbf16>, vector<128x32xbf16>, vector<24x32xf32> -> vector<24x32xf32>
    %557 = vector.extract_strided_slice %552 {offsets = [0, 0], sizes = [10, 32], strides = [1, 1]} : vector<24x32xf32> to vector<10x32xf32>
    %558 = vector.extract_strided_slice %554 {offsets = [1, 0], sizes = [10, 32], strides = [1, 1]} : vector<24x32xf32> to vector<10x32xf32>
    %559 = arith.addf %557, %558 : vector<10x32xf32>
    %560 = vector.extract_strided_slice %556 {offsets = [2, 0], sizes = [10, 32], strides = [1, 1]} : vector<24x32xf32> to vector<10x32xf32>
    %561 = arith.addf %559, %560 : vector<10x32xf32>
    %562 = vector.extract_strided_slice %549 {offsets = [1, 0], sizes = [10, 128], strides = [1, 1]} : vector<24x128xf32> to vector<10x128xf32>
    %563 = vector.extract_strided_slice %552 {offsets = [12, 0], sizes = [10, 32], strides = [1, 1]} : vector<24x32xf32> to vector<10x32xf32>
    %564 = vector.extract_strided_slice %554 {offsets = [13, 0], sizes = [10, 32], strides = [1, 1]} : vector<24x32xf32> to vector<10x32xf32>
    %565 = arith.addf %563, %564 : vector<10x32xf32>
    %566 = vector.extract_strided_slice %556 {offsets = [14, 0], sizes = [10, 32], strides = [1, 1]} : vector<24x32xf32> to vector<10x32xf32>
    %567 = arith.addf %565, %566 : vector<10x32xf32>
    %568 = vector.extract_strided_slice %549 {offsets = [13, 0], sizes = [10, 128], strides = [1, 1]} : vector<24x128xf32> to vector<10x128xf32>
    %569 = tpu.concatenate %561, %567 in 0 : vector<10x32xf32>, vector<10x32xf32> -> vector<20x32xf32>
    %570 = tpu.concatenate %562, %568 in 0 : vector<10x128xf32>, vector<10x128xf32> -> vector<20x128xf32>
    %571 = arith.truncf %569 : vector<20x32xf32> to vector<20x32xbf16>
    %c0_224 = arith.constant 0 : index
    %c0_225 = arith.constant 0 : index
    %572 = vector.load %arg24[%c0_224, %c0_225] : memref<32x128xbf16, #tpu.memory_space<vmem>>, vector<32x128xbf16>
    %cst_226 = arith.constant dense<0.000000e+00> : vector<20x128xf32>
    %573 = tpu.matmul %571, %572, %cst_226 {dimension_numbers = #tpu.dot_dimension_numbers<[1], [0], [0], [1], [0, 0, 1, 1], [], []>} : vector<20x32xbf16>, vector<32x128xbf16>, vector<20x128xf32> -> vector<20x128xf32>
    %cst_227 = arith.constant 6.600000e-01 : f32
    %574 = vector.broadcast %cst_227 : f32 to vector<20x128xf32>
    %575 = arith.mulf %574, %570 : vector<20x128xf32>
    %576 = arith.addf %573, %575 : vector<20x128xf32>
    %cst_228 = arith.constant dense<0.000000e+00> : vector<128xf32>
    %577 = vector.multi_reduction <add>, %576, %cst_228 [0] : vector<20x128xf32> to vector<128xf32>
    %578 = vector.shape_cast %577 : vector<128xf32> to vector<1x128xf32>
    %579 = arith.mulf %576, %576 : vector<20x128xf32>
    %cst_229 = arith.constant dense<0.000000e+00> : vector<128xf32>
    %580 = vector.multi_reduction <add>, %579, %cst_229 [0] : vector<20x128xf32> to vector<128xf32>
    %581 = vector.shape_cast %580 : vector<128xf32> to vector<1x128xf32>
    %cst_230 = arith.constant 5.000000e-02 : f32
    %582 = vector.broadcast %cst_230 : f32 to vector<1x128xf32>
    %583 = arith.mulf %578, %582 : vector<1x128xf32>
    %cst_231 = arith.constant 5.000000e-02 : f32
    %584 = vector.broadcast %cst_231 : f32 to vector<1x128xf32>
    %585 = arith.mulf %581, %584 : vector<1x128xf32>
    %586 = arith.mulf %583, %583 : vector<1x128xf32>
    %587 = arith.subf %585, %586 : vector<1x128xf32>
    %cst_232 = arith.constant 0.000000e+00 : f32
    %588 = vector.broadcast %cst_232 : f32 to vector<1x128xf32>
    %589 = arith.maximumf %587, %588 : vector<1x128xf32>
    %cst_233 = arith.constant 9.99999974E-6 : f32
    %590 = vector.broadcast %cst_233 : f32 to vector<1x128xf32>
    %591 = arith.addf %589, %590 : vector<1x128xf32>
    %592 = math.rsqrt %591 : vector<1x128xf32>
    %593 = vector.broadcast %583 : vector<1x128xf32> to vector<20x128xf32>
    %594 = arith.subf %576, %593 : vector<20x128xf32>
    %595 = vector.broadcast %592 : vector<1x128xf32> to vector<20x128xf32>
    %596 = arith.mulf %594, %595 : vector<20x128xf32>
    %cst_234 = arith.constant 0.000000e+00 : f32
    %597 = vector.broadcast %cst_234 : f32 to vector<20x128xf32>
    %598 = arith.maximumf %596, %597 : vector<20x128xf32>
    %599 = arith.truncf %598 : vector<20x128xf32> to vector<20x128xbf16>
    %c0_235 = arith.constant 0 : index
    %c0_236 = arith.constant 0 : index
    %600 = vector.load %arg25[%c0_235, %c0_236] : memref<128x128xbf16, #tpu.memory_space<vmem>>, vector<128x128xbf16>
    %cst_237 = arith.constant dense<0.000000e+00> : vector<20x128xf32>
    %601 = tpu.matmul %599, %600, %cst_237 {dimension_numbers = #tpu.dot_dimension_numbers<[1], [0], [0], [1], [0, 0, 1, 1], [], []>} : vector<20x128xbf16>, vector<128x128xbf16>, vector<20x128xf32> -> vector<20x128xf32>
    %602 = arith.truncf %601 : vector<20x128xf32> to vector<20x128xbf16>
    %c0_238 = arith.constant 0 : index
    %c0_239 = arith.constant 0 : index
    %603 = vector.load %arg26[%c0_238, %c0_239] : memref<128x256xbf16, #tpu.memory_space<vmem>>, vector<128x256xbf16>
    %cst_240 = arith.constant dense<0.000000e+00> : vector<20x256xf32>
    %604 = tpu.matmul %602, %603, %cst_240 {dimension_numbers = #tpu.dot_dimension_numbers<[1], [0], [0], [1], [0, 0, 1, 1], [], []>} : vector<20x128xbf16>, vector<128x256xbf16>, vector<20x256xf32> -> vector<20x256xf32>
    %605 = tpu.concatenate %598, %598 in 1 : vector<20x128xf32>, vector<20x128xf32> -> vector<20x256xf32>
    %cst_241 = arith.constant 6.600000e-01 : f32
    %606 = vector.broadcast %cst_241 : f32 to vector<20x256xf32>
    %607 = arith.mulf %606, %605 : vector<20x256xf32>
    %608 = arith.addf %604, %607 : vector<20x256xf32>
    %cst_242 = arith.constant dense<0.000000e+00> : vector<256xf32>
    %609 = vector.multi_reduction <add>, %608, %cst_242 [0] : vector<20x256xf32> to vector<256xf32>
    %610 = vector.shape_cast %609 : vector<256xf32> to vector<1x256xf32>
    %611 = arith.mulf %608, %608 : vector<20x256xf32>
    %cst_243 = arith.constant dense<0.000000e+00> : vector<256xf32>
    %612 = vector.multi_reduction <add>, %611, %cst_243 [0] : vector<20x256xf32> to vector<256xf32>
    %613 = vector.shape_cast %612 : vector<256xf32> to vector<1x256xf32>
    %cst_244 = arith.constant 5.000000e-02 : f32
    %614 = vector.broadcast %cst_244 : f32 to vector<1x256xf32>
    %615 = arith.mulf %610, %614 : vector<1x256xf32>
    %cst_245 = arith.constant 5.000000e-02 : f32
    %616 = vector.broadcast %cst_245 : f32 to vector<1x256xf32>
    %617 = arith.mulf %613, %616 : vector<1x256xf32>
    %618 = arith.mulf %615, %615 : vector<1x256xf32>
    %619 = arith.subf %617, %618 : vector<1x256xf32>
    %cst_246 = arith.constant 0.000000e+00 : f32
    %620 = vector.broadcast %cst_246 : f32 to vector<1x256xf32>
    %621 = arith.maximumf %619, %620 : vector<1x256xf32>
    %cst_247 = arith.constant 9.99999974E-6 : f32
    %622 = vector.broadcast %cst_247 : f32 to vector<1x256xf32>
    %623 = arith.addf %621, %622 : vector<1x256xf32>
    %624 = math.rsqrt %623 : vector<1x256xf32>
    %625 = vector.broadcast %615 : vector<1x256xf32> to vector<20x256xf32>
    %626 = arith.subf %608, %625 : vector<20x256xf32>
    %627 = vector.broadcast %624 : vector<1x256xf32> to vector<20x256xf32>
    %628 = arith.mulf %626, %627 : vector<20x256xf32>
    %cst_248 = arith.constant 0.000000e+00 : f32
    %629 = vector.broadcast %cst_248 : f32 to vector<20x256xf32>
    %630 = arith.maximumf %628, %629 : vector<20x256xf32>
    %631 = vector.extract_strided_slice %630 {offsets = [0, 0], sizes = [20, 128], strides = [1, 1]} : vector<20x256xf32> to vector<20x128xf32>
    %632 = vector.extract_strided_slice %630 {offsets = [0, 128], sizes = [20, 128], strides = [1, 1]} : vector<20x256xf32> to vector<20x128xf32>
    %633 = arith.truncf %631 : vector<20x128xf32> to vector<20x128xbf16>
    %c0_249 = arith.constant 0 : index
    %c0_250 = arith.constant 0 : index
    %634 = vector.load %arg27[%c0_249, %c0_250] : memref<128x32xbf16, #tpu.memory_space<vmem>>, vector<128x32xbf16>
    %cst_251 = arith.constant dense<0.000000e+00> : vector<20x32xf32>
    %635 = tpu.matmul %633, %634, %cst_251 {dimension_numbers = #tpu.dot_dimension_numbers<[1], [0], [0], [1], [0, 0, 1, 1], [], []>} : vector<20x128xbf16>, vector<128x32xbf16>, vector<20x32xf32> -> vector<20x32xf32>
    %c0_252 = arith.constant 0 : index
    %c0_253 = arith.constant 0 : index
    %636 = vector.load %arg28[%c0_252, %c0_253] : memref<1x32xf32, #tpu.memory_space<vmem>>, vector<1x32xf32>
    %637 = vector.broadcast %636 : vector<1x32xf32> to vector<20x32xf32>
    %638 = arith.addf %635, %637 : vector<20x32xf32>
    %c0_254 = arith.constant 0 : index
    %c0_255 = arith.constant 0 : index
    %639 = vector.load %arg31[%c0_254, %c0_255] : memref<20x32xf32, #tpu.memory_space<vmem>>, vector<20x32xf32>
    tpu.vector_store %arg31[%c0_254, %c0_255], %638 {strides = array<i32>} : memref<20x32xf32, #tpu.memory_space<vmem>>, vector<20x32xf32>,
    %640 = arith.truncf %632 : vector<20x128xf32> to vector<20x128xbf16>
    %c0_256 = arith.constant 0 : index
    %c0_257 = arith.constant 0 : index
    %641 = vector.load %arg29[%c0_256, %c0_257] : memref<128x32xbf16, #tpu.memory_space<vmem>>, vector<128x32xbf16>
    %cst_258 = arith.constant dense<0.000000e+00> : vector<20x32xf32>
    %642 = tpu.matmul %640, %641, %cst_258 {dimension_numbers = #tpu.dot_dimension_numbers<[1], [0], [0], [1], [0, 0, 1, 1], [], []>} : vector<20x128xbf16>, vector<128x32xbf16>, vector<20x32xf32> -> vector<20x32xf32>
    %c0_259 = arith.constant 0 : index
    %c0_260 = arith.constant 0 : index
    %643 = vector.load %arg30[%c0_259, %c0_260] : memref<1x32xf32, #tpu.memory_space<vmem>>, vector<1x32xf32>
    %644 = vector.broadcast %643 : vector<1x32xf32> to vector<20x32xf32>
    %645 = arith.addf %642, %644 : vector<20x32xf32>
    %cst_261 = arith.constant dense<0xFF800000> : vector<20xf32>
    %646 = vector.multi_reduction <maximumf>, %645, %cst_261 [1] : vector<20x32xf32> to vector<20xf32>
    %647 = vector.shape_cast %646 : vector<20xf32> to vector<20x1xf32>
    %648 = vector.broadcast %647 : vector<20x1xf32> to vector<20x32xf32>
    %649 = arith.subf %645, %648 : vector<20x32xf32>
    %650 = math.exp %649 : vector<20x32xf32>
    %cst_262 = arith.constant dense<0.000000e+00> : vector<20xf32>
    %651 = vector.multi_reduction <add>, %650, %cst_262 [1] : vector<20x32xf32> to vector<20xf32>
    %652 = vector.shape_cast %651 : vector<20xf32> to vector<20x1xf32>
    %653 = math.log %652 : vector<20x1xf32>
    %654 = vector.broadcast %653 : vector<20x1xf32> to vector<20x32xf32>
    %655 = arith.subf %649, %654 : vector<20x32xf32>
    %c0_263 = arith.constant 0 : index
    %c0_264 = arith.constant 0 : index
    %656 = vector.load %arg32[%c0_263, %c0_264] : memref<20x32xf32, #tpu.memory_space<vmem>>, vector<20x32xf32>
    tpu.vector_store %arg32[%c0_263, %c0_264], %655 {strides = array<i32>} : memref<20x32xf32, #tpu.memory_space<vmem>>, vector<20x32xf32>,
    return
  }
}

</mosaic_0001>

<llo_original>
// kernel: net_forward.1
$region0: #{net_forward.1}
  #allocation0 [shape = 'u32[]', space=smem, size = 0x4, offset = 0x4, fixed_abs, tag = 'smem constant byte address 0x4 - core index']
  #allocation1 [shape = 'u32[144,128]{1,0:T(1,128)}', space=vmem, size = 0x12000, scoped, tag = 'internal scratch']
  %s0 = inlined_call_operand.smem [shape: u32[33], index: -1, kind: input, shape index: {}]
  %s1 = sld [smem:[%s0]]
  %s2 = scalar_lea.smem %s0, 1
  %s3 = sld [smem:[%s2]]
  %s4 = scalar_lea.smem %s0, 2
  %s5 = sld [smem:[%s4]]
  %s6 = scalar_lea.smem %s0, 3
  %s7 = sld [smem:[%s6]]
  %s8 = scalar_lea.smem %s0, 4
  %s9 = sld [smem:[%s8]]
  %s10 = scalar_lea.smem %s0, 5
  %s11 = sld [smem:[%s10]]
  %s12 = scalar_lea.smem %s0, 6
  %s13 = sld [smem:[%s12]]
  %s14 = scalar_lea.smem %s0, 7
  %s15 = sld [smem:[%s14]]
  %s16 = scalar_lea.smem %s0, 8
  %s17 = sld [smem:[%s16]]
  %s18 = scalar_lea.smem %s0, 9
  %s19 = sld [smem:[%s18]]
  %s20 = scalar_lea.smem %s0, 10
  %s21 = sld [smem:[%s20]]
  %s22 = scalar_lea.smem %s0, 11
  %s23 = sld [smem:[%s22]]
  %s24 = scalar_lea.smem %s0, 12
  %s25 = sld [smem:[%s24]]
  %s26 = scalar_lea.smem %s0, 13
  %s27 = sld [smem:[%s26]]
  %s28 = scalar_lea.smem %s0, 14
  %s29 = sld [smem:[%s28]]
  %s30 = scalar_lea.smem %s0, 15
  %s31 = sld [smem:[%s30]]
  %s32 = scalar_lea.smem %s0, 16
  %s33 = sld [smem:[%s32]]
  %s34 = scalar_lea.smem %s0, 17
  %s35 = sld [smem:[%s34]]
  %s36 = scalar_lea.smem %s0, 18
  %s37 = sld [smem:[%s36]]
  %s38 = scalar_lea.smem %s0, 19
  %s39 = sld [smem:[%s38]]
  %s40 = scalar_lea.smem %s0, 20
  %s41 = sld [smem:[%s40]]
  %s42 = scalar_lea.smem %s0, 21
  %s43 = sld [smem:[%s42]]
  %s44 = scalar_lea.smem %s0, 22
  %s45 = sld [smem:[%s44]]
  %s46 = scalar_lea.smem %s0, 23
  %s47 = sld [smem:[%s46]]
  %s48 = scalar_lea.smem %s0, 24
  %s49 = sld [smem:[%s48]]
  %s50 = scalar_lea.smem %s0, 25
  %s51 = sld [smem:[%s50]]
  %s52 = scalar_lea.smem %s0, 26
  %s53 = sld [smem:[%s52]]
  %s54 = scalar_lea.smem %s0, 27
  %s55 = sld [smem:[%s54]]
  %s56 = scalar_lea.smem %s0, 28
  %s57 = sld [smem:[%s56]]
  %s58 = scalar_lea.smem %s0, 29
  %s59 = sld [smem:[%s58]]
  %s60 = scalar_lea.smem %s0, 30
  %s61 = sld [smem:[%s60]]
  %s62 = scalar_lea.smem %s0, 31
  %s63 = sld [smem:[%s62]]
  %s64 = scalar_lea.smem %s0, 32
  %s65 = sld [smem:[%s64]]
  %66 = xla_tuple %s63, %s65
  %s67 = sld [smem:[#allocation0]]
  $region142: #{net_forward.1} parent=0
    _
  %s69 = ssub.s32 1, %s67
  %s70 = scalar_select 0, %s69, %s67
  // Predicated region
  $region2: #{net_forward.1} parent=0 // pred_check
    _
  $region3: #{net_forward.1} parent=0 // pred_check_branch
    %72 = sbr.rel (0) target = $region5
  $region4: #{net_forward.1} parent=0 // pred_region
    _
  $region5: #{net_forward.1} parent=0 // pred_fallthru
    _
  // Predicated region
  $region6: #{net_forward.1} parent=0 // pred_check
    _
  $region7: #{net_forward.1} parent=0 // pred_check_branch
    %74 = sbr.rel (0) target = $region9
  $region8: #{net_forward.1} parent=0 // pred_region
    _
  $region9: #{net_forward.1} parent=0 // pred_fallthru
    _
  // Predicated region
  $region10: #{net_forward.1} parent=0 // pred_check
    _
  $region11: #{net_forward.1} parent=0 // pred_check_branch
    %76 = sbr.rel (0) target = $region13
  $region12: #{net_forward.1} parent=0 // pred_region
    _
  $region13: #{net_forward.1} parent=0 // pred_fallthru
    _
  // Predicated region
  $region14: #{net_forward.1} parent=0 // pred_check
    _
  $region15: #{net_forward.1} parent=0 // pred_check_branch
    %78 = sbr.rel (0) target = $region17
  $region16: #{net_forward.1} parent=0 // pred_region
    _
  $region17: #{net_forward.1} parent=0 // pred_fallthru
    _
  // Predicated region
  $region18: #{net_forward.1} parent=0 // pred_check
    _
  $region19: #{net_forward.1} parent=0 // pred_check_branch
    %80 = sbr.rel (0) target = $region21
  $region20: #{net_forward.1} parent=0 // pred_region
    _
  $region21: #{net_forward.1} parent=0 // pred_fallthru
    _
  // Predicated region
  $region22: #{net_forward.1} parent=0 // pred_check
    _
  $region23: #{net_forward.1} parent=0 // pred_check_branch
    %82 = sbr.rel (0) target = $region25
  $region24: #{net_forward.1} parent=0 // pred_region
    _
  $region25: #{net_forward.1} parent=0 // pred_fallthru
    _
  // Predicated region
  $region26: #{net_forward.1} parent=0 // pred_check
    _
  $region27: #{net_forward.1} parent=0 // pred_check_branch
    %84 = sbr.rel (0) target = $region29
  $region28: #{net_forward.1} parent=0 // pred_region
    _
  $region29: #{net_forward.1} parent=0 // pred_fallthru
    _
  // Predicated region
  $region30: #{net_forward.1} parent=0 // pred_check
    _
  $region31: #{net_forward.1} parent=0 // pred_check_branch
    %86 = sbr.rel (0) target = $region33
  $region32: #{net_forward.1} parent=0 // pred_region
    _
  $region33: #{net_forward.1} parent=0 // pred_fallthru
    _
  // Predicated region
  $region34: #{net_forward.1} parent=0 // pred_check
    _
  $region35: #{net_forward.1} parent=0 // pred_check_branch
    %88 = sbr.rel (0) target = $region37
  $region36: #{net_forward.1} parent=0 // pred_region
    _
  $region37: #{net_forward.1} parent=0 // pred_fallthru
    _
  // Predicated region
  $region38: #{net_forward.1} parent=0 // pred_check
    _
  $region39: #{net_forward.1} parent=0 // pred_check_branch
    %90 = sbr.rel (0) target = $region41
  $region40: #{net_forward.1} parent=0 // pred_region
    _
  $region41: #{net_forward.1} parent=0 // pred_fallthru
    _
  // Predicated region
  $region42: #{net_forward.1} parent=0 // pred_check
    _
  $region43: #{net_forward.1} parent=0 // pred_check_branch
    %92 = sbr.rel (0) target = $region45
  $region44: #{net_forward.1} parent=0 // pred_region
    _
  $region45: #{net_forward.1} parent=0 // pred_fallthru
    _
  // Predicated region
  $region46: #{net_forward.1} parent=0 // pred_check
    _
  $region47: #{net_forward.1} parent=0 // pred_check_branch
    %94 = sbr.rel (0) target = $region49
  $region48: #{net_forward.1} parent=0 // pred_region
    _
  $region49: #{net_forward.1} parent=0 // pred_fallthru
    _
  // Predicated region
  $region50: #{net_forward.1} parent=0 // pred_check
    _
  $region51: #{net_forward.1} parent=0 // pred_check_branch
    %96 = sbr.rel (0) target = $region53
  $region52: #{net_forward.1} parent=0 // pred_region
    _
  $region53: #{net_forward.1} parent=0 // pred_fallthru
    _
  // Predicated region
  $region54: #{net_forward.1} parent=0 // pred_check
    _
  $region55: #{net_forward.1} parent=0 // pred_check_branch
    %98 = sbr.rel (0) target = $region57
  $region56: #{net_forward.1} parent=0 // pred_region
    _
  $region57: #{net_forward.1} parent=0 // pred_fallthru
    _
  // Predicated region
  $region58: #{net_forward.1} parent=0 // pred_check
    _
  $region59: #{net_forward.1} parent=0 // pred_check_branch
    %100 = sbr.rel (0) target = $region61
  $region60: #{net_forward.1} parent=0 // pred_region
    _
  $region61: #{net_forward.1} parent=0 // pred_fallthru
    _
  // Predicated region
  $region62: #{net_forward.1} parent=0 // pred_check
    _
  $region63: #{net_forward.1} parent=0 // pred_check_branch
    %102 = sbr.rel (0) target = $region65
  $region64: #{net_forward.1} parent=0 // pred_region
    _
  $region65: #{net_forward.1} parent=0 // pred_fallthru
    _
  // Predicated region
  $region66: #{net_forward.1} parent=0 // pred_check
    _
  $region67: #{net_forward.1} parent=0 // pred_check_branch
    %104 = sbr.rel (0) target = $region69
  $region68: #{net_forward.1} parent=0 // pred_region
    _
  $region69: #{net_forward.1} parent=0 // pred_fallthru
    _
  // Predicated region
  $region70: #{net_forward.1} parent=0 // pred_check
    _
  $region71: #{net_forward.1} parent=0 // pred_check_branch
    %106 = sbr.rel (0) target = $region73
  $region72: #{net_forward.1} parent=0 // pred_region
    _
  $region73: #{net_forward.1} parent=0 // pred_fallthru
    _
  // Predicated region
  $region74: #{net_forward.1} parent=0 // pred_check
    _
  $region75: #{net_forward.1} parent=0 // pred_check_branch
    %108 = sbr.rel (0) target = $region77
  $region76: #{net_forward.1} parent=0 // pred_region
    _
  $region77: #{net_forward.1} parent=0 // pred_fallthru
    _
  // Predicated region
  $region78: #{net_forward.1} parent=0 // pred_check
    _
  $region79: #{net_forward.1} parent=0 // pred_check_branch
    %110 = sbr.rel (0) target = $region81
  $region80: #{net_forward.1} parent=0 // pred_region
    _
  $region81: #{net_forward.1} parent=0 // pred_fallthru
    _
  // Predicated region
  $region82: #{net_forward.1} parent=0 // pred_check
    _
  $region83: #{net_forward.1} parent=0 // pred_check_branch
    %112 = sbr.rel (0) target = $region85
  $region84: #{net_forward.1} parent=0 // pred_region
    _
  $region85: #{net_forward.1} parent=0 // pred_fallthru
    _
  // Predicated region
  $region86: #{net_forward.1} parent=0 // pred_check
    _
  $region87: #{net_forward.1} parent=0 // pred_check_branch
    %114 = sbr.rel (0) target = $region89
  $region88: #{net_forward.1} parent=0 // pred_region
    _
  $region89: #{net_forward.1} parent=0 // pred_fallthru
    _
  // Predicated region
  $region90: #{net_forward.1} parent=0 // pred_check
    _
  $region91: #{net_forward.1} parent=0 // pred_check_branch
    %116 = sbr.rel (0) target = $region93
  $region92: #{net_forward.1} parent=0 // pred_region
    _
  $region93: #{net_forward.1} parent=0 // pred_fallthru
    _
  // Predicated region
  $region94: #{net_forward.1} parent=0 // pred_check
    _
  $region95: #{net_forward.1} parent=0 // pred_check_branch
    %118 = sbr.rel (0) target = $region97
  $region96: #{net_forward.1} parent=0 // pred_region
    _
  $region97: #{net_forward.1} parent=0 // pred_fallthru
    _
  // Predicated region
  $region98: #{net_forward.1} parent=0 // pred_check
    _
  $region99: #{net_forward.1} parent=0 // pred_check_branch
    %120 = sbr.rel (0) target = $region101
  $region100: #{net_forward.1} parent=0 // pred_region
    _
  $region101: #{net_forward.1} parent=0 // pred_fallthru
    _
  // Predicated region
  $region102: #{net_forward.1} parent=0 // pred_check
    _
  $region103: #{net_forward.1} parent=0 // pred_check_branch
    %122 = sbr.rel (0) target = $region105
  $region104: #{net_forward.1} parent=0 // pred_region
    _
  $region105: #{net_forward.1} parent=0 // pred_fallthru
    _
  // Predicated region
  $region106: #{net_forward.1} parent=0 // pred_check
    _
  $region107: #{net_forward.1} parent=0 // pred_check_branch
    %124 = sbr.rel (0) target = $region109
  $region108: #{net_forward.1} parent=0 // pred_region
    _
  $region109: #{net_forward.1} parent=0 // pred_fallthru
    _
  // Predicated region
  $region110: #{net_forward.1} parent=0 // pred_check
    _
  $region111: #{net_forward.1} parent=0 // pred_check_branch
    %126 = sbr.rel (0) target = $region113
  $region112: #{net_forward.1} parent=0 // pred_region
    _
  $region113: #{net_forward.1} parent=0 // pred_fallthru
    _
  // Predicated region
  $region114: #{net_forward.1} parent=0 // pred_check
    _
  $region115: #{net_forward.1} parent=0 // pred_check_branch
    %128 = sbr.rel (0) target = $region117
  $region116: #{net_forward.1} parent=0 // pred_region
    _
  $region117: #{net_forward.1} parent=0 // pred_fallthru
    _
  // Predicated region
  $region118: #{net_forward.1} parent=0 // pred_check
    _
  $region119: #{net_forward.1} parent=0 // pred_check_branch
    %130 = sbr.rel (0) target = $region121
  $region120: #{net_forward.1} parent=0 // pred_region
    _
  $region121: #{net_forward.1} parent=0 // pred_fallthru
    _
  // Predicated region
  $region122: #{net_forward.1} parent=0 // pred_check
    _
  $region123: #{net_forward.1} parent=0 // pred_check_branch
    %132 = sbr.rel (0) target = $region125
  $region124: #{net_forward.1} parent=0 // pred_region
    _
  $region125: #{net_forward.1} parent=0 // pred_fallthru
    _
  %v134 = vld [vmem:[%s1] sm:$0xff]
  %v135 = vld [vmem:[%s1 + $0x8] sm:$0xff]
  %v136 = vld [vmem:[%s1 + $0x10] sm:$0xff]
  %v137 = vld [vmem:[%s1 + $0x18] sm:$0xff]
  %v138 = vld [vmem:[%s1 + $0x20] sm:$0xff]
  %v139 = vld [vmem:[%s1 + $0x28] sm:$0xff]
  %v140 = vld [vmem:[%s1 + $0x30] sm:$0xff]
  %v141 = vld [vmem:[%s1 + $0x38] sm:$0xff]
  %v142 = vld [vmem:[%s1 + $0x40] sm:$0xff]
  %v143 = vld [vmem:[%s1 + $0x48] sm:$0xff]
  %v144 = vld [vmem:[%s1 + $0x50] sm:$0xff]
  %v145 = vld [vmem:[%s1 + $0x58] sm:$0xff]
  %v146 = vld [vmem:[%s1 + $0x60] sm:$0xff]
  %v147 = vld [vmem:[%s1 + $0x68] sm:$0xff]
  %v148 = vld [vmem:[%s1 + $0x70] sm:$0xff]
  %v149 = vld [vmem:[%s1 + $0x78] sm:$0xff]
  %v150 = vld [vmem:[%s1 + $0x80] sm:$0xff]
  %v151 = vld [vmem:[%s1 + $0x88] sm:$0xff]
  %v152 = vld [vmem:[%s1 + $0x90] sm:$0xff]
  %v153 = vld [vmem:[%s1 + $0x98] sm:$0xff]
  %v154 = vld [vmem:[%s1 + $0xa0] sm:$0xff]
  %v155 = vpack.c.bf16 %v135, %v134
  %v156 = vpack.c.bf16 %v137, %v136
  %v157 = vpack.c.bf16 %v139, %v138
  %v158 = vpack.c.bf16 %v141, %v140
  %v159 = vpack.c.bf16 %v143, %v142
  %v160 = vpack.c.bf16 %v145, %v144
  %v161 = vpack.c.bf16 %v147, %v146
  %v162 = vpack.c.bf16 %v149, %v148
  %v163 = vpack.c.bf16 %v151, %v150
  %v164 = vpack.c.bf16 %v153, %v152
  %v165 = vpack.c.bf16 %v154, %v154
  %v166 = vld [vmem:[%s3] sm:$0xf]
  %v167 = vld [vmem:[%s3 + $0x4] sm:$0xf]
  %v170 = vunpack.c.l.b16 %v166
  %v171 = vunpack.c.l.b16 %v167
  %v172 = vpack.c.b16 %v171, %v170
  %vm174 = vcmask 130048
  %v176 = vsel %vm174, %v155, 0
  %v179 = vsel %vm174, %v156, 0
  %v182 = vsel %vm174, %v157, 0
  %v185 = vsel %vm174, %v158, 0
  %v188 = vsel %vm174, %v159, 0
  %v191 = vsel %vm174, %v160, 0
  %v194 = vsel %vm174, %v161, 0
  %v197 = vsel %vm174, %v162, 0
  %v200 = vsel %vm174, %v163, 0
  %v203 = vsel %vm174, %v164, 0
  %v206 = vsel %vm174, %v165, 0
  %208 = vmatprep.subr.bf16.mxu0 0
  %209 = vmatpush1.bf16.msra.mxu0 %v172
  %210 = vmatprep.subr.bf16.mxu0 0
  %211 = vmatpush1.bf16.msra.mxu0 0
  %212 = vmatprep.subr.bf16.mxu0 0
  %213 = vmatpush1.bf16.msra.mxu0 0
  %214 = vmatprep.subr.bf16.mxu0 0
  %215 = vmatpush1.bf16.msra.mxu0 0
  %216 = vmatprep.subr.bf16.mxu0 0
  %217 = vmatpush1.bf16.msra.mxu0 0
  %218 = vmatprep.subr.bf16.mxu0 0
  %219 = vmatpush1.bf16.msra.mxu0 0
  %220 = vmatprep.subr.bf16.mxu0 0
  %221 = vmatpush1.bf16.msra.mxu0 0
  %222 = vmatprep.subr.bf16.mxu0 0
  %223 = vmatpush1.bf16.msra.mxu0 0
  %224 = vmatprep.subr.bf16.mxu0 0
  %225 = vmatpush1.bf16.msra.mxu0 0
  %226 = vmatprep.subr.bf16.mxu0 0
  %227 = vmatpush1.bf16.msra.mxu0 0
  %228 = vmatprep.subr.bf16.mxu0 0
  %229 = vmatpush1.bf16.msra.mxu0 0
  %230 = vmatprep.subr.bf16.mxu0 0
  %231 = vmatpush1.bf16.msra.mxu0 0
  %232 = vmatprep.subr.bf16.mxu0 0
  %233 = vmatpush1.bf16.msra.mxu0 0
  %234 = vmatprep.subr.bf16.mxu0 0
  %235 = vmatpush1.bf16.msra.mxu0 0
  %236 = vmatprep.subr.bf16.mxu0 0
  %237 = vmatpush1.bf16.msra.mxu0 0
  %238 = vmatprep.subr.bf16.mxu0 0
  %239 = vmatpush1.bf16.msra.mxu0 0
  %240 = vmatprep.mubr.bf16.mxu0 0
  %241 = vmatmul.mubr.bf16.gmra.mrb[0].mxu0 %v176
  %v242 = vpop.f32.mrb[0].mxu0
  %v243 = vadd.f32 0.0, %v242
  %v244 = vpop.f32.mrb[0].mxu0
  %v245 = vpop.f32.mrb[0].mxu0
  %v246 = vadd.f32 0.0, %v245
  %v247 = vpop.f32.mrb[0].mxu0
  %248 = vmatprep.mubr.bf16.mxu0 0
  %249 = vmatmul.mubr.bf16.gmra.mrb[0].mxu0 %v179
  %v250 = vpop.f32.mrb[0].mxu0
  %v251 = vadd.f32 0.0, %v250
  %v252 = vpop.f32.mrb[0].mxu0
  %v253 = vpop.f32.mrb[0].mxu0
  %v254 = vadd.f32 0.0, %v253
  %v255 = vpop.f32.mrb[0].mxu0
  %256 = vmatprep.mubr.bf16.mxu0 0
  %257 = vmatmul.mubr.bf16.gmra.mrb[0].mxu0 %v182
  %v258 = vpop.f32.mrb[0].mxu0
  %v259 = vadd.f32 0.0, %v258
  %v260 = vpop.f32.mrb[0].mxu0
  %v261 = vpop.f32.mrb[0].mxu0
  %v262 = vadd.f32 0.0, %v261
  %v263 = vpop.f32.mrb[0].mxu0
  %264 = vmatprep.mubr.bf16.mxu0 0
  %265 = vmatmul.mubr.bf16.gmra.mrb[0].mxu0 %v185
  %v266 = vpop.f32.mrb[0].mxu0
  %v267 = vadd.f32 0.0, %v266
  %v268 = vpop.f32.mrb[0].mxu0
  %v269 = vpop.f32.mrb[0].mxu0
  %v270 = vadd.f32 0.0, %v269
  %v271 = vpop.f32.mrb[0].mxu0
  %272 = vmatprep.mubr.bf16.mxu0 0
  %273 = vmatmul.mubr.bf16.gmra.mrb[0].mxu0 %v188
  %v274 = vpop.f32.mrb[0].mxu0
  %v275 = vadd.f32 0.0, %v274
  %v276 = vpop.f32.mrb[0].mxu0
  %v277 = vpop.f32.mrb[0].mxu0
  %v278 = vadd.f32 0.0, %v277
  %v279 = vpop.f32.mrb[0].mxu0
  %280 = vmatprep.mubr.bf16.mxu0 0
  %281 = vmatmul.mubr.bf16.gmra.mrb[0].mxu0 %v191
  %v282 = vpop.f32.mrb[0].mxu0
  %v283 = vadd.f32 0.0, %v282
  %v284 = vpop.f32.mrb[0].mxu0
  %v285 = vpop.f32.mrb[0].mxu0
  %v286 = vadd.f32 0.0, %v285
  %v287 = vpop.f32.mrb[0].mxu0
  %288 = vmatprep.mubr.bf16.mxu0 0
  %289 = vmatmul.mubr.bf16.gmra.mrb[0].mxu0 %v194
  %v290 = vpop.f32.mrb[0].mxu0
  %v291 = vadd.f32 0.0, %v290
  %v292 = vpop.f32.mrb[0].mxu0
  %v293 = vpop.f32.mrb[0].mxu0
  %v294 = vadd.f32 0.0, %v293
  %v295 = vpop.f32.mrb[0].mxu0
  %296 = vmatprep.mubr.bf16.mxu0 0
  %297 = vmatmul.mubr.bf16.gmra.mrb[0].mxu0 %v197
  %v298 = vpop.f32.mrb[0].mxu0
  %v299 = vadd.f32 0.0, %v298
  %v300 = vpop.f32.mrb[0].mxu0
  %v301 = vpop.f32.mrb[0].mxu0
  %v302 = vadd.f32 0.0, %v301
  %v303 = vpop.f32.mrb[0].mxu0
  %304 = vmatprep.mubr.bf16.mxu0 0
  %305 = vmatmul.mubr.bf16.gmra.mrb[0].mxu0 %v200
  %v306 = vpop.f32.mrb[0].mxu0
  %v307 = vadd.f32 0.0, %v306
  %v308 = vpop.f32.mrb[0].mxu0
  %v309 = vpop.f32.mrb[0].mxu0
  %v310 = vadd.f32 0.0, %v309
  %v311 = vpop.f32.mrb[0].mxu0
  %312 = vmatprep.mubr.bf16.mxu0 0
  %313 = vmatmul.mubr.bf16.gmra.mrb[0].mxu0 %v203
  %v314 = vpop.f32.mrb[0].mxu0
  %v315 = vadd.f32 0.0, %v314
  %v316 = vpop.f32.mrb[0].mxu0
  %v317 = vpop.f32.mrb[0].mxu0
  %v318 = vadd.f32 0.0, %v317
  %v319 = vpop.f32.mrb[0].mxu0
  %320 = vmatprep.mubr.bf16.mxu0 0
  %321 = vmatmul.mubr.bf16.gmra.mrb[0].mxu0 %v206
  %v322 = vpop.f32.mrb[0].mxu0
  %v323 = vadd.f32 0.0, %v322
  %v324 = vpop.f32.mrb[0].mxu0
  %v325 = vpop.f32.mrb[0].mxu0
  %v326 = vpop.f32.mrb[0].mxu0
  %327 = vdwg.mxu0
  %v328 = vld [vmem:[%s3 + $0x8] sm:$0xf]
  %v329 = vld [vmem:[%s3 + $0xc] sm:$0xf]
  %v332 = vunpack.c.l.b16 %v328
  %v333 = vunpack.c.l.b16 %v329
  %v334 = vpack.c.b16 %v333, %v332
  %336 = vmatprep.subr.bf16.mxu0 0
  %337 = vmatpush1.bf16.msra.mxu0 %v334
  %338 = vmatprep.subr.bf16.mxu0 0
  %339 = vmatpush1.bf16.msra.mxu0 0
  %340 = vmatprep.subr.bf16.mxu0 0
  %341 = vmatpush1.bf16.msra.mxu0 0
  %342 = vmatprep.subr.bf16.mxu0 0
  %343 = vmatpush1.bf16.msra.mxu0 0
  %344 = vmatprep.subr.bf16.mxu0 0
  %345 = vmatpush1.bf16.msra.mxu0 0
  %346 = vmatprep.subr.bf16.mxu0 0
  %347 = vmatpush1.bf16.msra.mxu0 0
  %348 = vmatprep.subr.bf16.mxu0 0
  %349 = vmatpush1.bf16.msra.mxu0 0
  %350 = vmatprep.subr.bf16.mxu0 0
  %351 = vmatpush1.bf16.msra.mxu0 0
  %352 = vmatprep.subr.bf16.mxu0 0
  %353 = vmatpush1.bf16.msra.mxu0 0
  %354 = vmatprep.subr.bf16.mxu0 0
  %355 = vmatpush1.bf16.msra.mxu0 0
  %356 = vmatprep.subr.bf16.mxu0 0
  %357 = vmatpush1.bf16.msra.mxu0 0
  %358 = vmatprep.subr.bf16.mxu0 0
  %359 = vmatpush1.bf16.msra.mxu0 0
  %360 = vmatprep.subr.bf16.mxu0 0
  %361 = vmatpush1.bf16.msra.mxu0 0
  %362 = vmatprep.subr.bf16.mxu0 0
  %363 = vmatpush1.bf16.msra.mxu0 0
  %364 = vmatprep.subr.bf16.mxu0 0
  %365 = vmatpush1.bf16.msra.mxu0 0
  %366 = vmatprep.subr.bf16.mxu0 0
  %367 = vmatpush1.bf16.msra.mxu0 0
  %368 = vmatprep.mubr.bf16.mxu0 0
  %369 = vmatmul.mubr.bf16.gmra.mrb[0].mxu0 %v176
  %v370 = vpop.f32.mrb[0].mxu0
  %v371 = vadd.f32 0.0, %v370
  %v372 = vpop.f32.mrb[0].mxu0
  %v373 = vpop.f32.mrb[0].mxu0
  %v374 = vadd.f32 0.0, %v373
  %v375 = vpop.f32.mrb[0].mxu0
  %376 = vmatprep.mubr.bf16.mxu0 0
  %377 = vmatmul.mubr.bf16.gmra.mrb[0].mxu0 %v179
  %v378 = vpop.f32.mrb[0].mxu0
  %v379 = vadd.f32 0.0, %v378
  %v380 = vpop.f32.mrb[0].mxu0
  %v381 = vpop.f32.mrb[0].mxu0
  %v382 = vadd.f32 0.0, %v381
  %v383 = vpop.f32.mrb[0].mxu0
  %384 = vmatprep.mubr.bf16.mxu0 0
  %385 = vmatmul.mubr.bf16.gmra.mrb[0].mxu0 %v182
  %v386 = vpop.f32.mrb[0].mxu0
  %v387 = vadd.f32 0.0, %v386
  %v388 = vpop.f32.mrb[0].mxu0
  %v389 = vpop.f32.mrb[0].mxu0
  %v390 = vadd.f32 0.0, %v389
  %v391 = vpop.f32.mrb[0].mxu0
  %392 = vmatprep.mubr.bf16.mxu0 0
  %393 = vmatmul.mubr.bf16.gmra.mrb[0].mxu0 %v185
  %v394 = vpop.f32.mrb[0].mxu0
  %v395 = vadd.f32 0.0, %v394
  %v396 = vpop.f32.mrb[0].mxu0
  %v397 = vpop.f32.mrb[0].mxu0
  %v398 = vadd.f32 0.0, %v397
  %v399 = vpop.f32.mrb[0].mxu0
  %400 = vmatprep.mubr.bf16.mxu0 0
  %401 = vmatmul.mubr.bf16.gmra.mrb[0].mxu0 %v188
  %v402 = vpop.f32.mrb[0].mxu0
  %v403 = vadd.f32 0.0, %v402
  %v404 = vpop.f32.mrb[0].mxu0
  %v405 = vpop.f32.mrb[0].mxu0
  %v406 = vadd.f32 0.0, %v405
  %v407 = vpop.f32.mrb[0].mxu0
  %408 = vmatprep.mubr.bf16.mxu0 0
  %409 = vmatmul.mubr.bf16.gmra.mrb[0].mxu0 %v191
  %v410 = vpop.f32.mrb[0].mxu0
  %v411 = vadd.f32 0.0, %v410
  %v412 = vpop.f32.mrb[0].mxu0
  %v413 = vpop.f32.mrb[0].mxu0
  %v414 = vadd.f32 0.0, %v413
  %v415 = vpop.f32.mrb[0].mxu0
  %416 = vmatprep.mubr.bf16.mxu0 0
  %417 = vmatmul.mubr.bf16.gmra.mrb[0].mxu0 %v194
  %v418 = vpop.f32.mrb[0].mxu0
  %v419 = vadd.f32 0.0, %v418
  %v420 = vpop.f32.mrb[0].mxu0
  %v421 = vpop.f32.mrb[0].mxu0
  %v422 = vadd.f32 0.0, %v421
  %v423 = vpop.f32.mrb[0].mxu0
  %424 = vmatprep.mubr.bf16.mxu0 0
  %425 = vmatmul.mubr.bf16.gmra.mrb[0].mxu0 %v197
  %v426 = vpop.f32.mrb[0].mxu0
  %v427 = vadd.f32 0.0, %v426
  %v428 = vpop.f32.mrb[0].mxu0
  %v429 = vpop.f32.mrb[0].mxu0
  %v430 = vadd.f32 0.0, %v429
  %v431 = vpop.f32.mrb[0].mxu0
  %432 = vmatprep.mubr.bf16.mxu0 0
  %433 = vmatmul.mubr.bf16.gmra.mrb[0].mxu0 %v200
  %v434 = vpop.f32.mrb[0].mxu0
  %v435 = vadd.f32 0.0, %v434
  %v436 = vpop.f32.mrb[0].mxu0
  %v437 = vpop.f32.mrb[0].mxu0
  %v438 = vadd.f32 0.0, %v437
  %v439 = vpop.f32.mrb[0].mxu0
  %440 = vmatprep.mubr.bf16.mxu0 0
  %441 = vmatmul.mubr.bf16.gmra.mrb[0].mxu0 %v203
  %v442 = vpop.f32.mrb[0].mxu0
  %v443 = vadd.f32 0.0, %v442
  %v444 = vpop.f32.mrb[0].mxu0
  %v445 = vpop.f32.mrb[0].mxu0
  %v446 = vadd.f32 0.0, %v445
  %v447 = vpop.f32.mrb[0].mxu0
  %448 = vmatprep.mubr.bf16.mxu0 0
  %449 = vmatmul.mubr.bf16.gmra.mrb[0].mxu0 %v206
  %v450 = vpop.f32.mrb[0].mxu0
  %v451 = vadd.f32 0.0, %v450
  %v452 = vpop.f32.mrb[0].mxu0
  %v453 = vpop.f32.mrb[0].mxu0
  %v454 = vpop.f32.mrb[0].mxu0
  %455 = vdwg.mxu0
  %v456 = vld [vmem:[%s3 + $0x10] sm:$0xf]
  %v457 = vld [vmem:[%s3 + $0x14] sm:$0xf]
  %v460 = vunpack.c.l.b16 %v456
  %v461 = vunpack.c.l.b16 %v457
  %v462 = vpack.c.b16 %v461, %v460
  %464 = vmatprep.subr.bf16.mxu0 0
  %465 = vmatpush1.bf16.msra.mxu0 %v462
  %466 = vmatprep.subr.bf16.mxu0 0
  %467 = vmatpush1.bf16.msra.mxu0 0
  %468 = vmatprep.subr.bf16.mxu0 0
  %469 = vmatpush1.bf16.msra.mxu0 0
  %470 = vmatprep.subr.bf16.mxu0 0
  %471 = vmatpush1.bf16.msra.mxu0 0
  %472 = vmatprep.subr.bf16.mxu0 0
  %473 = vmatpush1.bf16.msra.mxu0 0
  %474 = vmatprep.subr.bf16.mxu0 0
  %475 = vmatpush1.bf16.msra.mxu0 0
  %476 = vmatprep.subr.bf16.mxu0 0
  %477 = vmatpush1.bf16.msra.mxu0 0
  %478 = vmatprep.subr.bf16.mxu0 0
  %479 = vmatpush1.bf16.msra.mxu0 0
  %480 = vmatprep.subr.bf16.mxu0 0
  %481 = vmatpush1.bf16.msra.mxu0 0
  %482 = vmatprep.subr.bf16.mxu0 0
  %483 = vmatpush1.bf16.msra.mxu0 0
  %484 = vmatprep.subr.bf16.mxu0 0
  %485 = vmatpush1.bf16.msra.mxu0 0
  %486 = vmatprep.subr.bf16.mxu0 0
  %487 = vmatpush1.bf16.msra.mxu0 0
  %488 = vmatprep.subr.bf16.mxu0 0
  %489 = vmatpush1.bf16.msra.mxu0 0
  %490 = vmatprep.subr.bf16.mxu0 0
  %491 = vmatpush1.bf16.msra.mxu0 0
  %492 = vmatprep.subr.bf16.mxu0 0
  %493 = vmatpush1.bf16.msra.mxu0 0
  %494 = vmatprep.subr.bf16.mxu0 0
  %495 = vmatpush1.bf16.msra.mxu0 0
  %496 = vmatprep.mubr.bf16.mxu0 0
  %497 = vmatmul.mubr.bf16.gmra.mrb[0].mxu0 %v176
  %v498 = vpop.f32.mrb[0].mxu0
  %v499 = vadd.f32 0.0, %v498
  %v500 = vpop.f32.mrb[0].mxu0
  %v501 = vpop.f32.mrb[0].mxu0
  %v502 = vadd.f32 0.0, %v501
  %v503 = vpop.f32.mrb[0].mxu0
  %504 = vmatprep.mubr.bf16.mxu0 0
  %505 = vmatmul.mubr.bf16.gmra.mrb[0].mxu0 %v179
  %v506 = vpop.f32.mrb[0].mxu0
  %v507 = vadd.f32 0.0, %v506
  %v508 = vpop.f32.mrb[0].mxu0
  %v509 = vpop.f32.mrb[0].mxu0
  %v510 = vadd.f32 0.0, %v509
  %v511 = vpop.f32.mrb[0].mxu0
  %512 = vmatprep.mubr.bf16.mxu0 0
  %513 = vmatmul.mubr.bf16.gmra.mrb[0].mxu0 %v182
  %v514 = vpop.f32.mrb[0].mxu0
  %v515 = vadd.f32 0.0, %v514
  %v516 = vpop.f32.mrb[0].mxu0
  %v517 = vpop.f32.mrb[0].mxu0
  %v518 = vadd.f32 0.0, %v517
  %v519 = vpop.f32.mrb[0].mxu0
  %520 = vmatprep.mubr.bf16.mxu0 0
  %521 = vmatmul.mubr.bf16.gmra.mrb[0].mxu0 %v185
  %v522 = vpop.f32.mrb[0].mxu0
  %v523 = vadd.f32 0.0, %v522
  %v524 = vpop.f32.mrb[0].mxu0
  %v525 = vpop.f32.mrb[0].mxu0
  %v526 = vadd.f32 0.0, %v525
  %v527 = vpop.f32.mrb[0].mxu0
  %528 = vmatprep.mubr.bf16.mxu0 0
  %529 = vmatmul.mubr.bf16.gmra.mrb[0].mxu0 %v188
  %v530 = vpop.f32.mrb[0].mxu0
  %v531 = vadd.f32 0.0, %v530
  %v532 = vpop.f32.mrb[0].mxu0
  %v533 = vpop.f32.mrb[0].mxu0
  %v534 = vadd.f32 0.0, %v533
  %v535 = vpop.f32.mrb[0].mxu0
  %536 = vmatprep.mubr.bf16.mxu0 0
  %537 = vmatmul.mubr.bf16.gmra.mrb[0].mxu0 %v191
  %v538 = vpop.f32.mrb[0].mxu0
  %v539 = vadd.f32 0.0, %v538
  %v540 = vpop.f32.mrb[0].mxu0
  %v541 = vpop.f32.mrb[0].mxu0
  %v542 = vadd.f32 0.0, %v541
  %v543 = vpop.f32.mrb[0].mxu0
  %544 = vmatprep.mubr.bf16.mxu0 0
  %545 = vmatmul.mubr.bf16.gmra.mrb[0].mxu0 %v194
  %v546 = vpop.f32.mrb[0].mxu0
  %v547 = vadd.f32 0.0, %v546
  %v548 = vpop.f32.mrb[0].mxu0
  %v549 = vpop.f32.mrb[0].mxu0
  %v550 = vadd.f32 0.0, %v549
  %v551 = vpop.f32.mrb[0].mxu0
  %552 = vmatprep.mubr.bf16.mxu0 0
  %553 = vmatmul.mubr.bf16.gmra.mrb[0].mxu0 %v197
  %v554 = vpop.f32.mrb[0].mxu0
  %v555 = vadd.f32 0.0, %v554
  %v556 = vpop.f32.mrb[0].mxu0
  %v557 = vpop.f32.mrb[0].mxu0
  %v558 = vadd.f32 0.0, %v557
  %v559 = vpop.f32.mrb[0].mxu0
  %560 = vmatprep.mubr.bf16.mxu0 0
  %561 = vmatmul.mubr.bf16.gmra.mrb[0].mxu0 %v200
  %v562 = vpop.f32.mrb[0].mxu0
  %v563 = vadd.f32 0.0, %v562
  %v564 = vpop.f32.mrb[0].mxu0
  %v565 = vpop.f32.mrb[0].mxu0
  %v566 = vadd.f32 0.0, %v565
  %v567 = vpop.f32.mrb[0].mxu0
  %568 = vmatprep.mubr.bf16.mxu0 0
  %569 = vmatmul.mubr.bf16.gmra.mrb[0].mxu0 %v203
  %v570 = vpop.f32.mrb[0].mxu0
  %v571 = vadd.f32 0.0, %v570
  %v572 = vpop.f32.mrb[0].mxu0
  %v573 = vpop.f32.mrb[0].mxu0
  %v574 = vadd.f32 0.0, %v573
  %v575 = vpop.f32.mrb[0].mxu0
  %576 = vmatprep.mubr.bf16.mxu0 0
  %577 = vmatmul.mubr.bf16.gmra.mrb[0].mxu0 %v206
  %v578 = vpop.f32.mrb[0].mxu0
  %v579 = vadd.f32 0.0, %v578
  %v580 = vpop.f32.mrb[0].mxu0
  %v581 = vpop.f32.mrb[0].mxu0
  %v582 = vpop.f32.mrb[0].mxu0
  %583 = vdwg.mxu0
  %vm595 = vcmask 1046528
  %v596 = vrot.slane %v371, 1
  %v597 = vrot.slane %v374, 1
  %v598 = vsel %vm595, %v596, %v597
  %v599 = vrot.slane %v379, 1
  %v600 = vsel %vm595, %v597, %v599
  %v601 = vrot.slane %v382, 1
  %v602 = vsel %vm595, %v599, %v601
  %v603 = vrot.slane %v387, 1
  %v604 = vsel %vm595, %v601, %v603
  %v605 = vrot.slane %v390, 1
  %v606 = vsel %vm595, %v603, %v605
  %v607 = vrot.slane %v395, 1
  %v608 = vsel %vm595, %v605, %v607
  %v609 = vrot.slane %v398, 1
  %v610 = vsel %vm595, %v607, %v609
  %v611 = vrot.slane %v403, 1
  %v612 = vsel %vm595, %v609, %v611
  %v613 = vrot.slane %v406, 1
  %v614 = vsel %vm595, %v611, %v613
  %v615 = vrot.slane %v411, 1
  %v616 = vsel %vm595, %v613, %v615
  %v628 = vadd.f32 %v243, %v598
  %v629 = vadd.f32 %v246, %v600
  %v630 = vadd.f32 %v251, %v602
  %v631 = vadd.f32 %v254, %v604
  %v632 = vadd.f32 %v259, %v606
  %v633 = vadd.f32 %v262, %v608
  %v634 = vadd.f32 %v267, %v610
  %v635 = vadd.f32 %v270, %v612
  %v636 = vadd.f32 %v275, %v614
  %v637 = vadd.f32 %v278, %v616
  %v638 = vadd.f32 %v283, %v615
  %vm650 = vcmask 1045504
  %v651 = vrot.slane %v499, 2
  %v652 = vrot.slane %v502, 2
  %v653 = vsel %vm650, %v651, %v652
  %v654 = vrot.slane %v507, 2
  %v655 = vsel %vm650, %v652, %v654
  %v656 = vrot.slane %v510, 2
  %v657 = vsel %vm650, %v654, %v656
  %v658 = vrot.slane %v515, 2
  %v659 = vsel %vm650, %v656, %v658
  %v660 = vrot.slane %v518, 2
  %v661 = vsel %vm650, %v658, %v660
  %v662 = vrot.slane %v523, 2
  %v663 = vsel %vm650, %v660, %v662
  %v664 = vrot.slane %v526, 2
  %v665 = vsel %vm650, %v662, %v664
  %v666 = vrot.slane %v531, 2
  %v667 = vsel %vm650, %v664, %v666
  %v668 = vrot.slane %v534, 2
  %v669 = vsel %vm650, %v666, %v668
  %v670 = vrot.slane %v539, 2
  %v671 = vsel %vm650, %v668, %v670
  %v683 = vadd.f32 %v628, %v653
  %v684 = vadd.f32 %v629, %v655
  %v685 = vadd.f32 %v630, %v657
  %v686 = vadd.f32 %v631, %v659
  %v687 = vadd.f32 %v632, %v661
  %v688 = vadd.f32 %v633, %v663
  %v689 = vadd.f32 %v634, %v665
  %v690 = vadd.f32 %v635, %v667
  %v691 = vadd.f32 %v636, %v669
  %v692 = vadd.f32 %v637, %v671
  %v693 = vadd.f32 %v638, %v670
  %v704 = vrot.slane %v414, 1
  %v705 = vsel %vm595, %v615, %v704
  %v706 = vrot.slane %v419, 1
  %v707 = vsel %vm595, %v704, %v706
  %v708 = vrot.slane %v422, 1
  %v709 = vsel %vm595, %v706, %v708
  %v710 = vrot.slane %v427, 1
  %v711 = vsel %vm595, %v708, %v710
  %v712 = vrot.slane %v430, 1
  %v713 = vsel %vm595, %v710, %v712
  %v714 = vrot.slane %v435, 1
  %v715 = vsel %vm595, %v712, %v714
  %v716 = vrot.slane %v438, 1
  %v717 = vsel %vm595, %v714, %v716
  %v718 = vrot.slane %v443, 1
  %v719 = vsel %vm595, %v716, %v718
  %v720 = vrot.slane %v446, 1
  %v721 = vsel %vm595, %v718, %v720
  %v722 = vrot.slane %v451, 1
  %v723 = vsel %vm595, %v720, %v722
  %v735 = vadd.f32 %v283, %v705
  %v736 = vadd.f32 %v286, %v707
  %v737 = vadd.f32 %v291, %v709
  %v738 = vadd.f32 %v294, %v711
  %v739 = vadd.f32 %v299, %v713
  %v740 = vadd.f32 %v302, %v715
  %v741 = vadd.f32 %v307, %v717
  %v742 = vadd.f32 %v310, %v719
  %v743 = vadd.f32 %v315, %v721
  %v744 = vadd.f32 %v318, %v723
  %v745 = vadd.f32 %v323, %v722
  %v756 = vrot.slane %v542, 2
  %v757 = vsel %vm650, %v670, %v756
  %v758 = vrot.slane %v547, 2
  %v759 = vsel %vm650, %v756, %v758
  %v760 = vrot.slane %v550, 2
  %v761 = vsel %vm650, %v758, %v760
  %v762 = vrot.slane %v555, 2
  %v763 = vsel %vm650, %v760, %v762
  %v764 = vrot.slane %v558, 2
  %v765 = vsel %vm650, %v762, %v764
  %v766 = vrot.slane %v563, 2
  %v767 = vsel %vm650, %v764, %v766
  %v768 = vrot.slane %v566, 2
  %v769 = vsel %vm650, %v766, %v768
  %v770 = vrot.slane %v571, 2
  %v771 = vsel %vm650, %v768, %v770
  %v772 = vrot.slane %v574, 2
  %v773 = vsel %vm650, %v770, %v772
  %v774 = vrot.slane %v579, 2
  %v775 = vsel %vm650, %v772, %v774
  %v787 = vadd.f32 %v735, %v757
  %v788 = vadd.f32 %v736, %v759
  %v789 = vadd.f32 %v737, %v761
  %v790 = vadd.f32 %v738, %v763
  %v791 = vadd.f32 %v739, %v765
  %v792 = vadd.f32 %v740, %v767
  %v793 = vadd.f32 %v741, %v769
  %v794 = vadd.f32 %v742, %v771
  %v795 = vadd.f32 %v743, %v773
  %v796 = vadd.f32 %v744, %v775
  %v797 = vadd.f32 %v745, %v774
  %v809 = vrot.slane %v787, 2
  %v810 = vrot.slane %v788, 2
  %v811 = vsel %vm650, %v809, %v810
  %v812 = vrot.slane %v789, 2
  %v813 = vsel %vm650, %v810, %v812
  %v814 = vrot.slane %v790, 2
  %v815 = vsel %vm650, %v812, %v814
  %v816 = vrot.slane %v791, 2
  %v817 = vsel %vm650, %v814, %v816
  %v818 = vrot.slane %v792, 2
  %v819 = vsel %vm650, %v816, %v818
  %v820 = vrot.slane %v793, 2
  %v821 = vsel %vm650, %v818, %v820
  %v822 = vrot.slane %v794, 2
  %v823 = vsel %vm650, %v820, %v822
  %v824 = vrot.slane %v795, 2
  %v825 = vsel %vm650, %v822, %v824
  %v826 = vrot.slane %v796, 2
  %v827 = vsel %vm650, %v824, %v826
  %v828 = vrot.slane %v797, 2
  %v829 = vsel %vm650, %v826, %v828
  %vm841 = vcmask 1041408
  %v842 = vsel %vm841, %v693, %v811
  %v843 = vpack.c.bf16 %v684, %v683
  %v844 = vpack.c.bf16 %v686, %v685
  %v845 = vpack.c.bf16 %v688, %v687
  %v846 = vpack.c.bf16 %v690, %v689
  %v847 = vpack.c.bf16 %v692, %v691
  %v848 = vpack.c.bf16 %v813, %v842
  %v849 = vpack.c.bf16 %v817, %v815
  %v850 = vpack.c.bf16 %v821, %v819
  %v851 = vpack.c.bf16 %v825, %v823
  %v852 = vpack.c.bf16 %v829, %v827
  %v853 = vpack.c.bf16 %v828, %v828
  %v854 = vld [vmem:[%s5] sm:$0xf]
  %v855 = vld [vmem:[%s5 + $0x4] sm:$0xf]
  %v856 = vld [vmem:[%s5 + $0x8] sm:$0xf]
  %v857 = vld [vmem:[%s5 + $0xc] sm:$0xf]
  %v862 = vunpack.c.l.b16 %v854
  %v863 = vunpack.c.l.b16 %v855
  %v864 = vunpack.c.l.b16 %v856
  %v865 = vunpack.c.l.b16 %v857
  %v866 = vpack.c.b16 %v863, %v862
  %v867 = vpack.c.b16 %v865, %v864
  %vm870 = vcmask 261120
  %v872 = vsel %vm870, %v843, 0
  %v875 = vsel %vm870, %v844, 0
  %v878 = vsel %vm870, %v845, 0
  %v881 = vsel %vm870, %v846, 0
  %v884 = vsel %vm870, %v847, 0
  %v887 = vsel %vm870, %v848, 0
  %v890 = vsel %vm870, %v849, 0
  %v893 = vsel %vm870, %v850, 0
  %v896 = vsel %vm870, %v851, 0
  %v899 = vsel %vm870, %v852, 0
  %v902 = vsel %vm870, %v853, 0
  %904 = vmatprep.subr.bf16.mxu0 0
  %905 = vmatpush1.bf16.msra.mxu0 %v866
  %906 = vmatprep.subr.bf16.mxu0 0
  %907 = vmatpush1.bf16.msra.mxu0 %v867
  %908 = vmatprep.subr.bf16.mxu0 0
  %909 = vmatpush1.bf16.msra.mxu0 0
  %910 = vmatprep.subr.bf16.mxu0 0
  %911 = vmatpush1.bf16.msra.mxu0 0
  %912 = vmatprep.subr.bf16.mxu0 0
  %913 = vmatpush1.bf16.msra.mxu0 0
  %914 = vmatprep.subr.bf16.mxu0 0
  %915 = vmatpush1.bf16.msra.mxu0 0
  %916 = vmatprep.subr.bf16.mxu0 0
  %917 = vmatpush1.bf16.msra.mxu0 0
  %918 = vmatprep.subr.bf16.mxu0 0
  %919 = vmatpush1.bf16.msra.mxu0 0
  %920 = vmatprep.subr.bf16.mxu0 0
  %921 = vmatpush1.bf16.msra.mxu0 0
  %922 = vmatprep.subr.bf16.mxu0 0
  %923 = vmatpush1.bf16.msra.mxu0 0
  %924 = vmatprep.subr.bf16.mxu0 0
  %925 = vmatpush1.bf16.msra.mxu0 0
  %926 = vmatprep.subr.bf16.mxu0 0
  %927 = vmatpush1.bf16.msra.mxu0 0
  %928 = vmatprep.subr.bf16.mxu0 0
  %929 = vmatpush1.bf16.msra.mxu0 0
  %930 = vmatprep.subr.bf16.mxu0 0
  %931 = vmatpush1.bf16.msra.mxu0 0
  %932 = vmatprep.subr.bf16.mxu0 0
  %933 = vmatpush1.bf16.msra.mxu0 0
  %934 = vmatprep.subr.bf16.mxu0 0
  %935 = vmatpush1.bf16.msra.mxu0 0
  %936 = vmatprep.mubr.bf16.mxu0 0
  %937 = vmatmul.mubr.bf16.gmra.mrb[0].mxu0 %v872
  %v938 = vpop.f32.mrb[0].mxu0
  %v939 = vadd.f32 0.0, %v938
  %v940 = vpop.f32.mrb[0].mxu0
  %v941 = vpop.f32.mrb[0].mxu0
  %v942 = vadd.f32 0.0, %v941
  %v943 = vpop.f32.mrb[0].mxu0
  %944 = vmatprep.mubr.bf16.mxu0 0
  %945 = vmatmul.mubr.bf16.gmra.mrb[0].mxu0 %v875
  %v946 = vpop.f32.mrb[0].mxu0
  %v947 = vadd.f32 0.0, %v946
  %v948 = vpop.f32.mrb[0].mxu0
  %v949 = vpop.f32.mrb[0].mxu0
  %v950 = vadd.f32 0.0, %v949
  %v951 = vpop.f32.mrb[0].mxu0
  %952 = vmatprep.mubr.bf16.mxu0 0
  %953 = vmatmul.mubr.bf16.gmra.mrb[0].mxu0 %v878
  %v954 = vpop.f32.mrb[0].mxu0
  %v955 = vadd.f32 0.0, %v954
  %v956 = vpop.f32.mrb[0].mxu0
  %v957 = vpop.f32.mrb[0].mxu0
  %v958 = vadd.f32 0.0, %v957
  %v959 = vpop.f32.mrb[0].mxu0
  %960 = vmatprep.mubr.bf16.mxu0 0
  %961 = vmatmul.mubr.bf16.gmra.mrb[0].mxu0 %v881
  %v962 = vpop.f32.mrb[0].mxu0
  %v963 = vadd.f32 0.0, %v962
  %v964 = vpop.f32.mrb[0].mxu0
  %v965 = vpop.f32.mrb[0].mxu0
  %v966 = vadd.f32 0.0, %v965
  %v967 = vpop.f32.mrb[0].mxu0
  %968 = vmatprep.mubr.bf16.mxu0 0
  %969 = vmatmul.mubr.bf16.gmra.mrb[0].mxu0 %v884
  %v970 = vpop.f32.mrb[0].mxu0
  %v971 = vadd.f32 0.0, %v970
  %v972 = vpop.f32.mrb[0].mxu0
  %v973 = vpop.f32.mrb[0].mxu0
  %v974 = vadd.f32 0.0, %v973
  %v975 = vpop.f32.mrb[0].mxu0
  %976 = vmatprep.mubr.bf16.mxu0 0
  %977 = vmatmul.mubr.bf16.gmra.mrb[0].mxu0 %v887
  %v978 = vpop.f32.mrb[0].mxu0
  %v979 = vadd.f32 0.0, %v978
  %v980 = vpop.f32.mrb[0].mxu0
  %v981 = vpop.f32.mrb[0].mxu0
  %v982 = vadd.f32 0.0, %v981
  %v983 = vpop.f32.mrb[0].mxu0
  %984 = vmatprep.mubr.bf16.mxu0 0
  %985 = vmatmul.mubr.bf16.gmra.mrb[0].mxu0 %v890
  %v986 = vpop.f32.mrb[0].mxu0
  %v987 = vadd.f32 0.0, %v986
  %v988 = vpop.f32.mrb[0].mxu0
  %v989 = vpop.f32.mrb[0].mxu0
  %v990 = vadd.f32 0.0, %v989
  %v991 = vpop.f32.mrb[0].mxu0
  %992 = vmatprep.mubr.bf16.mxu0 0
  %993 = vmatmul.mubr.bf16.gmra.mrb[0].mxu0 %v893
  %v994 = vpop.f32.mrb[0].mxu0
  %v995 = vadd.f32 0.0, %v994
  %v996 = vpop.f32.mrb[0].mxu0
  %v997 = vpop.f32.mrb[0].mxu0
  %v998 = vadd.f32 0.0, %v997
  %v999 = vpop.f32.mrb[0].mxu0
  %1000 = vmatprep.mubr.bf16.mxu0 0
  %1001 = vmatmul.mubr.bf16.gmra.mrb[0].mxu0 %v896
  %v1002 = vpop.f32.mrb[0].mxu0
  %v1003 = vadd.f32 0.0, %v1002
  %v1004 = vpop.f32.mrb[0].mxu0
  %v1005 = vpop.f32.mrb[0].mxu0
  %v1006 = vadd.f32 0.0, %v1005
  %v1007 = vpop.f32.mrb[0].mxu0
  %1008 = vmatprep.mubr.bf16.mxu0 0
  %1009 = vmatmul.mubr.bf16.gmra.mrb[0].mxu0 %v899
  %v1010 = vpop.f32.mrb[0].mxu0
  %v1011 = vadd.f32 0.0, %v1010
  %v1012 = vpop.f32.mrb[0].mxu0
  %v1013 = vpop.f32.mrb[0].mxu0
  %v1014 = vadd.f32 0.0, %v1013
  %v1015 = vpop.f32.mrb[0].mxu0
  %1016 = vmatprep.mubr.bf16.mxu0 0
  %1017 = vmatmul.mubr.bf16.gmra.mrb[0].mxu0 %v902
  %v1018 = vpop.f32.mrb[0].mxu0
  %v1019 = vadd.f32 0.0, %v1018
  %v1020 = vpop.f32.mrb[0].mxu0
  %v1021 = vpop.f32.mrb[0].mxu0
  %v1022 = vpop.f32.mrb[0].mxu0
  %1023 = vdwg.mxu0
  %v1024 = vadd.f32 %v939, %v942
  %v1025 = vadd.f32 %v1024, %v947
  %v1026 = vadd.f32 %v1025, %v950
  %v1027 = vadd.f32 %v1026, %v955
  %v1028 = vadd.f32 %v1027, %v958
  %v1029 = vadd.f32 %v1028, %v963
  %v1030 = vadd.f32 %v1029, %v966
  %v1031 = vadd.f32 %v1030, %v971
  %v1032 = vadd.f32 %v1031, %v974
  %v1033 = vadd.f32 %v1032, %v979
  %v1034 = vadd.f32 %v1033, %v982
  %v1035 = vadd.f32 %v1034, %v987
  %v1036 = vadd.f32 %v1035, %v990
  %v1037 = vadd.f32 %v1036, %v995
  %v1038 = vadd.f32 %v1037, %v998
  %v1039 = vadd.f32 %v1038, %v1003
  %v1040 = vadd.f32 %v1039, %v1006
  %v1041 = vadd.f32 %v1040, %v1011
  %v1042 = vadd.f32 %v1041, %v1014
  %vm1043 = vcmask 1043456
  %v1044 = vsel %vm1043, %v1019, 0.0
  %v1045 = vadd.f32 %v1042, %v1044
  %v1046 = vrot.slane %v1045, 4
  %v1047 = vadd.f32 %v1045, %v1046
  %v1048 = vrot.slane %v1047, 2
  %v1049 = vadd.f32 %v1047, %v1048
  %v1050 = vrot.slane %v1049, 1
  %v1051 = vadd.f32 %v1049, %v1050
  %v1052 = vmul.f32 %v939, %v939
  %v1053 = vmul.f32 %v942, %v942
  %v1054 = vmul.f32 %v947, %v947
  %v1055 = vmul.f32 %v950, %v950
  %v1056 = vmul.f32 %v955, %v955
  %v1057 = vmul.f32 %v958, %v958
  %v1058 = vmul.f32 %v963, %v963
  %v1059 = vmul.f32 %v966, %v966
  %v1060 = vmul.f32 %v971, %v971
  %v1061 = vmul.f32 %v974, %v974
  %v1062 = vmul.f32 %v979, %v979
  %v1063 = vmul.f32 %v982, %v982
  %v1064 = vmul.f32 %v987, %v987
  %v1065 = vmul.f32 %v990, %v990
  %v1066 = vmul.f32 %v995, %v995
  %v1067 = vmul.f32 %v998, %v998
  %v1068 = vmul.f32 %v1003, %v1003
  %v1069 = vmul.f32 %v1006, %v1006
  %v1070 = vmul.f32 %v1011, %v1011
  %v1071 = vmul.f32 %v1014, %v1014
  %v1072 = vmul.f32 %v1019, %v1019
  %v1073 = vadd.f32 %v1052, %v1053
  %v1074 = vadd.f32 %v1073, %v1054
  %v1075 = vadd.f32 %v1074, %v1055
  %v1076 = vadd.f32 %v1075, %v1056
  %v1077 = vadd.f32 %v1076, %v1057
  %v1078 = vadd.f32 %v1077, %v1058
  %v1079 = vadd.f32 %v1078, %v1059
  %v1080 = vadd.f32 %v1079, %v1060
  %v1081 = vadd.f32 %v1080, %v1061
  %v1082 = vadd.f32 %v1081, %v1062
  %v1083 = vadd.f32 %v1082, %v1063
  %v1084 = vadd.f32 %v1083, %v1064
  %v1085 = vadd.f32 %v1084, %v1065
  %v1086 = vadd.f32 %v1085, %v1066
  %v1087 = vadd.f32 %v1086, %v1067
  %v1088 = vadd.f32 %v1087, %v1068
  %v1089 = vadd.f32 %v1088, %v1069
  %v1090 = vadd.f32 %v1089, %v1070
  %v1091 = vadd.f32 %v1090, %v1071
  %v1092 = vsel %vm1043, %v1072, 0.0
  %v1093 = vadd.f32 %v1091, %v1092
  %v1094 = vrot.slane %v1093, 4
  %v1095 = vadd.f32 %v1093, %v1094
  %v1096 = vrot.slane %v1095, 2
  %v1097 = vadd.f32 %v1095, %v1096
  %v1098 = vrot.slane %v1097, 1
  %v1099 = vadd.f32 %v1097, %v1098
  %v1100 = vmul.f32 %v1051, 0.0060975607
  %v1101 = vmul.f32 %v1099, 0.0060975607
  %v1102 = vmul.f32 %v1100, %v1100
  %v1103 = vsub.f32 %v1101, %v1102
  %v1104 = vmax.f32 %v1103, 0.0
  %v1105 = vadd.f32 %v1104, 1e-05
  %v1106 = vrsqrt.pop %v1105
  %v1107 = vsub.f32 %v939, %v1100
  %v1108 = vsub.f32 %v942, %v1100
  %v1109 = vsub.f32 %v947, %v1100
  %v1110 = vsub.f32 %v950, %v1100
  %v1111 = vsub.f32 %v955, %v1100
  %v1112 = vsub.f32 %v958, %v1100
  %v1113 = vsub.f32 %v963, %v1100
  %v1114 = vsub.f32 %v966, %v1100
  %v1115 = vsub.f32 %v971, %v1100
  %v1116 = vsub.f32 %v974, %v1100
  %v1117 = vsub.f32 %v979, %v1100
  %v1118 = vsub.f32 %v982, %v1100
  %v1119 = vsub.f32 %v987, %v1100
  %v1120 = vsub.f32 %v990, %v1100
  %v1121 = vsub.f32 %v995, %v1100
  %v1122 = vsub.f32 %v998, %v1100
  %v1123 = vsub.f32 %v1003, %v1100
  %v1124 = vsub.f32 %v1006, %v1100
  %v1125 = vsub.f32 %v1011, %v1100
  %v1126 = vsub.f32 %v1014, %v1100
  %v1127 = vsub.f32 %v1019, %v1100
  %v1128 = vmul.f32 %v1107, %v1106
  %v1129 = vmul.f32 %v1108, %v1106
  %v1130 = vmul.f32 %v1109, %v1106
  %v1131 = vmul.f32 %v1110, %v1106
  %v1132 = vmul.f32 %v1111, %v1106
  %v1133 = vmul.f32 %v1112, %v1106
  %v1134 = vmul.f32 %v1113, %v1106
  %v1135 = vmul.f32 %v1114, %v1106
  %v1136 = vmul.f32 %v1115, %v1106
  %v1137 = vmul.f32 %v1116, %v1106
  %v1138 = vmul.f32 %v1117, %v1106
  %v1139 = vmul.f32 %v1118, %v1106
  %v1140 = vmul.f32 %v1119, %v1106
  %v1141 = vmul.f32 %v1120, %v1106
  %v1142 = vmul.f32 %v1121, %v1106
  %v1143 = vmul.f32 %v1122, %v1106
  %v1144 = vmul.f32 %v1123, %v1106
  %v1145 = vmul.f32 %v1124, %v1106
  %v1146 = vmul.f32 %v1125, %v1106
  %v1147 = vmul.f32 %v1126, %v1106
  %v1148 = vmul.f32 %v1127, %v1106
  %v1149 = vmax.f32 %v1128, 0.0
  %v1150 = vmax.f32 %v1129, 0.0
  %v1151 = vmax.f32 %v1130, 0.0
  %v1152 = vmax.f32 %v1131, 0.0
  %v1153 = vmax.f32 %v1132, 0.0
  %v1154 = vmax.f32 %v1133, 0.0
  %v1155 = vmax.f32 %v1134, 0.0
  %v1156 = vmax.f32 %v1135, 0.0
  %v1157 = vmax.f32 %v1136, 0.0
  %v1158 = vmax.f32 %v1137, 0.0
  %v1159 = vmax.f32 %v1138, 0.0
  %v1160 = vmax.f32 %v1139, 0.0
  %v1161 = vmax.f32 %v1140, 0.0
  %v1162 = vmax.f32 %v1141, 0.0
  %v1163 = vmax.f32 %v1142, 0.0
  %v1164 = vmax.f32 %v1143, 0.0
  %v1165 = vmax.f32 %v1144, 0.0
  %v1166 = vmax.f32 %v1145, 0.0
  %v1167 = vmax.f32 %v1146, 0.0
  %v1168 = vmax.f32 %v1147, 0.0
  %v1169 = vmax.f32 %v1148, 0.0
  %v1170 = vpack.c.bf16 %v1150, %v1149
  %v1171 = vpack.c.bf16 %v1152, %v1151
  %v1172 = vpack.c.bf16 %v1154, %v1153
  %v1173 = vpack.c.bf16 %v1156, %v1155
  %v1174 = vpack.c.bf16 %v1158, %v1157
  %v1175 = vpack.c.bf16 %v1160, %v1159
  %v1176 = vpack.c.bf16 %v1162, %v1161
  %v1177 = vpack.c.bf16 %v1164, %v1163
  %v1178 = vpack.c.bf16 %v1166, %v1165
  %v1179 = vpack.c.bf16 %v1168, %v1167
  %v1180 = vpack.c.bf16 %v1169, %v1169
  %v1181 = vld [vmem:[%s7] sm:$0xf]
  %v1182 = vld [vmem:[%s7 + $0x4] sm:$0xf]
  %v1183 = vld [vmem:[%s7 + $0x8] sm:$0xf]
  %v1184 = vld [vmem:[%s7 + $0xc] sm:$0xf]
  %v1185 = vld [vmem:[%s7 + $0x10] sm:$0xf]
  %v1186 = vld [vmem:[%s7 + $0x14] sm:$0xf]
  %v1187 = vld [vmem:[%s7 + $0x18] sm:$0xf]
  %v1188 = vld [vmem:[%s7 + $0x1c] sm:$0xf]
  %v1189 = vld [vmem:[%s7 + $0x20] sm:$0xf]
  %v1190 = vld [vmem:[%s7 + $0x24] sm:$0xf]
  %v1191 = vld [vmem:[%s7 + $0x28] sm:$0xf]
  %v1192 = vld [vmem:[%s7 + $0x2c] sm:$0xf]
  %v1193 = vld [vmem:[%s7 + $0x30] sm:$0xf]
  %v1194 = vld [vmem:[%s7 + $0x34] sm:$0xf]
  %v1195 = vld [vmem:[%s7 + $0x38] sm:$0xf]
  %v1196 = vld [vmem:[%s7 + $0x3c] sm:$0xf]
  %v1213 = vunpack.c.l.b16 %v1181
  %v1214 = vunpack.c.l.b16 %v1182
  %v1215 = vunpack.c.l.b16 %v1183
  %v1216 = vunpack.c.l.b16 %v1184
  %v1217 = vunpack.c.l.b16 %v1185
  %v1218 = vunpack.c.l.b16 %v1186
  %v1219 = vunpack.c.l.b16 %v1187
  %v1220 = vunpack.c.l.b16 %v1188
  %v1221 = vunpack.c.l.b16 %v1189
  %v1222 = vunpack.c.l.b16 %v1190
  %v1223 = vunpack.c.l.b16 %v1191
  %v1224 = vunpack.c.l.b16 %v1192
  %v1225 = vunpack.c.l.b16 %v1193
  %v1226 = vunpack.c.l.b16 %v1194
  %v1227 = vunpack.c.l.b16 %v1195
  %v1228 = vunpack.c.l.b16 %v1196
  %v1229 = vpack.c.b16 %v1214, %v1213
  %v1230 = vpack.c.b16 %v1216, %v1215
  %v1231 = vpack.c.b16 %v1218, %v1217
  %v1232 = vpack.c.b16 %v1220, %v1219
  %v1233 = vpack.c.b16 %v1222, %v1221
  %v1234 = vpack.c.b16 %v1224, %v1223
  %v1235 = vpack.c.b16 %v1226, %v1225
  %v1236 = vpack.c.b16 %v1228, %v1227
  %1245 = vmatprep.subr.bf16.mxu0 0
  %1246 = vmatpush1.bf16.msra.mxu0 %v1229
  %1247 = vmatprep.subr.bf16.mxu0 0
  %1248 = vmatpush1.bf16.msra.mxu0 %v1230
  %1249 = vmatprep.subr.bf16.mxu0 0
  %1250 = vmatpush1.bf16.msra.mxu0 %v1231
  %1251 = vmatprep.subr.bf16.mxu0 0
  %1252 = vmatpush1.bf16.msra.mxu0 %v1232
  %1253 = vmatprep.subr.bf16.mxu0 0
  %1254 = vmatpush1.bf16.msra.mxu0 %v1233
  %1255 = vmatprep.subr.bf16.mxu0 0
  %1256 = vmatpush1.bf16.msra.mxu0 %v1234
  %1257 = vmatprep.subr.bf16.mxu0 0
  %1258 = vmatpush1.bf16.msra.mxu0 %v1235
  %1259 = vmatprep.subr.bf16.mxu0 0
  %1260 = vmatpush1.bf16.msra.mxu0 %v1236
  %1261 = vmatprep.subr.bf16.mxu0 0
  %1262 = vmatpush1.bf16.msra.mxu0 0
  %1263 = vmatprep.subr.bf16.mxu0 0
  %1264 = vmatpush1.bf16.msra.mxu0 0
  %1265 = vmatprep.subr.bf16.mxu0 0
  %1266 = vmatpush1.bf16.msra.mxu0 0
  %1267 = vmatprep.subr.bf16.mxu0 0
  %1268 = vmatpush1.bf16.msra.mxu0 0
  %1269 = vmatprep.subr.bf16.mxu0 0
  %1270 = vmatpush1.bf16.msra.mxu0 0
  %1271 = vmatprep.subr.bf16.mxu0 0
  %1272 = vmatpush1.bf16.msra.mxu0 0
  %1273 = vmatprep.subr.bf16.mxu0 0
  %1274 = vmatpush1.bf16.msra.mxu0 0
  %1275 = vmatprep.subr.bf16.mxu0 0
  %1276 = vmatpush1.bf16.msra.mxu0 0
  %1277 = vmatprep.mubr.bf16.mxu0 0
  %1278 = vmatmul.mubr.bf16.gmra.mrb[0].mxu0 %v1170
  %v1279 = vpop.f32.mrb[0].mxu0
  %v1280 = vadd.f32 0.0, %v1279
  %v1281 = vpop.f32.mrb[0].mxu0
  %v1282 = vpop.f32.mrb[0].mxu0
  %v1283 = vadd.f32 0.0, %v1282
  %v1284 = vpop.f32.mrb[0].mxu0
  %1285 = vmatprep.mubr.bf16.mxu0 0
  %1286 = vmatmul.mubr.bf16.gmra.mrb[0].mxu0 %v1171
  %v1287 = vpop.f32.mrb[0].mxu0
  %v1288 = vadd.f32 0.0, %v1287
  %v1289 = vpop.f32.mrb[0].mxu0
  %v1290 = vpop.f32.mrb[0].mxu0
  %v1291 = vadd.f32 0.0, %v1290
  %v1292 = vpop.f32.mrb[0].mxu0
  %1293 = vmatprep.mubr.bf16.mxu0 0
  %1294 = vmatmul.mubr.bf16.gmra.mrb[0].mxu0 %v1172
  %v1295 = vpop.f32.mrb[0].mxu0
  %v1296 = vadd.f32 0.0, %v1295
  %v1297 = vpop.f32.mrb[0].mxu0
  %v1298 = vpop.f32.mrb[0].mxu0
  %v1299 = vadd.f32 0.0, %v1298
  %v1300 = vpop.f32.mrb[0].mxu0
  %1301 = vmatprep.mubr.bf16.mxu0 0
  %1302 = vmatmul.mubr.bf16.gmra.mrb[0].mxu0 %v1173
  %v1303 = vpop.f32.mrb[0].mxu0
  %v1304 = vadd.f32 0.0, %v1303
  %v1305 = vpop.f32.mrb[0].mxu0
  %v1306 = vpop.f32.mrb[0].mxu0
  %v1307 = vadd.f32 0.0, %v1306
  %v1308 = vpop.f32.mrb[0].mxu0
  %1309 = vmatprep.mubr.bf16.mxu0 0
  %1310 = vmatmul.mubr.bf16.gmra.mrb[0].mxu0 %v1174
  %v1311 = vpop.f32.mrb[0].mxu0
  %v1312 = vadd.f32 0.0, %v1311
  %v1313 = vpop.f32.mrb[0].mxu0
  %v1314 = vpop.f32.mrb[0].mxu0
  %v1315 = vadd.f32 0.0, %v1314
  %v1316 = vpop.f32.mrb[0].mxu0
  %1317 = vmatprep.mubr.bf16.mxu0 0
  %1318 = vmatmul.mubr.bf16.gmra.mrb[0].mxu0 %v1175
  %v1319 = vpop.f32.mrb[0].mxu0
  %v1320 = vadd.f32 0.0, %v1319
  %v1321 = vpop.f32.mrb[0].mxu0
  %v1322 = vpop.f32.mrb[0].mxu0
  %v1323 = vadd.f32 0.0, %v1322
  %v1324 = vpop.f32.mrb[0].mxu0
  %1325 = vmatprep.mubr.bf16.mxu0 0
  %1326 = vmatmul.mubr.bf16.gmra.mrb[0].mxu0 %v1176
  %v1327 = vpop.f32.mrb[0].mxu0
  %v1328 = vadd.f32 0.0, %v1327
  %v1329 = vpop.f32.mrb[0].mxu0
  %v1330 = vpop.f32.mrb[0].mxu0
  %v1331 = vadd.f32 0.0, %v1330
  %v1332 = vpop.f32.mrb[0].mxu0
  %1333 = vmatprep.mubr.bf16.mxu0 0
  %1334 = vmatmul.mubr.bf16.gmra.mrb[0].mxu0 %v1177
  %v1335 = vpop.f32.mrb[0].mxu0
  %v1336 = vadd.f32 0.0, %v1335
  %v1337 = vpop.f32.mrb[0].mxu0
  %v1338 = vpop.f32.mrb[0].mxu0
  %v1339 = vadd.f32 0.0, %v1338
  %v1340 = vpop.f32.mrb[0].mxu0
  %1341 = vmatprep.mubr.bf16.mxu0 0
  %1342 = vmatmul.mubr.bf16.gmra.mrb[0].mxu0 %v1178
  %v1343 = vpop.f32.mrb[0].mxu0
  %v1344 = vadd.f32 0.0, %v1343
  %v1345 = vpop.f32.mrb[0].mxu0
  %v1346 = vpop.f32.mrb[0].mxu0
  %v1347 = vadd.f32 0.0, %v1346
  %v1348 = vpop.f32.mrb[0].mxu0
  %1349 = vmatprep.mubr.bf16.mxu0 0
  %1350 = vmatmul.mubr.bf16.gmra.mrb[0].mxu0 %v1179
  %v1351 = vpop.f32.mrb[0].mxu0
  %v1352 = vadd.f32 0.0, %v1351
  %v1353 = vpop.f32.mrb[0].mxu0
  %v1354 = vpop.f32.mrb[0].mxu0
  %v1355 = vadd.f32 0.0, %v1354
  %v1356 = vpop.f32.mrb[0].mxu0
  %1357 = vmatprep.mubr.bf16.mxu0 0
  %1358 = vmatmul.mubr.bf16.gmra.mrb[0].mxu0 %v1180
  %v1359 = vpop.f32.mrb[0].mxu0
  %v1360 = vadd.f32 0.0, %v1359
  %v1361 = vpop.f32.mrb[0].mxu0
  %v1362 = vpop.f32.mrb[0].mxu0
  %v1363 = vpop.f32.mrb[0].mxu0
  %1364 = vdwg.mxu0
  %v1365 = vld [vmem:[%s7 + $0x40] sm:$0xf]
  %v1366 = vld [vmem:[%s7 + $0x44] sm:$0xf]
  %v1367 = vld [vmem:[%s7 + $0x48] sm:$0xf]
  %v1368 = vld [vmem:[%s7 + $0x4c] sm:$0xf]
  %v1369 = vld [vmem:[%s7 + $0x50] sm:$0xf]
  %v1370 = vld [vmem:[%s7 + $0x54] sm:$0xf]
  %v1371 = vld [vmem:[%s7 + $0x58] sm:$0xf]
  %v1372 = vld [vmem:[%s7 + $0x5c] sm:$0xf]
  %v1373 = vld [vmem:[%s7 + $0x60] sm:$0xf]
  %v1374 = vld [vmem:[%s7 + $0x64] sm:$0xf]
  %v1375 = vld [vmem:[%s7 + $0x68] sm:$0xf]
  %v1376 = vld [vmem:[%s7 + $0x6c] sm:$0xf]
  %v1377 = vld [vmem:[%s7 + $0x70] sm:$0xf]
  %v1378 = vld [vmem:[%s7 + $0x74] sm:$0xf]
  %v1379 = vld [vmem:[%s7 + $0x78] sm:$0xf]
  %v1380 = vld [vmem:[%s7 + $0x7c] sm:$0xf]
  %v1397 = vunpack.c.l.b16 %v1365
  %v1398 = vunpack.c.l.b16 %v1366
  %v1399 = vunpack.c.l.b16 %v1367
  %v1400 = vunpack.c.l.b16 %v1368
  %v1401 = vunpack.c.l.b16 %v1369
  %v1402 = vunpack.c.l.b16 %v1370
  %v1403 = vunpack.c.l.b16 %v1371
  %v1404 = vunpack.c.l.b16 %v1372
  %v1405 = vunpack.c.l.b16 %v1373
  %v1406 = vunpack.c.l.b16 %v1374
  %v1407 = vunpack.c.l.b16 %v1375
  %v1408 = vunpack.c.l.b16 %v1376
  %v1409 = vunpack.c.l.b16 %v1377
  %v1410 = vunpack.c.l.b16 %v1378
  %v1411 = vunpack.c.l.b16 %v1379
  %v1412 = vunpack.c.l.b16 %v1380
  %v1413 = vpack.c.b16 %v1398, %v1397
  %v1414 = vpack.c.b16 %v1400, %v1399
  %v1415 = vpack.c.b16 %v1402, %v1401
  %v1416 = vpack.c.b16 %v1404, %v1403
  %v1417 = vpack.c.b16 %v1406, %v1405
  %v1418 = vpack.c.b16 %v1408, %v1407
  %v1419 = vpack.c.b16 %v1410, %v1409
  %v1420 = vpack.c.b16 %v1412, %v1411
  %1429 = vmatprep.subr.bf16.mxu0 0
  %1430 = vmatpush1.bf16.msra.mxu0 %v1413
  %1431 = vmatprep.subr.bf16.mxu0 0
  %1432 = vmatpush1.bf16.msra.mxu0 %v1414
  %1433 = vmatprep.subr.bf16.mxu0 0
  %1434 = vmatpush1.bf16.msra.mxu0 %v1415
  %1435 = vmatprep.subr.bf16.mxu0 0
  %1436 = vmatpush1.bf16.msra.mxu0 %v1416
  %1437 = vmatprep.subr.bf16.mxu0 0
  %1438 = vmatpush1.bf16.msra.mxu0 %v1417
  %1439 = vmatprep.subr.bf16.mxu0 0
  %1440 = vmatpush1.bf16.msra.mxu0 %v1418
  %1441 = vmatprep.subr.bf16.mxu0 0
  %1442 = vmatpush1.bf16.msra.mxu0 %v1419
  %1443 = vmatprep.subr.bf16.mxu0 0
  %1444 = vmatpush1.bf16.msra.mxu0 %v1420
  %1445 = vmatprep.subr.bf16.mxu0 0
  %1446 = vmatpush1.bf16.msra.mxu0 0
  %1447 = vmatprep.subr.bf16.mxu0 0
  %1448 = vmatpush1.bf16.msra.mxu0 0
  %1449 = vmatprep.subr.bf16.mxu0 0
  %1450 = vmatpush1.bf16.msra.mxu0 0
  %1451 = vmatprep.subr.bf16.mxu0 0
  %1452 = vmatpush1.bf16.msra.mxu0 0
  %1453 = vmatprep.subr.bf16.mxu0 0
  %1454 = vmatpush1.bf16.msra.mxu0 0
  %1455 = vmatprep.subr.bf16.mxu0 0
  %1456 = vmatpush1.bf16.msra.mxu0 0
  %1457 = vmatprep.subr.bf16.mxu0 0
  %1458 = vmatpush1.bf16.msra.mxu0 0
  %1459 = vmatprep.subr.bf16.mxu0 0
  %1460 = vmatpush1.bf16.msra.mxu0 0
  %1461 = vmatprep.mubr.bf16.mxu0 0
  %1462 = vmatmul.mubr.bf16.gmra.mrb[0].mxu0 %v1170
  %v1463 = vpop.f32.mrb[0].mxu0
  %v1464 = vadd.f32 0.0, %v1463
  %v1465 = vpop.f32.mrb[0].mxu0
  %v1466 = vpop.f32.mrb[0].mxu0
  %v1467 = vadd.f32 0.0, %v1466
  %v1468 = vpop.f32.mrb[0].mxu0
  %1469 = vmatprep.mubr.bf16.mxu0 0
  %1470 = vmatmul.mubr.bf16.gmra.mrb[0].mxu0 %v1171
  %v1471 = vpop.f32.mrb[0].mxu0
  %v1472 = vadd.f32 0.0, %v1471
  %v1473 = vpop.f32.mrb[0].mxu0
  %v1474 = vpop.f32.mrb[0].mxu0
  %v1475 = vadd.f32 0.0, %v1474
  %v1476 = vpop.f32.mrb[0].mxu0
  %1477 = vmatprep.mubr.bf16.mxu0 0
  %1478 = vmatmul.mubr.bf16.gmra.mrb[0].mxu0 %v1172
  %v1479 = vpop.f32.mrb[0].mxu0
  %v1480 = vadd.f32 0.0, %v1479
  %v1481 = vpop.f32.mrb[0].mxu0
  %v1482 = vpop.f32.mrb[0].mxu0
  %v1483 = vadd.f32 0.0, %v1482
  %v1484 = vpop.f32.mrb[0].mxu0
  %1485 = vmatprep.mubr.bf16.mxu0 0
  %1486 = vmatmul.mubr.bf16.gmra.mrb[0].mxu0 %v1173
  %v1487 = vpop.f32.mrb[0].mxu0
  %v1488 = vadd.f32 0.0, %v1487
  %v1489 = vpop.f32.mrb[0].mxu0
  %v1490 = vpop.f32.mrb[0].mxu0
  %v1491 = vadd.f32 0.0, %v1490
  %v1492 = vpop.f32.mrb[0].mxu0
  %1493 = vmatprep.mubr.bf16.mxu0 0
  %1494 = vmatmul.mubr.bf16.gmra.mrb[0].mxu0 %v1174
  %v1495 = vpop.f32.mrb[0].mxu0
  %v1496 = vadd.f32 0.0, %v1495
  %v1497 = vpop.f32.mrb[0].mxu0
  %v1498 = vpop.f32.mrb[0].mxu0
  %v1499 = vadd.f32 0.0, %v1498
  %v1500 = vpop.f32.mrb[0].mxu0
  %1501 = vmatprep.mubr.bf16.mxu0 0
  %1502 = vmatmul.mubr.bf16.gmra.mrb[0].mxu0 %v1175
  %v1503 = vpop.f32.mrb[0].mxu0
  %v1504 = vadd.f32 0.0, %v1503
  %v1505 = vpop.f32.mrb[0].mxu0
  %v1506 = vpop.f32.mrb[0].mxu0
  %v1507 = vadd.f32 0.0, %v1506
  %v1508 = vpop.f32.mrb[0].mxu0
  %1509 = vmatprep.mubr.bf16.mxu0 0
  %1510 = vmatmul.mubr.bf16.gmra.mrb[0].mxu0 %v1176
  %v1511 = vpop.f32.mrb[0].mxu0
  %v1512 = vadd.f32 0.0, %v1511
  %v1513 = vpop.f32.mrb[0].mxu0
  %v1514 = vpop.f32.mrb[0].mxu0
  %v1515 = vadd.f32 0.0, %v1514
  %v1516 = vpop.f32.mrb[0].mxu0
  %1517 = vmatprep.mubr.bf16.mxu0 0
  %1518 = vmatmul.mubr.bf16.gmra.mrb[0].mxu0 %v1177
  %v1519 = vpop.f32.mrb[0].mxu0
  %v1520 = vadd.f32 0.0, %v1519
  %v1521 = vpop.f32.mrb[0].mxu0
  %v1522 = vpop.f32.mrb[0].mxu0
  %v1523 = vadd.f32 0.0, %v1522
  %v1524 = vpop.f32.mrb[0].mxu0
  %1525 = vmatprep.mubr.bf16.mxu0 0
  %1526 = vmatmul.mubr.bf16.gmra.mrb[0].mxu0 %v1178
  %v1527 = vpop.f32.mrb[0].mxu0
  %v1528 = vadd.f32 0.0, %v1527
  %v1529 = vpop.f32.mrb[0].mxu0
  %v1530 = vpop.f32.mrb[0].mxu0
  %v1531 = vadd.f32 0.0, %v1530
  %v1532 = vpop.f32.mrb[0].mxu0
  %1533 = vmatprep.mubr.bf16.mxu0 0
  %1534 = vmatmul.mubr.bf16.gmra.mrb[0].mxu0 %v1179
  %v1535 = vpop.f32.mrb[0].mxu0
  %v1536 = vadd.f32 0.0, %v1535
  %v1537 = vpop.f32.mrb[0].mxu0
  %v1538 = vpop.f32.mrb[0].mxu0
  %v1539 = vadd.f32 0.0, %v1538
  %v1540 = vpop.f32.mrb[0].mxu0
  %1541 = vmatprep.mubr.bf16.mxu0 0
  %1542 = vmatmul.mubr.bf16.gmra.mrb[0].mxu0 %v1180
  %v1543 = vpop.f32.mrb[0].mxu0
  %v1544 = vadd.f32 0.0, %v1543
  %v1545 = vpop.f32.mrb[0].mxu0
  %v1546 = vpop.f32.mrb[0].mxu0
  %v1547 = vpop.f32.mrb[0].mxu0
  %1548 = vdwg.mxu0
  %v1549 = vld [vmem:[%s7 + $0x80] sm:$0xf]
  %v1550 = vld [vmem:[%s7 + $0x84] sm:$0xf]
  %v1551 = vld [vmem:[%s7 + $0x88] sm:$0xf]
  %v1552 = vld [vmem:[%s7 + $0x8c] sm:$0xf]
  %v1553 = vld [vmem:[%s7 + $0x90] sm:$0xf]
  %v1554 = vld [vmem:[%s7 + $0x94] sm:$0xf]
  %v1555 = vld [vmem:[%s7 + $0x98] sm:$0xf]
  %v1556 = vld [vmem:[%s7 + $0x9c] sm:$0xf]
  %v1557 = vld [vmem:[%s7 + $0xa0] sm:$0xf]
  %v1558 = vld [vmem:[%s7 + $0xa4] sm:$0xf]
  %v1559 = vld [vmem:[%s7 + $0xa8] sm:$0xf]
  %v1560 = vld [vmem:[%s7 + $0xac] sm:$0xf]
  %v1561 = vld [vmem:[%s7 + $0xb0] sm:$0xf]
  %v1562 = vld [vmem:[%s7 + $0xb4] sm:$0xf]
  %v1563 = vld [vmem:[%s7 + $0xb8] sm:$0xf]
  %v1564 = vld [vmem:[%s7 + $0xbc] sm:$0xf]
  %v1581 = vunpack.c.l.b16 %v1549
  %v1582 = vunpack.c.l.b16 %v1550
  %v1583 = vunpack.c.l.b16 %v1551
  %v1584 = vunpack.c.l.b16 %v1552
  %v1585 = vunpack.c.l.b16 %v1553
  %v1586 = vunpack.c.l.b16 %v1554
  %v1587 = vunpack.c.l.b16 %v1555
  %v1588 = vunpack.c.l.b16 %v1556
  %v1589 = vunpack.c.l.b16 %v1557
  %v1590 = vunpack.c.l.b16 %v1558
  %v1591 = vunpack.c.l.b16 %v1559
  %v1592 = vunpack.c.l.b16 %v1560
  %v1593 = vunpack.c.l.b16 %v1561
  %v1594 = vunpack.c.l.b16 %v1562
  %v1595 = vunpack.c.l.b16 %v1563
  %v1596 = vunpack.c.l.b16 %v1564
  %v1597 = vpack.c.b16 %v1582, %v1581
  %v1598 = vpack.c.b16 %v1584, %v1583
  %v1599 = vpack.c.b16 %v1586, %v1585
  %v1600 = vpack.c.b16 %v1588, %v1587
  %v1601 = vpack.c.b16 %v1590, %v1589
  %v1602 = vpack.c.b16 %v1592, %v1591
  %v1603 = vpack.c.b16 %v1594, %v1593
  %v1604 = vpack.c.b16 %v1596, %v1595
  %1613 = vmatprep.subr.bf16.mxu0 0
  %1614 = vmatpush1.bf16.msra.mxu0 %v1597
  %1615 = vmatprep.subr.bf16.mxu0 0
  %1616 = vmatpush1.bf16.msra.mxu0 %v1598
  %1617 = vmatprep.subr.bf16.mxu0 0
  %1618 = vmatpush1.bf16.msra.mxu0 %v1599
  %1619 = vmatprep.subr.bf16.mxu0 0
  %1620 = vmatpush1.bf16.msra.mxu0 %v1600
  %1621 = vmatprep.subr.bf16.mxu0 0
  %1622 = vmatpush1.bf16.msra.mxu0 %v1601
  %1623 = vmatprep.subr.bf16.mxu0 0
  %1624 = vmatpush1.bf16.msra.mxu0 %v1602
  %1625 = vmatprep.subr.bf16.mxu0 0
  %1626 = vmatpush1.bf16.msra.mxu0 %v1603
  %1627 = vmatprep.subr.bf16.mxu0 0
  %1628 = vmatpush1.bf16.msra.mxu0 %v1604
  %1629 = vmatprep.subr.bf16.mxu0 0
  %1630 = vmatpush1.bf16.msra.mxu0 0
  %1631 = vmatprep.subr.bf16.mxu0 0
  %1632 = vmatpush1.bf16.msra.mxu0 0
  %1633 = vmatprep.subr.bf16.mxu0 0
  %1634 = vmatpush1.bf16.msra.mxu0 0
  %1635 = vmatprep.subr.bf16.mxu0 0
  %1636 = vmatpush1.bf16.msra.mxu0 0
  %1637 = vmatprep.subr.bf16.mxu0 0
  %1638 = vmatpush1.bf16.msra.mxu0 0
  %1639 = vmatprep.subr.bf16.mxu0 0
  %1640 = vmatpush1.bf16.msra.mxu0 0
  %1641 = vmatprep.subr.bf16.mxu0 0
  %1642 = vmatpush1.bf16.msra.mxu0 0
  %1643 = vmatprep.subr.bf16.mxu0 0
  %1644 = vmatpush1.bf16.msra.mxu0 0
  %1645 = vmatprep.mubr.bf16.mxu0 0
  %1646 = vmatmul.mubr.bf16.gmra.mrb[0].mxu0 %v1170
  %v1647 = vpop.f32.mrb[0].mxu0
  %v1648 = vadd.f32 0.0, %v1647
  %v1649 = vpop.f32.mrb[0].mxu0
  %v1650 = vpop.f32.mrb[0].mxu0
  %v1651 = vadd.f32 0.0, %v1650
  %v1652 = vpop.f32.mrb[0].mxu0
  %1653 = vmatprep.mubr.bf16.mxu0 0
  %1654 = vmatmul.mubr.bf16.gmra.mrb[0].mxu0 %v1171
  %v1655 = vpop.f32.mrb[0].mxu0
  %v1656 = vadd.f32 0.0, %v1655
  %v1657 = vpop.f32.mrb[0].mxu0
  %v1658 = vpop.f32.mrb[0].mxu0
  %v1659 = vadd.f32 0.0, %v1658
  %v1660 = vpop.f32.mrb[0].mxu0
  %1661 = vmatprep.mubr.bf16.mxu0 0
  %1662 = vmatmul.mubr.bf16.gmra.mrb[0].mxu0 %v1172
  %v1663 = vpop.f32.mrb[0].mxu0
  %v1664 = vadd.f32 0.0, %v1663
  %v1665 = vpop.f32.mrb[0].mxu0
  %v1666 = vpop.f32.mrb[0].mxu0
  %v1667 = vadd.f32 0.0, %v1666
  %v1668 = vpop.f32.mrb[0].mxu0
  %1669 = vmatprep.mubr.bf16.mxu0 0
  %1670 = vmatmul.mubr.bf16.gmra.mrb[0].mxu0 %v1173
  %v1671 = vpop.f32.mrb[0].mxu0
  %v1672 = vadd.f32 0.0, %v1671
  %v1673 = vpop.f32.mrb[0].mxu0
  %v1674 = vpop.f32.mrb[0].mxu0
  %v1675 = vadd.f32 0.0, %v1674
  %v1676 = vpop.f32.mrb[0].mxu0
  %1677 = vmatprep.mubr.bf16.mxu0 0
  %1678 = vmatmul.mubr.bf16.gmra.mrb[0].mxu0 %v1174
  %v1679 = vpop.f32.mrb[0].mxu0
  %v1680 = vadd.f32 0.0, %v1679
  %v1681 = vpop.f32.mrb[0].mxu0
  %v1682 = vpop.f32.mrb[0].mxu0
  %v1683 = vadd.f32 0.0, %v1682
  %v1684 = vpop.f32.mrb[0].mxu0
  %1685 = vmatprep.mubr.bf16.mxu0 0
  %1686 = vmatmul.mubr.bf16.gmra.mrb[0].mxu0 %v1175
  %v1687 = vpop.f32.mrb[0].mxu0
  %v1688 = vadd.f32 0.0, %v1687
  %v1689 = vpop.f32.mrb[0].mxu0
  %v1690 = vpop.f32.mrb[0].mxu0
  %v1691 = vadd.f32 0.0, %v1690
  %v1692 = vpop.f32.mrb[0].mxu0
  %1693 = vmatprep.mubr.bf16.mxu0 0
  %1694 = vmatmul.mubr.bf16.gmra.mrb[0].mxu0 %v1176
  %v1695 = vpop.f32.mrb[0].mxu0
  %v1696 = vadd.f32 0.0, %v1695
  %v1697 = vpop.f32.mrb[0].mxu0
  %v1698 = vpop.f32.mrb[0].mxu0
  %v1699 = vadd.f32 0.0, %v1698
  %v1700 = vpop.f32.mrb[0].mxu0
  %1701 = vmatprep.mubr.bf16.mxu0 0
  %1702 = vmatmul.mubr.bf16.gmra.mrb[0].mxu0 %v1177
  %v1703 = vpop.f32.mrb[0].mxu0
  %v1704 = vadd.f32 0.0, %v1703
  %v1705 = vpop.f32.mrb[0].mxu0
  %v1706 = vpop.f32.mrb[0].mxu0
  %v1707 = vadd.f32 0.0, %v1706
  %v1708 = vpop.f32.mrb[0].mxu0
  %1709 = vmatprep.mubr.bf16.mxu0 0
  %1710 = vmatmul.mubr.bf16.gmra.mrb[0].mxu0 %v1178
  %v1711 = vpop.f32.mrb[0].mxu0
  %v1712 = vadd.f32 0.0, %v1711
  %v1713 = vpop.f32.mrb[0].mxu0
  %v1714 = vpop.f32.mrb[0].mxu0
  %v1715 = vadd.f32 0.0, %v1714
  %v1716 = vpop.f32.mrb[0].mxu0
  %1717 = vmatprep.mubr.bf16.mxu0 0
  %1718 = vmatmul.mubr.bf16.gmra.mrb[0].mxu0 %v1179
  %v1719 = vpop.f32.mrb[0].mxu0
  %v1720 = vadd.f32 0.0, %v1719
  %v1721 = vpop.f32.mrb[0].mxu0
  %v1722 = vpop.f32.mrb[0].mxu0
  %v1723 = vadd.f32 0.0, %v1722
  %v1724 = vpop.f32.mrb[0].mxu0
  %1725 = vmatprep.mubr.bf16.mxu0 0
  %1726 = vmatmul.mubr.bf16.gmra.mrb[0].mxu0 %v1180
  %v1727 = vpop.f32.mrb[0].mxu0
  %v1728 = vadd.f32 0.0, %v1727
  %v1729 = vpop.f32.mrb[0].mxu0
  %v1730 = vpop.f32.mrb[0].mxu0
  %v1731 = vpop.f32.mrb[0].mxu0
  %1732 = vdwg.mxu0
  %v1744 = vrot.slane %v1464, 1
  %v1745 = vrot.slane %v1467, 1
  %v1746 = vsel %vm595, %v1744, %v1745
  %v1747 = vrot.slane %v1472, 1
  %v1748 = vsel %vm595, %v1745, %v1747
  %v1749 = vrot.slane %v1475, 1
  %v1750 = vsel %vm595, %v1747, %v1749
  %v1751 = vrot.slane %v1480, 1
  %v1752 = vsel %vm595, %v1749, %v1751
  %v1753 = vrot.slane %v1483, 1
  %v1754 = vsel %vm595, %v1751, %v1753
  %v1755 = vrot.slane %v1488, 1
  %v1756 = vsel %vm595, %v1753, %v1755
  %v1757 = vrot.slane %v1491, 1
  %v1758 = vsel %vm595, %v1755, %v1757
  %v1759 = vrot.slane %v1496, 1
  %v1760 = vsel %vm595, %v1757, %v1759
  %v1761 = vrot.slane %v1499, 1
  %v1762 = vsel %vm595, %v1759, %v1761
  %v1763 = vrot.slane %v1504, 1
  %v1764 = vsel %vm595, %v1761, %v1763
  %v1775 = vadd.f32 %v1280, %v1746
  %v1776 = vadd.f32 %v1283, %v1748
  %v1777 = vadd.f32 %v1288, %v1750
  %v1778 = vadd.f32 %v1291, %v1752
  %v1779 = vadd.f32 %v1296, %v1754
  %v1780 = vadd.f32 %v1299, %v1756
  %v1781 = vadd.f32 %v1304, %v1758
  %v1782 = vadd.f32 %v1307, %v1760
  %v1783 = vadd.f32 %v1312, %v1762
  %v1784 = vadd.f32 %v1315, %v1764
  %v1796 = vrot.slane %v1648, 2
  %v1797 = vrot.slane %v1651, 2
  %v1798 = vsel %vm650, %v1796, %v1797
  %v1799 = vrot.slane %v1656, 2
  %v1800 = vsel %vm650, %v1797, %v1799
  %v1801 = vrot.slane %v1659, 2
  %v1802 = vsel %vm650, %v1799, %v1801
  %v1803 = vrot.slane %v1664, 2
  %v1804 = vsel %vm650, %v1801, %v1803
  %v1805 = vrot.slane %v1667, 2
  %v1806 = vsel %vm650, %v1803, %v1805
  %v1807 = vrot.slane %v1672, 2
  %v1808 = vsel %vm650, %v1805, %v1807
  %v1809 = vrot.slane %v1675, 2
  %v1810 = vsel %vm650, %v1807, %v1809
  %v1811 = vrot.slane %v1680, 2
  %v1812 = vsel %vm650, %v1809, %v1811
  %v1813 = vrot.slane %v1683, 2
  %v1814 = vsel %vm650, %v1811, %v1813
  %v1815 = vrot.slane %v1688, 2
  %v1816 = vsel %vm650, %v1813, %v1815
  %v1827 = vadd.f32 %v1775, %v1798
  %v1828 = vadd.f32 %v1776, %v1800
  %v1829 = vadd.f32 %v1777, %v1802
  %v1830 = vadd.f32 %v1778, %v1804
  %v1831 = vadd.f32 %v1779, %v1806
  %v1832 = vadd.f32 %v1780, %v1808
  %v1833 = vadd.f32 %v1781, %v1810
  %v1834 = vadd.f32 %v1782, %v1812
  %v1835 = vadd.f32 %v1783, %v1814
  %v1836 = vadd.f32 %v1784, %v1816
  %v1847 = vrot.slane %v1507, 1
  %v1848 = vsel %vm595, %v1763, %v1847
  %v1849 = vrot.slane %v1512, 1
  %v1850 = vsel %vm595, %v1847, %v1849
  %v1851 = vrot.slane %v1515, 1
  %v1852 = vsel %vm595, %v1849, %v1851
  %v1853 = vrot.slane %v1520, 1
  %v1854 = vsel %vm595, %v1851, %v1853
  %v1855 = vrot.slane %v1523, 1
  %v1856 = vsel %vm595, %v1853, %v1855
  %v1857 = vrot.slane %v1528, 1
  %v1858 = vsel %vm595, %v1855, %v1857
  %v1859 = vrot.slane %v1531, 1
  %v1860 = vsel %vm595, %v1857, %v1859
  %v1861 = vrot.slane %v1536, 1
  %v1862 = vsel %vm595, %v1859, %v1861
  %v1863 = vrot.slane %v1539, 1
  %v1864 = vsel %vm595, %v1861, %v1863
  %v1865 = vrot.slane %v1544, 1
  %v1866 = vsel %vm595, %v1863, %v1865
  %v1878 = vadd.f32 %v1320, %v1848
  %v1879 = vadd.f32 %v1323, %v1850
  %v1880 = vadd.f32 %v1328, %v1852
  %v1881 = vadd.f32 %v1331, %v1854
  %v1882 = vadd.f32 %v1336, %v1856
  %v1883 = vadd.f32 %v1339, %v1858
  %v1884 = vadd.f32 %v1344, %v1860
  %v1885 = vadd.f32 %v1347, %v1862
  %v1886 = vadd.f32 %v1352, %v1864
  %v1887 = vadd.f32 %v1355, %v1866
  %v1888 = vadd.f32 %v1360, %v1865
  %v1899 = vrot.slane %v1691, 2
  %v1900 = vsel %vm650, %v1815, %v1899
  %v1901 = vrot.slane %v1696, 2
  %v1902 = vsel %vm650, %v1899, %v1901
  %v1903 = vrot.slane %v1699, 2
  %v1904 = vsel %vm650, %v1901, %v1903
  %v1905 = vrot.slane %v1704, 2
  %v1906 = vsel %vm650, %v1903, %v1905
  %v1907 = vrot.slane %v1707, 2
  %v1908 = vsel %vm650, %v1905, %v1907
  %v1909 = vrot.slane %v1712, 2
  %v1910 = vsel %vm650, %v1907, %v1909
  %v1911 = vrot.slane %v1715, 2
  %v1912 = vsel %vm650, %v1909, %v1911
  %v1913 = vrot.slane %v1720, 2
  %v1914 = vsel %vm650, %v1911, %v1913
  %v1915 = vrot.slane %v1723, 2
  %v1916 = vsel %vm650, %v1913, %v1915
  %v1917 = vrot.slane %v1728, 2
  %v1918 = vsel %vm650, %v1915, %v1917
  %v1930 = vadd.f32 %v1878, %v1900
  %v1931 = vadd.f32 %v1879, %v1902
  %v1932 = vadd.f32 %v1880, %v1904
  %v1933 = vadd.f32 %v1881, %v1906
  %v1934 = vadd.f32 %v1882, %v1908
  %v1935 = vadd.f32 %v1883, %v1910
  %v1936 = vadd.f32 %v1884, %v1912
  %v1937 = vadd.f32 %v1885, %v1914
  %v1938 = vadd.f32 %v1886, %v1916
  %v1939 = vadd.f32 %v1887, %v1918
  %v1940 = vadd.f32 %v1888, %v1917
  %v1952 = vrot.slane %v1930, 2
  %v1953 = vrot.slane %v1931, 2
  %v1954 = vsel %vm650, %v1952, %v1953
  %v1955 = vrot.slane %v1932, 2
  %v1956 = vsel %vm650, %v1953, %v1955
  %v1957 = vrot.slane %v1933, 2
  %v1958 = vsel %vm650, %v1955, %v1957
  %v1959 = vrot.slane %v1934, 2
  %v1960 = vsel %vm650, %v1957, %v1959
  %v1961 = vrot.slane %v1935, 2
  %v1962 = vsel %vm650, %v1959, %v1961
  %v1963 = vrot.slane %v1936, 2
  %v1964 = vsel %vm650, %v1961, %v1963
  %v1965 = vrot.slane %v1937, 2
  %v1966 = vsel %vm650, %v1963, %v1965
  %v1967 = vrot.slane %v1938, 2
  %v1968 = vsel %vm650, %v1965, %v1967
  %v1969 = vrot.slane %v1939, 2
  %v1970 = vsel %vm650, %v1967, %v1969
  %v1971 = vrot.slane %v1940, 2
  %v1972 = vsel %vm650, %v1969, %v1971
  %v1994 = vrot.slane %v1149, 1
  %v1995 = vrot.slane %v1150, 1
  %v1996 = vsel %vm595, %v1994, %v1995
  %v1997 = vrot.slane %v1151, 1
  %v1998 = vsel %vm595, %v1995, %v1997
  %v1999 = vrot.slane %v1152, 1
  %v2000 = vsel %vm595, %v1997, %v1999
  %v2001 = vrot.slane %v1153, 1
  %v2002 = vsel %vm595, %v1999, %v2001
  %v2003 = vrot.slane %v1154, 1
  %v2004 = vsel %vm595, %v2001, %v2003
  %v2005 = vrot.slane %v1155, 1
  %v2006 = vsel %vm595, %v2003, %v2005
  %v2007 = vrot.slane %v1156, 1
  %v2008 = vsel %vm595, %v2005, %v2007
  %v2009 = vrot.slane %v1157, 1
  %v2010 = vsel %vm595, %v2007, %v2009
  %v2011 = vrot.slane %v1158, 1
  %v2012 = vsel %vm595, %v2009, %v2011
  %v2013 = vrot.slane %v1159, 1
  %v2014 = vsel %vm595, %v2011, %v2013
  %vm2035 = vcmask 1044480
  %v2036 = vrot.slane %v1159, 3
  %v2037 = vrot.slane %v1160, 3
  %v2038 = vsel %vm2035, %v2036, %v2037
  %v2039 = vrot.slane %v1161, 3
  %v2040 = vsel %vm2035, %v2037, %v2039
  %v2041 = vrot.slane %v1162, 3
  %v2042 = vsel %vm2035, %v2039, %v2041
  %v2043 = vrot.slane %v1163, 3
  %v2044 = vsel %vm2035, %v2041, %v2043
  %v2045 = vrot.slane %v1164, 3
  %v2046 = vsel %vm2035, %v2043, %v2045
  %v2047 = vrot.slane %v1165, 3
  %v2048 = vsel %vm2035, %v2045, %v2047
  %v2049 = vrot.slane %v1166, 3
  %v2050 = vsel %vm2035, %v2047, %v2049
  %v2051 = vrot.slane %v1167, 3
  %v2052 = vsel %vm2035, %v2049, %v2051
  %v2053 = vrot.slane %v1168, 3
  %v2054 = vsel %vm2035, %v2051, %v2053
  %v2055 = vrot.slane %v1169, 3
  %v2056 = vsel %vm2035, %v2053, %v2055
  %v2067 = vpack.c.bf16 %v1828, %v1827
  %v2068 = vpack.c.bf16 %v1830, %v1829
  %v2069 = vpack.c.bf16 %v1832, %v1831
  %v2070 = vpack.c.bf16 %v1834, %v1833
  %v2071 = vpack.c.bf16 %v1836, %v1835
  %v2072 = vpack.c.bf16 %v1956, %v1954
  %v2073 = vpack.c.bf16 %v1960, %v1958
  %v2074 = vpack.c.bf16 %v1964, %v1962
  %v2075 = vpack.c.bf16 %v1968, %v1966
  %v2076 = vpack.c.bf16 %v1972, %v1970
  %v2077 = vld [vmem:[%s9] sm:$0xf]
  %v2078 = vld [vmem:[%s9 + $0x4] sm:$0xf]
  %v2079 = vld [vmem:[%s9 + $0x8] sm:$0xf]
  %v2080 = vld [vmem:[%s9 + $0xc] sm:$0xf]
  %v2081 = vmul.f32 %v1996, 0.66
  %v2082 = vmul.f32 %v1998, 0.66
  %v2083 = vmul.f32 %v2000, 0.66
  %v2084 = vmul.f32 %v2002, 0.66
  %v2085 = vmul.f32 %v2004, 0.66
  %v2086 = vmul.f32 %v2006, 0.66
  %v2087 = vmul.f32 %v2008, 0.66
  %v2088 = vmul.f32 %v2010, 0.66
  %v2089 = vmul.f32 %v2012, 0.66
  %v2090 = vmul.f32 %v2014, 0.66
  %v2091 = vmul.f32 %v2038, 0.66
  %v2092 = vmul.f32 %v2040, 0.66
  %v2093 = vmul.f32 %v2042, 0.66
  %v2094 = vmul.f32 %v2044, 0.66
  %v2095 = vmul.f32 %v2046, 0.66
  %v2096 = vmul.f32 %v2048, 0.66
  %v2097 = vmul.f32 %v2050, 0.66
  %v2098 = vmul.f32 %v2052, 0.66
  %v2099 = vmul.f32 %v2054, 0.66
  %v2100 = vmul.f32 %v2056, 0.66
  %v2105 = vunpack.c.l.b16 %v2077
  %v2106 = vunpack.c.l.b16 %v2078
  %v2107 = vunpack.c.l.b16 %v2079
  %v2108 = vunpack.c.l.b16 %v2080
  %v2109 = vpack.c.b16 %v2106, %v2105
  %v2110 = vpack.c.b16 %v2108, %v2107
  %v2114 = vsel %vm870, %v2067, 0
  %v2117 = vsel %vm870, %v2068, 0
  %v2120 = vsel %vm870, %v2069, 0
  %v2123 = vsel %vm870, %v2070, 0
  %v2126 = vsel %vm870, %v2071, 0
  %v2129 = vsel %vm870, %v2072, 0
  %v2132 = vsel %vm870, %v2073, 0
  %v2135 = vsel %vm870, %v2074, 0
  %v2138 = vsel %vm870, %v2075, 0
  %v2141 = vsel %vm870, %v2076, 0
  %2143 = vmatprep.subr.bf16.mxu0 0
  %2144 = vmatpush1.bf16.msra.mxu0 %v2109
  %2145 = vmatprep.subr.bf16.mxu0 0
  %2146 = vmatpush1.bf16.msra.mxu0 %v2110
  %2147 = vmatprep.subr.bf16.mxu0 0
  %2148 = vmatpush1.bf16.msra.mxu0 0
  %2149 = vmatprep.subr.bf16.mxu0 0
  %2150 = vmatpush1.bf16.msra.mxu0 0
  %2151 = vmatprep.subr.bf16.mxu0 0
  %2152 = vmatpush1.bf16.msra.mxu0 0
  %2153 = vmatprep.subr.bf16.mxu0 0
  %2154 = vmatpush1.bf16.msra.mxu0 0
  %2155 = vmatprep.subr.bf16.mxu0 0
  %2156 = vmatpush1.bf16.msra.mxu0 0
  %2157 = vmatprep.subr.bf16.mxu0 0
  %2158 = vmatpush1.bf16.msra.mxu0 0
  %2159 = vmatprep.subr.bf16.mxu0 0
  %2160 = vmatpush1.bf16.msra.mxu0 0
  %2161 = vmatprep.subr.bf16.mxu0 0
  %2162 = vmatpush1.bf16.msra.mxu0 0
  %2163 = vmatprep.subr.bf16.mxu0 0
  %2164 = vmatpush1.bf16.msra.mxu0 0
  %2165 = vmatprep.subr.bf16.mxu0 0
  %2166 = vmatpush1.bf16.msra.mxu0 0
  %2167 = vmatprep.subr.bf16.mxu0 0
  %2168 = vmatpush1.bf16.msra.mxu0 0
  %2169 = vmatprep.subr.bf16.mxu0 0
  %2170 = vmatpush1.bf16.msra.mxu0 0
  %2171 = vmatprep.subr.bf16.mxu0 0
  %2172 = vmatpush1.bf16.msra.mxu0 0
  %2173 = vmatprep.subr.bf16.mxu0 0
  %2174 = vmatpush1.bf16.msra.mxu0 0
  %2175 = vmatprep.mubr.bf16.mxu0 0
  %2176 = vmatmul.mubr.bf16.gmra.mrb[0].mxu0 %v2114
  %v2177 = vpop.f32.mrb[0].mxu0
  %v2178 = vadd.f32 %v2081, %v2177
  %v2179 = vpop.f32.mrb[0].mxu0
  %v2180 = vpop.f32.mrb[0].mxu0
  %v2181 = vadd.f32 %v2082, %v2180
  %v2182 = vpop.f32.mrb[0].mxu0
  %2183 = vmatprep.mubr.bf16.mxu0 0
  %2184 = vmatmul.mubr.bf16.gmra.mrb[0].mxu0 %v2117
  %v2185 = vpop.f32.mrb[0].mxu0
  %v2186 = vadd.f32 %v2083, %v2185
  %v2187 = vpop.f32.mrb[0].mxu0
  %v2188 = vpop.f32.mrb[0].mxu0
  %v2189 = vadd.f32 %v2084, %v2188
  %v2190 = vpop.f32.mrb[0].mxu0
  %2191 = vmatprep.mubr.bf16.mxu0 0
  %2192 = vmatmul.mubr.bf16.gmra.mrb[0].mxu0 %v2120
  %v2193 = vpop.f32.mrb[0].mxu0
  %v2194 = vadd.f32 %v2085, %v2193
  %v2195 = vpop.f32.mrb[0].mxu0
  %v2196 = vpop.f32.mrb[0].mxu0
  %v2197 = vadd.f32 %v2086, %v2196
  %v2198 = vpop.f32.mrb[0].mxu0
  %2199 = vmatprep.mubr.bf16.mxu0 0
  %2200 = vmatmul.mubr.bf16.gmra.mrb[0].mxu0 %v2123
  %v2201 = vpop.f32.mrb[0].mxu0
  %v2202 = vadd.f32 %v2087, %v2201
  %v2203 = vpop.f32.mrb[0].mxu0
  %v2204 = vpop.f32.mrb[0].mxu0
  %v2205 = vadd.f32 %v2088, %v2204
  %v2206 = vpop.f32.mrb[0].mxu0
  %2207 = vmatprep.mubr.bf16.mxu0 0
  %2208 = vmatmul.mubr.bf16.gmra.mrb[0].mxu0 %v2126
  %v2209 = vpop.f32.mrb[0].mxu0
  %v2210 = vadd.f32 %v2089, %v2209
  %v2211 = vpop.f32.mrb[0].mxu0
  %v2212 = vpop.f32.mrb[0].mxu0
  %v2213 = vadd.f32 %v2090, %v2212
  %v2214 = vpop.f32.mrb[0].mxu0
  %2215 = vmatprep.mubr.bf16.mxu0 0
  %2216 = vmatmul.mubr.bf16.gmra.mrb[0].mxu0 %v2129
  %v2217 = vpop.f32.mrb[0].mxu0
  %v2218 = vadd.f32 %v2091, %v2217
  %v2219 = vpop.f32.mrb[0].mxu0
  %v2220 = vpop.f32.mrb[0].mxu0
  %v2221 = vadd.f32 %v2092, %v2220
  %v2222 = vpop.f32.mrb[0].mxu0
  %2223 = vmatprep.mubr.bf16.mxu0 0
  %2224 = vmatmul.mubr.bf16.gmra.mrb[0].mxu0 %v2132
  %v2225 = vpop.f32.mrb[0].mxu0
  %v2226 = vadd.f32 %v2093, %v2225
  %v2227 = vpop.f32.mrb[0].mxu0
  %v2228 = vpop.f32.mrb[0].mxu0
  %v2229 = vadd.f32 %v2094, %v2228
  %v2230 = vpop.f32.mrb[0].mxu0
  %2231 = vmatprep.mubr.bf16.mxu0 0
  %2232 = vmatmul.mubr.bf16.gmra.mrb[0].mxu0 %v2135
  %v2233 = vpop.f32.mrb[0].mxu0
  %v2234 = vadd.f32 %v2095, %v2233
  %v2235 = vpop.f32.mrb[0].mxu0
  %v2236 = vpop.f32.mrb[0].mxu0
  %v2237 = vadd.f32 %v2096, %v2236
  %v2238 = vpop.f32.mrb[0].mxu0
  %2239 = vmatprep.mubr.bf16.mxu0 0
  %2240 = vmatmul.mubr.bf16.gmra.mrb[0].mxu0 %v2138
  %v2241 = vpop.f32.mrb[0].mxu0
  %v2242 = vadd.f32 %v2097, %v2241
  %v2243 = vpop.f32.mrb[0].mxu0
  %v2244 = vpop.f32.mrb[0].mxu0
  %v2245 = vadd.f32 %v2098, %v2244
  %v2246 = vpop.f32.mrb[0].mxu0
  %2247 = vmatprep.mubr.bf16.mxu0 0
  %2248 = vmatmul.mubr.bf16.gmra.mrb[0].mxu0 %v2141
  %v2249 = vpop.f32.mrb[0].mxu0
  %v2250 = vadd.f32 %v2099, %v2249
  %v2251 = vpop.f32.mrb[0].mxu0
  %v2252 = vpop.f32.mrb[0].mxu0
  %v2253 = vadd.f32 %v2100, %v2252
  %v2254 = vpop.f32.mrb[0].mxu0
  %2255 = vdwg.mxu0
  %v2256 = vadd.f32 %v2178, %v2181
  %v2257 = vadd.f32 %v2256, %v2186
  %v2258 = vadd.f32 %v2257, %v2189
  %v2259 = vadd.f32 %v2258, %v2194
  %v2260 = vadd.f32 %v2259, %v2197
  %v2261 = vadd.f32 %v2260, %v2202
  %v2262 = vadd.f32 %v2261, %v2205
  %v2263 = vadd.f32 %v2262, %v2210
  %v2264 = vadd.f32 %v2263, %v2213
  %v2265 = vadd.f32 %v2264, %v2218
  %v2266 = vadd.f32 %v2265, %v2221
  %v2267 = vadd.f32 %v2266, %v2226
  %v2268 = vadd.f32 %v2267, %v2229
  %v2269 = vadd.f32 %v2268, %v2234
  %v2270 = vadd.f32 %v2269, %v2237
  %v2271 = vadd.f32 %v2270, %v2242
  %v2272 = vadd.f32 %v2271, %v2245
  %v2273 = vadd.f32 %v2272, %v2250
  %v2274 = vadd.f32 %v2273, %v2253
  %v2275 = vrot.slane %v2274, 4
  %v2276 = vadd.f32 %v2274, %v2275
  %v2277 = vrot.slane %v2276, 2
  %v2278 = vadd.f32 %v2276, %v2277
  %v2279 = vrot.slane %v2278, 1
  %v2280 = vadd.f32 %v2278, %v2279
  %v2281 = vmul.f32 %v2178, %v2178
  %v2282 = vmul.f32 %v2181, %v2181
  %v2283 = vmul.f32 %v2186, %v2186
  %v2284 = vmul.f32 %v2189, %v2189
  %v2285 = vmul.f32 %v2194, %v2194
  %v2286 = vmul.f32 %v2197, %v2197
  %v2287 = vmul.f32 %v2202, %v2202
  %v2288 = vmul.f32 %v2205, %v2205
  %v2289 = vmul.f32 %v2210, %v2210
  %v2290 = vmul.f32 %v2213, %v2213
  %v2291 = vmul.f32 %v2218, %v2218
  %v2292 = vmul.f32 %v2221, %v2221
  %v2293 = vmul.f32 %v2226, %v2226
  %v2294 = vmul.f32 %v2229, %v2229
  %v2295 = vmul.f32 %v2234, %v2234
  %v2296 = vmul.f32 %v2237, %v2237
  %v2297 = vmul.f32 %v2242, %v2242
  %v2298 = vmul.f32 %v2245, %v2245
  %v2299 = vmul.f32 %v2250, %v2250
  %v2300 = vmul.f32 %v2253, %v2253
  %v2301 = vadd.f32 %v2281, %v2282
  %v2302 = vadd.f32 %v2301, %v2283
  %v2303 = vadd.f32 %v2302, %v2284
  %v2304 = vadd.f32 %v2303, %v2285
  %v2305 = vadd.f32 %v2304, %v2286
  %v2306 = vadd.f32 %v2305, %v2287
  %v2307 = vadd.f32 %v2306, %v2288
  %v2308 = vadd.f32 %v2307, %v2289
  %v2309 = vadd.f32 %v2308, %v2290
  %v2310 = vadd.f32 %v2309, %v2291
  %v2311 = vadd.f32 %v2310, %v2292
  %v2312 = vadd.f32 %v2311, %v2293
  %v2313 = vadd.f32 %v2312, %v2294
  %v2314 = vadd.f32 %v2313, %v2295
  %v2315 = vadd.f32 %v2314, %v2296
  %v2316 = vadd.f32 %v2315, %v2297
  %v2317 = vadd.f32 %v2316, %v2298
  %v2318 = vadd.f32 %v2317, %v2299
  %v2319 = vadd.f32 %v2318, %v2300
  %v2320 = vrot.slane %v2319, 4
  %v2321 = vadd.f32 %v2319, %v2320
  %v2322 = vrot.slane %v2321, 2
  %v2323 = vadd.f32 %v2321, %v2322
  %v2324 = vrot.slane %v2323, 1
  %v2325 = vadd.f32 %v2323, %v2324
  %v2326 = vmul.f32 %v2280, 0.00625
  %v2327 = vmul.f32 %v2325, 0.00625
  %v2328 = vmul.f32 %v2326, %v2326
  %v2329 = vsub.f32 %v2327, %v2328
  %v2330 = vmax.f32 %v2329, 0.0
  %v2331 = vadd.f32 %v2330, 1e-05
  %v2332 = vrsqrt.pop %v2331
  %v2333 = vsub.f32 %v2178, %v2326
  %v2334 = vsub.f32 %v2181, %v2326
  %v2335 = vsub.f32 %v2186, %v2326
  %v2336 = vsub.f32 %v2189, %v2326
  %v2337 = vsub.f32 %v2194, %v2326
  %v2338 = vsub.f32 %v2197, %v2326
  %v2339 = vsub.f32 %v2202, %v2326
  %v2340 = vsub.f32 %v2205, %v2326
  %v2341 = vsub.f32 %v2210, %v2326
  %v2342 = vsub.f32 %v2213, %v2326
  %v2343 = vsub.f32 %v2218, %v2326
  %v2344 = vsub.f32 %v2221, %v2326
  %v2345 = vsub.f32 %v2226, %v2326
  %v2346 = vsub.f32 %v2229, %v2326
  %v2347 = vsub.f32 %v2234, %v2326
  %v2348 = vsub.f32 %v2237, %v2326
  %v2349 = vsub.f32 %v2242, %v2326
  %v2350 = vsub.f32 %v2245, %v2326
  %v2351 = vsub.f32 %v2250, %v2326
  %v2352 = vsub.f32 %v2253, %v2326
  %v2353 = vmul.f32 %v2333, %v2332
  %v2354 = vmul.f32 %v2334, %v2332
  %v2355 = vmul.f32 %v2335, %v2332
  %v2356 = vmul.f32 %v2336, %v2332
  %v2357 = vmul.f32 %v2337, %v2332
  %v2358 = vmul.f32 %v2338, %v2332
  %v2359 = vmul.f32 %v2339, %v2332
  %v2360 = vmul.f32 %v2340, %v2332
  %v2361 = vmul.f32 %v2341, %v2332
  %v2362 = vmul.f32 %v2342, %v2332
  %v2363 = vmul.f32 %v2343, %v2332
  %v2364 = vmul.f32 %v2344, %v2332
  %v2365 = vmul.f32 %v2345, %v2332
  %v2366 = vmul.f32 %v2346, %v2332
  %v2367 = vmul.f32 %v2347, %v2332
  %v2368 = vmul.f32 %v2348, %v2332
  %v2369 = vmul.f32 %v2349, %v2332
  %v2370 = vmul.f32 %v2350, %v2332
  %v2371 = vmul.f32 %v2351, %v2332
  %v2372 = vmul.f32 %v2352, %v2332
  %v2373 = vmax.f32 %v2353, 0.0
  %v2374 = vmax.f32 %v2354, 0.0
  %v2375 = vmax.f32 %v2355, 0.0
  %v2376 = vmax.f32 %v2356, 0.0
  %v2377 = vmax.f32 %v2357, 0.0
  %v2378 = vmax.f32 %v2358, 0.0
  %v2379 = vmax.f32 %v2359, 0.0
  %v2380 = vmax.f32 %v2360, 0.0
  %v2381 = vmax.f32 %v2361, 0.0
  %v2382 = vmax.f32 %v2362, 0.0
  %v2383 = vmax.f32 %v2363, 0.0
  %v2384 = vmax.f32 %v2364, 0.0
  %v2385 = vmax.f32 %v2365, 0.0
  %v2386 = vmax.f32 %v2366, 0.0
  %v2387 = vmax.f32 %v2367, 0.0
  %v2388 = vmax.f32 %v2368, 0.0
  %v2389 = vmax.f32 %v2369, 0.0
  %v2390 = vmax.f32 %v2370, 0.0
  %v2391 = vmax.f32 %v2371, 0.0
  %v2392 = vmax.f32 %v2372, 0.0
  %v2393 = vpack.c.bf16 %v2374, %v2373
  %v2394 = vpack.c.bf16 %v2376, %v2375
  %v2395 = vpack.c.bf16 %v2378, %v2377
  %v2396 = vpack.c.bf16 %v2380, %v2379
  %v2397 = vpack.c.bf16 %v2382, %v2381
  %v2398 = vpack.c.bf16 %v2384, %v2383
  %v2399 = vpack.c.bf16 %v2386, %v2385
  %v2400 = vpack.c.bf16 %v2388, %v2387
  %v2401 = vpack.c.bf16 %v2390, %v2389
  %v2402 = vpack.c.bf16 %v2392, %v2391
  %v2403 = vld [vmem:[%s11] sm:$0xf]
  %v2404 = vld [vmem:[%s11 + $0x4] sm:$0xf]
  %v2405 = vld [vmem:[%s11 + $0x8] sm:$0xf]
  %v2406 = vld [vmem:[%s11 + $0xc] sm:$0xf]
  %v2407 = vld [vmem:[%s11 + $0x10] sm:$0xf]
  %v2408 = vld [vmem:[%s11 + $0x14] sm:$0xf]
  %v2409 = vld [vmem:[%s11 + $0x18] sm:$0xf]
  %v2410 = vld [vmem:[%s11 + $0x1c] sm:$0xf]
  %v2411 = vld [vmem:[%s11 + $0x20] sm:$0xf]
  %v2412 = vld [vmem:[%s11 + $0x24] sm:$0xf]
  %v2413 = vld [vmem:[%s11 + $0x28] sm:$0xf]
  %v2414 = vld [vmem:[%s11 + $0x2c] sm:$0xf]
  %v2415 = vld [vmem:[%s11 + $0x30] sm:$0xf]
  %v2416 = vld [vmem:[%s11 + $0x34] sm:$0xf]
  %v2417 = vld [vmem:[%s11 + $0x38] sm:$0xf]
  %v2418 = vld [vmem:[%s11 + $0x3c] sm:$0xf]
  %v2435 = vunpack.c.l.b16 %v2403
  %v2436 = vunpack.c.l.b16 %v2404
  %v2437 = vunpack.c.l.b16 %v2405
  %v2438 = vunpack.c.l.b16 %v2406
  %v2439 = vunpack.c.l.b16 %v2407
  %v2440 = vunpack.c.l.b16 %v2408
  %v2441 = vunpack.c.l.b16 %v2409
  %v2442 = vunpack.c.l.b16 %v2410
  %v2443 = vunpack.c.l.b16 %v2411
  %v2444 = vunpack.c.l.b16 %v2412
  %v2445 = vunpack.c.l.b16 %v2413
  %v2446 = vunpack.c.l.b16 %v2414
  %v2447 = vunpack.c.l.b16 %v2415
  %v2448 = vunpack.c.l.b16 %v2416
  %v2449 = vunpack.c.l.b16 %v2417
  %v2450 = vunpack.c.l.b16 %v2418
  %v2451 = vpack.c.b16 %v2436, %v2435
  %v2452 = vpack.c.b16 %v2438, %v2437
  %v2453 = vpack.c.b16 %v2440, %v2439
  %v2454 = vpack.c.b16 %v2442, %v2441
  %v2455 = vpack.c.b16 %v2444, %v2443
  %v2456 = vpack.c.b16 %v2446, %v2445
  %v2457 = vpack.c.b16 %v2448, %v2447
  %v2458 = vpack.c.b16 %v2450, %v2449
  %2467 = vmatprep.subr.bf16.mxu0 0
  %2468 = vmatpush1.bf16.msra.mxu0 %v2451
  %2469 = vmatprep.subr.bf16.mxu0 0
  %2470 = vmatpush1.bf16.msra.mxu0 %v2452
  %2471 = vmatprep.subr.bf16.mxu0 0
  %2472 = vmatpush1.bf16.msra.mxu0 %v2453
  %2473 = vmatprep.subr.bf16.mxu0 0
  %2474 = vmatpush1.bf16.msra.mxu0 %v2454
  %2475 = vmatprep.subr.bf16.mxu0 0
  %2476 = vmatpush1.bf16.msra.mxu0 %v2455
  %2477 = vmatprep.subr.bf16.mxu0 0
  %2478 = vmatpush1.bf16.msra.mxu0 %v2456
  %2479 = vmatprep.subr.bf16.mxu0 0
  %2480 = vmatpush1.bf16.msra.mxu0 %v2457
  %2481 = vmatprep.subr.bf16.mxu0 0
  %2482 = vmatpush1.bf16.msra.mxu0 %v2458
  %2483 = vmatprep.subr.bf16.mxu0 0
  %2484 = vmatpush1.bf16.msra.mxu0 0
  %2485 = vmatprep.subr.bf16.mxu0 0
  %2486 = vmatpush1.bf16.msra.mxu0 0
  %2487 = vmatprep.subr.bf16.mxu0 0
  %2488 = vmatpush1.bf16.msra.mxu0 0
  %2489 = vmatprep.subr.bf16.mxu0 0
  %2490 = vmatpush1.bf16.msra.mxu0 0
  %2491 = vmatprep.subr.bf16.mxu0 0
  %2492 = vmatpush1.bf16.msra.mxu0 0
  %2493 = vmatprep.subr.bf16.mxu0 0
  %2494 = vmatpush1.bf16.msra.mxu0 0
  %2495 = vmatprep.subr.bf16.mxu0 0
  %2496 = vmatpush1.bf16.msra.mxu0 0
  %2497 = vmatprep.subr.bf16.mxu0 0
  %2498 = vmatpush1.bf16.msra.mxu0 0
  %2499 = vmatprep.mubr.bf16.mxu0 0
  %2500 = vmatmul.mubr.bf16.gmra.mrb[0].mxu0 %v2393
  %v2501 = vpop.f32.mrb[0].mxu0
  %v2502 = vadd.f32 0.0, %v2501
  %v2503 = vpop.f32.mrb[0].mxu0
  %v2504 = vpop.f32.mrb[0].mxu0
  %v2505 = vadd.f32 0.0, %v2504
  %v2506 = vpop.f32.mrb[0].mxu0
  %2507 = vmatprep.mubr.bf16.mxu0 0
  %2508 = vmatmul.mubr.bf16.gmra.mrb[0].mxu0 %v2394
  %v2509 = vpop.f32.mrb[0].mxu0
  %v2510 = vadd.f32 0.0, %v2509
  %v2511 = vpop.f32.mrb[0].mxu0
  %v2512 = vpop.f32.mrb[0].mxu0
  %v2513 = vadd.f32 0.0, %v2512
  %v2514 = vpop.f32.mrb[0].mxu0
  %2515 = vmatprep.mubr.bf16.mxu0 0
  %2516 = vmatmul.mubr.bf16.gmra.mrb[0].mxu0 %v2395
  %v2517 = vpop.f32.mrb[0].mxu0
  %v2518 = vadd.f32 0.0, %v2517
  %v2519 = vpop.f32.mrb[0].mxu0
  %v2520 = vpop.f32.mrb[0].mxu0
  %v2521 = vadd.f32 0.0, %v2520
  %v2522 = vpop.f32.mrb[0].mxu0
  %2523 = vmatprep.mubr.bf16.mxu0 0
  %2524 = vmatmul.mubr.bf16.gmra.mrb[0].mxu0 %v2396
  %v2525 = vpop.f32.mrb[0].mxu0
  %v2526 = vadd.f32 0.0, %v2525
  %v2527 = vpop.f32.mrb[0].mxu0
  %v2528 = vpop.f32.mrb[0].mxu0
  %v2529 = vadd.f32 0.0, %v2528
  %v2530 = vpop.f32.mrb[0].mxu0
  %2531 = vmatprep.mubr.bf16.mxu0 0
  %2532 = vmatmul.mubr.bf16.gmra.mrb[0].mxu0 %v2397
  %v2533 = vpop.f32.mrb[0].mxu0
  %v2534 = vadd.f32 0.0, %v2533
  %v2535 = vpop.f32.mrb[0].mxu0
  %v2536 = vpop.f32.mrb[0].mxu0
  %v2537 = vadd.f32 0.0, %v2536
  %v2538 = vpop.f32.mrb[0].mxu0
  %2539 = vmatprep.mubr.bf16.mxu0 0
  %2540 = vmatmul.mubr.bf16.gmra.mrb[0].mxu0 %v2398
  %v2541 = vpop.f32.mrb[0].mxu0
  %v2542 = vadd.f32 0.0, %v2541
  %v2543 = vpop.f32.mrb[0].mxu0
  %v2544 = vpop.f32.mrb[0].mxu0
  %v2545 = vadd.f32 0.0, %v2544
  %v2546 = vpop.f32.mrb[0].mxu0
  %2547 = vmatprep.mubr.bf16.mxu0 0
  %2548 = vmatmul.mubr.bf16.gmra.mrb[0].mxu0 %v2399
  %v2549 = vpop.f32.mrb[0].mxu0
  %v2550 = vadd.f32 0.0, %v2549
  %v2551 = vpop.f32.mrb[0].mxu0
  %v2552 = vpop.f32.mrb[0].mxu0
  %v2553 = vadd.f32 0.0, %v2552
  %v2554 = vpop.f32.mrb[0].mxu0
  %2555 = vmatprep.mubr.bf16.mxu0 0
  %2556 = vmatmul.mubr.bf16.gmra.mrb[0].mxu0 %v2400
  %v2557 = vpop.f32.mrb[0].mxu0
  %v2558 = vadd.f32 0.0, %v2557
  %v2559 = vpop.f32.mrb[0].mxu0
  %v2560 = vpop.f32.mrb[0].mxu0
  %v2561 = vadd.f32 0.0, %v2560
  %v2562 = vpop.f32.mrb[0].mxu0
  %2563 = vmatprep.mubr.bf16.mxu0 0
  %2564 = vmatmul.mubr.bf16.gmra.mrb[0].mxu0 %v2401
  %v2565 = vpop.f32.mrb[0].mxu0
  %v2566 = vadd.f32 0.0, %v2565
  %v2567 = vpop.f32.mrb[0].mxu0
  %v2568 = vpop.f32.mrb[0].mxu0
  %v2569 = vadd.f32 0.0, %v2568
  %v2570 = vpop.f32.mrb[0].mxu0
  %2571 = vmatprep.mubr.bf16.mxu0 0
  %2572 = vmatmul.mubr.bf16.gmra.mrb[0].mxu0 %v2402
  %v2573 = vpop.f32.mrb[0].mxu0
  %v2574 = vadd.f32 0.0, %v2573
  %v2575 = vpop.f32.mrb[0].mxu0
  %v2576 = vpop.f32.mrb[0].mxu0
  %v2577 = vadd.f32 0.0, %v2576
  %v2578 = vpop.f32.mrb[0].mxu0
  %2579 = vdwg.mxu0
  %v2580 = vld [vmem:[%s11 + $0x40] sm:$0xf]
  %v2581 = vld [vmem:[%s11 + $0x44] sm:$0xf]
  %v2582 = vld [vmem:[%s11 + $0x48] sm:$0xf]
  %v2583 = vld [vmem:[%s11 + $0x4c] sm:$0xf]
  %v2584 = vld [vmem:[%s11 + $0x50] sm:$0xf]
  %v2585 = vld [vmem:[%s11 + $0x54] sm:$0xf]
  %v2586 = vld [vmem:[%s11 + $0x58] sm:$0xf]
  %v2587 = vld [vmem:[%s11 + $0x5c] sm:$0xf]
  %v2588 = vld [vmem:[%s11 + $0x60] sm:$0xf]
  %v2589 = vld [vmem:[%s11 + $0x64] sm:$0xf]
  %v2590 = vld [vmem:[%s11 + $0x68] sm:$0xf]
  %v2591 = vld [vmem:[%s11 + $0x6c] sm:$0xf]
  %v2592 = vld [vmem:[%s11 + $0x70] sm:$0xf]
  %v2593 = vld [vmem:[%s11 + $0x74] sm:$0xf]
  %v2594 = vld [vmem:[%s11 + $0x78] sm:$0xf]
  %v2595 = vld [vmem:[%s11 + $0x7c] sm:$0xf]
  %v2612 = vunpack.c.l.b16 %v2580
  %v2613 = vunpack.c.l.b16 %v2581
  %v2614 = vunpack.c.l.b16 %v2582
  %v2615 = vunpack.c.l.b16 %v2583
  %v2616 = vunpack.c.l.b16 %v2584
  %v2617 = vunpack.c.l.b16 %v2585
  %v2618 = vunpack.c.l.b16 %v2586
  %v2619 = vunpack.c.l.b16 %v2587
  %v2620 = vunpack.c.l.b16 %v2588
  %v2621 = vunpack.c.l.b16 %v2589
  %v2622 = vunpack.c.l.b16 %v2590
  %v2623 = vunpack.c.l.b16 %v2591
  %v2624 = vunpack.c.l.b16 %v2592
  %v2625 = vunpack.c.l.b16 %v2593
  %v2626 = vunpack.c.l.b16 %v2594
  %v2627 = vunpack.c.l.b16 %v2595
  %v2628 = vpack.c.b16 %v2613, %v2612
  %v2629 = vpack.c.b16 %v2615, %v2614
  %v2630 = vpack.c.b16 %v2617, %v2616
  %v2631 = vpack.c.b16 %v2619, %v2618
  %v2632 = vpack.c.b16 %v2621, %v2620
  %v2633 = vpack.c.b16 %v2623, %v2622
  %v2634 = vpack.c.b16 %v2625, %v2624
  %v2635 = vpack.c.b16 %v2627, %v2626
  %2644 = vmatprep.subr.bf16.mxu0 0
  %2645 = vmatpush1.bf16.msra.mxu0 %v2628
  %2646 = vmatprep.subr.bf16.mxu0 0
  %2647 = vmatpush1.bf16.msra.mxu0 %v2629
  %2648 = vmatprep.subr.bf16.mxu0 0
  %2649 = vmatpush1.bf16.msra.mxu0 %v2630
  %2650 = vmatprep.subr.bf16.mxu0 0
  %2651 = vmatpush1.bf16.msra.mxu0 %v2631
  %2652 = vmatprep.subr.bf16.mxu0 0
  %2653 = vmatpush1.bf16.msra.mxu0 %v2632
  %2654 = vmatprep.subr.bf16.mxu0 0
  %2655 = vmatpush1.bf16.msra.mxu0 %v2633
  %2656 = vmatprep.subr.bf16.mxu0 0
  %2657 = vmatpush1.bf16.msra.mxu0 %v2634
  %2658 = vmatprep.subr.bf16.mxu0 0
  %2659 = vmatpush1.bf16.msra.mxu0 %v2635
  %2660 = vmatprep.subr.bf16.mxu0 0
  %2661 = vmatpush1.bf16.msra.mxu0 0
  %2662 = vmatprep.subr.bf16.mxu0 0
  %2663 = vmatpush1.bf16.msra.mxu0 0
  %2664 = vmatprep.subr.bf16.mxu0 0
  %2665 = vmatpush1.bf16.msra.mxu0 0
  %2666 = vmatprep.subr.bf16.mxu0 0
  %2667 = vmatpush1.bf16.msra.mxu0 0
  %2668 = vmatprep.subr.bf16.mxu0 0
  %2669 = vmatpush1.bf16.msra.mxu0 0
  %2670 = vmatprep.subr.bf16.mxu0 0
  %2671 = vmatpush1.bf16.msra.mxu0 0
  %2672 = vmatprep.subr.bf16.mxu0 0
  %2673 = vmatpush1.bf16.msra.mxu0 0
  %2674 = vmatprep.subr.bf16.mxu0 0
  %2675 = vmatpush1.bf16.msra.mxu0 0
  %2676 = vmatprep.mubr.bf16.mxu0 0
  %2677 = vmatmul.mubr.bf16.gmra.mrb[0].mxu0 %v2393
  %v2678 = vpop.f32.mrb[0].mxu0
  %v2679 = vadd.f32 0.0, %v2678
  %v2680 = vpop.f32.mrb[0].mxu0
  %v2681 = vpop.f32.mrb[0].mxu0
  %v2682 = vadd.f32 0.0, %v2681
  %v2683 = vpop.f32.mrb[0].mxu0
  %2684 = vmatprep.mubr.bf16.mxu0 0
  %2685 = vmatmul.mubr.bf16.gmra.mrb[0].mxu0 %v2394
  %v2686 = vpop.f32.mrb[0].mxu0
  %v2687 = vadd.f32 0.0, %v2686
  %v2688 = vpop.f32.mrb[0].mxu0
  %v2689 = vpop.f32.mrb[0].mxu0
  %v2690 = vadd.f32 0.0, %v2689
  %v2691 = vpop.f32.mrb[0].mxu0
  %2692 = vmatprep.mubr.bf16.mxu0 0
  %2693 = vmatmul.mubr.bf16.gmra.mrb[0].mxu0 %v2395
  %v2694 = vpop.f32.mrb[0].mxu0
  %v2695 = vadd.f32 0.0, %v2694
  %v2696 = vpop.f32.mrb[0].mxu0
  %v2697 = vpop.f32.mrb[0].mxu0
  %v2698 = vadd.f32 0.0, %v2697
  %v2699 = vpop.f32.mrb[0].mxu0
  %2700 = vmatprep.mubr.bf16.mxu0 0
  %2701 = vmatmul.mubr.bf16.gmra.mrb[0].mxu0 %v2396
  %v2702 = vpop.f32.mrb[0].mxu0
  %v2703 = vadd.f32 0.0, %v2702
  %v2704 = vpop.f32.mrb[0].mxu0
  %v2705 = vpop.f32.mrb[0].mxu0
  %v2706 = vadd.f32 0.0, %v2705
  %v2707 = vpop.f32.mrb[0].mxu0
  %2708 = vmatprep.mubr.bf16.mxu0 0
  %2709 = vmatmul.mubr.bf16.gmra.mrb[0].mxu0 %v2397
  %v2710 = vpop.f32.mrb[0].mxu0
  %v2711 = vadd.f32 0.0, %v2710
  %v2712 = vpop.f32.mrb[0].mxu0
  %v2713 = vpop.f32.mrb[0].mxu0
  %v2714 = vadd.f32 0.0, %v2713
  %v2715 = vpop.f32.mrb[0].mxu0
  %2716 = vmatprep.mubr.bf16.mxu0 0
  %2717 = vmatmul.mubr.bf16.gmra.mrb[0].mxu0 %v2398
  %v2718 = vpop.f32.mrb[0].mxu0
  %v2719 = vadd.f32 0.0, %v2718
  %v2720 = vpop.f32.mrb[0].mxu0
  %v2721 = vpop.f32.mrb[0].mxu0
  %v2722 = vadd.f32 0.0, %v2721
  %v2723 = vpop.f32.mrb[0].mxu0
  %2724 = vmatprep.mubr.bf16.mxu0 0
  %2725 = vmatmul.mubr.bf16.gmra.mrb[0].mxu0 %v2399
  %v2726 = vpop.f32.mrb[0].mxu0
  %v2727 = vadd.f32 0.0, %v2726
  %v2728 = vpop.f32.mrb[0].mxu0
  %v2729 = vpop.f32.mrb[0].mxu0
  %v2730 = vadd.f32 0.0, %v2729
  %v2731 = vpop.f32.mrb[0].mxu0
  %2732 = vmatprep.mubr.bf16.mxu0 0
  %2733 = vmatmul.mubr.bf16.gmra.mrb[0].mxu0 %v2400
  %v2734 = vpop.f32.mrb[0].mxu0
  %v2735 = vadd.f32 0.0, %v2734
  %v2736 = vpop.f32.mrb[0].mxu0
  %v2737 = vpop.f32.mrb[0].mxu0
  %v2738 = vadd.f32 0.0, %v2737
  %v2739 = vpop.f32.mrb[0].mxu0
  %2740 = vmatprep.mubr.bf16.mxu0 0
  %2741 = vmatmul.mubr.bf16.gmra.mrb[0].mxu0 %v2401
  %v2742 = vpop.f32.mrb[0].mxu0
  %v2743 = vadd.f32 0.0, %v2742
  %v2744 = vpop.f32.mrb[0].mxu0
  %v2745 = vpop.f32.mrb[0].mxu0
  %v2746 = vadd.f32 0.0, %v2745
  %v2747 = vpop.f32.mrb[0].mxu0
  %2748 = vmatprep.mubr.bf16.mxu0 0
  %2749 = vmatmul.mubr.bf16.gmra.mrb[0].mxu0 %v2402
  %v2750 = vpop.f32.mrb[0].mxu0
  %v2751 = vadd.f32 0.0, %v2750
  %v2752 = vpop.f32.mrb[0].mxu0
  %v2753 = vpop.f32.mrb[0].mxu0
  %v2754 = vadd.f32 0.0, %v2753
  %v2755 = vpop.f32.mrb[0].mxu0
  %2756 = vdwg.mxu0
  %v2757 = vld [vmem:[%s11 + $0x80] sm:$0xf]
  %v2758 = vld [vmem:[%s11 + $0x84] sm:$0xf]
  %v2759 = vld [vmem:[%s11 + $0x88] sm:$0xf]
  %v2760 = vld [vmem:[%s11 + $0x8c] sm:$0xf]
  %v2761 = vld [vmem:[%s11 + $0x90] sm:$0xf]
  %v2762 = vld [vmem:[%s11 + $0x94] sm:$0xf]
  %v2763 = vld [vmem:[%s11 + $0x98] sm:$0xf]
  %v2764 = vld [vmem:[%s11 + $0x9c] sm:$0xf]
  %v2765 = vld [vmem:[%s11 + $0xa0] sm:$0xf]
  %v2766 = vld [vmem:[%s11 + $0xa4] sm:$0xf]
  %v2767 = vld [vmem:[%s11 + $0xa8] sm:$0xf]
  %v2768 = vld [vmem:[%s11 + $0xac] sm:$0xf]
  %v2769 = vld [vmem:[%s11 + $0xb0] sm:$0xf]
  %v2770 = vld [vmem:[%s11 + $0xb4] sm:$0xf]
  %v2771 = vld [vmem:[%s11 + $0xb8] sm:$0xf]
  %v2772 = vld [vmem:[%s11 + $0xbc] sm:$0xf]
  %v2789 = vunpack.c.l.b16 %v2757
  %v2790 = vunpack.c.l.b16 %v2758
  %v2791 = vunpack.c.l.b16 %v2759
  %v2792 = vunpack.c.l.b16 %v2760
  %v2793 = vunpack.c.l.b16 %v2761
  %v2794 = vunpack.c.l.b16 %v2762
  %v2795 = vunpack.c.l.b16 %v2763
  %v2796 = vunpack.c.l.b16 %v2764
  %v2797 = vunpack.c.l.b16 %v2765
  %v2798 = vunpack.c.l.b16 %v2766
  %v2799 = vunpack.c.l.b16 %v2767
  %v2800 = vunpack.c.l.b16 %v2768
  %v2801 = vunpack.c.l.b16 %v2769
  %v2802 = vunpack.c.l.b16 %v2770
  %v2803 = vunpack.c.l.b16 %v2771
  %v2804 = vunpack.c.l.b16 %v2772
  %v2805 = vpack.c.b16 %v2790, %v2789
  %v2806 = vpack.c.b16 %v2792, %v2791
  %v2807 = vpack.c.b16 %v2794, %v2793
  %v2808 = vpack.c.b16 %v2796, %v2795
  %v2809 = vpack.c.b16 %v2798, %v2797
  %v2810 = vpack.c.b16 %v2800, %v2799
  %v2811 = vpack.c.b16 %v2802, %v2801
  %v2812 = vpack.c.b16 %v2804, %v2803
  %2821 = vmatprep.subr.bf16.mxu0 0
  %2822 = vmatpush1.bf16.msra.mxu0 %v2805
  %2823 = vmatprep.subr.bf16.mxu0 0
  %2824 = vmatpush1.bf16.msra.mxu0 %v2806
  %2825 = vmatprep.subr.bf16.mxu0 0
  %2826 = vmatpush1.bf16.msra.mxu0 %v2807
  %2827 = vmatprep.subr.bf16.mxu0 0
  %2828 = vmatpush1.bf16.msra.mxu0 %v2808
  %2829 = vmatprep.subr.bf16.mxu0 0
  %2830 = vmatpush1.bf16.msra.mxu0 %v2809
  %2831 = vmatprep.subr.bf16.mxu0 0
  %2832 = vmatpush1.bf16.msra.mxu0 %v2810
  %2833 = vmatprep.subr.bf16.mxu0 0
  %2834 = vmatpush1.bf16.msra.mxu0 %v2811
  %2835 = vmatprep.subr.bf16.mxu0 0
  %2836 = vmatpush1.bf16.msra.mxu0 %v2812
  %2837 = vmatprep.subr.bf16.mxu0 0
  %2838 = vmatpush1.bf16.msra.mxu0 0
  %2839 = vmatprep.subr.bf16.mxu0 0
  %2840 = vmatpush1.bf16.msra.mxu0 0
  %2841 = vmatprep.subr.bf16.mxu0 0
  %2842 = vmatpush1.bf16.msra.mxu0 0
  %2843 = vmatprep.subr.bf16.mxu0 0
  %2844 = vmatpush1.bf16.msra.mxu0 0
  %2845 = vmatprep.subr.bf16.mxu0 0
  %2846 = vmatpush1.bf16.msra.mxu0 0
  %2847 = vmatprep.subr.bf16.mxu0 0
  %2848 = vmatpush1.bf16.msra.mxu0 0
  %2849 = vmatprep.subr.bf16.mxu0 0
  %2850 = vmatpush1.bf16.msra.mxu0 0
  %2851 = vmatprep.subr.bf16.mxu0 0
  %2852 = vmatpush1.bf16.msra.mxu0 0
  %2853 = vmatprep.mubr.bf16.mxu0 0
  %2854 = vmatmul.mubr.bf16.gmra.mrb[0].mxu0 %v2393
  %v2855 = vpop.f32.mrb[0].mxu0
  %v2856 = vadd.f32 0.0, %v2855
  %v2857 = vpop.f32.mrb[0].mxu0
  %v2858 = vpop.f32.mrb[0].mxu0
  %v2859 = vadd.f32 0.0, %v2858
  %v2860 = vpop.f32.mrb[0].mxu0
  %2861 = vmatprep.mubr.bf16.mxu0 0
  %2862 = vmatmul.mubr.bf16.gmra.mrb[0].mxu0 %v2394
  %v2863 = vpop.f32.mrb[0].mxu0
  %v2864 = vadd.f32 0.0, %v2863
  %v2865 = vpop.f32.mrb[0].mxu0
  %v2866 = vpop.f32.mrb[0].mxu0
  %v2867 = vadd.f32 0.0, %v2866
  %v2868 = vpop.f32.mrb[0].mxu0
  %2869 = vmatprep.mubr.bf16.mxu0 0
  %2870 = vmatmul.mubr.bf16.gmra.mrb[0].mxu0 %v2395
  %v2871 = vpop.f32.mrb[0].mxu0
  %v2872 = vadd.f32 0.0, %v2871
  %v2873 = vpop.f32.mrb[0].mxu0
  %v2874 = vpop.f32.mrb[0].mxu0
  %v2875 = vadd.f32 0.0, %v2874
  %v2876 = vpop.f32.mrb[0].mxu0
  %2877 = vmatprep.mubr.bf16.mxu0 0
  %2878 = vmatmul.mubr.bf16.gmra.mrb[0].mxu0 %v2396
  %v2879 = vpop.f32.mrb[0].mxu0
  %v2880 = vadd.f32 0.0, %v2879
  %v2881 = vpop.f32.mrb[0].mxu0
  %v2882 = vpop.f32.mrb[0].mxu0
  %v2883 = vadd.f32 0.0, %v2882
  %v2884 = vpop.f32.mrb[0].mxu0
  %2885 = vmatprep.mubr.bf16.mxu0 0
  %2886 = vmatmul.mubr.bf16.gmra.mrb[0].mxu0 %v2397
  %v2887 = vpop.f32.mrb[0].mxu0
  %v2888 = vadd.f32 0.0, %v2887
  %v2889 = vpop.f32.mrb[0].mxu0
  %v2890 = vpop.f32.mrb[0].mxu0
  %v2891 = vadd.f32 0.0, %v2890
  %v2892 = vpop.f32.mrb[0].mxu0
  %2893 = vmatprep.mubr.bf16.mxu0 0
  %2894 = vmatmul.mubr.bf16.gmra.mrb[0].mxu0 %v2398
  %v2895 = vpop.f32.mrb[0].mxu0
  %v2896 = vadd.f32 0.0, %v2895
  %v2897 = vpop.f32.mrb[0].mxu0
  %v2898 = vpop.f32.mrb[0].mxu0
  %v2899 = vadd.f32 0.0, %v2898
  %v2900 = vpop.f32.mrb[0].mxu0
  %2901 = vmatprep.mubr.bf16.mxu0 0
  %2902 = vmatmul.mubr.bf16.gmra.mrb[0].mxu0 %v2399
  %v2903 = vpop.f32.mrb[0].mxu0
  %v2904 = vadd.f32 0.0, %v2903
  %v2905 = vpop.f32.mrb[0].mxu0
  %v2906 = vpop.f32.mrb[0].mxu0
  %v2907 = vadd.f32 0.0, %v2906
  %v2908 = vpop.f32.mrb[0].mxu0
  %2909 = vmatprep.mubr.bf16.mxu0 0
  %2910 = vmatmul.mubr.bf16.gmra.mrb[0].mxu0 %v2400
  %v2911 = vpop.f32.mrb[0].mxu0
  %v2912 = vadd.f32 0.0, %v2911
  %v2913 = vpop.f32.mrb[0].mxu0
  %v2914 = vpop.f32.mrb[0].mxu0
  %v2915 = vadd.f32 0.0, %v2914
  %v2916 = vpop.f32.mrb[0].mxu0
  %2917 = vmatprep.mubr.bf16.mxu0 0
  %2918 = vmatmul.mubr.bf16.gmra.mrb[0].mxu0 %v2401
  %v2919 = vpop.f32.mrb[0].mxu0
  %v2920 = vadd.f32 0.0, %v2919
  %v2921 = vpop.f32.mrb[0].mxu0
  %v2922 = vpop.f32.mrb[0].mxu0
  %v2923 = vadd.f32 0.0, %v2922
  %v2924 = vpop.f32.mrb[0].mxu0
  %2925 = vmatprep.mubr.bf16.mxu0 0
  %2926 = vmatmul.mubr.bf16.gmra.mrb[0].mxu0 %v2402
  %v2927 = vpop.f32.mrb[0].mxu0
  %v2928 = vadd.f32 0.0, %v2927
  %v2929 = vpop.f32.mrb[0].mxu0
  %v2930 = vpop.f32.mrb[0].mxu0
  %v2931 = vadd.f32 0.0, %v2930
  %v2932 = vpop.f32.mrb[0].mxu0
  %2933 = vdwg.mxu0
  %v2944 = vrot.slane %v2679, 1
  %v2945 = vrot.slane %v2682, 1
  %v2946 = vsel %vm595, %v2944, %v2945
  %v2947 = vrot.slane %v2687, 1
  %v2948 = vsel %vm595, %v2945, %v2947
  %v2949 = vrot.slane %v2690, 1
  %v2950 = vsel %vm595, %v2947, %v2949
  %v2951 = vrot.slane %v2695, 1
  %v2952 = vsel %vm595, %v2949, %v2951
  %v2953 = vrot.slane %v2698, 1
  %v2954 = vsel %vm595, %v2951, %v2953
  %v2955 = vrot.slane %v2703, 1
  %v2956 = vsel %vm595, %v2953, %v2955
  %v2957 = vrot.slane %v2706, 1
  %v2958 = vsel %vm595, %v2955, %v2957
  %v2959 = vrot.slane %v2711, 1
  %v2960 = vsel %vm595, %v2957, %v2959
  %v2961 = vrot.slane %v2714, 1
  %v2962 = vsel %vm595, %v2959, %v2961
  %v2973 = vadd.f32 %v2502, %v2946
  %v2974 = vadd.f32 %v2505, %v2948
  %v2975 = vadd.f32 %v2510, %v2950
  %v2976 = vadd.f32 %v2513, %v2952
  %v2977 = vadd.f32 %v2518, %v2954
  %v2978 = vadd.f32 %v2521, %v2956
  %v2979 = vadd.f32 %v2526, %v2958
  %v2980 = vadd.f32 %v2529, %v2960
  %v2981 = vadd.f32 %v2534, %v2962
  %v2982 = vadd.f32 %v2537, %v2961
  %v2993 = vrot.slane %v2856, 2
  %v2994 = vrot.slane %v2859, 2
  %v2995 = vsel %vm650, %v2993, %v2994
  %v2996 = vrot.slane %v2864, 2
  %v2997 = vsel %vm650, %v2994, %v2996
  %v2998 = vrot.slane %v2867, 2
  %v2999 = vsel %vm650, %v2996, %v2998
  %v3000 = vrot.slane %v2872, 2
  %v3001 = vsel %vm650, %v2998, %v3000
  %v3002 = vrot.slane %v2875, 2
  %v3003 = vsel %vm650, %v3000, %v3002
  %v3004 = vrot.slane %v2880, 2
  %v3005 = vsel %vm650, %v3002, %v3004
  %v3006 = vrot.slane %v2883, 2
  %v3007 = vsel %vm650, %v3004, %v3006
  %v3008 = vrot.slane %v2888, 2
  %v3009 = vsel %vm650, %v3006, %v3008
  %v3010 = vrot.slane %v2891, 2
  %v3011 = vsel %vm650, %v3008, %v3010
  %v3022 = vadd.f32 %v2973, %v2995
  %v3023 = vadd.f32 %v2974, %v2997
  %v3024 = vadd.f32 %v2975, %v2999
  %v3025 = vadd.f32 %v2976, %v3001
  %v3026 = vadd.f32 %v2977, %v3003
  %v3027 = vadd.f32 %v2978, %v3005
  %v3028 = vadd.f32 %v2979, %v3007
  %v3029 = vadd.f32 %v2980, %v3009
  %v3030 = vadd.f32 %v2981, %v3011
  %v3031 = vadd.f32 %v2982, %v3010
  %v3042 = vrot.slane %v2719, 1
  %v3043 = vrot.slane %v2722, 1
  %v3044 = vsel %vm595, %v3042, %v3043
  %v3045 = vrot.slane %v2727, 1
  %v3046 = vsel %vm595, %v3043, %v3045
  %v3047 = vrot.slane %v2730, 1
  %v3048 = vsel %vm595, %v3045, %v3047
  %v3049 = vrot.slane %v2735, 1
  %v3050 = vsel %vm595, %v3047, %v3049
  %v3051 = vrot.slane %v2738, 1
  %v3052 = vsel %vm595, %v3049, %v3051
  %v3053 = vrot.slane %v2743, 1
  %v3054 = vsel %vm595, %v3051, %v3053
  %v3055 = vrot.slane %v2746, 1
  %v3056 = vsel %vm595, %v3053, %v3055
  %v3057 = vrot.slane %v2751, 1
  %v3058 = vsel %vm595, %v3055, %v3057
  %v3059 = vrot.slane %v2754, 1
  %v3060 = vsel %vm595, %v3057, %v3059
  %v3071 = vadd.f32 %v2542, %v3044
  %v3072 = vadd.f32 %v2545, %v3046
  %v3073 = vadd.f32 %v2550, %v3048
  %v3074 = vadd.f32 %v2553, %v3050
  %v3075 = vadd.f32 %v2558, %v3052
  %v3076 = vadd.f32 %v2561, %v3054
  %v3077 = vadd.f32 %v2566, %v3056
  %v3078 = vadd.f32 %v2569, %v3058
  %v3079 = vadd.f32 %v2574, %v3060
  %v3080 = vadd.f32 %v2577, %v3059
  %v3091 = vrot.slane %v2896, 2
  %v3092 = vrot.slane %v2899, 2
  %v3093 = vsel %vm650, %v3091, %v3092
  %v3094 = vrot.slane %v2904, 2
  %v3095 = vsel %vm650, %v3092, %v3094
  %v3096 = vrot.slane %v2907, 2
  %v3097 = vsel %vm650, %v3094, %v3096
  %v3098 = vrot.slane %v2912, 2
  %v3099 = vsel %vm650, %v3096, %v3098
  %v3100 = vrot.slane %v2915, 2
  %v3101 = vsel %vm650, %v3098, %v3100
  %v3102 = vrot.slane %v2920, 2
  %v3103 = vsel %vm650, %v3100, %v3102
  %v3104 = vrot.slane %v2923, 2
  %v3105 = vsel %vm650, %v3102, %v3104
  %v3106 = vrot.slane %v2928, 2
  %v3107 = vsel %vm650, %v3104, %v3106
  %v3108 = vrot.slane %v2931, 2
  %v3109 = vsel %vm650, %v3106, %v3108
  %v3120 = vadd.f32 %v3071, %v3093
  %v3121 = vadd.f32 %v3072, %v3095
  %v3122 = vadd.f32 %v3073, %v3097
  %v3123 = vadd.f32 %v3074, %v3099
  %v3124 = vadd.f32 %v3075, %v3101
  %v3125 = vadd.f32 %v3076, %v3103
  %v3126 = vadd.f32 %v3077, %v3105
  %v3127 = vadd.f32 %v3078, %v3107
  %v3128 = vadd.f32 %v3079, %v3109
  %v3129 = vadd.f32 %v3080, %v3108
  %v3140 = vrot.slane %v3120, 2
  %v3141 = vrot.slane %v3121, 2
  %v3142 = vsel %vm650, %v3140, %v3141
  %v3143 = vrot.slane %v3122, 2
  %v3144 = vsel %vm650, %v3141, %v3143
  %v3145 = vrot.slane %v3123, 2
  %v3146 = vsel %vm650, %v3143, %v3145
  %v3147 = vrot.slane %v3124, 2
  %v3148 = vsel %vm650, %v3145, %v3147
  %v3149 = vrot.slane %v3125, 2
  %v3150 = vsel %vm650, %v3147, %v3149
  %v3151 = vrot.slane %v3126, 2
  %v3152 = vsel %vm650, %v3149, %v3151
  %v3153 = vrot.slane %v3127, 2
  %v3154 = vsel %vm650, %v3151, %v3153
  %v3155 = vrot.slane %v3128, 2
  %v3156 = vsel %vm650, %v3153, %v3155
  %v3157 = vrot.slane %v3129, 2
  %v3158 = vsel %vm650, %v3155, %v3157
  %v3170 = vsel %vm650, %v3031, %v3140
  %v3181 = vrot.slane %v2373, 1
  %v3182 = vrot.slane %v2374, 1
  %v3183 = vsel %vm595, %v3181, %v3182
  %v3184 = vrot.slane %v2375, 1
  %v3185 = vsel %vm595, %v3182, %v3184
  %v3186 = vrot.slane %v2376, 1
  %v3187 = vsel %vm595, %v3184, %v3186
  %v3188 = vrot.slane %v2377, 1
  %v3189 = vsel %vm595, %v3186, %v3188
  %v3190 = vrot.slane %v2378, 1
  %v3191 = vsel %vm595, %v3188, %v3190
  %v3192 = vrot.slane %v2379, 1
  %v3193 = vsel %vm595, %v3190, %v3192
  %v3194 = vrot.slane %v2380, 1
  %v3195 = vsel %vm595, %v3192, %v3194
  %v3196 = vrot.slane %v2381, 1
  %v3197 = vsel %vm595, %v3194, %v3196
  %v3198 = vrot.slane %v2382, 1
  %v3199 = vsel %vm595, %v3196, %v3198
  %v3220 = vrot.slane %v2383, 3
  %v3221 = vrot.slane %v2384, 3
  %v3222 = vsel %vm2035, %v3220, %v3221
  %v3223 = vrot.slane %v2385, 3
  %v3224 = vsel %vm2035, %v3221, %v3223
  %v3225 = vrot.slane %v2386, 3
  %v3226 = vsel %vm2035, %v3223, %v3225
  %v3227 = vrot.slane %v2387, 3
  %v3228 = vsel %vm2035, %v3225, %v3227
  %v3229 = vrot.slane %v2388, 3
  %v3230 = vsel %vm2035, %v3227, %v3229
  %v3231 = vrot.slane %v2389, 3
  %v3232 = vsel %vm2035, %v3229, %v3231
  %v3233 = vrot.slane %v2390, 3
  %v3234 = vsel %vm2035, %v3231, %v3233
  %v3235 = vrot.slane %v2391, 3
  %v3236 = vsel %vm2035, %v3233, %v3235
  %v3237 = vrot.slane %v2392, 3
  %v3238 = vsel %vm2035, %v3235, %v3237
  %v3250 = vsel %vm650, %v3198, %v3220
  %v3251 = vpack.c.bf16 %v3023, %v3022
  %v3252 = vpack.c.bf16 %v3025, %v3024
  %v3253 = vpack.c.bf16 %v3027, %v3026
  %v3254 = vpack.c.bf16 %v3029, %v3028
  %v3255 = vpack.c.bf16 %v3170, %v3030
  %v3256 = vpack.c.bf16 %v3144, %v3142
  %v3257 = vpack.c.bf16 %v3148, %v3146
  %v3258 = vpack.c.bf16 %v3152, %v3150
  %v3259 = vpack.c.bf16 %v3156, %v3154
  %v3260 = vpack.c.bf16 %v3157, %v3158
  %v3261 = vld [vmem:[%s13] sm:$0xf]
  %v3262 = vld [vmem:[%s13 + $0x4] sm:$0xf]
  %v3263 = vld [vmem:[%s13 + $0x8] sm:$0xf]
  %v3264 = vld [vmem:[%s13 + $0xc] sm:$0xf]
  %v3265 = vmul.f32 %v3183, 0.66
  %v3266 = vmul.f32 %v3185, 0.66
  %v3267 = vmul.f32 %v3187, 0.66
  %v3268 = vmul.f32 %v3189, 0.66
  %v3269 = vmul.f32 %v3191, 0.66
  %v3270 = vmul.f32 %v3193, 0.66
  %v3271 = vmul.f32 %v3195, 0.66
  %v3272 = vmul.f32 %v3197, 0.66
  %v3273 = vmul.f32 %v3199, 0.66
  %v3274 = vmul.f32 %v3250, 0.66
  %v3275 = vmul.f32 %v3222, 0.66
  %v3276 = vmul.f32 %v3224, 0.66
  %v3277 = vmul.f32 %v3226, 0.66
  %v3278 = vmul.f32 %v3228, 0.66
  %v3279 = vmul.f32 %v3230, 0.66
  %v3280 = vmul.f32 %v3232, 0.66
  %v3281 = vmul.f32 %v3234, 0.66
  %v3282 = vmul.f32 %v3236, 0.66
  %v3283 = vmul.f32 %v3238, 0.66
  %v3284 = vmul.f32 %v3237, 0.66
  %v3289 = vunpack.c.l.b16 %v3261
  %v3290 = vunpack.c.l.b16 %v3262
  %v3291 = vunpack.c.l.b16 %v3263
  %v3292 = vunpack.c.l.b16 %v3264
  %v3293 = vpack.c.b16 %v3290, %v3289
  %v3294 = vpack.c.b16 %v3292, %v3291
  %v3298 = vsel %vm870, %v3251, 0
  %v3301 = vsel %vm870, %v3252, 0
  %v3304 = vsel %vm870, %v3253, 0
  %v3307 = vsel %vm870, %v3254, 0
  %v3310 = vsel %vm870, %v3255, 0
  %v3313 = vsel %vm870, %v3256, 0
  %v3316 = vsel %vm870, %v3257, 0
  %v3319 = vsel %vm870, %v3258, 0
  %v3322 = vsel %vm870, %v3259, 0
  %v3325 = vsel %vm870, %v3260, 0
  %3327 = vmatprep.subr.bf16.mxu0 0
  %3328 = vmatpush1.bf16.msra.mxu0 %v3293
  %3329 = vmatprep.subr.bf16.mxu0 0
  %3330 = vmatpush1.bf16.msra.mxu0 %v3294
  %3331 = vmatprep.subr.bf16.mxu0 0
  %3332 = vmatpush1.bf16.msra.mxu0 0
  %3333 = vmatprep.subr.bf16.mxu0 0
  %3334 = vmatpush1.bf16.msra.mxu0 0
  %3335 = vmatprep.subr.bf16.mxu0 0
  %3336 = vmatpush1.bf16.msra.mxu0 0
  %3337 = vmatprep.subr.bf16.mxu0 0
  %3338 = vmatpush1.bf16.msra.mxu0 0
  %3339 = vmatprep.subr.bf16.mxu0 0
  %3340 = vmatpush1.bf16.msra.mxu0 0
  %3341 = vmatprep.subr.bf16.mxu0 0
  %3342 = vmatpush1.bf16.msra.mxu0 0
  %3343 = vmatprep.subr.bf16.mxu0 0
  %3344 = vmatpush1.bf16.msra.mxu0 0
  %3345 = vmatprep.subr.bf16.mxu0 0
  %3346 = vmatpush1.bf16.msra.mxu0 0
  %3347 = vmatprep.subr.bf16.mxu0 0
  %3348 = vmatpush1.bf16.msra.mxu0 0
  %3349 = vmatprep.subr.bf16.mxu0 0
  %3350 = vmatpush1.bf16.msra.mxu0 0
  %3351 = vmatprep.subr.bf16.mxu0 0
  %3352 = vmatpush1.bf16.msra.mxu0 0
  %3353 = vmatprep.subr.bf16.mxu0 0
  %3354 = vmatpush1.bf16.msra.mxu0 0
  %3355 = vmatprep.subr.bf16.mxu0 0
  %3356 = vmatpush1.bf16.msra.mxu0 0
  %3357 = vmatprep.subr.bf16.mxu0 0
  %3358 = vmatpush1.bf16.msra.mxu0 0
  %3359 = vmatprep.mubr.bf16.mxu0 0
  %3360 = vmatmul.mubr.bf16.gmra.mrb[0].mxu0 %v3298
  %v3361 = vpop.f32.mrb[0].mxu0
  %v3362 = vadd.f32 %v3265, %v3361
  %v3363 = vpop.f32.mrb[0].mxu0
  %v3364 = vpop.f32.mrb[0].mxu0
  %v3365 = vadd.f32 %v3266, %v3364
  %v3366 = vpop.f32.mrb[0].mxu0
  %3367 = vmatprep.mubr.bf16.mxu0 0
  %3368 = vmatmul.mubr.bf16.gmra.mrb[0].mxu0 %v3301
  %v3369 = vpop.f32.mrb[0].mxu0
  %v3370 = vadd.f32 %v3267, %v3369
  %v3371 = vpop.f32.mrb[0].mxu0
  %v3372 = vpop.f32.mrb[0].mxu0
  %v3373 = vadd.f32 %v3268, %v3372
  %v3374 = vpop.f32.mrb[0].mxu0
  %3375 = vmatprep.mubr.bf16.mxu0 0
  %3376 = vmatmul.mubr.bf16.gmra.mrb[0].mxu0 %v3304
  %v3377 = vpop.f32.mrb[0].mxu0
  %v3378 = vadd.f32 %v3269, %v3377
  %v3379 = vpop.f32.mrb[0].mxu0
  %v3380 = vpop.f32.mrb[0].mxu0
  %v3381 = vadd.f32 %v3270, %v3380
  %v3382 = vpop.f32.mrb[0].mxu0
  %3383 = vmatprep.mubr.bf16.mxu0 0
  %3384 = vmatmul.mubr.bf16.gmra.mrb[0].mxu0 %v3307
  %v3385 = vpop.f32.mrb[0].mxu0
  %v3386 = vadd.f32 %v3271, %v3385
  %v3387 = vpop.f32.mrb[0].mxu0
  %v3388 = vpop.f32.mrb[0].mxu0
  %v3389 = vadd.f32 %v3272, %v3388
  %v3390 = vpop.f32.mrb[0].mxu0
  %3391 = vmatprep.mubr.bf16.mxu0 0
  %3392 = vmatmul.mubr.bf16.gmra.mrb[0].mxu0 %v3310
  %v3393 = vpop.f32.mrb[0].mxu0
  %v3394 = vadd.f32 %v3273, %v3393
  %v3395 = vpop.f32.mrb[0].mxu0
  %v3396 = vpop.f32.mrb[0].mxu0
  %v3397 = vadd.f32 %v3274, %v3396
  %v3398 = vpop.f32.mrb[0].mxu0
  %3399 = vmatprep.mubr.bf16.mxu0 0
  %3400 = vmatmul.mubr.bf16.gmra.mrb[0].mxu0 %v3313
  %v3401 = vpop.f32.mrb[0].mxu0
  %v3402 = vadd.f32 %v3275, %v3401
  %v3403 = vpop.f32.mrb[0].mxu0
  %v3404 = vpop.f32.mrb[0].mxu0
  %v3405 = vadd.f32 %v3276, %v3404
  %v3406 = vpop.f32.mrb[0].mxu0
  %3407 = vmatprep.mubr.bf16.mxu0 0
  %3408 = vmatmul.mubr.bf16.gmra.mrb[0].mxu0 %v3316
  %v3409 = vpop.f32.mrb[0].mxu0
  %v3410 = vadd.f32 %v3277, %v3409
  %v3411 = vpop.f32.mrb[0].mxu0
  %v3412 = vpop.f32.mrb[0].mxu0
  %v3413 = vadd.f32 %v3278, %v3412
  %v3414 = vpop.f32.mrb[0].mxu0
  %3415 = vmatprep.mubr.bf16.mxu0 0
  %3416 = vmatmul.mubr.bf16.gmra.mrb[0].mxu0 %v3319
  %v3417 = vpop.f32.mrb[0].mxu0
  %v3418 = vadd.f32 %v3279, %v3417
  %v3419 = vpop.f32.mrb[0].mxu0
  %v3420 = vpop.f32.mrb[0].mxu0
  %v3421 = vadd.f32 %v3280, %v3420
  %v3422 = vpop.f32.mrb[0].mxu0
  %3423 = vmatprep.mubr.bf16.mxu0 0
  %3424 = vmatmul.mubr.bf16.gmra.mrb[0].mxu0 %v3322
  %v3425 = vpop.f32.mrb[0].mxu0
  %v3426 = vadd.f32 %v3281, %v3425
  %v3427 = vpop.f32.mrb[0].mxu0
  %v3428 = vpop.f32.mrb[0].mxu0
  %v3429 = vadd.f32 %v3282, %v3428
  %v3430 = vpop.f32.mrb[0].mxu0
  %3431 = vmatprep.mubr.bf16.mxu0 0
  %3432 = vmatmul.mubr.bf16.gmra.mrb[0].mxu0 %v3325
  %v3433 = vpop.f32.mrb[0].mxu0
  %v3434 = vadd.f32 %v3283, %v3433
  %v3435 = vpop.f32.mrb[0].mxu0
  %v3436 = vpop.f32.mrb[0].mxu0
  %v3437 = vadd.f32 %v3284, %v3436
  %v3438 = vpop.f32.mrb[0].mxu0
  %3439 = vdwg.mxu0
  %v3440 = vadd.f32 %v3362, %v3365
  %v3441 = vadd.f32 %v3440, %v3370
  %v3442 = vadd.f32 %v3441, %v3373
  %v3443 = vadd.f32 %v3442, %v3378
  %v3444 = vadd.f32 %v3443, %v3381
  %v3445 = vadd.f32 %v3444, %v3386
  %v3446 = vadd.f32 %v3445, %v3389
  %v3447 = vadd.f32 %v3446, %v3394
  %v3448 = vadd.f32 %v3447, %v3397
  %v3449 = vadd.f32 %v3448, %v3402
  %v3450 = vadd.f32 %v3449, %v3405
  %v3451 = vadd.f32 %v3450, %v3410
  %v3452 = vadd.f32 %v3451, %v3413
  %v3453 = vadd.f32 %v3452, %v3418
  %v3454 = vadd.f32 %v3453, %v3421
  %v3455 = vadd.f32 %v3454, %v3426
  %v3456 = vadd.f32 %v3455, %v3429
  %v3457 = vadd.f32 %v3456, %v3434
  %v3458 = vsel %vm1043, %v3437, 0.0
  %v3459 = vadd.f32 %v3457, %v3458
  %v3460 = vrot.slane %v3459, 4
  %v3461 = vadd.f32 %v3459, %v3460
  %v3462 = vrot.slane %v3461, 2
  %v3463 = vadd.f32 %v3461, %v3462
  %v3464 = vrot.slane %v3463, 1
  %v3465 = vadd.f32 %v3463, %v3464
  %v3466 = vmul.f32 %v3362, %v3362
  %v3467 = vmul.f32 %v3365, %v3365
  %v3468 = vmul.f32 %v3370, %v3370
  %v3469 = vmul.f32 %v3373, %v3373
  %v3470 = vmul.f32 %v3378, %v3378
  %v3471 = vmul.f32 %v3381, %v3381
  %v3472 = vmul.f32 %v3386, %v3386
  %v3473 = vmul.f32 %v3389, %v3389
  %v3474 = vmul.f32 %v3394, %v3394
  %v3475 = vmul.f32 %v3397, %v3397
  %v3476 = vmul.f32 %v3402, %v3402
  %v3477 = vmul.f32 %v3405, %v3405
  %v3478 = vmul.f32 %v3410, %v3410
  %v3479 = vmul.f32 %v3413, %v3413
  %v3480 = vmul.f32 %v3418, %v3418
  %v3481 = vmul.f32 %v3421, %v3421
  %v3482 = vmul.f32 %v3426, %v3426
  %v3483 = vmul.f32 %v3429, %v3429
  %v3484 = vmul.f32 %v3434, %v3434
  %v3485 = vmul.f32 %v3437, %v3437
  %v3486 = vadd.f32 %v3466, %v3467
  %v3487 = vadd.f32 %v3486, %v3468
  %v3488 = vadd.f32 %v3487, %v3469
  %v3489 = vadd.f32 %v3488, %v3470
  %v3490 = vadd.f32 %v3489, %v3471
  %v3491 = vadd.f32 %v3490, %v3472
  %v3492 = vadd.f32 %v3491, %v3473
  %v3493 = vadd.f32 %v3492, %v3474
  %v3494 = vadd.f32 %v3493, %v3475
  %v3495 = vadd.f32 %v3494, %v3476
  %v3496 = vadd.f32 %v3495, %v3477
  %v3497 = vadd.f32 %v3496, %v3478
  %v3498 = vadd.f32 %v3497, %v3479
  %v3499 = vadd.f32 %v3498, %v3480
  %v3500 = vadd.f32 %v3499, %v3481
  %v3501 = vadd.f32 %v3500, %v3482
  %v3502 = vadd.f32 %v3501, %v3483
  %v3503 = vadd.f32 %v3502, %v3484
  %v3504 = vsel %vm1043, %v3485, 0.0
  %v3505 = vadd.f32 %v3503, %v3504
  %v3506 = vrot.slane %v3505, 4
  %v3507 = vadd.f32 %v3505, %v3506
  %v3508 = vrot.slane %v3507, 2
  %v3509 = vadd.f32 %v3507, %v3508
  %v3510 = vrot.slane %v3509, 1
  %v3511 = vadd.f32 %v3509, %v3510
  %v3512 = vmul.f32 %v3465, 0.0064102565
  %v3513 = vmul.f32 %v3511, 0.0064102565
  %v3514 = vmul.f32 %v3512, %v3512
  %v3515 = vsub.f32 %v3513, %v3514
  %v3516 = vmax.f32 %v3515, 0.0
  %v3517 = vadd.f32 %v3516, 1e-05
  %v3518 = vrsqrt.pop %v3517
  %v3519 = vsub.f32 %v3362, %v3512
  %v3520 = vsub.f32 %v3365, %v3512
  %v3521 = vsub.f32 %v3370, %v3512
  %v3522 = vsub.f32 %v3373, %v3512
  %v3523 = vsub.f32 %v3378, %v3512
  %v3524 = vsub.f32 %v3381, %v3512
  %v3525 = vsub.f32 %v3386, %v3512
  %v3526 = vsub.f32 %v3389, %v3512
  %v3527 = vsub.f32 %v3394, %v3512
  %v3528 = vsub.f32 %v3397, %v3512
  %v3529 = vsub.f32 %v3402, %v3512
  %v3530 = vsub.f32 %v3405, %v3512
  %v3531 = vsub.f32 %v3410, %v3512
  %v3532 = vsub.f32 %v3413, %v3512
  %v3533 = vsub.f32 %v3418, %v3512
  %v3534 = vsub.f32 %v3421, %v3512
  %v3535 = vsub.f32 %v3426, %v3512
  %v3536 = vsub.f32 %v3429, %v3512
  %v3537 = vsub.f32 %v3434, %v3512
  %v3538 = vsub.f32 %v3437, %v3512
  %v3539 = vmul.f32 %v3519, %v3518
  %v3540 = vmul.f32 %v3520, %v3518
  %v3541 = vmul.f32 %v3521, %v3518
  %v3542 = vmul.f32 %v3522, %v3518
  %v3543 = vmul.f32 %v3523, %v3518
  %v3544 = vmul.f32 %v3524, %v3518
  %v3545 = vmul.f32 %v3525, %v3518
  %v3546 = vmul.f32 %v3526, %v3518
  %v3547 = vmul.f32 %v3527, %v3518
  %v3548 = vmul.f32 %v3528, %v3518
  %v3549 = vmul.f32 %v3529, %v3518
  %v3550 = vmul.f32 %v3530, %v3518
  %v3551 = vmul.f32 %v3531, %v3518
  %v3552 = vmul.f32 %v3532, %v3518
  %v3553 = vmul.f32 %v3533, %v3518
  %v3554 = vmul.f32 %v3534, %v3518
  %v3555 = vmul.f32 %v3535, %v3518
  %v3556 = vmul.f32 %v3536, %v3518
  %v3557 = vmul.f32 %v3537, %v3518
  %v3558 = vmul.f32 %v3538, %v3518
  %v3559 = vmax.f32 %v3539, 0.0
  %v3560 = vmax.f32 %v3540, 0.0
  %v3561 = vmax.f32 %v3541, 0.0
  %v3562 = vmax.f32 %v3542, 0.0
  %v3563 = vmax.f32 %v3543, 0.0
  %v3564 = vmax.f32 %v3544, 0.0
  %v3565 = vmax.f32 %v3545, 0.0
  %v3566 = vmax.f32 %v3546, 0.0
  %v3567 = vmax.f32 %v3547, 0.0
  %v3568 = vmax.f32 %v3548, 0.0
  %v3569 = vmax.f32 %v3549, 0.0
  %v3570 = vmax.f32 %v3550, 0.0
  %v3571 = vmax.f32 %v3551, 0.0
  %v3572 = vmax.f32 %v3552, 0.0
  %v3573 = vmax.f32 %v3553, 0.0
  %v3574 = vmax.f32 %v3554, 0.0
  %v3575 = vmax.f32 %v3555, 0.0
  %v3576 = vmax.f32 %v3556, 0.0
  %v3577 = vmax.f32 %v3557, 0.0
  %v3578 = vmax.f32 %v3558, 0.0
  %v3579 = vlaneseq
  %v3580 = vshrl.u32 %v3579, 7
  %v3581 = vadd.s32 %v3580, 8
  %v3582 = vadd.s32 %v3580, 16
  %v3583 = vadd.s32 %v3580, 24
  %v3584 = vadd.s32 %v3580, 32
  %v3585 = vadd.s32 %v3580, 40
  %v3586 = vadd.s32 %v3580, 48
  %v3587 = vlaneseq
  %v3588 = vand.u32 %v3587, 127
  %v3589 = vadd.s32 %v3588, 128
  %vm3590 = vcmp.ge.s32.totalorder %v3580, 0
  %vm3591 = vcmp.ge.s32.totalorder %v3581, 0
  %vm3592 = vcmp.ge.s32.totalorder %v3582, 0
  %vm3593 = vcmp.ge.s32.totalorder %v3583, 0
  %vm3594 = vcmp.ge.s32.totalorder %v3584, 0
  %vm3595 = vcmp.ge.s32.totalorder %v3585, 0
  %vm3596 = vcmp.ge.s32.totalorder %v3586, 0
  %vm3597 = vcmp.lt.s32.totalorder %v3580, 26
  %vm3598 = vcmp.lt.s32.totalorder %v3581, 26
  %vm3599 = vcmp.lt.s32.totalorder %v3582, 26
  %vm3600 = vcmp.lt.s32.totalorder %v3583, 26
  %vm3601 = vcmp.lt.s32.totalorder %v3584, 26
  %vm3602 = vcmp.lt.s32.totalorder %v3585, 26
  %vm3603 = vcmp.lt.s32.totalorder %v3586, 26
  %vm3604 = vmand %vm3590, %vm3597
  %vm3605 = vmand %vm3591, %vm3598
  %vm3606 = vmand %vm3592, %vm3599
  %vm3607 = vmand %vm3593, %vm3600
  %vm3608 = vmand %vm3594, %vm3601
  %vm3609 = vmand %vm3595, %vm3602
  %vm3610 = vmand %vm3596, %vm3603
  %v3611 = vmul.u32 %v3580, 3
  %v3612 = vmul.u32 %v3581, 3
  %v3613 = vmul.u32 %v3582, 3
  %v3614 = vmul.u32 %v3583, 3
  %v3615 = vmul.u32 %v3584, 3
  %v3616 = vmul.u32 %v3585, 3
  %v3617 = vmul.u32 %v3586, 3
  %vm3618 = vcmp.eq.s32.totalorder %v3588, %v3611
  %vm3619 = vcmp.eq.s32.totalorder %v3589, %v3611
  %vm3620 = vcmp.eq.s32.totalorder %v3588, %v3612
  %vm3621 = vcmp.eq.s32.totalorder %v3589, %v3612
  %vm3622 = vcmp.eq.s32.totalorder %v3588, %v3613
  %vm3623 = vcmp.eq.s32.totalorder %v3589, %v3613
  %vm3624 = vcmp.eq.s32.totalorder %v3588, %v3614
  %vm3625 = vcmp.eq.s32.totalorder %v3589, %v3614
  %vm3626 = vcmp.eq.s32.totalorder %v3588, %v3615
  %vm3627 = vcmp.eq.s32.totalorder %v3589, %v3615
  %vm3628 = vcmp.eq.s32.totalorder %v3588, %v3616
  %vm3629 = vcmp.eq.s32.totalorder %v3589, %v3616
  %vm3630 = vcmp.eq.s32.totalorder %v3588, %v3617
  %vm3631 = vcmp.eq.s32.totalorder %v3589, %v3617
  %vm3632 = vmand %vm3604, %vm3618
  %vm3633 = vmand %vm3604, %vm3619
  %vm3634 = vmand %vm3605, %vm3620
  %vm3635 = vmand %vm3605, %vm3621
  %vm3636 = vmand %vm3606, %vm3622
  %vm3637 = vmand %vm3606, %vm3623
  %vm3638 = vmand %vm3607, %vm3624
  %vm3639 = vmand %vm3607, %vm3625
  %vm3640 = vmand %vm3608, %vm3626
  %vm3641 = vmand %vm3608, %vm3627
  %vm3642 = vmand %vm3609, %vm3628
  %vm3643 = vmand %vm3609, %vm3629
  %vm3644 = vmand %vm3610, %vm3630
  %vm3645 = vmand %vm3610, %vm3631
  %vm3646 = vcmp.ge.s32.totalorder %v3580, 26
  %vm3647 = vcmp.ge.s32.totalorder %v3581, 26
  %vm3648 = vcmp.ge.s32.totalorder %v3582, 26
  %vm3649 = vcmp.ge.s32.totalorder %v3583, 26
  %vm3650 = vcmp.ge.s32.totalorder %v3584, 26
  %vm3651 = vcmp.ge.s32.totalorder %v3585, 26
  %vm3652 = vcmp.ge.s32.totalorder %v3586, 26
  %vm3653 = vcmp.lt.s32.totalorder %v3580, 52
  %vm3654 = vcmp.lt.s32.totalorder %v3581, 52
  %vm3655 = vcmp.lt.s32.totalorder %v3582, 52
  %vm3656 = vcmp.lt.s32.totalorder %v3583, 52
  %vm3657 = vcmp.lt.s32.totalorder %v3584, 52
  %vm3658 = vcmp.lt.s32.totalorder %v3585, 52
  %vm3659 = vcmp.lt.s32.totalorder %v3586, 52
  %vm3660 = vmand %vm3646, %vm3653
  %vm3661 = vmand %vm3647, %vm3654
  %vm3662 = vmand %vm3648, %vm3655
  %vm3663 = vmand %vm3649, %vm3656
  %vm3664 = vmand %vm3650, %vm3657
  %vm3665 = vmand %vm3651, %vm3658
  %vm3666 = vmand %vm3652, %vm3659
  %v3667 = vsub.s32 %v3580, 26
  %v3668 = vsub.s32 %v3581, 26
  %v3669 = vsub.s32 %v3582, 26
  %v3670 = vsub.s32 %v3583, 26
  %v3671 = vsub.s32 %v3584, 26
  %v3672 = vsub.s32 %v3585, 26
  %v3673 = vsub.s32 %v3586, 26
  %v3674 = vmul.u32 %v3667, 3
  %v3675 = vmul.u32 %v3668, 3
  %v3676 = vmul.u32 %v3669, 3
  %v3677 = vmul.u32 %v3670, 3
  %v3678 = vmul.u32 %v3671, 3
  %v3679 = vmul.u32 %v3672, 3
  %v3680 = vmul.u32 %v3673, 3
  %v3681 = vadd.s32 %v3674, 78
  %v3682 = vadd.s32 %v3675, 78
  %v3683 = vadd.s32 %v3676, 78
  %v3684 = vadd.s32 %v3677, 78
  %v3685 = vadd.s32 %v3678, 78
  %v3686 = vadd.s32 %v3679, 78
  %v3687 = vadd.s32 %v3680, 78
  %vm3688 = vcmp.eq.s32.totalorder %v3588, %v3681
  %vm3689 = vcmp.eq.s32.totalorder %v3589, %v3681
  %vm3690 = vcmp.eq.s32.totalorder %v3588, %v3682
  %vm3691 = vcmp.eq.s32.totalorder %v3589, %v3682
  %vm3692 = vcmp.eq.s32.totalorder %v3588, %v3683
  %vm3693 = vcmp.eq.s32.totalorder %v3589, %v3683
  %vm3694 = vcmp.eq.s32.totalorder %v3588, %v3684
  %vm3695 = vcmp.eq.s32.totalorder %v3589, %v3684
  %vm3696 = vcmp.eq.s32.totalorder %v3588, %v3685
  %vm3697 = vcmp.eq.s32.totalorder %v3589, %v3685
  %vm3698 = vcmp.eq.s32.totalorder %v3588, %v3686
  %vm3699 = vcmp.eq.s32.totalorder %v3589, %v3686
  %vm3700 = vcmp.eq.s32.totalorder %v3588, %v3687
  %vm3701 = vcmp.eq.s32.totalorder %v3589, %v3687
  %vm3702 = vmand %vm3660, %vm3688
  %vm3703 = vmand %vm3660, %vm3689
  %vm3704 = vmand %vm3661, %vm3690
  %vm3705 = vmand %vm3661, %vm3691
  %vm3706 = vmand %vm3662, %vm3692
  %vm3707 = vmand %vm3662, %vm3693
  %vm3708 = vmand %vm3663, %vm3694
  %vm3709 = vmand %vm3663, %vm3695
  %vm3710 = vmand %vm3664, %vm3696
  %vm3711 = vmand %vm3664, %vm3697
  %vm3712 = vmand %vm3665, %vm3698
  %vm3713 = vmand %vm3665, %vm3699
  %vm3714 = vmand %vm3666, %vm3700
  %vm3715 = vmand %vm3666, %vm3701
  %vm3716 = vmor %vm3632, %vm3702
  %vm3717 = vmor %vm3633, %vm3703
  %vm3718 = vmor %vm3634, %vm3704
  %vm3719 = vmor %vm3635, %vm3705
  %vm3720 = vmor %vm3636, %vm3706
  %vm3721 = vmor %vm3637, %vm3707
  %vm3722 = vmor %vm3638, %vm3708
  %vm3723 = vmor %vm3639, %vm3709
  %vm3724 = vmor %vm3640, %vm3710
  %vm3725 = vmor %vm3641, %vm3711
  %vm3726 = vmor %vm3642, %vm3712
  %vm3727 = vmor %vm3643, %vm3713
  %vm3728 = vmor %vm3644, %vm3714
  %vm3729 = vmor %vm3645, %vm3715
  %v3730 = vsel %vm3716, 1, 0
  %v3731 = vsel %vm3717, 1, 0
  %v3732 = vsel %vm3718, 1, 0
  %v3733 = vsel %vm3719, 1, 0
  %v3734 = vsel %vm3720, 1, 0
  %v3735 = vsel %vm3721, 1, 0
  %v3736 = vsel %vm3722, 1, 0
  %v3737 = vsel %vm3723, 1, 0
  %v3738 = vsel %vm3724, 1, 0
  %v3739 = vsel %vm3725, 1, 0
  %v3740 = vsel %vm3726, 1, 0
  %v3741 = vsel %vm3727, 1, 0
  %v3742 = vsel %vm3728, 1, 0
  %v3743 = vsel %vm3729, 1, 0
  %v3744 = vcvt.s32.f32 %v3730
  %v3745 = vcvt.s32.f32 %v3731
  %v3746 = vcvt.s32.f32 %v3732
  %v3747 = vcvt.s32.f32 %v3733
  %v3748 = vcvt.s32.f32 %v3734
  %v3749 = vcvt.s32.f32 %v3735
  %v3750 = vcvt.s32.f32 %v3736
  %v3751 = vcvt.s32.f32 %v3737
  %v3752 = vcvt.s32.f32 %v3738
  %v3753 = vcvt.s32.f32 %v3739
  %v3754 = vcvt.s32.f32 %v3740
  %v3755 = vcvt.s32.f32 %v3741
  %v3756 = vcvt.s32.f32 %v3742
  %v3757 = vcvt.s32.f32 %v3743
  %v3758 = vpack.c.bf16 %v3746, %v3744
  %v3759 = vpack.c.bf16 %v3747, %v3745
  %v3760 = vpack.c.bf16 %v3750, %v3748
  %v3761 = vpack.c.bf16 %v3751, %v3749
  %v3762 = vpack.c.bf16 %v3754, %v3752
  %v3763 = vpack.c.bf16 %v3755, %v3753
  %v3764 = vpack.c.bf16 %v3756, %v3756
  %v3765 = vpack.c.bf16 %v3757, %v3757
  %v3766 = vpack.c.bf16 %v3560, %v3559
  %v3767 = vpack.c.bf16 %v3562, %v3561
  %v3768 = vpack.c.bf16 %v3564, %v3563
  %v3769 = vpack.c.bf16 %v3566, %v3565
  %v3770 = vpack.c.bf16 %v3568, %v3567
  %v3771 = vpack.c.bf16 %v3570, %v3569
  %v3772 = vpack.c.bf16 %v3572, %v3571
  %v3773 = vpack.c.bf16 %v3574, %v3573
  %v3774 = vpack.c.bf16 %v3576, %v3575
  %v3775 = vpack.c.bf16 %v3578, %v3577
  %vm3776 = vcmask 228352
  %v3778 = vsel %vm3776, %v3759, 0
  %v3781 = vsel %vm3776, %v3761, 0
  %v3784 = vsel %vm3776, %v3763, 0
  %v3787 = vsel %vm3776, %v3765, 0
  %v3790 = vsel %vm650, %v3775, 0
  %3792 = vmatprep.subr.bf16.mxu0 0
  %3793 = vmatpush1.bf16.msra.mxu0 %v3766
  %3794 = vmatprep.subr.bf16.mxu0 0
  %3795 = vmatpush1.bf16.msra.mxu0 %v3767
  %3796 = vmatprep.subr.bf16.mxu0 0
  %3797 = vmatpush1.bf16.msra.mxu0 %v3768
  %3798 = vmatprep.subr.bf16.mxu0 0
  %3799 = vmatpush1.bf16.msra.mxu0 %v3769
  %3800 = vmatprep.subr.bf16.mxu0 0
  %3801 = vmatpush1.bf16.msra.mxu0 %v3770
  %3802 = vmatprep.subr.bf16.mxu0 0
  %3803 = vmatpush1.bf16.msra.mxu0 %v3771
  %3804 = vmatprep.subr.bf16.mxu0 0
  %3805 = vmatpush1.bf16.msra.mxu0 %v3772
  %3806 = vmatprep.subr.bf16.mxu0 0
  %3807 = vmatpush1.bf16.msra.mxu0 %v3773
  %3808 = vmatprep.subr.bf16.mxu0 0
  %3809 = vmatpush1.bf16.msra.mxu0 %v3774
  %3810 = vmatprep.subr.bf16.mxu0 0
  %3811 = vmatpush1.bf16.msra.mxu0 %v3790
  %3812 = vmatprep.subr.bf16.mxu0 0
  %3813 = vmatpush1.bf16.msra.mxu0 0
  %3814 = vmatprep.subr.bf16.mxu0 0
  %3815 = vmatpush1.bf16.msra.mxu0 0
  %3816 = vmatprep.subr.bf16.mxu0 0
  %3817 = vmatpush1.bf16.msra.mxu0 0
  %3818 = vmatprep.subr.bf16.mxu0 0
  %3819 = vmatpush1.bf16.msra.mxu0 0
  %3820 = vmatprep.subr.bf16.mxu0 0
  %3821 = vmatpush1.bf16.msra.mxu0 0
  %3822 = vmatprep.subr.bf16.mxu0 0
  %3823 = vmatpush1.bf16.msra.mxu0 0
  %3824 = vmatprep.mubr.bf16.mxu0 %v3778
  %3825 = vmatmul.mubr.bf16.gmra.mrb[0].mxu0 %v3758
  %v3826 = vpop.f32.mrb[0].mxu0
  %v3827 = vadd.f32 0.0, %v3826
  %v3828 = vpop.f32.mrb[0].mxu0
  %v3829 = vpop.f32.mrb[0].mxu0
  %v3830 = vadd.f32 0.0, %v3829
  %v3831 = vpop.f32.mrb[0].mxu0
  %3832 = vmatprep.mubr.bf16.mxu0 %v3781
  %3833 = vmatmul.mubr.bf16.gmra.mrb[0].mxu0 %v3760
  %v3834 = vpop.f32.mrb[0].mxu0
  %v3835 = vadd.f32 0.0, %v3834
  %v3836 = vpop.f32.mrb[0].mxu0
  %v3837 = vpop.f32.mrb[0].mxu0
  %v3838 = vadd.f32 0.0, %v3837
  %v3839 = vpop.f32.mrb[0].mxu0
  %3840 = vmatprep.mubr.bf16.mxu0 %v3784
  %3841 = vmatmul.mubr.bf16.gmra.mrb[0].mxu0 %v3762
  %v3842 = vpop.f32.mrb[0].mxu0
  %v3843 = vadd.f32 0.0, %v3842
  %v3844 = vpop.f32.mrb[0].mxu0
  %v3845 = vpop.f32.mrb[0].mxu0
  %v3846 = vadd.f32 0.0, %v3845
  %v3847 = vpop.f32.mrb[0].mxu0
  %3848 = vmatprep.mubr.bf16.mxu0 %v3787
  %3849 = vmatmul.mubr.bf16.gmra.mrb[0].mxu0 %v3764
  %v3850 = vpop.f32.mrb[0].mxu0
  %v3851 = vadd.f32 0.0, %v3850
  %v3852 = vpop.f32.mrb[0].mxu0
  %v3853 = vpop.f32.mrb[0].mxu0
  %v3854 = vpop.f32.mrb[0].mxu0
  %3855 = vdwg.mxu0
  %v3856 = vpack.c.bf16 %v3830, %v3827
  %v3857 = vpack.c.bf16 %v3838, %v3835
  %v3858 = vpack.c.bf16 %v3846, %v3843
  %v3859 = vpack.c.bf16 %v3851, %v3851
  %v3860 = vld [vmem:[%s15] sm:$0xf]
  %v3861 = vld [vmem:[%s15 + $0x4] sm:$0xf]
  %v3862 = vld [vmem:[%s15 + $0x8] sm:$0xf]
  %v3863 = vld [vmem:[%s15 + $0xc] sm:$0xf]
  %v3864 = vld [vmem:[%s15 + $0x10] sm:$0xf]
  %v3865 = vld [vmem:[%s15 + $0x14] sm:$0xf]
  %v3866 = vld [vmem:[%s15 + $0x18] sm:$0xf]
  %v3867 = vld [vmem:[%s15 + $0x1c] sm:$0xf]
  %v3868 = vld [vmem:[%s15 + $0x20] sm:$0xf]
  %v3869 = vld [vmem:[%s15 + $0x24] sm:$0xf]
  %v3870 = vld [vmem:[%s15 + $0x28] sm:$0xf]
  %v3871 = vld [vmem:[%s15 + $0x2c] sm:$0xf]
  %v3872 = vld [vmem:[%s15 + $0x30] sm:$0xf]
  %v3873 = vld [vmem:[%s15 + $0x34] sm:$0xf]
  %v3874 = vld [vmem:[%s15 + $0x38] sm:$0xf]
  %v3875 = vld [vmem:[%s15 + $0x3c] sm:$0xf]
  %v3892 = vunpack.c.l.b16 %v3860
  %v3893 = vunpack.c.l.b16 %v3861
  %v3894 = vunpack.c.l.b16 %v3862
  %v3895 = vunpack.c.l.b16 %v3863
  %v3896 = vunpack.c.l.b16 %v3864
  %v3897 = vunpack.c.l.b16 %v3865
  %v3898 = vunpack.c.l.b16 %v3866
  %v3899 = vunpack.c.l.b16 %v3867
  %v3900 = vunpack.c.l.b16 %v3868
  %v3901 = vunpack.c.l.b16 %v3869
  %v3902 = vunpack.c.l.b16 %v3870
  %v3903 = vunpack.c.l.b16 %v3871
  %v3904 = vunpack.c.l.b16 %v3872
  %v3905 = vunpack.c.l.b16 %v3873
  %v3906 = vunpack.c.l.b16 %v3874
  %v3907 = vunpack.c.l.b16 %v3875
  %v3908 = vpack.c.b16 %v3893, %v3892
  %v3909 = vpack.c.b16 %v3895, %v3894
  %v3910 = vpack.c.b16 %v3897, %v3896
  %v3911 = vpack.c.b16 %v3899, %v3898
  %v3912 = vpack.c.b16 %v3901, %v3900
  %v3913 = vpack.c.b16 %v3903, %v3902
  %v3914 = vpack.c.b16 %v3905, %v3904
  %v3915 = vpack.c.b16 %v3907, %v3906
  %3924 = vmatprep.subr.bf16.mxu0 0
  %3925 = vmatpush1.bf16.msra.mxu0 %v3908
  %3926 = vmatprep.subr.bf16.mxu0 0
  %3927 = vmatpush1.bf16.msra.mxu0 %v3909
  %3928 = vmatprep.subr.bf16.mxu0 0
  %3929 = vmatpush1.bf16.msra.mxu0 %v3910
  %3930 = vmatprep.subr.bf16.mxu0 0
  %3931 = vmatpush1.bf16.msra.mxu0 %v3911
  %3932 = vmatprep.subr.bf16.mxu0 0
  %3933 = vmatpush1.bf16.msra.mxu0 %v3912
  %3934 = vmatprep.subr.bf16.mxu0 0
  %3935 = vmatpush1.bf16.msra.mxu0 %v3913
  %3936 = vmatprep.subr.bf16.mxu0 0
  %3937 = vmatpush1.bf16.msra.mxu0 %v3914
  %3938 = vmatprep.subr.bf16.mxu0 0
  %3939 = vmatpush1.bf16.msra.mxu0 %v3915
  %3940 = vmatprep.subr.bf16.mxu0 0
  %3941 = vmatpush1.bf16.msra.mxu0 0
  %3942 = vmatprep.subr.bf16.mxu0 0
  %3943 = vmatpush1.bf16.msra.mxu0 0
  %3944 = vmatprep.subr.bf16.mxu0 0
  %3945 = vmatpush1.bf16.msra.mxu0 0
  %3946 = vmatprep.subr.bf16.mxu0 0
  %3947 = vmatpush1.bf16.msra.mxu0 0
  %3948 = vmatprep.subr.bf16.mxu0 0
  %3949 = vmatpush1.bf16.msra.mxu0 0
  %3950 = vmatprep.subr.bf16.mxu0 0
  %3951 = vmatpush1.bf16.msra.mxu0 0
  %3952 = vmatprep.subr.bf16.mxu0 0
  %3953 = vmatpush1.bf16.msra.mxu0 0
  %3954 = vmatprep.subr.bf16.mxu0 0
  %3955 = vmatpush1.bf16.msra.mxu0 0
  %3956 = vmatprep.mubr.bf16.mxu0 0
  %3957 = vmatmul.mubr.bf16.gmra.mrb[0].mxu0 %v3856
  %v3958 = vpop.f32.mrb[0].mxu0
  %v3959 = vadd.f32 0.0, %v3958
  %v3960 = vpop.f32.mrb[0].mxu0
  %v3961 = vpop.f32.mrb[0].mxu0
  %v3962 = vadd.f32 0.0, %v3961
  %v3963 = vpop.f32.mrb[0].mxu0
  %3964 = vmatprep.mubr.bf16.mxu0 0
  %3965 = vmatmul.mubr.bf16.gmra.mrb[0].mxu0 %v3857
  %v3966 = vpop.f32.mrb[0].mxu0
  %v3967 = vadd.f32 0.0, %v3966
  %v3968 = vpop.f32.mrb[0].mxu0
  %v3969 = vpop.f32.mrb[0].mxu0
  %v3970 = vadd.f32 0.0, %v3969
  %v3971 = vpop.f32.mrb[0].mxu0
  %3972 = vmatprep.mubr.bf16.mxu0 0
  %3973 = vmatmul.mubr.bf16.gmra.mrb[0].mxu0 %v3858
  %v3974 = vpop.f32.mrb[0].mxu0
  %v3975 = vadd.f32 0.0, %v3974
  %v3976 = vpop.f32.mrb[0].mxu0
  %v3977 = vpop.f32.mrb[0].mxu0
  %v3978 = vadd.f32 0.0, %v3977
  %v3979 = vpop.f32.mrb[0].mxu0
  %3980 = vmatprep.mubr.bf16.mxu0 0
  %3981 = vmatmul.mubr.bf16.gmra.mrb[0].mxu0 %v3859
  %v3982 = vpop.f32.mrb[0].mxu0
  %v3983 = vadd.f32 0.0, %v3982
  %v3984 = vpop.f32.mrb[0].mxu0
  %v3985 = vpop.f32.mrb[0].mxu0
  %v3986 = vpop.f32.mrb[0].mxu0
  %3987 = vdwg.mxu0
  %v3988 = vpack.c.bf16 %v3962, %v3959
  %v3989 = vpack.c.bf16 %v3970, %v3967
  %v3990 = vpack.c.bf16 %v3978, %v3975
  %v3991 = vpack.c.bf16 %v3983, %v3983
  %v3992 = vld [vmem:[%s17] sm:$0xf]
  %v3993 = vld [vmem:[%s17 + $0x4] sm:$0xf]
  %v3994 = vld [vmem:[%s17 + $0x8] sm:$0xf]
  %v3995 = vld [vmem:[%s17 + $0xc] sm:$0xf]
  %v3996 = vmul.f32 %v3827, 0.66
  %v3997 = vmul.f32 %v3830, 0.66
  %v3998 = vmul.f32 %v3835, 0.66
  %v3999 = vmul.f32 %v3838, 0.66
  %v4000 = vmul.f32 %v3843, 0.66
  %v4001 = vmul.f32 %v3846, 0.66
  %v4002 = vmul.f32 %v3851, 0.66
  %v4007 = vunpack.c.l.b16 %v3992
  %v4008 = vunpack.c.l.b16 %v3993
  %v4009 = vunpack.c.l.b16 %v3994
  %v4010 = vunpack.c.l.b16 %v3995
  %v4011 = vpack.c.b16 %v4008, %v4007
  %v4012 = vpack.c.b16 %v4010, %v4009
  %v4016 = vsel %vm870, %v3988, 0
  %v4019 = vsel %vm870, %v3989, 0
  %v4022 = vsel %vm870, %v3990, 0
  %v4025 = vsel %vm870, %v3991, 0
  %4027 = vmatprep.subr.bf16.mxu0 0
  %4028 = vmatpush1.bf16.msra.mxu0 %v4011
  %4029 = vmatprep.subr.bf16.mxu0 0
  %4030 = vmatpush1.bf16.msra.mxu0 %v4012
  %4031 = vmatprep.subr.bf16.mxu0 0
  %4032 = vmatpush1.bf16.msra.mxu0 0
  %4033 = vmatprep.subr.bf16.mxu0 0
  %4034 = vmatpush1.bf16.msra.mxu0 0
  %4035 = vmatprep.subr.bf16.mxu0 0
  %4036 = vmatpush1.bf16.msra.mxu0 0
  %4037 = vmatprep.subr.bf16.mxu0 0
  %4038 = vmatpush1.bf16.msra.mxu0 0
  %4039 = vmatprep.subr.bf16.mxu0 0
  %4040 = vmatpush1.bf16.msra.mxu0 0
  %4041 = vmatprep.subr.bf16.mxu0 0
  %4042 = vmatpush1.bf16.msra.mxu0 0
  %4043 = vmatprep.subr.bf16.mxu0 0
  %4044 = vmatpush1.bf16.msra.mxu0 0
  %4045 = vmatprep.subr.bf16.mxu0 0
  %4046 = vmatpush1.bf16.msra.mxu0 0
  %4047 = vmatprep.subr.bf16.mxu0 0
  %4048 = vmatpush1.bf16.msra.mxu0 0
  %4049 = vmatprep.subr.bf16.mxu0 0
  %4050 = vmatpush1.bf16.msra.mxu0 0
  %4051 = vmatprep.subr.bf16.mxu0 0
  %4052 = vmatpush1.bf16.msra.mxu0 0
  %4053 = vmatprep.subr.bf16.mxu0 0
  %4054 = vmatpush1.bf16.msra.mxu0 0
  %4055 = vmatprep.subr.bf16.mxu0 0
  %4056 = vmatpush1.bf16.msra.mxu0 0
  %4057 = vmatprep.subr.bf16.mxu0 0
  %4058 = vmatpush1.bf16.msra.mxu0 0
  %4059 = vmatprep.mubr.bf16.mxu0 0
  %4060 = vmatmul.mubr.bf16.gmra.mrb[0].mxu0 %v4016
  %v4061 = vpop.f32.mrb[0].mxu0
  %v4062 = vadd.f32 %v3996, %v4061
  %v4063 = vpop.f32.mrb[0].mxu0
  %v4064 = vpop.f32.mrb[0].mxu0
  %v4065 = vadd.f32 %v3997, %v4064
  %v4066 = vpop.f32.mrb[0].mxu0
  %4067 = vmatprep.mubr.bf16.mxu0 0
  %4068 = vmatmul.mubr.bf16.gmra.mrb[0].mxu0 %v4019
  %v4069 = vpop.f32.mrb[0].mxu0
  %v4070 = vadd.f32 %v3998, %v4069
  %v4071 = vpop.f32.mrb[0].mxu0
  %v4072 = vpop.f32.mrb[0].mxu0
  %v4073 = vadd.f32 %v3999, %v4072
  %v4074 = vpop.f32.mrb[0].mxu0
  %4075 = vmatprep.mubr.bf16.mxu0 0
  %4076 = vmatmul.mubr.bf16.gmra.mrb[0].mxu0 %v4022
  %v4077 = vpop.f32.mrb[0].mxu0
  %v4078 = vadd.f32 %v4000, %v4077
  %v4079 = vpop.f32.mrb[0].mxu0
  %v4080 = vpop.f32.mrb[0].mxu0
  %v4081 = vadd.f32 %v4001, %v4080
  %v4082 = vpop.f32.mrb[0].mxu0
  %4083 = vmatprep.mubr.bf16.mxu0 0
  %4084 = vmatmul.mubr.bf16.gmra.mrb[0].mxu0 %v4025
  %v4085 = vpop.f32.mrb[0].mxu0
  %v4086 = vadd.f32 %v4002, %v4085
  %v4087 = vpop.f32.mrb[0].mxu0
  %v4088 = vpop.f32.mrb[0].mxu0
  %v4089 = vpop.f32.mrb[0].mxu0
  %4090 = vdwg.mxu0
  %v4091 = vadd.f32 %v4062, %v4065
  %v4092 = vadd.f32 %v4091, %v4070
  %v4093 = vadd.f32 %v4092, %v4073
  %v4094 = vadd.f32 %v4093, %v4078
  %v4095 = vadd.f32 %v4094, %v4081
  %v4096 = vsel %vm1043, %v4086, 0.0
  %v4097 = vadd.f32 %v4095, %v4096
  %v4098 = vrot.slane %v4097, 4
  %v4099 = vadd.f32 %v4097, %v4098
  %v4100 = vrot.slane %v4099, 2
  %v4101 = vadd.f32 %v4099, %v4100
  %v4102 = vrot.slane %v4101, 1
  %v4103 = vadd.f32 %v4101, %v4102
  %v4104 = vmul.f32 %v4062, %v4062
  %v4105 = vmul.f32 %v4065, %v4065
  %v4106 = vmul.f32 %v4070, %v4070
  %v4107 = vmul.f32 %v4073, %v4073
  %v4108 = vmul.f32 %v4078, %v4078
  %v4109 = vmul.f32 %v4081, %v4081
  %v4110 = vmul.f32 %v4086, %v4086
  %v4111 = vadd.f32 %v4104, %v4105
  %v4112 = vadd.f32 %v4111, %v4106
  %v4113 = vadd.f32 %v4112, %v4107
  %v4114 = vadd.f32 %v4113, %v4108
  %v4115 = vadd.f32 %v4114, %v4109
  %v4116 = vsel %vm1043, %v4110, 0.0
  %v4117 = vadd.f32 %v4115, %v4116
  %v4118 = vrot.slane %v4117, 4
  %v4119 = vadd.f32 %v4117, %v4118
  %v4120 = vrot.slane %v4119, 2
  %v4121 = vadd.f32 %v4119, %v4120
  %v4122 = vrot.slane %v4121, 1
  %v4123 = vadd.f32 %v4121, %v4122
  %v4124 = vmul.f32 %v4103, 0.01923077
  %v4125 = vmul.f32 %v4123, 0.01923077
  %v4126 = vmul.f32 %v4124, %v4124
  %v4127 = vsub.f32 %v4125, %v4126
  %v4128 = vmax.f32 %v4127, 0.0
  %v4129 = vadd.f32 %v4128, 1e-05
  %v4130 = vrsqrt.pop %v4129
  %v4131 = vsub.f32 %v4062, %v4124
  %v4132 = vsub.f32 %v4065, %v4124
  %v4133 = vsub.f32 %v4070, %v4124
  %v4134 = vsub.f32 %v4073, %v4124
  %v4135 = vsub.f32 %v4078, %v4124
  %v4136 = vsub.f32 %v4081, %v4124
  %v4137 = vsub.f32 %v4086, %v4124
  %v4138 = vmul.f32 %v4131, %v4130
  %v4139 = vmul.f32 %v4132, %v4130
  %v4140 = vmul.f32 %v4133, %v4130
  %v4141 = vmul.f32 %v4134, %v4130
  %v4142 = vmul.f32 %v4135, %v4130
  %v4143 = vmul.f32 %v4136, %v4130
  %v4144 = vmul.f32 %v4137, %v4130
  %v4145 = vmax.f32 %v4138, 0.0
  %v4146 = vmax.f32 %v4139, 0.0
  %v4147 = vmax.f32 %v4140, 0.0
  %v4148 = vmax.f32 %v4141, 0.0
  %v4149 = vmax.f32 %v4142, 0.0
  %v4150 = vmax.f32 %v4143, 0.0
  %v4151 = vmax.f32 %v4144, 0.0
  %v4152 = vpack.c.bf16 %v4146, %v4145
  %v4153 = vpack.c.bf16 %v4148, %v4147
  %v4154 = vpack.c.bf16 %v4150, %v4149
  %v4155 = vpack.c.bf16 %v4151, %v4151
  %v4156 = vld [vmem:[%s19] sm:$0xf]
  %v4157 = vld [vmem:[%s19 + $0x4] sm:$0xf]
  %v4158 = vld [vmem:[%s19 + $0x8] sm:$0xf]
  %v4159 = vld [vmem:[%s19 + $0xc] sm:$0xf]
  %v4160 = vld [vmem:[%s19 + $0x10] sm:$0xf]
  %v4161 = vld [vmem:[%s19 + $0x14] sm:$0xf]
  %v4162 = vld [vmem:[%s19 + $0x18] sm:$0xf]
  %v4163 = vld [vmem:[%s19 + $0x1c] sm:$0xf]
  %v4164 = vld [vmem:[%s19 + $0x20] sm:$0xf]
  %v4165 = vld [vmem:[%s19 + $0x24] sm:$0xf]
  %v4166 = vld [vmem:[%s19 + $0x28] sm:$0xf]
  %v4167 = vld [vmem:[%s19 + $0x2c] sm:$0xf]
  %v4168 = vld [vmem:[%s19 + $0x30] sm:$0xf]
  %v4169 = vld [vmem:[%s19 + $0x34] sm:$0xf]
  %v4170 = vld [vmem:[%s19 + $0x38] sm:$0xf]
  %v4171 = vld [vmem:[%s19 + $0x3c] sm:$0xf]
  %v4188 = vunpack.c.l.b16 %v4156
  %v4189 = vunpack.c.l.b16 %v4157
  %v4190 = vunpack.c.l.b16 %v4158
  %v4191 = vunpack.c.l.b16 %v4159
  %v4192 = vunpack.c.l.b16 %v4160
  %v4193 = vunpack.c.l.b16 %v4161
  %v4194 = vunpack.c.l.b16 %v4162
  %v4195 = vunpack.c.l.b16 %v4163
  %v4196 = vunpack.c.l.b16 %v4164
  %v4197 = vunpack.c.l.b16 %v4165
  %v4198 = vunpack.c.l.b16 %v4166
  %v4199 = vunpack.c.l.b16 %v4167
  %v4200 = vunpack.c.l.b16 %v4168
  %v4201 = vunpack.c.l.b16 %v4169
  %v4202 = vunpack.c.l.b16 %v4170
  %v4203 = vunpack.c.l.b16 %v4171
  %v4204 = vpack.c.b16 %v4189, %v4188
  %v4205 = vpack.c.b16 %v4191, %v4190
  %v4206 = vpack.c.b16 %v4193, %v4192
  %v4207 = vpack.c.b16 %v4195, %v4194
  %v4208 = vpack.c.b16 %v4197, %v4196
  %v4209 = vpack.c.b16 %v4199, %v4198
  %v4210 = vpack.c.b16 %v4201, %v4200
  %v4211 = vpack.c.b16 %v4203, %v4202
  %4220 = vmatprep.subr.bf16.mxu0 0
  %4221 = vmatpush1.bf16.msra.mxu0 %v4204
  %4222 = vmatprep.subr.bf16.mxu0 0
  %4223 = vmatpush1.bf16.msra.mxu0 %v4205
  %4224 = vmatprep.subr.bf16.mxu0 0
  %4225 = vmatpush1.bf16.msra.mxu0 %v4206
  %4226 = vmatprep.subr.bf16.mxu0 0
  %4227 = vmatpush1.bf16.msra.mxu0 %v4207
  %4228 = vmatprep.subr.bf16.mxu0 0
  %4229 = vmatpush1.bf16.msra.mxu0 %v4208
  %4230 = vmatprep.subr.bf16.mxu0 0
  %4231 = vmatpush1.bf16.msra.mxu0 %v4209
  %4232 = vmatprep.subr.bf16.mxu0 0
  %4233 = vmatpush1.bf16.msra.mxu0 %v4210
  %4234 = vmatprep.subr.bf16.mxu0 0
  %4235 = vmatpush1.bf16.msra.mxu0 %v4211
  %4236 = vmatprep.subr.bf16.mxu0 0
  %4237 = vmatpush1.bf16.msra.mxu0 0
  %4238 = vmatprep.subr.bf16.mxu0 0
  %4239 = vmatpush1.bf16.msra.mxu0 0
  %4240 = vmatprep.subr.bf16.mxu0 0
  %4241 = vmatpush1.bf16.msra.mxu0 0
  %4242 = vmatprep.subr.bf16.mxu0 0
  %4243 = vmatpush1.bf16.msra.mxu0 0
  %4244 = vmatprep.subr.bf16.mxu0 0
  %4245 = vmatpush1.bf16.msra.mxu0 0
  %4246 = vmatprep.subr.bf16.mxu0 0
  %4247 = vmatpush1.bf16.msra.mxu0 0
  %4248 = vmatprep.subr.bf16.mxu0 0
  %4249 = vmatpush1.bf16.msra.mxu0 0
  %4250 = vmatprep.subr.bf16.mxu0 0
  %4251 = vmatpush1.bf16.msra.mxu0 0
  %4252 = vmatprep.mubr.bf16.mxu0 0
  %4253 = vmatmul.mubr.bf16.gmra.mrb[0].mxu0 %v4152
  %v4254 = vpop.f32.mrb[0].mxu0
  %v4255 = vadd.f32 0.0, %v4254
  %v4256 = vpop.f32.mrb[0].mxu0
  %v4257 = vpop.f32.mrb[0].mxu0
  %v4258 = vadd.f32 0.0, %v4257
  %v4259 = vpop.f32.mrb[0].mxu0
  %4260 = vmatprep.mubr.bf16.mxu0 0
  %4261 = vmatmul.mubr.bf16.gmra.mrb[0].mxu0 %v4153
  %v4262 = vpop.f32.mrb[0].mxu0
  %v4263 = vadd.f32 0.0, %v4262
  %v4264 = vpop.f32.mrb[0].mxu0
  %v4265 = vpop.f32.mrb[0].mxu0
  %v4266 = vadd.f32 0.0, %v4265
  %v4267 = vpop.f32.mrb[0].mxu0
  %4268 = vmatprep.mubr.bf16.mxu0 0
  %4269 = vmatmul.mubr.bf16.gmra.mrb[0].mxu0 %v4154
  %v4270 = vpop.f32.mrb[0].mxu0
  %v4271 = vadd.f32 0.0, %v4270
  %v4272 = vpop.f32.mrb[0].mxu0
  %v4273 = vpop.f32.mrb[0].mxu0
  %v4274 = vadd.f32 0.0, %v4273
  %v4275 = vpop.f32.mrb[0].mxu0
  %4276 = vmatprep.mubr.bf16.mxu0 0
  %4277 = vmatmul.mubr.bf16.gmra.mrb[0].mxu0 %v4155
  %v4278 = vpop.f32.mrb[0].mxu0
  %v4279 = vadd.f32 0.0, %v4278
  %v4280 = vpop.f32.mrb[0].mxu0
  %v4281 = vpop.f32.mrb[0].mxu0
  %v4282 = vpop.f32.mrb[0].mxu0
  %4283 = vdwg.mxu0
  %v4284 = vld [vmem:[%s19 + $0x40] sm:$0xf]
  %v4285 = vld [vmem:[%s19 + $0x44] sm:$0xf]
  %v4286 = vld [vmem:[%s19 + $0x48] sm:$0xf]
  %v4287 = vld [vmem:[%s19 + $0x4c] sm:$0xf]
  %v4288 = vld [vmem:[%s19 + $0x50] sm:$0xf]
  %v4289 = vld [vmem:[%s19 + $0x54] sm:$0xf]
  %v4290 = vld [vmem:[%s19 + $0x58] sm:$0xf]
  %v4291 = vld [vmem:[%s19 + $0x5c] sm:$0xf]
  %v4292 = vld [vmem:[%s19 + $0x60] sm:$0xf]
  %v4293 = vld [vmem:[%s19 + $0x64] sm:$0xf]
  %v4294 = vld [vmem:[%s19 + $0x68] sm:$0xf]
  %v4295 = vld [vmem:[%s19 + $0x6c] sm:$0xf]
  %v4296 = vld [vmem:[%s19 + $0x70] sm:$0xf]
  %v4297 = vld [vmem:[%s19 + $0x74] sm:$0xf]
  %v4298 = vld [vmem:[%s19 + $0x78] sm:$0xf]
  %v4299 = vld [vmem:[%s19 + $0x7c] sm:$0xf]
  %v4316 = vunpack.c.l.b16 %v4284
  %v4317 = vunpack.c.l.b16 %v4285
  %v4318 = vunpack.c.l.b16 %v4286
  %v4319 = vunpack.c.l.b16 %v4287
  %v4320 = vunpack.c.l.b16 %v4288
  %v4321 = vunpack.c.l.b16 %v4289
  %v4322 = vunpack.c.l.b16 %v4290
  %v4323 = vunpack.c.l.b16 %v4291
  %v4324 = vunpack.c.l.b16 %v4292
  %v4325 = vunpack.c.l.b16 %v4293
  %v4326 = vunpack.c.l.b16 %v4294
  %v4327 = vunpack.c.l.b16 %v4295
  %v4328 = vunpack.c.l.b16 %v4296
  %v4329 = vunpack.c.l.b16 %v4297
  %v4330 = vunpack.c.l.b16 %v4298
  %v4331 = vunpack.c.l.b16 %v4299
  %v4332 = vpack.c.b16 %v4317, %v4316
  %v4333 = vpack.c.b16 %v4319, %v4318
  %v4334 = vpack.c.b16 %v4321, %v4320
  %v4335 = vpack.c.b16 %v4323, %v4322
  %v4336 = vpack.c.b16 %v4325, %v4324
  %v4337 = vpack.c.b16 %v4327, %v4326
  %v4338 = vpack.c.b16 %v4329, %v4328
  %v4339 = vpack.c.b16 %v4331, %v4330
  %4348 = vmatprep.subr.bf16.mxu0 0
  %4349 = vmatpush1.bf16.msra.mxu0 %v4332
  %4350 = vmatprep.subr.bf16.mxu0 0
  %4351 = vmatpush1.bf16.msra.mxu0 %v4333
  %4352 = vmatprep.subr.bf16.mxu0 0
  %4353 = vmatpush1.bf16.msra.mxu0 %v4334
  %4354 = vmatprep.subr.bf16.mxu0 0
  %4355 = vmatpush1.bf16.msra.mxu0 %v4335
  %4356 = vmatprep.subr.bf16.mxu0 0
  %4357 = vmatpush1.bf16.msra.mxu0 %v4336
  %4358 = vmatprep.subr.bf16.mxu0 0
  %4359 = vmatpush1.bf16.msra.mxu0 %v4337
  %4360 = vmatprep.subr.bf16.mxu0 0
  %4361 = vmatpush1.bf16.msra.mxu0 %v4338
  %4362 = vmatprep.subr.bf16.mxu0 0
  %4363 = vmatpush1.bf16.msra.mxu0 %v4339
  %4364 = vmatprep.subr.bf16.mxu0 0
  %4365 = vmatpush1.bf16.msra.mxu0 0
  %4366 = vmatprep.subr.bf16.mxu0 0
  %4367 = vmatpush1.bf16.msra.mxu0 0
  %4368 = vmatprep.subr.bf16.mxu0 0
  %4369 = vmatpush1.bf16.msra.mxu0 0
  %4370 = vmatprep.subr.bf16.mxu0 0
  %4371 = vmatpush1.bf16.msra.mxu0 0
  %4372 = vmatprep.subr.bf16.mxu0 0
  %4373 = vmatpush1.bf16.msra.mxu0 0
  %4374 = vmatprep.subr.bf16.mxu0 0
  %4375 = vmatpush1.bf16.msra.mxu0 0
  %4376 = vmatprep.subr.bf16.mxu0 0
  %4377 = vmatpush1.bf16.msra.mxu0 0
  %4378 = vmatprep.subr.bf16.mxu0 0
  %4379 = vmatpush1.bf16.msra.mxu0 0
  %4380 = vmatprep.mubr.bf16.mxu0 0
  %4381 = vmatmul.mubr.bf16.gmra.mrb[0].mxu0 %v4152
  %v4382 = vpop.f32.mrb[0].mxu0
  %v4383 = vadd.f32 0.0, %v4382
  %v4384 = vpop.f32.mrb[0].mxu0
  %v4385 = vpop.f32.mrb[0].mxu0
  %v4386 = vadd.f32 0.0, %v4385
  %v4387 = vpop.f32.mrb[0].mxu0
  %4388 = vmatprep.mubr.bf16.mxu0 0
  %4389 = vmatmul.mubr.bf16.gmra.mrb[0].mxu0 %v4153
  %v4390 = vpop.f32.mrb[0].mxu0
  %v4391 = vadd.f32 0.0, %v4390
  %v4392 = vpop.f32.mrb[0].mxu0
  %v4393 = vpop.f32.mrb[0].mxu0
  %v4394 = vadd.f32 0.0, %v4393
  %v4395 = vpop.f32.mrb[0].mxu0
  %4396 = vmatprep.mubr.bf16.mxu0 0
  %4397 = vmatmul.mubr.bf16.gmra.mrb[0].mxu0 %v4154
  %v4398 = vpop.f32.mrb[0].mxu0
  %v4399 = vadd.f32 0.0, %v4398
  %v4400 = vpop.f32.mrb[0].mxu0
  %v4401 = vpop.f32.mrb[0].mxu0
  %v4402 = vadd.f32 0.0, %v4401
  %v4403 = vpop.f32.mrb[0].mxu0
  %4404 = vmatprep.mubr.bf16.mxu0 0
  %4405 = vmatmul.mubr.bf16.gmra.mrb[0].mxu0 %v4155
  %v4406 = vpop.f32.mrb[0].mxu0
  %v4407 = vadd.f32 0.0, %v4406
  %v4408 = vpop.f32.mrb[0].mxu0
  %v4409 = vpop.f32.mrb[0].mxu0
  %v4410 = vpop.f32.mrb[0].mxu0
  %4411 = vdwg.mxu0
  %v4412 = vld [vmem:[%s19 + $0x80] sm:$0xf]
  %v4413 = vld [vmem:[%s19 + $0x84] sm:$0xf]
  %v4414 = vld [vmem:[%s19 + $0x88] sm:$0xf]
  %v4415 = vld [vmem:[%s19 + $0x8c] sm:$0xf]
  %v4416 = vld [vmem:[%s19 + $0x90] sm:$0xf]
  %v4417 = vld [vmem:[%s19 + $0x94] sm:$0xf]
  %v4418 = vld [vmem:[%s19 + $0x98] sm:$0xf]
  %v4419 = vld [vmem:[%s19 + $0x9c] sm:$0xf]
  %v4420 = vld [vmem:[%s19 + $0xa0] sm:$0xf]
  %v4421 = vld [vmem:[%s19 + $0xa4] sm:$0xf]
  %v4422 = vld [vmem:[%s19 + $0xa8] sm:$0xf]
  %v4423 = vld [vmem:[%s19 + $0xac] sm:$0xf]
  %v4424 = vld [vmem:[%s19 + $0xb0] sm:$0xf]
  %v4425 = vld [vmem:[%s19 + $0xb4] sm:$0xf]
  %v4426 = vld [vmem:[%s19 + $0xb8] sm:$0xf]
  %v4427 = vld [vmem:[%s19 + $0xbc] sm:$0xf]
  %v4444 = vunpack.c.l.b16 %v4412
  %v4445 = vunpack.c.l.b16 %v4413
  %v4446 = vunpack.c.l.b16 %v4414
  %v4447 = vunpack.c.l.b16 %v4415
  %v4448 = vunpack.c.l.b16 %v4416
  %v4449 = vunpack.c.l.b16 %v4417
  %v4450 = vunpack.c.l.b16 %v4418
  %v4451 = vunpack.c.l.b16 %v4419
  %v4452 = vunpack.c.l.b16 %v4420
  %v4453 = vunpack.c.l.b16 %v4421
  %v4454 = vunpack.c.l.b16 %v4422
  %v4455 = vunpack.c.l.b16 %v4423
  %v4456 = vunpack.c.l.b16 %v4424
  %v4457 = vunpack.c.l.b16 %v4425
  %v4458 = vunpack.c.l.b16 %v4426
  %v4459 = vunpack.c.l.b16 %v4427
  %v4460 = vpack.c.b16 %v4445, %v4444
  %v4461 = vpack.c.b16 %v4447, %v4446
  %v4462 = vpack.c.b16 %v4449, %v4448
  %v4463 = vpack.c.b16 %v4451, %v4450
  %v4464 = vpack.c.b16 %v4453, %v4452
  %v4465 = vpack.c.b16 %v4455, %v4454
  %v4466 = vpack.c.b16 %v4457, %v4456
  %v4467 = vpack.c.b16 %v4459, %v4458
  %4476 = vmatprep.subr.bf16.mxu0 0
  %4477 = vmatpush1.bf16.msra.mxu0 %v4460
  %4478 = vmatprep.subr.bf16.mxu0 0
  %4479 = vmatpush1.bf16.msra.mxu0 %v4461
  %4480 = vmatprep.subr.bf16.mxu0 0
  %4481 = vmatpush1.bf16.msra.mxu0 %v4462
  %4482 = vmatprep.subr.bf16.mxu0 0
  %4483 = vmatpush1.bf16.msra.mxu0 %v4463
  %4484 = vmatprep.subr.bf16.mxu0 0
  %4485 = vmatpush1.bf16.msra.mxu0 %v4464
  %4486 = vmatprep.subr.bf16.mxu0 0
  %4487 = vmatpush1.bf16.msra.mxu0 %v4465
  %4488 = vmatprep.subr.bf16.mxu0 0
  %4489 = vmatpush1.bf16.msra.mxu0 %v4466
  %4490 = vmatprep.subr.bf16.mxu0 0
  %4491 = vmatpush1.bf16.msra.mxu0 %v4467
  %4492 = vmatprep.subr.bf16.mxu0 0
  %4493 = vmatpush1.bf16.msra.mxu0 0
  %4494 = vmatprep.subr.bf16.mxu0 0
  %4495 = vmatpush1.bf16.msra.mxu0 0
  %4496 = vmatprep.subr.bf16.mxu0 0
  %4497 = vmatpush1.bf16.msra.mxu0 0
  %4498 = vmatprep.subr.bf16.mxu0 0
  %4499 = vmatpush1.bf16.msra.mxu0 0
  %4500 = vmatprep.subr.bf16.mxu0 0
  %4501 = vmatpush1.bf16.msra.mxu0 0
  %4502 = vmatprep.subr.bf16.mxu0 0
  %4503 = vmatpush1.bf16.msra.mxu0 0
  %4504 = vmatprep.subr.bf16.mxu0 0
  %4505 = vmatpush1.bf16.msra.mxu0 0
  %4506 = vmatprep.subr.bf16.mxu0 0
  %4507 = vmatpush1.bf16.msra.mxu0 0
  %4508 = vmatprep.mubr.bf16.mxu0 0
  %4509 = vmatmul.mubr.bf16.gmra.mrb[0].mxu0 %v4152
  %v4510 = vpop.f32.mrb[0].mxu0
  %v4511 = vadd.f32 0.0, %v4510
  %v4512 = vpop.f32.mrb[0].mxu0
  %v4513 = vpop.f32.mrb[0].mxu0
  %v4514 = vadd.f32 0.0, %v4513
  %v4515 = vpop.f32.mrb[0].mxu0
  %4516 = vmatprep.mubr.bf16.mxu0 0
  %4517 = vmatmul.mubr.bf16.gmra.mrb[0].mxu0 %v4153
  %v4518 = vpop.f32.mrb[0].mxu0
  %v4519 = vadd.f32 0.0, %v4518
  %v4520 = vpop.f32.mrb[0].mxu0
  %v4521 = vpop.f32.mrb[0].mxu0
  %v4522 = vadd.f32 0.0, %v4521
  %v4523 = vpop.f32.mrb[0].mxu0
  %4524 = vmatprep.mubr.bf16.mxu0 0
  %4525 = vmatmul.mubr.bf16.gmra.mrb[0].mxu0 %v4154
  %v4526 = vpop.f32.mrb[0].mxu0
  %v4527 = vadd.f32 0.0, %v4526
  %v4528 = vpop.f32.mrb[0].mxu0
  %v4529 = vpop.f32.mrb[0].mxu0
  %v4530 = vadd.f32 0.0, %v4529
  %v4531 = vpop.f32.mrb[0].mxu0
  %4532 = vmatprep.mubr.bf16.mxu0 0
  %4533 = vmatmul.mubr.bf16.gmra.mrb[0].mxu0 %v4155
  %v4534 = vpop.f32.mrb[0].mxu0
  %v4535 = vadd.f32 0.0, %v4534
  %v4536 = vpop.f32.mrb[0].mxu0
  %v4537 = vpop.f32.mrb[0].mxu0
  %v4538 = vpop.f32.mrb[0].mxu0
  %4539 = vdwg.mxu0
  %v4544 = vrot.slane %v4383, 1
  %v4545 = vrot.slane %v4386, 1
  %v4546 = vsel %vm595, %v4544, %v4545
  %v4547 = vrot.slane %v4391, 1
  %v4548 = vsel %vm595, %v4545, %v4547
  %v4549 = vrot.slane %v4394, 1
  %v4550 = vsel %vm595, %v4547, %v4549
  %v4554 = vadd.f32 %v4255, %v4546
  %v4555 = vadd.f32 %v4258, %v4548
  %v4556 = vadd.f32 %v4263, %v4550
  %v4561 = vrot.slane %v4511, 2
  %v4562 = vrot.slane %v4514, 2
  %v4563 = vsel %vm650, %v4561, %v4562
  %v4564 = vrot.slane %v4519, 2
  %v4565 = vsel %vm650, %v4562, %v4564
  %v4566 = vrot.slane %v4522, 2
  %v4567 = vsel %vm650, %v4564, %v4566
  %v4571 = vadd.f32 %v4554, %v4563
  %v4572 = vadd.f32 %v4555, %v4565
  %v4573 = vadd.f32 %v4556, %v4567
  %v4577 = vrot.slane %v4399, 1
  %v4578 = vsel %vm595, %v4549, %v4577
  %v4579 = vrot.slane %v4402, 1
  %v4580 = vsel %vm595, %v4577, %v4579
  %v4581 = vrot.slane %v4407, 1
  %v4582 = vsel %vm595, %v4579, %v4581
  %v4587 = vadd.f32 %v4266, %v4578
  %v4588 = vadd.f32 %v4271, %v4580
  %v4589 = vadd.f32 %v4274, %v4582
  %v4590 = vadd.f32 %v4279, %v4581
  %v4594 = vrot.slane %v4527, 2
  %v4595 = vsel %vm650, %v4566, %v4594
  %v4596 = vrot.slane %v4530, 2
  %v4597 = vsel %vm650, %v4594, %v4596
  %v4598 = vrot.slane %v4535, 2
  %v4599 = vsel %vm650, %v4596, %v4598
  %v4604 = vadd.f32 %v4587, %v4595
  %v4605 = vadd.f32 %v4588, %v4597
  %v4606 = vadd.f32 %v4589, %v4599
  %v4607 = vadd.f32 %v4590, %v4598
  %v4612 = vrot.slane %v4604, 2
  %v4613 = vrot.slane %v4605, 2
  %v4614 = vsel %vm650, %v4612, %v4613
  %v4615 = vrot.slane %v4606, 2
  %v4616 = vsel %vm650, %v4613, %v4615
  %v4617 = vrot.slane %v4607, 2
  %v4618 = vsel %vm650, %v4615, %v4617
  %v4626 = vrot.slane %v4145, 1
  %v4627 = vrot.slane %v4146, 1
  %v4628 = vsel %vm595, %v4626, %v4627
  %v4629 = vrot.slane %v4147, 1
  %v4630 = vsel %vm595, %v4627, %v4629
  %v4631 = vrot.slane %v4148, 1
  %v4632 = vsel %vm595, %v4629, %v4631
  %v4639 = vrot.slane %v4148, 3
  %v4640 = vrot.slane %v4149, 3
  %v4641 = vsel %vm2035, %v4639, %v4640
  %v4642 = vrot.slane %v4150, 3
  %v4643 = vsel %vm2035, %v4640, %v4642
  %v4644 = vrot.slane %v4151, 3
  %v4645 = vsel %vm2035, %v4642, %v4644
  %v4649 = vpack.c.bf16 %v4572, %v4571
  %v4650 = vpack.c.bf16 %v4614, %v4573
  %v4651 = vpack.c.bf16 %v4618, %v4616
  %v4652 = vld [vmem:[%s21] sm:$0xf]
  %v4653 = vld [vmem:[%s21 + $0x4] sm:$0xf]
  %v4654 = vld [vmem:[%s21 + $0x8] sm:$0xf]
  %v4655 = vld [vmem:[%s21 + $0xc] sm:$0xf]
  %v4656 = vmul.f32 %v4628, 0.66
  %v4657 = vmul.f32 %v4630, 0.66
  %v4658 = vmul.f32 %v4632, 0.66
  %v4659 = vmul.f32 %v4641, 0.66
  %v4660 = vmul.f32 %v4643, 0.66
  %v4661 = vmul.f32 %v4645, 0.66
  %v4666 = vunpack.c.l.b16 %v4652
  %v4667 = vunpack.c.l.b16 %v4653
  %v4668 = vunpack.c.l.b16 %v4654
  %v4669 = vunpack.c.l.b16 %v4655
  %v4670 = vpack.c.b16 %v4667, %v4666
  %v4671 = vpack.c.b16 %v4669, %v4668
  %v4675 = vsel %vm870, %v4649, 0
  %v4678 = vsel %vm870, %v4650, 0
  %v4681 = vsel %vm870, %v4651, 0
  %4683 = vmatprep.subr.bf16.mxu0 0
  %4684 = vmatpush1.bf16.msra.mxu0 %v4670
  %4685 = vmatprep.subr.bf16.mxu0 0
  %4686 = vmatpush1.bf16.msra.mxu0 %v4671
  %4687 = vmatprep.subr.bf16.mxu0 0
  %4688 = vmatpush1.bf16.msra.mxu0 0
  %4689 = vmatprep.subr.bf16.mxu0 0
  %4690 = vmatpush1.bf16.msra.mxu0 0
  %4691 = vmatprep.subr.bf16.mxu0 0
  %4692 = vmatpush1.bf16.msra.mxu0 0
  %4693 = vmatprep.subr.bf16.mxu0 0
  %4694 = vmatpush1.bf16.msra.mxu0 0
  %4695 = vmatprep.subr.bf16.mxu0 0
  %4696 = vmatpush1.bf16.msra.mxu0 0
  %4697 = vmatprep.subr.bf16.mxu0 0
  %4698 = vmatpush1.bf16.msra.mxu0 0
  %4699 = vmatprep.subr.bf16.mxu0 0
  %4700 = vmatpush1.bf16.msra.mxu0 0
  %4701 = vmatprep.subr.bf16.mxu0 0
  %4702 = vmatpush1.bf16.msra.mxu0 0
  %4703 = vmatprep.subr.bf16.mxu0 0
  %4704 = vmatpush1.bf16.msra.mxu0 0
  %4705 = vmatprep.subr.bf16.mxu0 0
  %4706 = vmatpush1.bf16.msra.mxu0 0
  %4707 = vmatprep.subr.bf16.mxu0 0
  %4708 = vmatpush1.bf16.msra.mxu0 0
  %4709 = vmatprep.subr.bf16.mxu0 0
  %4710 = vmatpush1.bf16.msra.mxu0 0
  %4711 = vmatprep.subr.bf16.mxu0 0
  %4712 = vmatpush1.bf16.msra.mxu0 0
  %4713 = vmatprep.subr.bf16.mxu0 0
  %4714 = vmatpush1.bf16.msra.mxu0 0
  %4715 = vmatprep.mubr.bf16.mxu0 0
  %4716 = vmatmul.mubr.bf16.gmra.mrb[0].mxu0 %v4675
  %v4717 = vpop.f32.mrb[0].mxu0
  %v4718 = vadd.f32 %v4656, %v4717
  %v4719 = vpop.f32.mrb[0].mxu0
  %v4720 = vpop.f32.mrb[0].mxu0
  %v4721 = vadd.f32 %v4657, %v4720
  %v4722 = vpop.f32.mrb[0].mxu0
  %4723 = vmatprep.mubr.bf16.mxu0 0
  %4724 = vmatmul.mubr.bf16.gmra.mrb[0].mxu0 %v4678
  %v4725 = vpop.f32.mrb[0].mxu0
  %v4726 = vadd.f32 %v4658, %v4725
  %v4727 = vpop.f32.mrb[0].mxu0
  %v4728 = vpop.f32.mrb[0].mxu0
  %v4729 = vadd.f32 %v4659, %v4728
  %v4730 = vpop.f32.mrb[0].mxu0
  %4731 = vmatprep.mubr.bf16.mxu0 0
  %4732 = vmatmul.mubr.bf16.gmra.mrb[0].mxu0 %v4681
  %v4733 = vpop.f32.mrb[0].mxu0
  %v4734 = vadd.f32 %v4660, %v4733
  %v4735 = vpop.f32.mrb[0].mxu0
  %v4736 = vpop.f32.mrb[0].mxu0
  %v4737 = vadd.f32 %v4661, %v4736
  %v4738 = vpop.f32.mrb[0].mxu0
  %4739 = vdwg.mxu0
  %v4740 = vadd.f32 %v4718, %v4721
  %v4741 = vadd.f32 %v4740, %v4726
  %v4742 = vadd.f32 %v4741, %v4729
  %v4743 = vadd.f32 %v4742, %v4734
  %v4744 = vadd.f32 %v4743, %v4737
  %v4745 = vrot.slane %v4744, 4
  %v4746 = vadd.f32 %v4744, %v4745
  %v4747 = vrot.slane %v4746, 2
  %v4748 = vadd.f32 %v4746, %v4747
  %v4749 = vrot.slane %v4748, 1
  %v4750 = vadd.f32 %v4748, %v4749
  %v4751 = vmul.f32 %v4718, %v4718
  %v4752 = vmul.f32 %v4721, %v4721
  %v4753 = vmul.f32 %v4726, %v4726
  %v4754 = vmul.f32 %v4729, %v4729
  %v4755 = vmul.f32 %v4734, %v4734
  %v4756 = vmul.f32 %v4737, %v4737
  %v4757 = vadd.f32 %v4751, %v4752
  %v4758 = vadd.f32 %v4757, %v4753
  %v4759 = vadd.f32 %v4758, %v4754
  %v4760 = vadd.f32 %v4759, %v4755
  %v4761 = vadd.f32 %v4760, %v4756
  %v4762 = vrot.slane %v4761, 4
  %v4763 = vadd.f32 %v4761, %v4762
  %v4764 = vrot.slane %v4763, 2
  %v4765 = vadd.f32 %v4763, %v4764
  %v4766 = vrot.slane %v4765, 1
  %v4767 = vadd.f32 %v4765, %v4766
  %v4768 = vmul.f32 %v4750, 0.020833334
  %v4769 = vmul.f32 %v4767, 0.020833334
  %v4770 = vmul.f32 %v4768, %v4768
  %v4771 = vsub.f32 %v4769, %v4770
  %v4772 = vmax.f32 %v4771, 0.0
  %v4773 = vadd.f32 %v4772, 1e-05
  %v4774 = vrsqrt.pop %v4773
  %v4775 = vsub.f32 %v4718, %v4768
  %v4776 = vsub.f32 %v4721, %v4768
  %v4777 = vsub.f32 %v4726, %v4768
  %v4778 = vsub.f32 %v4729, %v4768
  %v4779 = vsub.f32 %v4734, %v4768
  %v4780 = vsub.f32 %v4737, %v4768
  %v4781 = vmul.f32 %v4775, %v4774
  %v4782 = vmul.f32 %v4776, %v4774
  %v4783 = vmul.f32 %v4777, %v4774
  %v4784 = vmul.f32 %v4778, %v4774
  %v4785 = vmul.f32 %v4779, %v4774
  %v4786 = vmul.f32 %v4780, %v4774
  %v4787 = vmax.f32 %v4781, 0.0
  %v4788 = vmax.f32 %v4782, 0.0
  %v4789 = vmax.f32 %v4783, 0.0
  %v4790 = vmax.f32 %v4784, 0.0
  %v4791 = vmax.f32 %v4785, 0.0
  %v4792 = vmax.f32 %v4786, 0.0
  %v4793 = vpack.c.bf16 %v4788, %v4787
  %v4794 = vpack.c.bf16 %v4790, %v4789
  %v4795 = vpack.c.bf16 %v4792, %v4791
  %v4796 = vld [vmem:[%s23] sm:$0xf]
  %v4797 = vld [vmem:[%s23 + $0x4] sm:$0xf]
  %v4798 = vld [vmem:[%s23 + $0x8] sm:$0xf]
  %v4799 = vld [vmem:[%s23 + $0xc] sm:$0xf]
  %v4800 = vld [vmem:[%s23 + $0x10] sm:$0xf]
  %v4801 = vld [vmem:[%s23 + $0x14] sm:$0xf]
  %v4802 = vld [vmem:[%s23 + $0x18] sm:$0xf]
  %v4803 = vld [vmem:[%s23 + $0x1c] sm:$0xf]
  %v4804 = vld [vmem:[%s23 + $0x20] sm:$0xf]
  %v4805 = vld [vmem:[%s23 + $0x24] sm:$0xf]
  %v4806 = vld [vmem:[%s23 + $0x28] sm:$0xf]
  %v4807 = vld [vmem:[%s23 + $0x2c] sm:$0xf]
  %v4808 = vld [vmem:[%s23 + $0x30] sm:$0xf]
  %v4809 = vld [vmem:[%s23 + $0x34] sm:$0xf]
  %v4810 = vld [vmem:[%s23 + $0x38] sm:$0xf]
  %v4811 = vld [vmem:[%s23 + $0x3c] sm:$0xf]
  %v4828 = vunpack.c.l.b16 %v4796
  %v4829 = vunpack.c.l.b16 %v4797
  %v4830 = vunpack.c.l.b16 %v4798
  %v4831 = vunpack.c.l.b16 %v4799
  %v4832 = vunpack.c.l.b16 %v4800
  %v4833 = vunpack.c.l.b16 %v4801
  %v4834 = vunpack.c.l.b16 %v4802
  %v4835 = vunpack.c.l.b16 %v4803
  %v4836 = vunpack.c.l.b16 %v4804
  %v4837 = vunpack.c.l.b16 %v4805
  %v4838 = vunpack.c.l.b16 %v4806
  %v4839 = vunpack.c.l.b16 %v4807
  %v4840 = vunpack.c.l.b16 %v4808
  %v4841 = vunpack.c.l.b16 %v4809
  %v4842 = vunpack.c.l.b16 %v4810
  %v4843 = vunpack.c.l.b16 %v4811
  %v4844 = vpack.c.b16 %v4829, %v4828
  %v4845 = vpack.c.b16 %v4831, %v4830
  %v4846 = vpack.c.b16 %v4833, %v4832
  %v4847 = vpack.c.b16 %v4835, %v4834
  %v4848 = vpack.c.b16 %v4837, %v4836
  %v4849 = vpack.c.b16 %v4839, %v4838
  %v4850 = vpack.c.b16 %v4841, %v4840
  %v4851 = vpack.c.b16 %v4843, %v4842
  %4860 = vmatprep.subr.bf16.mxu0 0
  %4861 = vmatpush1.bf16.msra.mxu0 %v4844
  %4862 = vmatprep.subr.bf16.mxu0 0
  %4863 = vmatpush1.bf16.msra.mxu0 %v4845
  %4864 = vmatprep.subr.bf16.mxu0 0
  %4865 = vmatpush1.bf16.msra.mxu0 %v4846
  %4866 = vmatprep.subr.bf16.mxu0 0
  %4867 = vmatpush1.bf16.msra.mxu0 %v4847
  %4868 = vmatprep.subr.bf16.mxu0 0
  %4869 = vmatpush1.bf16.msra.mxu0 %v4848
  %4870 = vmatprep.subr.bf16.mxu0 0
  %4871 = vmatpush1.bf16.msra.mxu0 %v4849
  %4872 = vmatprep.subr.bf16.mxu0 0
  %4873 = vmatpush1.bf16.msra.mxu0 %v4850
  %4874 = vmatprep.subr.bf16.mxu0 0
  %4875 = vmatpush1.bf16.msra.mxu0 %v4851
  %4876 = vmatprep.subr.bf16.mxu0 0
  %4877 = vmatpush1.bf16.msra.mxu0 0
  %4878 = vmatprep.subr.bf16.mxu0 0
  %4879 = vmatpush1.bf16.msra.mxu0 0
  %4880 = vmatprep.subr.bf16.mxu0 0
  %4881 = vmatpush1.bf16.msra.mxu0 0
  %4882 = vmatprep.subr.bf16.mxu0 0
  %4883 = vmatpush1.bf16.msra.mxu0 0
  %4884 = vmatprep.subr.bf16.mxu0 0
  %4885 = vmatpush1.bf16.msra.mxu0 0
  %4886 = vmatprep.subr.bf16.mxu0 0
  %4887 = vmatpush1.bf16.msra.mxu0 0
  %4888 = vmatprep.subr.bf16.mxu0 0
  %4889 = vmatpush1.bf16.msra.mxu0 0
  %4890 = vmatprep.subr.bf16.mxu0 0
  %4891 = vmatpush1.bf16.msra.mxu0 0
  %4892 = vmatprep.mubr.bf16.mxu0 0
  %4893 = vmatmul.mubr.bf16.gmra.mrb[0].mxu0 %v4793
  %v4894 = vpop.f32.mrb[0].mxu0
  %v4895 = vadd.f32 0.0, %v4894
  %v4896 = vpop.f32.mrb[0].mxu0
  %v4897 = vpop.f32.mrb[0].mxu0
  %v4898 = vadd.f32 0.0, %v4897
  %v4899 = vpop.f32.mrb[0].mxu0
  %4900 = vmatprep.mubr.bf16.mxu0 0
  %4901 = vmatmul.mubr.bf16.gmra.mrb[0].mxu0 %v4794
  %v4902 = vpop.f32.mrb[0].mxu0
  %v4903 = vadd.f32 0.0, %v4902
  %v4904 = vpop.f32.mrb[0].mxu0
  %v4905 = vpop.f32.mrb[0].mxu0
  %v4906 = vadd.f32 0.0, %v4905
  %v4907 = vpop.f32.mrb[0].mxu0
  %4908 = vmatprep.mubr.bf16.mxu0 0
  %4909 = vmatmul.mubr.bf16.gmra.mrb[0].mxu0 %v4795
  %v4910 = vpop.f32.mrb[0].mxu0
  %v4911 = vadd.f32 0.0, %v4910
  %v4912 = vpop.f32.mrb[0].mxu0
  %v4913 = vpop.f32.mrb[0].mxu0
  %v4914 = vadd.f32 0.0, %v4913
  %v4915 = vpop.f32.mrb[0].mxu0
  %4916 = vdwg.mxu0
  %v4917 = vld [vmem:[%s23 + $0x40] sm:$0xf]
  %v4918 = vld [vmem:[%s23 + $0x44] sm:$0xf]
  %v4919 = vld [vmem:[%s23 + $0x48] sm:$0xf]
  %v4920 = vld [vmem:[%s23 + $0x4c] sm:$0xf]
  %v4921 = vld [vmem:[%s23 + $0x50] sm:$0xf]
  %v4922 = vld [vmem:[%s23 + $0x54] sm:$0xf]
  %v4923 = vld [vmem:[%s23 + $0x58] sm:$0xf]
  %v4924 = vld [vmem:[%s23 + $0x5c] sm:$0xf]
  %v4925 = vld [vmem:[%s23 + $0x60] sm:$0xf]
  %v4926 = vld [vmem:[%s23 + $0x64] sm:$0xf]
  %v4927 = vld [vmem:[%s23 + $0x68] sm:$0xf]
  %v4928 = vld [vmem:[%s23 + $0x6c] sm:$0xf]
  %v4929 = vld [vmem:[%s23 + $0x70] sm:$0xf]
  %v4930 = vld [vmem:[%s23 + $0x74] sm:$0xf]
  %v4931 = vld [vmem:[%s23 + $0x78] sm:$0xf]
  %v4932 = vld [vmem:[%s23 + $0x7c] sm:$0xf]
  %v4949 = vunpack.c.l.b16 %v4917
  %v4950 = vunpack.c.l.b16 %v4918
  %v4951 = vunpack.c.l.b16 %v4919
  %v4952 = vunpack.c.l.b16 %v4920
  %v4953 = vunpack.c.l.b16 %v4921
  %v4954 = vunpack.c.l.b16 %v4922
  %v4955 = vunpack.c.l.b16 %v4923
  %v4956 = vunpack.c.l.b16 %v4924
  %v4957 = vunpack.c.l.b16 %v4925
  %v4958 = vunpack.c.l.b16 %v4926
  %v4959 = vunpack.c.l.b16 %v4927
  %v4960 = vunpack.c.l.b16 %v4928
  %v4961 = vunpack.c.l.b16 %v4929
  %v4962 = vunpack.c.l.b16 %v4930
  %v4963 = vunpack.c.l.b16 %v4931
  %v4964 = vunpack.c.l.b16 %v4932
  %v4965 = vpack.c.b16 %v4950, %v4949
  %v4966 = vpack.c.b16 %v4952, %v4951
  %v4967 = vpack.c.b16 %v4954, %v4953
  %v4968 = vpack.c.b16 %v4956, %v4955
  %v4969 = vpack.c.b16 %v4958, %v4957
  %v4970 = vpack.c.b16 %v4960, %v4959
  %v4971 = vpack.c.b16 %v4962, %v4961
  %v4972 = vpack.c.b16 %v4964, %v4963
  %4981 = vmatprep.subr.bf16.mxu0 0
  %4982 = vmatpush1.bf16.msra.mxu0 %v4965
  %4983 = vmatprep.subr.bf16.mxu0 0
  %4984 = vmatpush1.bf16.msra.mxu0 %v4966
  %4985 = vmatprep.subr.bf16.mxu0 0
  %4986 = vmatpush1.bf16.msra.mxu0 %v4967
  %4987 = vmatprep.subr.bf16.mxu0 0
  %4988 = vmatpush1.bf16.msra.mxu0 %v4968
  %4989 = vmatprep.subr.bf16.mxu0 0
  %4990 = vmatpush1.bf16.msra.mxu0 %v4969
  %4991 = vmatprep.subr.bf16.mxu0 0
  %4992 = vmatpush1.bf16.msra.mxu0 %v4970
  %4993 = vmatprep.subr.bf16.mxu0 0
  %4994 = vmatpush1.bf16.msra.mxu0 %v4971
  %4995 = vmatprep.subr.bf16.mxu0 0
  %4996 = vmatpush1.bf16.msra.mxu0 %v4972
  %4997 = vmatprep.subr.bf16.mxu0 0
  %4998 = vmatpush1.bf16.msra.mxu0 0
  %4999 = vmatprep.subr.bf16.mxu0 0
  %5000 = vmatpush1.bf16.msra.mxu0 0
  %5001 = vmatprep.subr.bf16.mxu0 0
  %5002 = vmatpush1.bf16.msra.mxu0 0
  %5003 = vmatprep.subr.bf16.mxu0 0
  %5004 = vmatpush1.bf16.msra.mxu0 0
  %5005 = vmatprep.subr.bf16.mxu0 0
  %5006 = vmatpush1.bf16.msra.mxu0 0
  %5007 = vmatprep.subr.bf16.mxu0 0
  %5008 = vmatpush1.bf16.msra.mxu0 0
  %5009 = vmatprep.subr.bf16.mxu0 0
  %5010 = vmatpush1.bf16.msra.mxu0 0
  %5011 = vmatprep.subr.bf16.mxu0 0
  %5012 = vmatpush1.bf16.msra.mxu0 0
  %5013 = vmatprep.mubr.bf16.mxu0 0
  %5014 = vmatmul.mubr.bf16.gmra.mrb[0].mxu0 %v4793
  %v5015 = vpop.f32.mrb[0].mxu0
  %v5016 = vadd.f32 0.0, %v5015
  %v5017 = vpop.f32.mrb[0].mxu0
  %v5018 = vpop.f32.mrb[0].mxu0
  %v5019 = vadd.f32 0.0, %v5018
  %v5020 = vpop.f32.mrb[0].mxu0
  %5021 = vmatprep.mubr.bf16.mxu0 0
  %5022 = vmatmul.mubr.bf16.gmra.mrb[0].mxu0 %v4794
  %v5023 = vpop.f32.mrb[0].mxu0
  %v5024 = vadd.f32 0.0, %v5023
  %v5025 = vpop.f32.mrb[0].mxu0
  %v5026 = vpop.f32.mrb[0].mxu0
  %v5027 = vadd.f32 0.0, %v5026
  %v5028 = vpop.f32.mrb[0].mxu0
  %5029 = vmatprep.mubr.bf16.mxu0 0
  %5030 = vmatmul.mubr.bf16.gmra.mrb[0].mxu0 %v4795
  %v5031 = vpop.f32.mrb[0].mxu0
  %v5032 = vadd.f32 0.0, %v5031
  %v5033 = vpop.f32.mrb[0].mxu0
  %v5034 = vpop.f32.mrb[0].mxu0
  %v5035 = vadd.f32 0.0, %v5034
  %v5036 = vpop.f32.mrb[0].mxu0
  %5037 = vdwg.mxu0
  %v5038 = vld [vmem:[%s23 + $0x80] sm:$0xf]
  %v5039 = vld [vmem:[%s23 + $0x84] sm:$0xf]
  %v5040 = vld [vmem:[%s23 + $0x88] sm:$0xf]
  %v5041 = vld [vmem:[%s23 + $0x8c] sm:$0xf]
  %v5042 = vld [vmem:[%s23 + $0x90] sm:$0xf]
  %v5043 = vld [vmem:[%s23 + $0x94] sm:$0xf]
  %v5044 = vld [vmem:[%s23 + $0x98] sm:$0xf]
  %v5045 = vld [vmem:[%s23 + $0x9c] sm:$0xf]
  %v5046 = vld [vmem:[%s23 + $0xa0] sm:$0xf]
  %v5047 = vld [vmem:[%s23 + $0xa4] sm:$0xf]
  %v5048 = vld [vmem:[%s23 + $0xa8] sm:$0xf]
  %v5049 = vld [vmem:[%s23 + $0xac] sm:$0xf]
  %v5050 = vld [vmem:[%s23 + $0xb0] sm:$0xf]
  %v5051 = vld [vmem:[%s23 + $0xb4] sm:$0xf]
  %v5052 = vld [vmem:[%s23 + $0xb8] sm:$0xf]
  %v5053 = vld [vmem:[%s23 + $0xbc] sm:$0xf]
  %v5070 = vunpack.c.l.b16 %v5038
  %v5071 = vunpack.c.l.b16 %v5039
  %v5072 = vunpack.c.l.b16 %v5040
  %v5073 = vunpack.c.l.b16 %v5041
  %v5074 = vunpack.c.l.b16 %v5042
  %v5075 = vunpack.c.l.b16 %v5043
  %v5076 = vunpack.c.l.b16 %v5044
  %v5077 = vunpack.c.l.b16 %v5045
  %v5078 = vunpack.c.l.b16 %v5046
  %v5079 = vunpack.c.l.b16 %v5047
  %v5080 = vunpack.c.l.b16 %v5048
  %v5081 = vunpack.c.l.b16 %v5049
  %v5082 = vunpack.c.l.b16 %v5050
  %v5083 = vunpack.c.l.b16 %v5051
  %v5084 = vunpack.c.l.b16 %v5052
  %v5085 = vunpack.c.l.b16 %v5053
  %v5086 = vpack.c.b16 %v5071, %v5070
  %v5087 = vpack.c.b16 %v5073, %v5072
  %v5088 = vpack.c.b16 %v5075, %v5074
  %v5089 = vpack.c.b16 %v5077, %v5076
  %v5090 = vpack.c.b16 %v5079, %v5078
  %v5091 = vpack.c.b16 %v5081, %v5080
  %v5092 = vpack.c.b16 %v5083, %v5082
  %v5093 = vpack.c.b16 %v5085, %v5084
  %5102 = vmatprep.subr.bf16.mxu0 0
  %5103 = vmatpush1.bf16.msra.mxu0 %v5086
  %5104 = vmatprep.subr.bf16.mxu0 0
  %5105 = vmatpush1.bf16.msra.mxu0 %v5087
  %5106 = vmatprep.subr.bf16.mxu0 0
  %5107 = vmatpush1.bf16.msra.mxu0 %v5088
  %5108 = vmatprep.subr.bf16.mxu0 0
  %5109 = vmatpush1.bf16.msra.mxu0 %v5089
  %5110 = vmatprep.subr.bf16.mxu0 0
  %5111 = vmatpush1.bf16.msra.mxu0 %v5090
  %5112 = vmatprep.subr.bf16.mxu0 0
  %5113 = vmatpush1.bf16.msra.mxu0 %v5091
  %5114 = vmatprep.subr.bf16.mxu0 0
  %5115 = vmatpush1.bf16.msra.mxu0 %v5092
  %5116 = vmatprep.subr.bf16.mxu0 0
  %5117 = vmatpush1.bf16.msra.mxu0 %v5093
  %5118 = vmatprep.subr.bf16.mxu0 0
  %5119 = vmatpush1.bf16.msra.mxu0 0
  %5120 = vmatprep.subr.bf16.mxu0 0
  %5121 = vmatpush1.bf16.msra.mxu0 0
  %5122 = vmatprep.subr.bf16.mxu0 0
  %5123 = vmatpush1.bf16.msra.mxu0 0
  %5124 = vmatprep.subr.bf16.mxu0 0
  %5125 = vmatpush1.bf16.msra.mxu0 0
  %5126 = vmatprep.subr.bf16.mxu0 0
  %5127 = vmatpush1.bf16.msra.mxu0 0
  %5128 = vmatprep.subr.bf16.mxu0 0
  %5129 = vmatpush1.bf16.msra.mxu0 0
  %5130 = vmatprep.subr.bf16.mxu0 0
  %5131 = vmatpush1.bf16.msra.mxu0 0
  %5132 = vmatprep.subr.bf16.mxu0 0
  %5133 = vmatpush1.bf16.msra.mxu0 0
  %5134 = vmatprep.mubr.bf16.mxu0 0
  %5135 = vmatmul.mubr.bf16.gmra.mrb[0].mxu0 %v4793
  %v5136 = vpop.f32.mrb[0].mxu0
  %v5137 = vadd.f32 0.0, %v5136
  %v5138 = vpop.f32.mrb[0].mxu0
  %v5139 = vpop.f32.mrb[0].mxu0
  %v5140 = vadd.f32 0.0, %v5139
  %v5141 = vpop.f32.mrb[0].mxu0
  %5142 = vmatprep.mubr.bf16.mxu0 0
  %5143 = vmatmul.mubr.bf16.gmra.mrb[0].mxu0 %v4794
  %v5144 = vpop.f32.mrb[0].mxu0
  %v5145 = vadd.f32 0.0, %v5144
  %v5146 = vpop.f32.mrb[0].mxu0
  %v5147 = vpop.f32.mrb[0].mxu0
  %v5148 = vadd.f32 0.0, %v5147
  %v5149 = vpop.f32.mrb[0].mxu0
  %5150 = vmatprep.mubr.bf16.mxu0 0
  %5151 = vmatmul.mubr.bf16.gmra.mrb[0].mxu0 %v4795
  %v5152 = vpop.f32.mrb[0].mxu0
  %v5153 = vadd.f32 0.0, %v5152
  %v5154 = vpop.f32.mrb[0].mxu0
  %v5155 = vpop.f32.mrb[0].mxu0
  %v5156 = vadd.f32 0.0, %v5155
  %v5157 = vpop.f32.mrb[0].mxu0
  %5158 = vdwg.mxu0
  %v5162 = vrot.slane %v5016, 1
  %v5163 = vrot.slane %v5019, 1
  %v5164 = vsel %vm595, %v5162, %v5163
  %v5165 = vrot.slane %v5024, 1
  %v5166 = vsel %vm595, %v5163, %v5165
  %v5170 = vadd.f32 %v4895, %v5164
  %v5171 = vadd.f32 %v4898, %v5166
  %v5172 = vadd.f32 %v4903, %v5165
  %v5176 = vrot.slane %v5137, 2
  %v5177 = vrot.slane %v5140, 2
  %v5178 = vsel %vm650, %v5176, %v5177
  %v5179 = vrot.slane %v5145, 2
  %v5180 = vsel %vm650, %v5177, %v5179
  %v5184 = vadd.f32 %v5170, %v5178
  %v5185 = vadd.f32 %v5171, %v5180
  %v5186 = vadd.f32 %v5172, %v5179
  %v5190 = vrot.slane %v5027, 1
  %v5191 = vrot.slane %v5032, 1
  %v5192 = vsel %vm595, %v5190, %v5191
  %v5193 = vrot.slane %v5035, 1
  %v5194 = vsel %vm595, %v5191, %v5193
  %v5198 = vadd.f32 %v4906, %v5192
  %v5199 = vadd.f32 %v4911, %v5194
  %v5200 = vadd.f32 %v4914, %v5193
  %v5204 = vrot.slane %v5148, 2
  %v5205 = vrot.slane %v5153, 2
  %v5206 = vsel %vm650, %v5204, %v5205
  %v5207 = vrot.slane %v5156, 2
  %v5208 = vsel %vm650, %v5205, %v5207
  %v5212 = vadd.f32 %v5198, %v5206
  %v5213 = vadd.f32 %v5199, %v5208
  %v5214 = vadd.f32 %v5200, %v5207
  %v5218 = vrot.slane %v5212, 2
  %v5219 = vrot.slane %v5213, 2
  %v5220 = vsel %vm650, %v5218, %v5219
  %v5221 = vrot.slane %v5214, 2
  %v5222 = vsel %vm650, %v5219, %v5221
  %v5227 = vsel %vm650, %v5186, %v5218
  %v5231 = vrot.slane %v4787, 1
  %v5232 = vrot.slane %v4788, 1
  %v5233 = vsel %vm595, %v5231, %v5232
  %v5234 = vrot.slane %v4789, 1
  %v5235 = vsel %vm595, %v5232, %v5234
  %v5242 = vrot.slane %v4790, 3
  %v5243 = vrot.slane %v4791, 3
  %v5244 = vsel %vm2035, %v5242, %v5243
  %v5245 = vrot.slane %v4792, 3
  %v5246 = vsel %vm2035, %v5243, %v5245
  %v5251 = vsel %vm650, %v5234, %v5242
  %v5252 = vpack.c.bf16 %v5185, %v5184
  %v5253 = vpack.c.bf16 %v5220, %v5227
  %v5254 = vpack.c.bf16 %v5221, %v5222
  %v5255 = vld [vmem:[%s25] sm:$0xf]
  %v5256 = vld [vmem:[%s25 + $0x4] sm:$0xf]
  %v5257 = vld [vmem:[%s25 + $0x8] sm:$0xf]
  %v5258 = vld [vmem:[%s25 + $0xc] sm:$0xf]
  %v5259 = vmul.f32 %v5233, 0.66
  %v5260 = vmul.f32 %v5235, 0.66
  %v5261 = vmul.f32 %v5251, 0.66
  %v5262 = vmul.f32 %v5244, 0.66
  %v5263 = vmul.f32 %v5246, 0.66
  %v5264 = vmul.f32 %v5245, 0.66
  %v5269 = vunpack.c.l.b16 %v5255
  %v5270 = vunpack.c.l.b16 %v5256
  %v5271 = vunpack.c.l.b16 %v5257
  %v5272 = vunpack.c.l.b16 %v5258
  %v5273 = vpack.c.b16 %v5270, %v5269
  %v5274 = vpack.c.b16 %v5272, %v5271
  %v5278 = vsel %vm870, %v5252, 0
  %v5281 = vsel %vm870, %v5253, 0
  %v5284 = vsel %vm870, %v5254, 0
  %5286 = vmatprep.subr.bf16.mxu0 0
  %5287 = vmatpush1.bf16.msra.mxu0 %v5273
  %5288 = vmatprep.subr.bf16.mxu0 0
  %5289 = vmatpush1.bf16.msra.mxu0 %v5274
  %5290 = vmatprep.subr.bf16.mxu0 0
  %5291 = vmatpush1.bf16.msra.mxu0 0
  %5292 = vmatprep.subr.bf16.mxu0 0
  %5293 = vmatpush1.bf16.msra.mxu0 0
  %5294 = vmatprep.subr.bf16.mxu0 0
  %5295 = vmatpush1.bf16.msra.mxu0 0
  %5296 = vmatprep.subr.bf16.mxu0 0
  %5297 = vmatpush1.bf16.msra.mxu0 0
  %5298 = vmatprep.subr.bf16.mxu0 0
  %5299 = vmatpush1.bf16.msra.mxu0 0
  %5300 = vmatprep.subr.bf16.mxu0 0
  %5301 = vmatpush1.bf16.msra.mxu0 0
  %5302 = vmatprep.subr.bf16.mxu0 0
  %5303 = vmatpush1.bf16.msra.mxu0 0
  %5304 = vmatprep.subr.bf16.mxu0 0
  %5305 = vmatpush1.bf16.msra.mxu0 0
  %5306 = vmatprep.subr.bf16.mxu0 0
  %5307 = vmatpush1.bf16.msra.mxu0 0
  %5308 = vmatprep.subr.bf16.mxu0 0
  %5309 = vmatpush1.bf16.msra.mxu0 0
  %5310 = vmatprep.subr.bf16.mxu0 0
  %5311 = vmatpush1.bf16.msra.mxu0 0
  %5312 = vmatprep.subr.bf16.mxu0 0
  %5313 = vmatpush1.bf16.msra.mxu0 0
  %5314 = vmatprep.subr.bf16.mxu0 0
  %5315 = vmatpush1.bf16.msra.mxu0 0
  %5316 = vmatprep.subr.bf16.mxu0 0
  %5317 = vmatpush1.bf16.msra.mxu0 0
  %5318 = vmatprep.mubr.bf16.mxu0 0
  %5319 = vmatmul.mubr.bf16.gmra.mrb[0].mxu0 %v5278
  %v5320 = vpop.f32.mrb[0].mxu0
  %v5321 = vadd.f32 %v5259, %v5320
  %v5322 = vpop.f32.mrb[0].mxu0
  %v5323 = vpop.f32.mrb[0].mxu0
  %v5324 = vadd.f32 %v5260, %v5323
  %v5325 = vpop.f32.mrb[0].mxu0
  %5326 = vmatprep.mubr.bf16.mxu0 0
  %5327 = vmatmul.mubr.bf16.gmra.mrb[0].mxu0 %v5281
  %v5328 = vpop.f32.mrb[0].mxu0
  %v5329 = vadd.f32 %v5261, %v5328
  %v5330 = vpop.f32.mrb[0].mxu0
  %v5331 = vpop.f32.mrb[0].mxu0
  %v5332 = vadd.f32 %v5262, %v5331
  %v5333 = vpop.f32.mrb[0].mxu0
  %5334 = vmatprep.mubr.bf16.mxu0 0
  %5335 = vmatmul.mubr.bf16.gmra.mrb[0].mxu0 %v5284
  %v5336 = vpop.f32.mrb[0].mxu0
  %v5337 = vadd.f32 %v5263, %v5336
  %v5338 = vpop.f32.mrb[0].mxu0
  %v5339 = vpop.f32.mrb[0].mxu0
  %v5340 = vadd.f32 %v5264, %v5339
  %v5341 = vpop.f32.mrb[0].mxu0
  %5342 = vdwg.mxu0
  %v5343 = vadd.f32 %v5321, %v5324
  %v5344 = vadd.f32 %v5343, %v5329
  %v5345 = vadd.f32 %v5344, %v5332
  %v5346 = vadd.f32 %v5345, %v5337
  %v5347 = vsel %vm1043, %v5340, 0.0
  %v5348 = vadd.f32 %v5346, %v5347
  %v5349 = vrot.slane %v5348, 4
  %v5350 = vadd.f32 %v5348, %v5349
  %v5351 = vrot.slane %v5350, 2
  %v5352 = vadd.f32 %v5350, %v5351
  %v5353 = vrot.slane %v5352, 1
  %v5354 = vadd.f32 %v5352, %v5353
  %v5355 = vmul.f32 %v5321, %v5321
  %v5356 = vmul.f32 %v5324, %v5324
  %v5357 = vmul.f32 %v5329, %v5329
  %v5358 = vmul.f32 %v5332, %v5332
  %v5359 = vmul.f32 %v5337, %v5337
  %v5360 = vmul.f32 %v5340, %v5340
  %v5361 = vadd.f32 %v5355, %v5356
  %v5362 = vadd.f32 %v5361, %v5357
  %v5363 = vadd.f32 %v5362, %v5358
  %v5364 = vadd.f32 %v5363, %v5359
  %v5365 = vsel %vm1043, %v5360, 0.0
  %v5366 = vadd.f32 %v5364, %v5365
  %v5367 = vrot.slane %v5366, 4
  %v5368 = vadd.f32 %v5366, %v5367
  %v5369 = vrot.slane %v5368, 2
  %v5370 = vadd.f32 %v5368, %v5369
  %v5371 = vrot.slane %v5370, 1
  %v5372 = vadd.f32 %v5370, %v5371
  %v5373 = vmul.f32 %v5354, 0.022727273
  %v5374 = vmul.f32 %v5372, 0.022727273
  %v5375 = vmul.f32 %v5373, %v5373
  %v5376 = vsub.f32 %v5374, %v5375
  %v5377 = vmax.f32 %v5376, 0.0
  %v5378 = vadd.f32 %v5377, 1e-05
  %v5379 = vrsqrt.pop %v5378
  %v5380 = vsub.f32 %v5321, %v5373
  %v5381 = vsub.f32 %v5324, %v5373
  %v5382 = vsub.f32 %v5329, %v5373
  %v5383 = vsub.f32 %v5332, %v5373
  %v5384 = vsub.f32 %v5337, %v5373
  %v5385 = vsub.f32 %v5340, %v5373
  %v5386 = vmul.f32 %v5380, %v5379
  %v5387 = vmul.f32 %v5381, %v5379
  %v5388 = vmul.f32 %v5382, %v5379
  %v5389 = vmul.f32 %v5383, %v5379
  %v5390 = vmul.f32 %v5384, %v5379
  %v5391 = vmul.f32 %v5385, %v5379
  %v5392 = vmax.f32 %v5386, 0.0
  %v5393 = vmax.f32 %v5387, 0.0
  %v5394 = vmax.f32 %v5388, 0.0
  %v5395 = vmax.f32 %v5389, 0.0
  %v5396 = vmax.f32 %v5390, 0.0
  %v5397 = vmax.f32 %v5391, 0.0
  %v5398 = vpack.c.bf16 %v5393, %v5392
  %v5399 = vpack.c.bf16 %v5395, %v5394
  %v5400 = vpack.c.bf16 %v5397, %v5396
  %v5401 = vld [vmem:[%s27] sm:$0xf]
  %v5402 = vld [vmem:[%s27 + $0x4] sm:$0xf]
  %v5403 = vld [vmem:[%s27 + $0x8] sm:$0xf]
  %v5404 = vld [vmem:[%s27 + $0xc] sm:$0xf]
  %v5405 = vld [vmem:[%s27 + $0x10] sm:$0xf]
  %v5406 = vld [vmem:[%s27 + $0x14] sm:$0xf]
  %v5407 = vld [vmem:[%s27 + $0x18] sm:$0xf]
  %v5408 = vld [vmem:[%s27 + $0x1c] sm:$0xf]
  %v5409 = vld [vmem:[%s27 + $0x20] sm:$0xf]
  %v5410 = vld [vmem:[%s27 + $0x24] sm:$0xf]
  %v5411 = vld [vmem:[%s27 + $0x28] sm:$0xf]
  %v5412 = vld [vmem:[%s27 + $0x2c] sm:$0xf]
  %v5413 = vld [vmem:[%s27 + $0x30] sm:$0xf]
  %v5414 = vld [vmem:[%s27 + $0x34] sm:$0xf]
  %v5415 = vld [vmem:[%s27 + $0x38] sm:$0xf]
  %v5416 = vld [vmem:[%s27 + $0x3c] sm:$0xf]
  %v5433 = vunpack.c.l.b16 %v5401
  %v5434 = vunpack.c.l.b16 %v5402
  %v5435 = vunpack.c.l.b16 %v5403
  %v5436 = vunpack.c.l.b16 %v5404
  %v5437 = vunpack.c.l.b16 %v5405
  %v5438 = vunpack.c.l.b16 %v5406
  %v5439 = vunpack.c.l.b16 %v5407
  %v5440 = vunpack.c.l.b16 %v5408
  %v5441 = vunpack.c.l.b16 %v5409
  %v5442 = vunpack.c.l.b16 %v5410
  %v5443 = vunpack.c.l.b16 %v5411
  %v5444 = vunpack.c.l.b16 %v5412
  %v5445 = vunpack.c.l.b16 %v5413
  %v5446 = vunpack.c.l.b16 %v5414
  %v5447 = vunpack.c.l.b16 %v5415
  %v5448 = vunpack.c.l.b16 %v5416
  %v5449 = vpack.c.b16 %v5434, %v5433
  %v5450 = vpack.c.b16 %v5436, %v5435
  %v5451 = vpack.c.b16 %v5438, %v5437
  %v5452 = vpack.c.b16 %v5440, %v5439
  %v5453 = vpack.c.b16 %v5442, %v5441
  %v5454 = vpack.c.b16 %v5444, %v5443
  %v5455 = vpack.c.b16 %v5446, %v5445
  %v5456 = vpack.c.b16 %v5448, %v5447
  %5465 = vmatprep.subr.bf16.mxu0 0
  %5466 = vmatpush1.bf16.msra.mxu0 %v5449
  %5467 = vmatprep.subr.bf16.mxu0 0
  %5468 = vmatpush1.bf16.msra.mxu0 %v5450
  %5469 = vmatprep.subr.bf16.mxu0 0
  %5470 = vmatpush1.bf16.msra.mxu0 %v5451
  %5471 = vmatprep.subr.bf16.mxu0 0
  %5472 = vmatpush1.bf16.msra.mxu0 %v5452
  %5473 = vmatprep.subr.bf16.mxu0 0
  %5474 = vmatpush1.bf16.msra.mxu0 %v5453
  %5475 = vmatprep.subr.bf16.mxu0 0
  %5476 = vmatpush1.bf16.msra.mxu0 %v5454
  %5477 = vmatprep.subr.bf16.mxu0 0
  %5478 = vmatpush1.bf16.msra.mxu0 %v5455
  %5479 = vmatprep.subr.bf16.mxu0 0
  %5480 = vmatpush1.bf16.msra.mxu0 %v5456
  %5481 = vmatprep.subr.bf16.mxu0 0
  %5482 = vmatpush1.bf16.msra.mxu0 0
  %5483 = vmatprep.subr.bf16.mxu0 0
  %5484 = vmatpush1.bf16.msra.mxu0 0
  %5485 = vmatprep.subr.bf16.mxu0 0
  %5486 = vmatpush1.bf16.msra.mxu0 0
  %5487 = vmatprep.subr.bf16.mxu0 0
  %5488 = vmatpush1.bf16.msra.mxu0 0
  %5489 = vmatprep.subr.bf16.mxu0 0
  %5490 = vmatpush1.bf16.msra.mxu0 0
  %5491 = vmatprep.subr.bf16.mxu0 0
  %5492 = vmatpush1.bf16.msra.mxu0 0
  %5493 = vmatprep.subr.bf16.mxu0 0
  %5494 = vmatpush1.bf16.msra.mxu0 0
  %5495 = vmatprep.subr.bf16.mxu0 0
  %5496 = vmatpush1.bf16.msra.mxu0 0
  %5497 = vmatprep.mubr.bf16.mxu0 0
  %5498 = vmatmul.mubr.bf16.gmra.mrb[0].mxu0 %v5398
  %v5499 = vpop.f32.mrb[0].mxu0
  %v5500 = vadd.f32 0.0, %v5499
  %v5501 = vpop.f32.mrb[0].mxu0
  %v5502 = vpop.f32.mrb[0].mxu0
  %v5503 = vadd.f32 0.0, %v5502
  %v5504 = vpop.f32.mrb[0].mxu0
  %5505 = vmatprep.mubr.bf16.mxu0 0
  %5506 = vmatmul.mubr.bf16.gmra.mrb[0].mxu0 %v5399
  %v5507 = vpop.f32.mrb[0].mxu0
  %v5508 = vadd.f32 0.0, %v5507
  %v5509 = vpop.f32.mrb[0].mxu0
  %v5510 = vpop.f32.mrb[0].mxu0
  %v5511 = vadd.f32 0.0, %v5510
  %v5512 = vpop.f32.mrb[0].mxu0
  %5513 = vmatprep.mubr.bf16.mxu0 0
  %5514 = vmatmul.mubr.bf16.gmra.mrb[0].mxu0 %v5400
  %v5515 = vpop.f32.mrb[0].mxu0
  %v5516 = vadd.f32 0.0, %v5515
  %v5517 = vpop.f32.mrb[0].mxu0
  %v5518 = vpop.f32.mrb[0].mxu0
  %v5519 = vadd.f32 0.0, %v5518
  %v5520 = vpop.f32.mrb[0].mxu0
  %5521 = vdwg.mxu0
  %v5522 = vld [vmem:[%s27 + $0x40] sm:$0xf]
  %v5523 = vld [vmem:[%s27 + $0x44] sm:$0xf]
  %v5524 = vld [vmem:[%s27 + $0x48] sm:$0xf]
  %v5525 = vld [vmem:[%s27 + $0x4c] sm:$0xf]
  %v5526 = vld [vmem:[%s27 + $0x50] sm:$0xf]
  %v5527 = vld [vmem:[%s27 + $0x54] sm:$0xf]
  %v5528 = vld [vmem:[%s27 + $0x58] sm:$0xf]
  %v5529 = vld [vmem:[%s27 + $0x5c] sm:$0xf]
  %v5530 = vld [vmem:[%s27 + $0x60] sm:$0xf]
  %v5531 = vld [vmem:[%s27 + $0x64] sm:$0xf]
  %v5532 = vld [vmem:[%s27 + $0x68] sm:$0xf]
  %v5533 = vld [vmem:[%s27 + $0x6c] sm:$0xf]
  %v5534 = vld [vmem:[%s27 + $0x70] sm:$0xf]
  %v5535 = vld [vmem:[%s27 + $0x74] sm:$0xf]
  %v5536 = vld [vmem:[%s27 + $0x78] sm:$0xf]
  %v5537 = vld [vmem:[%s27 + $0x7c] sm:$0xf]
  %v5554 = vunpack.c.l.b16 %v5522
  %v5555 = vunpack.c.l.b16 %v5523
  %v5556 = vunpack.c.l.b16 %v5524
  %v5557 = vunpack.c.l.b16 %v5525
  %v5558 = vunpack.c.l.b16 %v5526
  %v5559 = vunpack.c.l.b16 %v5527
  %v5560 = vunpack.c.l.b16 %v5528
  %v5561 = vunpack.c.l.b16 %v5529
  %v5562 = vunpack.c.l.b16 %v5530
  %v5563 = vunpack.c.l.b16 %v5531
  %v5564 = vunpack.c.l.b16 %v5532
  %v5565 = vunpack.c.l.b16 %v5533
  %v5566 = vunpack.c.l.b16 %v5534
  %v5567 = vunpack.c.l.b16 %v5535
  %v5568 = vunpack.c.l.b16 %v5536
  %v5569 = vunpack.c.l.b16 %v5537
  %v5570 = vpack.c.b16 %v5555, %v5554
  %v5571 = vpack.c.b16 %v5557, %v5556
  %v5572 = vpack.c.b16 %v5559, %v5558
  %v5573 = vpack.c.b16 %v5561, %v5560
  %v5574 = vpack.c.b16 %v5563, %v5562
  %v5575 = vpack.c.b16 %v5565, %v5564
  %v5576 = vpack.c.b16 %v5567, %v5566
  %v5577 = vpack.c.b16 %v5569, %v5568
  %5586 = vmatprep.subr.bf16.mxu0 0
  %5587 = vmatpush1.bf16.msra.mxu0 %v5570
  %5588 = vmatprep.subr.bf16.mxu0 0
  %5589 = vmatpush1.bf16.msra.mxu0 %v5571
  %5590 = vmatprep.subr.bf16.mxu0 0
  %5591 = vmatpush1.bf16.msra.mxu0 %v5572
  %5592 = vmatprep.subr.bf16.mxu0 0
  %5593 = vmatpush1.bf16.msra.mxu0 %v5573
  %5594 = vmatprep.subr.bf16.mxu0 0
  %5595 = vmatpush1.bf16.msra.mxu0 %v5574
  %5596 = vmatprep.subr.bf16.mxu0 0
  %5597 = vmatpush1.bf16.msra.mxu0 %v5575
  %5598 = vmatprep.subr.bf16.mxu0 0
  %5599 = vmatpush1.bf16.msra.mxu0 %v5576
  %5600 = vmatprep.subr.bf16.mxu0 0
  %5601 = vmatpush1.bf16.msra.mxu0 %v5577
  %5602 = vmatprep.subr.bf16.mxu0 0
  %5603 = vmatpush1.bf16.msra.mxu0 0
  %5604 = vmatprep.subr.bf16.mxu0 0
  %5605 = vmatpush1.bf16.msra.mxu0 0
  %5606 = vmatprep.subr.bf16.mxu0 0
  %5607 = vmatpush1.bf16.msra.mxu0 0
  %5608 = vmatprep.subr.bf16.mxu0 0
  %5609 = vmatpush1.bf16.msra.mxu0 0
  %5610 = vmatprep.subr.bf16.mxu0 0
  %5611 = vmatpush1.bf16.msra.mxu0 0
  %5612 = vmatprep.subr.bf16.mxu0 0
  %5613 = vmatpush1.bf16.msra.mxu0 0
  %5614 = vmatprep.subr.bf16.mxu0 0
  %5615 = vmatpush1.bf16.msra.mxu0 0
  %5616 = vmatprep.subr.bf16.mxu0 0
  %5617 = vmatpush1.bf16.msra.mxu0 0
  %5618 = vmatprep.mubr.bf16.mxu0 0
  %5619 = vmatmul.mubr.bf16.gmra.mrb[0].mxu0 %v5398
  %v5620 = vpop.f32.mrb[0].mxu0
  %v5621 = vadd.f32 0.0, %v5620
  %v5622 = vpop.f32.mrb[0].mxu0
  %v5623 = vpop.f32.mrb[0].mxu0
  %v5624 = vadd.f32 0.0, %v5623
  %v5625 = vpop.f32.mrb[0].mxu0
  %5626 = vmatprep.mubr.bf16.mxu0 0
  %5627 = vmatmul.mubr.bf16.gmra.mrb[0].mxu0 %v5399
  %v5628 = vpop.f32.mrb[0].mxu0
  %v5629 = vadd.f32 0.0, %v5628
  %v5630 = vpop.f32.mrb[0].mxu0
  %v5631 = vpop.f32.mrb[0].mxu0
  %v5632 = vadd.f32 0.0, %v5631
  %v5633 = vpop.f32.mrb[0].mxu0
  %5634 = vmatprep.mubr.bf16.mxu0 0
  %5635 = vmatmul.mubr.bf16.gmra.mrb[0].mxu0 %v5400
  %v5636 = vpop.f32.mrb[0].mxu0
  %v5637 = vadd.f32 0.0, %v5636
  %v5638 = vpop.f32.mrb[0].mxu0
  %v5639 = vpop.f32.mrb[0].mxu0
  %v5640 = vadd.f32 0.0, %v5639
  %v5641 = vpop.f32.mrb[0].mxu0
  %5642 = vdwg.mxu0
  %v5643 = vld [vmem:[%s27 + $0x80] sm:$0xf]
  %v5644 = vld [vmem:[%s27 + $0x84] sm:$0xf]
  %v5645 = vld [vmem:[%s27 + $0x88] sm:$0xf]
  %v5646 = vld [vmem:[%s27 + $0x8c] sm:$0xf]
  %v5647 = vld [vmem:[%s27 + $0x90] sm:$0xf]
  %v5648 = vld [vmem:[%s27 + $0x94] sm:$0xf]
  %v5649 = vld [vmem:[%s27 + $0x98] sm:$0xf]
  %v5650 = vld [vmem:[%s27 + $0x9c] sm:$0xf]
  %v5651 = vld [vmem:[%s27 + $0xa0] sm:$0xf]
  %v5652 = vld [vmem:[%s27 + $0xa4] sm:$0xf]
  %v5653 = vld [vmem:[%s27 + $0xa8] sm:$0xf]
  %v5654 = vld [vmem:[%s27 + $0xac] sm:$0xf]
  %v5655 = vld [vmem:[%s27 + $0xb0] sm:$0xf]
  %v5656 = vld [vmem:[%s27 + $0xb4] sm:$0xf]
  %v5657 = vld [vmem:[%s27 + $0xb8] sm:$0xf]
  %v5658 = vld [vmem:[%s27 + $0xbc] sm:$0xf]
  %v5675 = vunpack.c.l.b16 %v5643
  %v5676 = vunpack.c.l.b16 %v5644
  %v5677 = vunpack.c.l.b16 %v5645
  %v5678 = vunpack.c.l.b16 %v5646
  %v5679 = vunpack.c.l.b16 %v5647
  %v5680 = vunpack.c.l.b16 %v5648
  %v5681 = vunpack.c.l.b16 %v5649
  %v5682 = vunpack.c.l.b16 %v5650
  %v5683 = vunpack.c.l.b16 %v5651
  %v5684 = vunpack.c.l.b16 %v5652
  %v5685 = vunpack.c.l.b16 %v5653
  %v5686 = vunpack.c.l.b16 %v5654
  %v5687 = vunpack.c.l.b16 %v5655
  %v5688 = vunpack.c.l.b16 %v5656
  %v5689 = vunpack.c.l.b16 %v5657
  %v5690 = vunpack.c.l.b16 %v5658
  %v5691 = vpack.c.b16 %v5676, %v5675
  %v5692 = vpack.c.b16 %v5678, %v5677
  %v5693 = vpack.c.b16 %v5680, %v5679
  %v5694 = vpack.c.b16 %v5682, %v5681
  %v5695 = vpack.c.b16 %v5684, %v5683
  %v5696 = vpack.c.b16 %v5686, %v5685
  %v5697 = vpack.c.b16 %v5688, %v5687
  %v5698 = vpack.c.b16 %v5690, %v5689
  %5707 = vmatprep.subr.bf16.mxu0 0
  %5708 = vmatpush1.bf16.msra.mxu0 %v5691
  %5709 = vmatprep.subr.bf16.mxu0 0
  %5710 = vmatpush1.bf16.msra.mxu0 %v5692
  %5711 = vmatprep.subr.bf16.mxu0 0
  %5712 = vmatpush1.bf16.msra.mxu0 %v5693
  %5713 = vmatprep.subr.bf16.mxu0 0
  %5714 = vmatpush1.bf16.msra.mxu0 %v5694
  %5715 = vmatprep.subr.bf16.mxu0 0
  %5716 = vmatpush1.bf16.msra.mxu0 %v5695
  %5717 = vmatprep.subr.bf16.mxu0 0
  %5718 = vmatpush1.bf16.msra.mxu0 %v5696
  %5719 = vmatprep.subr.bf16.mxu0 0
  %5720 = vmatpush1.bf16.msra.mxu0 %v5697
  %5721 = vmatprep.subr.bf16.mxu0 0
  %5722 = vmatpush1.bf16.msra.mxu0 %v5698
  %5723 = vmatprep.subr.bf16.mxu0 0
  %5724 = vmatpush1.bf16.msra.mxu0 0
  %5725 = vmatprep.subr.bf16.mxu0 0
  %5726 = vmatpush1.bf16.msra.mxu0 0
  %5727 = vmatprep.subr.bf16.mxu0 0
  %5728 = vmatpush1.bf16.msra.mxu0 0
  %5729 = vmatprep.subr.bf16.mxu0 0
  %5730 = vmatpush1.bf16.msra.mxu0 0
  %5731 = vmatprep.subr.bf16.mxu0 0
  %5732 = vmatpush1.bf16.msra.mxu0 0
  %5733 = vmatprep.subr.bf16.mxu0 0
  %5734 = vmatpush1.bf16.msra.mxu0 0
  %5735 = vmatprep.subr.bf16.mxu0 0
  %5736 = vmatpush1.bf16.msra.mxu0 0
  %5737 = vmatprep.subr.bf16.mxu0 0
  %5738 = vmatpush1.bf16.msra.mxu0 0
  %5739 = vmatprep.mubr.bf16.mxu0 0
  %5740 = vmatmul.mubr.bf16.gmra.mrb[0].mxu0 %v5398
  %v5741 = vpop.f32.mrb[0].mxu0
  %v5742 = vadd.f32 0.0, %v5741
  %v5743 = vpop.f32.mrb[0].mxu0
  %v5744 = vpop.f32.mrb[0].mxu0
  %v5745 = vadd.f32 0.0, %v5744
  %v5746 = vpop.f32.mrb[0].mxu0
  %5747 = vmatprep.mubr.bf16.mxu0 0
  %5748 = vmatmul.mubr.bf16.gmra.mrb[0].mxu0 %v5399
  %v5749 = vpop.f32.mrb[0].mxu0
  %v5750 = vadd.f32 0.0, %v5749
  %v5751 = vpop.f32.mrb[0].mxu0
  %v5752 = vpop.f32.mrb[0].mxu0
  %v5753 = vadd.f32 0.0, %v5752
  %v5754 = vpop.f32.mrb[0].mxu0
  %5755 = vmatprep.mubr.bf16.mxu0 0
  %5756 = vmatmul.mubr.bf16.gmra.mrb[0].mxu0 %v5400
  %v5757 = vpop.f32.mrb[0].mxu0
  %v5758 = vadd.f32 0.0, %v5757
  %v5759 = vpop.f32.mrb[0].mxu0
  %v5760 = vpop.f32.mrb[0].mxu0
  %v5761 = vadd.f32 0.0, %v5760
  %v5762 = vpop.f32.mrb[0].mxu0
  %5763 = vdwg.mxu0
  %v5767 = vrot.slane %v5621, 1
  %v5768 = vrot.slane %v5624, 1
  %v5769 = vsel %vm595, %v5767, %v5768
  %v5770 = vrot.slane %v5629, 1
  %v5771 = vsel %vm595, %v5768, %v5770
  %v5775 = vadd.f32 %v5500, %v5769
  %v5776 = vadd.f32 %v5503, %v5771
  %v5777 = vadd.f32 %v5508, %v5770
  %v5781 = vrot.slane %v5742, 2
  %v5782 = vrot.slane %v5745, 2
  %v5783 = vsel %vm650, %v5781, %v5782
  %v5784 = vrot.slane %v5750, 2
  %v5785 = vsel %vm650, %v5782, %v5784
  %v5789 = vadd.f32 %v5775, %v5783
  %v5790 = vadd.f32 %v5776, %v5785
  %v5791 = vadd.f32 %v5777, %v5784
  %v5795 = vrot.slane %v5632, 1
  %v5796 = vsel %vm595, %v5770, %v5795
  %v5797 = vrot.slane %v5637, 1
  %v5798 = vsel %vm595, %v5795, %v5797
  %v5799 = vrot.slane %v5640, 1
  %v5800 = vsel %vm595, %v5797, %v5799
  %v5805 = vadd.f32 %v5508, %v5796
  %v5806 = vadd.f32 %v5511, %v5798
  %v5807 = vadd.f32 %v5516, %v5800
  %v5808 = vadd.f32 %v5519, %v5799
  %v5812 = vrot.slane %v5753, 2
  %v5813 = vrot.slane %v5758, 2
  %v5814 = vsel %vm650, %v5812, %v5813
  %v5815 = vrot.slane %v5761, 2
  %v5816 = vsel %vm650, %v5813, %v5815
  %v5821 = vadd.f32 %v5805, %v5812
  %v5822 = vadd.f32 %v5806, %v5814
  %v5823 = vadd.f32 %v5807, %v5816
  %v5824 = vadd.f32 %v5808, %v5815
  %v5829 = vrot.slane %v5821, 2
  %v5830 = vrot.slane %v5822, 2
  %v5831 = vsel %vm650, %v5829, %v5830
  %v5832 = vrot.slane %v5823, 2
  %v5833 = vsel %vm650, %v5830, %v5832
  %v5834 = vrot.slane %v5824, 2
  %v5835 = vsel %vm650, %v5832, %v5834
  %v5839 = vsel %vm1043, %v5791, %v5831
  %v5843 = vrot.slane %v5392, 1
  %v5844 = vrot.slane %v5393, 1
  %v5845 = vsel %vm595, %v5843, %v5844
  %v5846 = vrot.slane %v5394, 1
  %v5847 = vsel %vm595, %v5844, %v5846
  %v5854 = vrot.slane %v5394, 3
  %v5855 = vrot.slane %v5395, 3
  %v5856 = vsel %vm2035, %v5854, %v5855
  %v5857 = vrot.slane %v5396, 3
  %v5858 = vsel %vm2035, %v5855, %v5857
  %v5859 = vrot.slane %v5397, 3
  %v5860 = vsel %vm2035, %v5857, %v5859
  %v5864 = vsel %vm1043, %v5846, %v5856
  %v5865 = vpack.c.bf16 %v5790, %v5789
  %v5866 = vpack.c.bf16 %v5833, %v5839
  %v5867 = vpack.c.bf16 %v5835, %v5835
  %v5868 = vld [vmem:[%s29] sm:$0xf]
  %v5869 = vld [vmem:[%s29 + $0x4] sm:$0xf]
  %v5870 = vld [vmem:[%s29 + $0x8] sm:$0xf]
  %v5871 = vld [vmem:[%s29 + $0xc] sm:$0xf]
  %v5872 = vmul.f32 %v5845, 0.66
  %v5873 = vmul.f32 %v5847, 0.66
  %v5874 = vmul.f32 %v5864, 0.66
  %v5875 = vmul.f32 %v5858, 0.66
  %v5876 = vmul.f32 %v5860, 0.66
  %v5881 = vunpack.c.l.b16 %v5868
  %v5882 = vunpack.c.l.b16 %v5869
  %v5883 = vunpack.c.l.b16 %v5870
  %v5884 = vunpack.c.l.b16 %v5871
  %v5885 = vpack.c.b16 %v5882, %v5881
  %v5886 = vpack.c.b16 %v5884, %v5883
  %v5890 = vsel %vm870, %v5865, 0
  %v5893 = vsel %vm870, %v5866, 0
  %v5896 = vsel %vm870, %v5867, 0
  %5898 = vmatprep.subr.bf16.mxu0 0
  %5899 = vmatpush1.bf16.msra.mxu0 %v5885
  %5900 = vmatprep.subr.bf16.mxu0 0
  %5901 = vmatpush1.bf16.msra.mxu0 %v5886
  %5902 = vmatprep.subr.bf16.mxu0 0
  %5903 = vmatpush1.bf16.msra.mxu0 0
  %5904 = vmatprep.subr.bf16.mxu0 0
  %5905 = vmatpush1.bf16.msra.mxu0 0
  %5906 = vmatprep.subr.bf16.mxu0 0
  %5907 = vmatpush1.bf16.msra.mxu0 0
  %5908 = vmatprep.subr.bf16.mxu0 0
  %5909 = vmatpush1.bf16.msra.mxu0 0
  %5910 = vmatprep.subr.bf16.mxu0 0
  %5911 = vmatpush1.bf16.msra.mxu0 0
  %5912 = vmatprep.subr.bf16.mxu0 0
  %5913 = vmatpush1.bf16.msra.mxu0 0
  %5914 = vmatprep.subr.bf16.mxu0 0
  %5915 = vmatpush1.bf16.msra.mxu0 0
  %5916 = vmatprep.subr.bf16.mxu0 0
  %5917 = vmatpush1.bf16.msra.mxu0 0
  %5918 = vmatprep.subr.bf16.mxu0 0
  %5919 = vmatpush1.bf16.msra.mxu0 0
  %5920 = vmatprep.subr.bf16.mxu0 0
  %5921 = vmatpush1.bf16.msra.mxu0 0
  %5922 = vmatprep.subr.bf16.mxu0 0
  %5923 = vmatpush1.bf16.msra.mxu0 0
  %5924 = vmatprep.subr.bf16.mxu0 0
  %5925 = vmatpush1.bf16.msra.mxu0 0
  %5926 = vmatprep.subr.bf16.mxu0 0
  %5927 = vmatpush1.bf16.msra.mxu0 0
  %5928 = vmatprep.subr.bf16.mxu0 0
  %5929 = vmatpush1.bf16.msra.mxu0 0
  %5930 = vmatprep.mubr.bf16.mxu0 0
  %5931 = vmatmul.mubr.bf16.gmra.mrb[0].mxu0 %v5890
  %v5932 = vpop.f32.mrb[0].mxu0
  %v5933 = vadd.f32 %v5872, %v5932
  %v5934 = vpop.f32.mrb[0].mxu0
  %v5935 = vpop.f32.mrb[0].mxu0
  %v5936 = vadd.f32 %v5873, %v5935
  %v5937 = vpop.f32.mrb[0].mxu0
  %5938 = vmatprep.mubr.bf16.mxu0 0
  %5939 = vmatmul.mubr.bf16.gmra.mrb[0].mxu0 %v5893
  %v5940 = vpop.f32.mrb[0].mxu0
  %v5941 = vadd.f32 %v5874, %v5940
  %v5942 = vpop.f32.mrb[0].mxu0
  %v5943 = vpop.f32.mrb[0].mxu0
  %v5944 = vadd.f32 %v5875, %v5943
  %v5945 = vpop.f32.mrb[0].mxu0
  %5946 = vmatprep.mubr.bf16.mxu0 0
  %5947 = vmatmul.mubr.bf16.gmra.mrb[0].mxu0 %v5896
  %v5948 = vpop.f32.mrb[0].mxu0
  %v5949 = vadd.f32 %v5876, %v5948
  %v5950 = vpop.f32.mrb[0].mxu0
  %v5951 = vpop.f32.mrb[0].mxu0
  %v5952 = vpop.f32.mrb[0].mxu0
  %5953 = vdwg.mxu0
  %v5954 = vadd.f32 %v5933, %v5936
  %v5955 = vadd.f32 %v5954, %v5941
  %v5956 = vadd.f32 %v5955, %v5944
  %v5957 = vadd.f32 %v5956, %v5949
  %v5958 = vrot.slane %v5957, 4
  %v5959 = vadd.f32 %v5957, %v5958
  %v5960 = vrot.slane %v5959, 2
  %v5961 = vadd.f32 %v5959, %v5960
  %v5962 = vrot.slane %v5961, 1
  %v5963 = vadd.f32 %v5961, %v5962
  %v5964 = vmul.f32 %v5933, %v5933
  %v5965 = vmul.f32 %v5936, %v5936
  %v5966 = vmul.f32 %v5941, %v5941
  %v5967 = vmul.f32 %v5944, %v5944
  %v5968 = vmul.f32 %v5949, %v5949
  %v5969 = vadd.f32 %v5964, %v5965
  %v5970 = vadd.f32 %v5969, %v5966
  %v5971 = vadd.f32 %v5970, %v5967
  %v5972 = vadd.f32 %v5971, %v5968
  %v5973 = vrot.slane %v5972, 4
  %v5974 = vadd.f32 %v5972, %v5973
  %v5975 = vrot.slane %v5974, 2
  %v5976 = vadd.f32 %v5974, %v5975
  %v5977 = vrot.slane %v5976, 1
  %v5978 = vadd.f32 %v5976, %v5977
  %v5979 = vmul.f32 %v5963, 0.025
  %v5980 = vmul.f32 %v5978, 0.025
  %v5981 = vmul.f32 %v5979, %v5979
  %v5982 = vsub.f32 %v5980, %v5981
  %v5983 = vmax.f32 %v5982, 0.0
  %v5984 = vadd.f32 %v5983, 1e-05
  %v5985 = vrsqrt.pop %v5984
  %v5986 = vsub.f32 %v5933, %v5979
  %v5987 = vsub.f32 %v5936, %v5979
  %v5988 = vsub.f32 %v5941, %v5979
  %v5989 = vsub.f32 %v5944, %v5979
  %v5990 = vsub.f32 %v5949, %v5979
  %v5991 = vmul.f32 %v5986, %v5985
  %v5992 = vmul.f32 %v5987, %v5985
  %v5993 = vmul.f32 %v5988, %v5985
  %v5994 = vmul.f32 %v5989, %v5985
  %v5995 = vmul.f32 %v5990, %v5985
  %v5996 = vmax.f32 %v5991, 0.0
  %v5997 = vmax.f32 %v5992, 0.0
  %v5998 = vmax.f32 %v5993, 0.0
  %v5999 = vmax.f32 %v5994, 0.0
  %v6000 = vmax.f32 %v5995, 0.0
  %v6001 = vpack.c.bf16 %v5997, %v5996
  %v6002 = vpack.c.bf16 %v5999, %v5998
  %v6003 = vpack.c.bf16 %v6000, %v6000
  %v6004 = vld [vmem:[%s31] sm:$0xf]
  %v6005 = vld [vmem:[%s31 + $0x4] sm:$0xf]
  %v6006 = vld [vmem:[%s31 + $0x8] sm:$0xf]
  %v6007 = vld [vmem:[%s31 + $0xc] sm:$0xf]
  %v6008 = vld [vmem:[%s31 + $0x10] sm:$0xf]
  %v6009 = vld [vmem:[%s31 + $0x14] sm:$0xf]
  %v6010 = vld [vmem:[%s31 + $0x18] sm:$0xf]
  %v6011 = vld [vmem:[%s31 + $0x1c] sm:$0xf]
  %v6012 = vld [vmem:[%s31 + $0x20] sm:$0xf]
  %v6013 = vld [vmem:[%s31 + $0x24] sm:$0xf]
  %v6014 = vld [vmem:[%s31 + $0x28] sm:$0xf]
  %v6015 = vld [vmem:[%s31 + $0x2c] sm:$0xf]
  %v6016 = vld [vmem:[%s31 + $0x30] sm:$0xf]
  %v6017 = vld [vmem:[%s31 + $0x34] sm:$0xf]
  %v6018 = vld [vmem:[%s31 + $0x38] sm:$0xf]
  %v6019 = vld [vmem:[%s31 + $0x3c] sm:$0xf]
  %v6036 = vunpack.c.l.b16 %v6004
  %v6037 = vunpack.c.l.b16 %v6005
  %v6038 = vunpack.c.l.b16 %v6006
  %v6039 = vunpack.c.l.b16 %v6007
  %v6040 = vunpack.c.l.b16 %v6008
  %v6041 = vunpack.c.l.b16 %v6009
  %v6042 = vunpack.c.l.b16 %v6010
  %v6043 = vunpack.c.l.b16 %v6011
  %v6044 = vunpack.c.l.b16 %v6012
  %v6045 = vunpack.c.l.b16 %v6013
  %v6046 = vunpack.c.l.b16 %v6014
  %v6047 = vunpack.c.l.b16 %v6015
  %v6048 = vunpack.c.l.b16 %v6016
  %v6049 = vunpack.c.l.b16 %v6017
  %v6050 = vunpack.c.l.b16 %v6018
  %v6051 = vunpack.c.l.b16 %v6019
  %v6052 = vpack.c.b16 %v6037, %v6036
  %v6053 = vpack.c.b16 %v6039, %v6038
  %v6054 = vpack.c.b16 %v6041, %v6040
  %v6055 = vpack.c.b16 %v6043, %v6042
  %v6056 = vpack.c.b16 %v6045, %v6044
  %v6057 = vpack.c.b16 %v6047, %v6046
  %v6058 = vpack.c.b16 %v6049, %v6048
  %v6059 = vpack.c.b16 %v6051, %v6050
  %6068 = vmatprep.subr.bf16.mxu0 0
  %6069 = vmatpush1.bf16.msra.mxu0 %v6052
  %6070 = vmatprep.subr.bf16.mxu0 0
  %6071 = vmatpush1.bf16.msra.mxu0 %v6053
  %6072 = vmatprep.subr.bf16.mxu0 0
  %6073 = vmatpush1.bf16.msra.mxu0 %v6054
  %6074 = vmatprep.subr.bf16.mxu0 0
  %6075 = vmatpush1.bf16.msra.mxu0 %v6055
  %6076 = vmatprep.subr.bf16.mxu0 0
  %6077 = vmatpush1.bf16.msra.mxu0 %v6056
  %6078 = vmatprep.subr.bf16.mxu0 0
  %6079 = vmatpush1.bf16.msra.mxu0 %v6057
  %6080 = vmatprep.subr.bf16.mxu0 0
  %6081 = vmatpush1.bf16.msra.mxu0 %v6058
  %6082 = vmatprep.subr.bf16.mxu0 0
  %6083 = vmatpush1.bf16.msra.mxu0 %v6059
  %6084 = vmatprep.subr.bf16.mxu0 0
  %6085 = vmatpush1.bf16.msra.mxu0 0
  %6086 = vmatprep.subr.bf16.mxu0 0
  %6087 = vmatpush1.bf16.msra.mxu0 0
  %6088 = vmatprep.subr.bf16.mxu0 0
  %6089 = vmatpush1.bf16.msra.mxu0 0
  %6090 = vmatprep.subr.bf16.mxu0 0
  %6091 = vmatpush1.bf16.msra.mxu0 0
  %6092 = vmatprep.subr.bf16.mxu0 0
  %6093 = vmatpush1.bf16.msra.mxu0 0
  %6094 = vmatprep.subr.bf16.mxu0 0
  %6095 = vmatpush1.bf16.msra.mxu0 0
  %6096 = vmatprep.subr.bf16.mxu0 0
  %6097 = vmatpush1.bf16.msra.mxu0 0
  %6098 = vmatprep.subr.bf16.mxu0 0
  %6099 = vmatpush1.bf16.msra.mxu0 0
  %6100 = vmatprep.mubr.bf16.mxu0 0
  %6101 = vmatmul.mubr.bf16.gmra.mrb[0].mxu0 %v6001
  %v6102 = vpop.f32.mrb[0].mxu0
  %v6103 = vadd.f32 0.0, %v6102
  %v6104 = vpop.f32.mrb[0].mxu0
  %v6105 = vpop.f32.mrb[0].mxu0
  %v6106 = vadd.f32 0.0, %v6105
  %v6107 = vpop.f32.mrb[0].mxu0
  %6108 = vmatprep.mubr.bf16.mxu0 0
  %6109 = vmatmul.mubr.bf16.gmra.mrb[0].mxu0 %v6002
  %v6110 = vpop.f32.mrb[0].mxu0
  %v6111 = vadd.f32 0.0, %v6110
  %v6112 = vpop.f32.mrb[0].mxu0
  %v6113 = vpop.f32.mrb[0].mxu0
  %v6114 = vadd.f32 0.0, %v6113
  %v6115 = vpop.f32.mrb[0].mxu0
  %6116 = vmatprep.mubr.bf16.mxu0 0
  %6117 = vmatmul.mubr.bf16.gmra.mrb[0].mxu0 %v6003
  %v6118 = vpop.f32.mrb[0].mxu0
  %v6119 = vadd.f32 0.0, %v6118
  %v6120 = vpop.f32.mrb[0].mxu0
  %v6121 = vpop.f32.mrb[0].mxu0
  %v6122 = vpop.f32.mrb[0].mxu0
  %6123 = vdwg.mxu0
  %v6124 = vld [vmem:[%s31 + $0x40] sm:$0xf]
  %v6125 = vld [vmem:[%s31 + $0x44] sm:$0xf]
  %v6126 = vld [vmem:[%s31 + $0x48] sm:$0xf]
  %v6127 = vld [vmem:[%s31 + $0x4c] sm:$0xf]
  %v6128 = vld [vmem:[%s31 + $0x50] sm:$0xf]
  %v6129 = vld [vmem:[%s31 + $0x54] sm:$0xf]
  %v6130 = vld [vmem:[%s31 + $0x58] sm:$0xf]
  %v6131 = vld [vmem:[%s31 + $0x5c] sm:$0xf]
  %v6132 = vld [vmem:[%s31 + $0x60] sm:$0xf]
  %v6133 = vld [vmem:[%s31 + $0x64] sm:$0xf]
  %v6134 = vld [vmem:[%s31 + $0x68] sm:$0xf]
  %v6135 = vld [vmem:[%s31 + $0x6c] sm:$0xf]
  %v6136 = vld [vmem:[%s31 + $0x70] sm:$0xf]
  %v6137 = vld [vmem:[%s31 + $0x74] sm:$0xf]
  %v6138 = vld [vmem:[%s31 + $0x78] sm:$0xf]
  %v6139 = vld [vmem:[%s31 + $0x7c] sm:$0xf]
  %v6156 = vunpack.c.l.b16 %v6124
  %v6157 = vunpack.c.l.b16 %v6125
  %v6158 = vunpack.c.l.b16 %v6126
  %v6159 = vunpack.c.l.b16 %v6127
  %v6160 = vunpack.c.l.b16 %v6128
  %v6161 = vunpack.c.l.b16 %v6129
  %v6162 = vunpack.c.l.b16 %v6130
  %v6163 = vunpack.c.l.b16 %v6131
  %v6164 = vunpack.c.l.b16 %v6132
  %v6165 = vunpack.c.l.b16 %v6133
  %v6166 = vunpack.c.l.b16 %v6134
  %v6167 = vunpack.c.l.b16 %v6135
  %v6168 = vunpack.c.l.b16 %v6136
  %v6169 = vunpack.c.l.b16 %v6137
  %v6170 = vunpack.c.l.b16 %v6138
  %v6171 = vunpack.c.l.b16 %v6139
  %v6172 = vpack.c.b16 %v6157, %v6156
  %v6173 = vpack.c.b16 %v6159, %v6158
  %v6174 = vpack.c.b16 %v6161, %v6160
  %v6175 = vpack.c.b16 %v6163, %v6162
  %v6176 = vpack.c.b16 %v6165, %v6164
  %v6177 = vpack.c.b16 %v6167, %v6166
  %v6178 = vpack.c.b16 %v6169, %v6168
  %v6179 = vpack.c.b16 %v6171, %v6170
  %6188 = vmatprep.subr.bf16.mxu0 0
  %6189 = vmatpush1.bf16.msra.mxu0 %v6172
  %6190 = vmatprep.subr.bf16.mxu0 0
  %6191 = vmatpush1.bf16.msra.mxu0 %v6173
  %6192 = vmatprep.subr.bf16.mxu0 0
  %6193 = vmatpush1.bf16.msra.mxu0 %v6174
  %6194 = vmatprep.subr.bf16.mxu0 0
  %6195 = vmatpush1.bf16.msra.mxu0 %v6175
  %6196 = vmatprep.subr.bf16.mxu0 0
  %6197 = vmatpush1.bf16.msra.mxu0 %v6176
  %6198 = vmatprep.subr.bf16.mxu0 0
  %6199 = vmatpush1.bf16.msra.mxu0 %v6177
  %6200 = vmatprep.subr.bf16.mxu0 0
  %6201 = vmatpush1.bf16.msra.mxu0 %v6178
  %6202 = vmatprep.subr.bf16.mxu0 0
  %6203 = vmatpush1.bf16.msra.mxu0 %v6179
  %6204 = vmatprep.subr.bf16.mxu0 0
  %6205 = vmatpush1.bf16.msra.mxu0 0
  %6206 = vmatprep.subr.bf16.mxu0 0
  %6207 = vmatpush1.bf16.msra.mxu0 0
  %6208 = vmatprep.subr.bf16.mxu0 0
  %6209 = vmatpush1.bf16.msra.mxu0 0
  %6210 = vmatprep.subr.bf16.mxu0 0
  %6211 = vmatpush1.bf16.msra.mxu0 0
  %6212 = vmatprep.subr.bf16.mxu0 0
  %6213 = vmatpush1.bf16.msra.mxu0 0
  %6214 = vmatprep.subr.bf16.mxu0 0
  %6215 = vmatpush1.bf16.msra.mxu0 0
  %6216 = vmatprep.subr.bf16.mxu0 0
  %6217 = vmatpush1.bf16.msra.mxu0 0
  %6218 = vmatprep.subr.bf16.mxu0 0
  %6219 = vmatpush1.bf16.msra.mxu0 0
  %6220 = vmatprep.mubr.bf16.mxu0 0
  %6221 = vmatmul.mubr.bf16.gmra.mrb[0].mxu0 %v6001
  %v6222 = vpop.f32.mrb[0].mxu0
  %v6223 = vadd.f32 0.0, %v6222
  %v6224 = vpop.f32.mrb[0].mxu0
  %v6225 = vpop.f32.mrb[0].mxu0
  %v6226 = vadd.f32 0.0, %v6225
  %v6227 = vpop.f32.mrb[0].mxu0
  %6228 = vmatprep.mubr.bf16.mxu0 0
  %6229 = vmatmul.mubr.bf16.gmra.mrb[0].mxu0 %v6002
  %v6230 = vpop.f32.mrb[0].mxu0
  %v6231 = vadd.f32 0.0, %v6230
  %v6232 = vpop.f32.mrb[0].mxu0
  %v6233 = vpop.f32.mrb[0].mxu0
  %v6234 = vadd.f32 0.0, %v6233
  %v6235 = vpop.f32.mrb[0].mxu0
  %6236 = vmatprep.mubr.bf16.mxu0 0
  %6237 = vmatmul.mubr.bf16.gmra.mrb[0].mxu0 %v6003
  %v6238 = vpop.f32.mrb[0].mxu0
  %v6239 = vadd.f32 0.0, %v6238
  %v6240 = vpop.f32.mrb[0].mxu0
  %v6241 = vpop.f32.mrb[0].mxu0
  %v6242 = vpop.f32.mrb[0].mxu0
  %6243 = vdwg.mxu0
  %v6244 = vld [vmem:[%s31 + $0x80] sm:$0xf]
  %v6245 = vld [vmem:[%s31 + $0x84] sm:$0xf]
  %v6246 = vld [vmem:[%s31 + $0x88] sm:$0xf]
  %v6247 = vld [vmem:[%s31 + $0x8c] sm:$0xf]
  %v6248 = vld [vmem:[%s31 + $0x90] sm:$0xf]
  %v6249 = vld [vmem:[%s31 + $0x94] sm:$0xf]
  %v6250 = vld [vmem:[%s31 + $0x98] sm:$0xf]
  %v6251 = vld [vmem:[%s31 + $0x9c] sm:$0xf]
  %v6252 = vld [vmem:[%s31 + $0xa0] sm:$0xf]
  %v6253 = vld [vmem:[%s31 + $0xa4] sm:$0xf]
  %v6254 = vld [vmem:[%s31 + $0xa8] sm:$0xf]
  %v6255 = vld [vmem:[%s31 + $0xac] sm:$0xf]
  %v6256 = vld [vmem:[%s31 + $0xb0] sm:$0xf]
  %v6257 = vld [vmem:[%s31 + $0xb4] sm:$0xf]
  %v6258 = vld [vmem:[%s31 + $0xb8] sm:$0xf]
  %v6259 = vld [vmem:[%s31 + $0xbc] sm:$0xf]
  %v6276 = vunpack.c.l.b16 %v6244
  %v6277 = vunpack.c.l.b16 %v6245
  %v6278 = vunpack.c.l.b16 %v6246
  %v6279 = vunpack.c.l.b16 %v6247
  %v6280 = vunpack.c.l.b16 %v6248
  %v6281 = vunpack.c.l.b16 %v6249
  %v6282 = vunpack.c.l.b16 %v6250
  %v6283 = vunpack.c.l.b16 %v6251
  %v6284 = vunpack.c.l.b16 %v6252
  %v6285 = vunpack.c.l.b16 %v6253
  %v6286 = vunpack.c.l.b16 %v6254
  %v6287 = vunpack.c.l.b16 %v6255
  %v6288 = vunpack.c.l.b16 %v6256
  %v6289 = vunpack.c.l.b16 %v6257
  %v6290 = vunpack.c.l.b16 %v6258
  %v6291 = vunpack.c.l.b16 %v6259
  %v6292 = vpack.c.b16 %v6277, %v6276
  %v6293 = vpack.c.b16 %v6279, %v6278
  %v6294 = vpack.c.b16 %v6281, %v6280
  %v6295 = vpack.c.b16 %v6283, %v6282
  %v6296 = vpack.c.b16 %v6285, %v6284
  %v6297 = vpack.c.b16 %v6287, %v6286
  %v6298 = vpack.c.b16 %v6289, %v6288
  %v6299 = vpack.c.b16 %v6291, %v6290
  %6308 = vmatprep.subr.bf16.mxu0 0
  %6309 = vmatpush1.bf16.msra.mxu0 %v6292
  %6310 = vmatprep.subr.bf16.mxu0 0
  %6311 = vmatpush1.bf16.msra.mxu0 %v6293
  %6312 = vmatprep.subr.bf16.mxu0 0
  %6313 = vmatpush1.bf16.msra.mxu0 %v6294
  %6314 = vmatprep.subr.bf16.mxu0 0
  %6315 = vmatpush1.bf16.msra.mxu0 %v6295
  %6316 = vmatprep.subr.bf16.mxu0 0
  %6317 = vmatpush1.bf16.msra.mxu0 %v6296
  %6318 = vmatprep.subr.bf16.mxu0 0
  %6319 = vmatpush1.bf16.msra.mxu0 %v6297
  %6320 = vmatprep.subr.bf16.mxu0 0
  %6321 = vmatpush1.bf16.msra.mxu0 %v6298
  %6322 = vmatprep.subr.bf16.mxu0 0
  %6323 = vmatpush1.bf16.msra.mxu0 %v6299
  %6324 = vmatprep.subr.bf16.mxu0 0
  %6325 = vmatpush1.bf16.msra.mxu0 0
  %6326 = vmatprep.subr.bf16.mxu0 0
  %6327 = vmatpush1.bf16.msra.mxu0 0
  %6328 = vmatprep.subr.bf16.mxu0 0
  %6329 = vmatpush1.bf16.msra.mxu0 0
  %6330 = vmatprep.subr.bf16.mxu0 0
  %6331 = vmatpush1.bf16.msra.mxu0 0
  %6332 = vmatprep.subr.bf16.mxu0 0
  %6333 = vmatpush1.bf16.msra.mxu0 0
  %6334 = vmatprep.subr.bf16.mxu0 0
  %6335 = vmatpush1.bf16.msra.mxu0 0
  %6336 = vmatprep.subr.bf16.mxu0 0
  %6337 = vmatpush1.bf16.msra.mxu0 0
  %6338 = vmatprep.subr.bf16.mxu0 0
  %6339 = vmatpush1.bf16.msra.mxu0 0
  %6340 = vmatprep.mubr.bf16.mxu0 0
  %6341 = vmatmul.mubr.bf16.gmra.mrb[0].mxu0 %v6001
  %v6342 = vpop.f32.mrb[0].mxu0
  %v6343 = vadd.f32 0.0, %v6342
  %v6344 = vpop.f32.mrb[0].mxu0
  %v6345 = vpop.f32.mrb[0].mxu0
  %v6346 = vadd.f32 0.0, %v6345
  %v6347 = vpop.f32.mrb[0].mxu0
  %6348 = vmatprep.mubr.bf16.mxu0 0
  %6349 = vmatmul.mubr.bf16.gmra.mrb[0].mxu0 %v6002
  %v6350 = vpop.f32.mrb[0].mxu0
  %v6351 = vadd.f32 0.0, %v6350
  %v6352 = vpop.f32.mrb[0].mxu0
  %v6353 = vpop.f32.mrb[0].mxu0
  %v6354 = vadd.f32 0.0, %v6353
  %v6355 = vpop.f32.mrb[0].mxu0
  %6356 = vmatprep.mubr.bf16.mxu0 0
  %6357 = vmatmul.mubr.bf16.gmra.mrb[0].mxu0 %v6003
  %v6358 = vpop.f32.mrb[0].mxu0
  %v6359 = vadd.f32 0.0, %v6358
  %v6360 = vpop.f32.mrb[0].mxu0
  %v6361 = vpop.f32.mrb[0].mxu0
  %v6362 = vpop.f32.mrb[0].mxu0
  %6363 = vdwg.mxu0
  %v6367 = vrot.slane %v6223, 1
  %v6368 = vrot.slane %v6226, 1
  %v6369 = vsel %vm595, %v6367, %v6368
  %v6370 = vrot.slane %v6231, 1
  %v6371 = vsel %vm595, %v6368, %v6370
  %v6375 = vadd.f32 %v6103, %v6369
  %v6376 = vadd.f32 %v6106, %v6371
  %v6377 = vadd.f32 %v6111, %v6370
  %v6381 = vrot.slane %v6343, 2
  %v6382 = vrot.slane %v6346, 2
  %v6383 = vsel %vm650, %v6381, %v6382
  %v6384 = vrot.slane %v6351, 2
  %v6385 = vsel %vm650, %v6382, %v6384
  %v6389 = vadd.f32 %v6375, %v6383
  %v6390 = vadd.f32 %v6376, %v6385
  %v6391 = vadd.f32 %v6377, %v6384
  %v6394 = vrot.slane %v6234, 1
  %v6395 = vsel %vm595, %v6370, %v6394
  %v6396 = vrot.slane %v6239, 1
  %v6397 = vsel %vm595, %v6394, %v6396
  %v6401 = vadd.f32 %v6111, %v6395
  %v6402 = vadd.f32 %v6114, %v6397
  %v6403 = vadd.f32 %v6119, %v6396
  %v6406 = vrot.slane %v6354, 2
  %v6407 = vsel %vm650, %v6384, %v6406
  %v6408 = vrot.slane %v6359, 2
  %v6409 = vsel %vm650, %v6406, %v6408
  %v6413 = vadd.f32 %v6401, %v6407
  %v6414 = vadd.f32 %v6402, %v6409
  %v6415 = vadd.f32 %v6403, %v6408
  %v6419 = vrot.slane %v6413, 2
  %v6420 = vrot.slane %v6414, 2
  %v6421 = vsel %vm650, %v6419, %v6420
  %v6422 = vrot.slane %v6415, 2
  %v6423 = vsel %vm650, %v6420, %v6422
  %v6427 = vsel %vm841, %v6391, %v6421
  %v6431 = vrot.slane %v5996, 1
  %v6432 = vrot.slane %v5997, 1
  %v6433 = vsel %vm595, %v6431, %v6432
  %v6434 = vrot.slane %v5998, 1
  %v6435 = vsel %vm595, %v6432, %v6434
  %v6441 = vrot.slane %v5998, 3
  %v6442 = vrot.slane %v5999, 3
  %v6443 = vsel %vm2035, %v6441, %v6442
  %v6444 = vrot.slane %v6000, 3
  %v6445 = vsel %vm2035, %v6442, %v6444
  %v6449 = vsel %vm841, %v6434, %v6443
  %v6450 = vpack.c.bf16 %v6390, %v6389
  %v6451 = vpack.c.bf16 %v6423, %v6427
  %v6452 = vpack.c.bf16 %v6422, %v6422
  %v6453 = vld [vmem:[%s33] sm:$0xf]
  %v6454 = vld [vmem:[%s33 + $0x4] sm:$0xf]
  %v6455 = vld [vmem:[%s33 + $0x8] sm:$0xf]
  %v6456 = vld [vmem:[%s33 + $0xc] sm:$0xf]
  %v6457 = vmul.f32 %v6433, 0.66
  %v6458 = vmul.f32 %v6435, 0.66
  %v6459 = vmul.f32 %v6449, 0.66
  %v6460 = vmul.f32 %v6445, 0.66
  %v6461 = vmul.f32 %v6444, 0.66
  %v6466 = vunpack.c.l.b16 %v6453
  %v6467 = vunpack.c.l.b16 %v6454
  %v6468 = vunpack.c.l.b16 %v6455
  %v6469 = vunpack.c.l.b16 %v6456
  %v6470 = vpack.c.b16 %v6467, %v6466
  %v6471 = vpack.c.b16 %v6469, %v6468
  %v6475 = vsel %vm870, %v6450, 0
  %v6478 = vsel %vm870, %v6451, 0
  %v6481 = vsel %vm870, %v6452, 0
  %6483 = vmatprep.subr.bf16.mxu0 0
  %6484 = vmatpush1.bf16.msra.mxu0 %v6470
  %6485 = vmatprep.subr.bf16.mxu0 0
  %6486 = vmatpush1.bf16.msra.mxu0 %v6471
  %6487 = vmatprep.subr.bf16.mxu0 0
  %6488 = vmatpush1.bf16.msra.mxu0 0
  %6489 = vmatprep.subr.bf16.mxu0 0
  %6490 = vmatpush1.bf16.msra.mxu0 0
  %6491 = vmatprep.subr.bf16.mxu0 0
  %6492 = vmatpush1.bf16.msra.mxu0 0
  %6493 = vmatprep.subr.bf16.mxu0 0
  %6494 = vmatpush1.bf16.msra.mxu0 0
  %6495 = vmatprep.subr.bf16.mxu0 0
  %6496 = vmatpush1.bf16.msra.mxu0 0
  %6497 = vmatprep.subr.bf16.mxu0 0
  %6498 = vmatpush1.bf16.msra.mxu0 0
  %6499 = vmatprep.subr.bf16.mxu0 0
  %6500 = vmatpush1.bf16.msra.mxu0 0
  %6501 = vmatprep.subr.bf16.mxu0 0
  %6502 = vmatpush1.bf16.msra.mxu0 0
  %6503 = vmatprep.subr.bf16.mxu0 0
  %6504 = vmatpush1.bf16.msra.mxu0 0
  %6505 = vmatprep.subr.bf16.mxu0 0
  %6506 = vmatpush1.bf16.msra.mxu0 0
  %6507 = vmatprep.subr.bf16.mxu0 0
  %6508 = vmatpush1.bf16.msra.mxu0 0
  %6509 = vmatprep.subr.bf16.mxu0 0
  %6510 = vmatpush1.bf16.msra.mxu0 0
  %6511 = vmatprep.subr.bf16.mxu0 0
  %6512 = vmatpush1.bf16.msra.mxu0 0
  %6513 = vmatprep.subr.bf16.mxu0 0
  %6514 = vmatpush1.bf16.msra.mxu0 0
  %6515 = vmatprep.mubr.bf16.mxu0 0
  %6516 = vmatmul.mubr.bf16.gmra.mrb[0].mxu0 %v6475
  %v6517 = vpop.f32.mrb[0].mxu0
  %v6518 = vadd.f32 %v6457, %v6517
  %v6519 = vpop.f32.mrb[0].mxu0
  %v6520 = vpop.f32.mrb[0].mxu0
  %v6521 = vadd.f32 %v6458, %v6520
  %v6522 = vpop.f32.mrb[0].mxu0
  %6523 = vmatprep.mubr.bf16.mxu0 0
  %6524 = vmatmul.mubr.bf16.gmra.mrb[0].mxu0 %v6478
  %v6525 = vpop.f32.mrb[0].mxu0
  %v6526 = vadd.f32 %v6459, %v6525
  %v6527 = vpop.f32.mrb[0].mxu0
  %v6528 = vpop.f32.mrb[0].mxu0
  %v6529 = vadd.f32 %v6460, %v6528
  %v6530 = vpop.f32.mrb[0].mxu0
  %6531 = vmatprep.mubr.bf16.mxu0 0
  %6532 = vmatmul.mubr.bf16.gmra.mrb[0].mxu0 %v6481
  %v6533 = vpop.f32.mrb[0].mxu0
  %v6534 = vadd.f32 %v6461, %v6533
  %v6535 = vpop.f32.mrb[0].mxu0
  %v6536 = vpop.f32.mrb[0].mxu0
  %v6537 = vpop.f32.mrb[0].mxu0
  %6538 = vdwg.mxu0
  %v6539 = vadd.f32 %v6518, %v6521
  %v6540 = vadd.f32 %v6539, %v6526
  %v6541 = vadd.f32 %v6540, %v6529
  %v6542 = vsel %vm1043, %v6534, 0.0
  %v6543 = vadd.f32 %v6541, %v6542
  %v6544 = vrot.slane %v6543, 4
  %v6545 = vadd.f32 %v6543, %v6544
  %v6546 = vrot.slane %v6545, 2
  %v6547 = vadd.f32 %v6545, %v6546
  %v6548 = vrot.slane %v6547, 1
  %v6549 = vadd.f32 %v6547, %v6548
  %v6550 = vmul.f32 %v6518, %v6518
  %v6551 = vmul.f32 %v6521, %v6521
  %v6552 = vmul.f32 %v6526, %v6526
  %v6553 = vmul.f32 %v6529, %v6529
  %v6554 = vmul.f32 %v6534, %v6534
  %v6555 = vadd.f32 %v6550, %v6551
  %v6556 = vadd.f32 %v6555, %v6552
  %v6557 = vadd.f32 %v6556, %v6553
  %v6558 = vsel %vm1043, %v6554, 0.0
  %v6559 = vadd.f32 %v6557, %v6558
  %v6560 = vrot.slane %v6559, 4
  %v6561 = vadd.f32 %v6559, %v6560
  %v6562 = vrot.slane %v6561, 2
  %v6563 = vadd.f32 %v6561, %v6562
  %v6564 = vrot.slane %v6563, 1
  %v6565 = vadd.f32 %v6563, %v6564
  %v6566 = vmul.f32 %v6549, 0.027777778
  %v6567 = vmul.f32 %v6565, 0.027777778
  %v6568 = vmul.f32 %v6566, %v6566
  %v6569 = vsub.f32 %v6567, %v6568
  %v6570 = vmax.f32 %v6569, 0.0
  %v6571 = vadd.f32 %v6570, 1e-05
  %v6572 = vrsqrt.pop %v6571
  %v6573 = vsub.f32 %v6518, %v6566
  %v6574 = vsub.f32 %v6521, %v6566
  %v6575 = vsub.f32 %v6526, %v6566
  %v6576 = vsub.f32 %v6529, %v6566
  %v6577 = vsub.f32 %v6534, %v6566
  %v6578 = vmul.f32 %v6573, %v6572
  %v6579 = vmul.f32 %v6574, %v6572
  %v6580 = vmul.f32 %v6575, %v6572
  %v6581 = vmul.f32 %v6576, %v6572
  %v6582 = vmul.f32 %v6577, %v6572
  %v6583 = vmax.f32 %v6578, 0.0
  %v6584 = vmax.f32 %v6579, 0.0
  %v6585 = vmax.f32 %v6580, 0.0
  %v6586 = vmax.f32 %v6581, 0.0
  %v6587 = vmax.f32 %v6582, 0.0
  %v6588 = vpack.c.bf16 %v6584, %v6583
  %v6589 = vpack.c.bf16 %v6586, %v6585
  %v6590 = vpack.c.bf16 %v6587, %v6587
  %v6591 = vld [vmem:[%s35] sm:$0xf]
  %v6592 = vld [vmem:[%s35 + $0x4] sm:$0xf]
  %v6593 = vld [vmem:[%s35 + $0x8] sm:$0xf]
  %v6594 = vld [vmem:[%s35 + $0xc] sm:$0xf]
  %v6595 = vld [vmem:[%s35 + $0x10] sm:$0xf]
  %v6596 = vld [vmem:[%s35 + $0x14] sm:$0xf]
  %v6597 = vld [vmem:[%s35 + $0x18] sm:$0xf]
  %v6598 = vld [vmem:[%s35 + $0x1c] sm:$0xf]
  %v6599 = vld [vmem:[%s35 + $0x20] sm:$0xf]
  %v6600 = vld [vmem:[%s35 + $0x24] sm:$0xf]
  %v6601 = vld [vmem:[%s35 + $0x28] sm:$0xf]
  %v6602 = vld [vmem:[%s35 + $0x2c] sm:$0xf]
  %v6603 = vld [vmem:[%s35 + $0x30] sm:$0xf]
  %v6604 = vld [vmem:[%s35 + $0x34] sm:$0xf]
  %v6605 = vld [vmem:[%s35 + $0x38] sm:$0xf]
  %v6606 = vld [vmem:[%s35 + $0x3c] sm:$0xf]
  %v6623 = vunpack.c.l.b16 %v6591
  %v6624 = vunpack.c.l.b16 %v6592
  %v6625 = vunpack.c.l.b16 %v6593
  %v6626 = vunpack.c.l.b16 %v6594
  %v6627 = vunpack.c.l.b16 %v6595
  %v6628 = vunpack.c.l.b16 %v6596
  %v6629 = vunpack.c.l.b16 %v6597
  %v6630 = vunpack.c.l.b16 %v6598
  %v6631 = vunpack.c.l.b16 %v6599
  %v6632 = vunpack.c.l.b16 %v6600
  %v6633 = vunpack.c.l.b16 %v6601
  %v6634 = vunpack.c.l.b16 %v6602
  %v6635 = vunpack.c.l.b16 %v6603
  %v6636 = vunpack.c.l.b16 %v6604
  %v6637 = vunpack.c.l.b16 %v6605
  %v6638 = vunpack.c.l.b16 %v6606
  %v6639 = vpack.c.b16 %v6624, %v6623
  %v6640 = vpack.c.b16 %v6626, %v6625
  %v6641 = vpack.c.b16 %v6628, %v6627
  %v6642 = vpack.c.b16 %v6630, %v6629
  %v6643 = vpack.c.b16 %v6632, %v6631
  %v6644 = vpack.c.b16 %v6634, %v6633
  %v6645 = vpack.c.b16 %v6636, %v6635
  %v6646 = vpack.c.b16 %v6638, %v6637
  %6655 = vmatprep.subr.bf16.mxu0 0
  %6656 = vmatpush1.bf16.msra.mxu0 %v6639
  %6657 = vmatprep.subr.bf16.mxu0 0
  %6658 = vmatpush1.bf16.msra.mxu0 %v6640
  %6659 = vmatprep.subr.bf16.mxu0 0
  %6660 = vmatpush1.bf16.msra.mxu0 %v6641
  %6661 = vmatprep.subr.bf16.mxu0 0
  %6662 = vmatpush1.bf16.msra.mxu0 %v6642
  %6663 = vmatprep.subr.bf16.mxu0 0
  %6664 = vmatpush1.bf16.msra.mxu0 %v6643
  %6665 = vmatprep.subr.bf16.mxu0 0
  %6666 = vmatpush1.bf16.msra.mxu0 %v6644
  %6667 = vmatprep.subr.bf16.mxu0 0
  %6668 = vmatpush1.bf16.msra.mxu0 %v6645
  %6669 = vmatprep.subr.bf16.mxu0 0
  %6670 = vmatpush1.bf16.msra.mxu0 %v6646
  %6671 = vmatprep.subr.bf16.mxu0 0
  %6672 = vmatpush1.bf16.msra.mxu0 0
  %6673 = vmatprep.subr.bf16.mxu0 0
  %6674 = vmatpush1.bf16.msra.mxu0 0
  %6675 = vmatprep.subr.bf16.mxu0 0
  %6676 = vmatpush1.bf16.msra.mxu0 0
  %6677 = vmatprep.subr.bf16.mxu0 0
  %6678 = vmatpush1.bf16.msra.mxu0 0
  %6679 = vmatprep.subr.bf16.mxu0 0
  %6680 = vmatpush1.bf16.msra.mxu0 0
  %6681 = vmatprep.subr.bf16.mxu0 0
  %6682 = vmatpush1.bf16.msra.mxu0 0
  %6683 = vmatprep.subr.bf16.mxu0 0
  %6684 = vmatpush1.bf16.msra.mxu0 0
  %6685 = vmatprep.subr.bf16.mxu0 0
  %6686 = vmatpush1.bf16.msra.mxu0 0
  %6687 = vmatprep.mubr.bf16.mxu0 0
  %6688 = vmatmul.mubr.bf16.gmra.mrb[0].mxu0 %v6588
  %v6689 = vpop.f32.mrb[0].mxu0
  %v6690 = vadd.f32 0.0, %v6689
  %v6691 = vpop.f32.mrb[0].mxu0
  %v6692 = vpop.f32.mrb[0].mxu0
  %v6693 = vadd.f32 0.0, %v6692
  %v6694 = vpop.f32.mrb[0].mxu0
  %6695 = vmatprep.mubr.bf16.mxu0 0
  %6696 = vmatmul.mubr.bf16.gmra.mrb[0].mxu0 %v6589
  %v6697 = vpop.f32.mrb[0].mxu0
  %v6698 = vadd.f32 0.0, %v6697
  %v6699 = vpop.f32.mrb[0].mxu0
  %v6700 = vpop.f32.mrb[0].mxu0
  %v6701 = vadd.f32 0.0, %v6700
  %v6702 = vpop.f32.mrb[0].mxu0
  %6703 = vmatprep.mubr.bf16.mxu0 0
  %6704 = vmatmul.mubr.bf16.gmra.mrb[0].mxu0 %v6590
  %v6705 = vpop.f32.mrb[0].mxu0
  %v6706 = vadd.f32 0.0, %v6705
  %v6707 = vpop.f32.mrb[0].mxu0
  %v6708 = vpop.f32.mrb[0].mxu0
  %v6709 = vpop.f32.mrb[0].mxu0
  %6710 = vdwg.mxu0
  %v6711 = vld [vmem:[%s35 + $0x40] sm:$0xf]
  %v6712 = vld [vmem:[%s35 + $0x44] sm:$0xf]
  %v6713 = vld [vmem:[%s35 + $0x48] sm:$0xf]
  %v6714 = vld [vmem:[%s35 + $0x4c] sm:$0xf]
  %v6715 = vld [vmem:[%s35 + $0x50] sm:$0xf]
  %v6716 = vld [vmem:[%s35 + $0x54] sm:$0xf]
  %v6717 = vld [vmem:[%s35 + $0x58] sm:$0xf]
  %v6718 = vld [vmem:[%s35 + $0x5c] sm:$0xf]
  %v6719 = vld [vmem:[%s35 + $0x60] sm:$0xf]
  %v6720 = vld [vmem:[%s35 + $0x64] sm:$0xf]
  %v6721 = vld [vmem:[%s35 + $0x68] sm:$0xf]
  %v6722 = vld [vmem:[%s35 + $0x6c] sm:$0xf]
  %v6723 = vld [vmem:[%s35 + $0x70] sm:$0xf]
  %v6724 = vld [vmem:[%s35 + $0x74] sm:$0xf]
  %v6725 = vld [vmem:[%s35 + $0x78] sm:$0xf]
  %v6726 = vld [vmem:[%s35 + $0x7c] sm:$0xf]
  %v6743 = vunpack.c.l.b16 %v6711
  %v6744 = vunpack.c.l.b16 %v6712
  %v6745 = vunpack.c.l.b16 %v6713
  %v6746 = vunpack.c.l.b16 %v6714
  %v6747 = vunpack.c.l.b16 %v6715
  %v6748 = vunpack.c.l.b16 %v6716
  %v6749 = vunpack.c.l.b16 %v6717
  %v6750 = vunpack.c.l.b16 %v6718
  %v6751 = vunpack.c.l.b16 %v6719
  %v6752 = vunpack.c.l.b16 %v6720
  %v6753 = vunpack.c.l.b16 %v6721
  %v6754 = vunpack.c.l.b16 %v6722
  %v6755 = vunpack.c.l.b16 %v6723
  %v6756 = vunpack.c.l.b16 %v6724
  %v6757 = vunpack.c.l.b16 %v6725
  %v6758 = vunpack.c.l.b16 %v6726
  %v6759 = vpack.c.b16 %v6744, %v6743
  %v6760 = vpack.c.b16 %v6746, %v6745
  %v6761 = vpack.c.b16 %v6748, %v6747
  %v6762 = vpack.c.b16 %v6750, %v6749
  %v6763 = vpack.c.b16 %v6752, %v6751
  %v6764 = vpack.c.b16 %v6754, %v6753
  %v6765 = vpack.c.b16 %v6756, %v6755
  %v6766 = vpack.c.b16 %v6758, %v6757
  %6775 = vmatprep.subr.bf16.mxu0 0
  %6776 = vmatpush1.bf16.msra.mxu0 %v6759
  %6777 = vmatprep.subr.bf16.mxu0 0
  %6778 = vmatpush1.bf16.msra.mxu0 %v6760
  %6779 = vmatprep.subr.bf16.mxu0 0
  %6780 = vmatpush1.bf16.msra.mxu0 %v6761
  %6781 = vmatprep.subr.bf16.mxu0 0
  %6782 = vmatpush1.bf16.msra.mxu0 %v6762
  %6783 = vmatprep.subr.bf16.mxu0 0
  %6784 = vmatpush1.bf16.msra.mxu0 %v6763
  %6785 = vmatprep.subr.bf16.mxu0 0
  %6786 = vmatpush1.bf16.msra.mxu0 %v6764
  %6787 = vmatprep.subr.bf16.mxu0 0
  %6788 = vmatpush1.bf16.msra.mxu0 %v6765
  %6789 = vmatprep.subr.bf16.mxu0 0
  %6790 = vmatpush1.bf16.msra.mxu0 %v6766
  %6791 = vmatprep.subr.bf16.mxu0 0
  %6792 = vmatpush1.bf16.msra.mxu0 0
  %6793 = vmatprep.subr.bf16.mxu0 0
  %6794 = vmatpush1.bf16.msra.mxu0 0
  %6795 = vmatprep.subr.bf16.mxu0 0
  %6796 = vmatpush1.bf16.msra.mxu0 0
  %6797 = vmatprep.subr.bf16.mxu0 0
  %6798 = vmatpush1.bf16.msra.mxu0 0
  %6799 = vmatprep.subr.bf16.mxu0 0
  %6800 = vmatpush1.bf16.msra.mxu0 0
  %6801 = vmatprep.subr.bf16.mxu0 0
  %6802 = vmatpush1.bf16.msra.mxu0 0
  %6803 = vmatprep.subr.bf16.mxu0 0
  %6804 = vmatpush1.bf16.msra.mxu0 0
  %6805 = vmatprep.subr.bf16.mxu0 0
  %6806 = vmatpush1.bf16.msra.mxu0 0
  %6807 = vmatprep.mubr.bf16.mxu0 0
  %6808 = vmatmul.mubr.bf16.gmra.mrb[0].mxu0 %v6588
  %v6809 = vpop.f32.mrb[0].mxu0
  %v6810 = vadd.f32 0.0, %v6809
  %v6811 = vpop.f32.mrb[0].mxu0
  %v6812 = vpop.f32.mrb[0].mxu0
  %v6813 = vadd.f32 0.0, %v6812
  %v6814 = vpop.f32.mrb[0].mxu0
  %6815 = vmatprep.mubr.bf16.mxu0 0
  %6816 = vmatmul.mubr.bf16.gmra.mrb[0].mxu0 %v6589
  %v6817 = vpop.f32.mrb[0].mxu0
  %v6818 = vadd.f32 0.0, %v6817
  %v6819 = vpop.f32.mrb[0].mxu0
  %v6820 = vpop.f32.mrb[0].mxu0
  %v6821 = vadd.f32 0.0, %v6820
  %v6822 = vpop.f32.mrb[0].mxu0
  %6823 = vmatprep.mubr.bf16.mxu0 0
  %6824 = vmatmul.mubr.bf16.gmra.mrb[0].mxu0 %v6590
  %v6825 = vpop.f32.mrb[0].mxu0
  %v6826 = vadd.f32 0.0, %v6825
  %v6827 = vpop.f32.mrb[0].mxu0
  %v6828 = vpop.f32.mrb[0].mxu0
  %v6829 = vpop.f32.mrb[0].mxu0
  %6830 = vdwg.mxu0
  %v6831 = vld [vmem:[%s35 + $0x80] sm:$0xf]
  %v6832 = vld [vmem:[%s35 + $0x84] sm:$0xf]
  %v6833 = vld [vmem:[%s35 + $0x88] sm:$0xf]
  %v6834 = vld [vmem:[%s35 + $0x8c] sm:$0xf]
  %v6835 = vld [vmem:[%s35 + $0x90] sm:$0xf]
  %v6836 = vld [vmem:[%s35 + $0x94] sm:$0xf]
  %v6837 = vld [vmem:[%s35 + $0x98] sm:$0xf]
  %v6838 = vld [vmem:[%s35 + $0x9c] sm:$0xf]
  %v6839 = vld [vmem:[%s35 + $0xa0] sm:$0xf]
  %v6840 = vld [vmem:[%s35 + $0xa4] sm:$0xf]
  %v6841 = vld [vmem:[%s35 + $0xa8] sm:$0xf]
  %v6842 = vld [vmem:[%s35 + $0xac] sm:$0xf]
  %v6843 = vld [vmem:[%s35 + $0xb0] sm:$0xf]
  %v6844 = vld [vmem:[%s35 + $0xb4] sm:$0xf]
  %v6845 = vld [vmem:[%s35 + $0xb8] sm:$0xf]
  %v6846 = vld [vmem:[%s35 + $0xbc] sm:$0xf]
  %v6863 = vunpack.c.l.b16 %v6831
  %v6864 = vunpack.c.l.b16 %v6832
  %v6865 = vunpack.c.l.b16 %v6833
  %v6866 = vunpack.c.l.b16 %v6834
  %v6867 = vunpack.c.l.b16 %v6835
  %v6868 = vunpack.c.l.b16 %v6836
  %v6869 = vunpack.c.l.b16 %v6837
  %v6870 = vunpack.c.l.b16 %v6838
  %v6871 = vunpack.c.l.b16 %v6839
  %v6872 = vunpack.c.l.b16 %v6840
  %v6873 = vunpack.c.l.b16 %v6841
  %v6874 = vunpack.c.l.b16 %v6842
  %v6875 = vunpack.c.l.b16 %v6843
  %v6876 = vunpack.c.l.b16 %v6844
  %v6877 = vunpack.c.l.b16 %v6845
  %v6878 = vunpack.c.l.b16 %v6846
  %v6879 = vpack.c.b16 %v6864, %v6863
  %v6880 = vpack.c.b16 %v6866, %v6865
  %v6881 = vpack.c.b16 %v6868, %v6867
  %v6882 = vpack.c.b16 %v6870, %v6869
  %v6883 = vpack.c.b16 %v6872, %v6871
  %v6884 = vpack.c.b16 %v6874, %v6873
  %v6885 = vpack.c.b16 %v6876, %v6875
  %v6886 = vpack.c.b16 %v6878, %v6877
  %6895 = vmatprep.subr.bf16.mxu0 0
  %6896 = vmatpush1.bf16.msra.mxu0 %v6879
  %6897 = vmatprep.subr.bf16.mxu0 0
  %6898 = vmatpush1.bf16.msra.mxu0 %v6880
  %6899 = vmatprep.subr.bf16.mxu0 0
  %6900 = vmatpush1.bf16.msra.mxu0 %v6881
  %6901 = vmatprep.subr.bf16.mxu0 0
  %6902 = vmatpush1.bf16.msra.mxu0 %v6882
  %6903 = vmatprep.subr.bf16.mxu0 0
  %6904 = vmatpush1.bf16.msra.mxu0 %v6883
  %6905 = vmatprep.subr.bf16.mxu0 0
  %6906 = vmatpush1.bf16.msra.mxu0 %v6884
  %6907 = vmatprep.subr.bf16.mxu0 0
  %6908 = vmatpush1.bf16.msra.mxu0 %v6885
  %6909 = vmatprep.subr.bf16.mxu0 0
  %6910 = vmatpush1.bf16.msra.mxu0 %v6886
  %6911 = vmatprep.subr.bf16.mxu0 0
  %6912 = vmatpush1.bf16.msra.mxu0 0
  %6913 = vmatprep.subr.bf16.mxu0 0
  %6914 = vmatpush1.bf16.msra.mxu0 0
  %6915 = vmatprep.subr.bf16.mxu0 0
  %6916 = vmatpush1.bf16.msra.mxu0 0
  %6917 = vmatprep.subr.bf16.mxu0 0
  %6918 = vmatpush1.bf16.msra.mxu0 0
  %6919 = vmatprep.subr.bf16.mxu0 0
  %6920 = vmatpush1.bf16.msra.mxu0 0
  %6921 = vmatprep.subr.bf16.mxu0 0
  %6922 = vmatpush1.bf16.msra.mxu0 0
  %6923 = vmatprep.subr.bf16.mxu0 0
  %6924 = vmatpush1.bf16.msra.mxu0 0
  %6925 = vmatprep.subr.bf16.mxu0 0
  %6926 = vmatpush1.bf16.msra.mxu0 0
  %6927 = vmatprep.mubr.bf16.mxu0 0
  %6928 = vmatmul.mubr.bf16.gmra.mrb[0].mxu0 %v6588
  %v6929 = vpop.f32.mrb[0].mxu0
  %v6930 = vadd.f32 0.0, %v6929
  %v6931 = vpop.f32.mrb[0].mxu0
  %v6932 = vpop.f32.mrb[0].mxu0
  %v6933 = vadd.f32 0.0, %v6932
  %v6934 = vpop.f32.mrb[0].mxu0
  %6935 = vmatprep.mubr.bf16.mxu0 0
  %6936 = vmatmul.mubr.bf16.gmra.mrb[0].mxu0 %v6589
  %v6937 = vpop.f32.mrb[0].mxu0
  %v6938 = vadd.f32 0.0, %v6937
  %v6939 = vpop.f32.mrb[0].mxu0
  %v6940 = vpop.f32.mrb[0].mxu0
  %v6941 = vadd.f32 0.0, %v6940
  %v6942 = vpop.f32.mrb[0].mxu0
  %6943 = vmatprep.mubr.bf16.mxu0 0
  %6944 = vmatmul.mubr.bf16.gmra.mrb[0].mxu0 %v6590
  %v6945 = vpop.f32.mrb[0].mxu0
  %v6946 = vadd.f32 0.0, %v6945
  %v6947 = vpop.f32.mrb[0].mxu0
  %v6948 = vpop.f32.mrb[0].mxu0
  %v6949 = vpop.f32.mrb[0].mxu0
  %6950 = vdwg.mxu0
  %v6954 = vrot.slane %v6810, 1
  %v6955 = vrot.slane %v6813, 1
  %v6956 = vsel %vm595, %v6954, %v6955
  %v6957 = vrot.slane %v6818, 1
  %v6958 = vsel %vm595, %v6955, %v6957
  %v6961 = vadd.f32 %v6690, %v6956
  %v6962 = vadd.f32 %v6693, %v6958
  %v6966 = vrot.slane %v6930, 2
  %v6967 = vrot.slane %v6933, 2
  %v6968 = vsel %vm650, %v6966, %v6967
  %v6969 = vrot.slane %v6938, 2
  %v6970 = vsel %vm650, %v6967, %v6969
  %v6973 = vadd.f32 %v6961, %v6968
  %v6974 = vadd.f32 %v6962, %v6970
  %v6977 = vrot.slane %v6821, 1
  %v6978 = vsel %vm595, %v6957, %v6977
  %v6979 = vrot.slane %v6826, 1
  %v6980 = vsel %vm595, %v6977, %v6979
  %v6984 = vadd.f32 %v6698, %v6978
  %v6985 = vadd.f32 %v6701, %v6980
  %v6986 = vadd.f32 %v6706, %v6979
  %v6989 = vrot.slane %v6941, 2
  %v6990 = vsel %vm650, %v6969, %v6989
  %v6991 = vrot.slane %v6946, 2
  %v6992 = vsel %vm650, %v6989, %v6991
  %v6996 = vadd.f32 %v6984, %v6990
  %v6997 = vadd.f32 %v6985, %v6992
  %v6998 = vadd.f32 %v6986, %v6991
  %v7002 = vrot.slane %v6996, 2
  %v7003 = vrot.slane %v6997, 2
  %v7004 = vsel %vm650, %v7002, %v7003
  %v7005 = vrot.slane %v6998, 2
  %v7006 = vsel %vm650, %v7003, %v7005
  %v7012 = vrot.slane %v6583, 1
  %v7013 = vrot.slane %v6584, 1
  %v7014 = vsel %vm595, %v7012, %v7013
  %v7015 = vrot.slane %v6585, 1
  %v7016 = vsel %vm595, %v7013, %v7015
  %v7021 = vrot.slane %v6585, 3
  %v7022 = vrot.slane %v6586, 3
  %v7023 = vsel %vm2035, %v7021, %v7022
  %v7024 = vrot.slane %v6587, 3
  %v7025 = vsel %vm2035, %v7022, %v7024
  %v7028 = vpack.c.bf16 %v6974, %v6973
  %v7029 = vpack.c.bf16 %v7006, %v7004
  %v7030 = vld [vmem:[%s37] sm:$0xf]
  %v7031 = vld [vmem:[%s37 + $0x4] sm:$0xf]
  %v7032 = vld [vmem:[%s37 + $0x8] sm:$0xf]
  %v7033 = vld [vmem:[%s37 + $0xc] sm:$0xf]
  %v7034 = vmul.f32 %v7014, 0.66
  %v7035 = vmul.f32 %v7016, 0.66
  %v7036 = vmul.f32 %v7023, 0.66
  %v7037 = vmul.f32 %v7025, 0.66
  %v7042 = vunpack.c.l.b16 %v7030
  %v7043 = vunpack.c.l.b16 %v7031
  %v7044 = vunpack.c.l.b16 %v7032
  %v7045 = vunpack.c.l.b16 %v7033
  %v7046 = vpack.c.b16 %v7043, %v7042
  %v7047 = vpack.c.b16 %v7045, %v7044
  %v7051 = vsel %vm870, %v7028, 0
  %v7054 = vsel %vm870, %v7029, 0
  %7056 = vmatprep.subr.bf16.mxu0 0
  %7057 = vmatpush1.bf16.msra.mxu0 %v7046
  %7058 = vmatprep.subr.bf16.mxu0 0
  %7059 = vmatpush1.bf16.msra.mxu0 %v7047
  %7060 = vmatprep.subr.bf16.mxu0 0
  %7061 = vmatpush1.bf16.msra.mxu0 0
  %7062 = vmatprep.subr.bf16.mxu0 0
  %7063 = vmatpush1.bf16.msra.mxu0 0
  %7064 = vmatprep.subr.bf16.mxu0 0
  %7065 = vmatpush1.bf16.msra.mxu0 0
  %7066 = vmatprep.subr.bf16.mxu0 0
  %7067 = vmatpush1.bf16.msra.mxu0 0
  %7068 = vmatprep.subr.bf16.mxu0 0
  %7069 = vmatpush1.bf16.msra.mxu0 0
  %7070 = vmatprep.subr.bf16.mxu0 0
  %7071 = vmatpush1.bf16.msra.mxu0 0
  %7072 = vmatprep.subr.bf16.mxu0 0
  %7073 = vmatpush1.bf16.msra.mxu0 0
  %7074 = vmatprep.subr.bf16.mxu0 0
  %7075 = vmatpush1.bf16.msra.mxu0 0
  %7076 = vmatprep.subr.bf16.mxu0 0
  %7077 = vmatpush1.bf16.msra.mxu0 0
  %7078 = vmatprep.subr.bf16.mxu0 0
  %7079 = vmatpush1.bf16.msra.mxu0 0
  %7080 = vmatprep.subr.bf16.mxu0 0
  %7081 = vmatpush1.bf16.msra.mxu0 0
  %7082 = vmatprep.subr.bf16.mxu0 0
  %7083 = vmatpush1.bf16.msra.mxu0 0
  %7084 = vmatprep.subr.bf16.mxu0 0
  %7085 = vmatpush1.bf16.msra.mxu0 0
  %7086 = vmatprep.subr.bf16.mxu0 0
  %7087 = vmatpush1.bf16.msra.mxu0 0
  %7088 = vmatprep.mubr.bf16.mxu0 0
  %7089 = vmatmul.mubr.bf16.gmra.mrb[0].mxu0 %v7051
  %v7090 = vpop.f32.mrb[0].mxu0
  %v7091 = vadd.f32 %v7034, %v7090
  %v7092 = vpop.f32.mrb[0].mxu0
  %v7093 = vpop.f32.mrb[0].mxu0
  %v7094 = vadd.f32 %v7035, %v7093
  %v7095 = vpop.f32.mrb[0].mxu0
  %7096 = vmatprep.mubr.bf16.mxu0 0
  %7097 = vmatmul.mubr.bf16.gmra.mrb[0].mxu0 %v7054
  %v7098 = vpop.f32.mrb[0].mxu0
  %v7099 = vadd.f32 %v7036, %v7098
  %v7100 = vpop.f32.mrb[0].mxu0
  %v7101 = vpop.f32.mrb[0].mxu0
  %v7102 = vadd.f32 %v7037, %v7101
  %v7103 = vpop.f32.mrb[0].mxu0
  %7104 = vdwg.mxu0
  %v7105 = vadd.f32 %v7091, %v7094
  %v7106 = vadd.f32 %v7105, %v7099
  %v7107 = vadd.f32 %v7106, %v7102
  %v7108 = vrot.slane %v7107, 4
  %v7109 = vadd.f32 %v7107, %v7108
  %v7110 = vrot.slane %v7109, 2
  %v7111 = vadd.f32 %v7109, %v7110
  %v7112 = vrot.slane %v7111, 1
  %v7113 = vadd.f32 %v7111, %v7112
  %v7114 = vmul.f32 %v7091, %v7091
  %v7115 = vmul.f32 %v7094, %v7094
  %v7116 = vmul.f32 %v7099, %v7099
  %v7117 = vmul.f32 %v7102, %v7102
  %v7118 = vadd.f32 %v7114, %v7115
  %v7119 = vadd.f32 %v7118, %v7116
  %v7120 = vadd.f32 %v7119, %v7117
  %v7121 = vrot.slane %v7120, 4
  %v7122 = vadd.f32 %v7120, %v7121
  %v7123 = vrot.slane %v7122, 2
  %v7124 = vadd.f32 %v7122, %v7123
  %v7125 = vrot.slane %v7124, 1
  %v7126 = vadd.f32 %v7124, %v7125
  %v7127 = vmul.f32 %v7113, 0.03125
  %v7128 = vmul.f32 %v7126, 0.03125
  %v7129 = vmul.f32 %v7127, %v7127
  %v7130 = vsub.f32 %v7128, %v7129
  %v7131 = vmax.f32 %v7130, 0.0
  %v7132 = vadd.f32 %v7131, 1e-05
  %v7133 = vrsqrt.pop %v7132
  %v7134 = vsub.f32 %v7091, %v7127
  %v7135 = vsub.f32 %v7094, %v7127
  %v7136 = vsub.f32 %v7099, %v7127
  %v7137 = vsub.f32 %v7102, %v7127
  %v7138 = vmul.f32 %v7134, %v7133
  %v7139 = vmul.f32 %v7135, %v7133
  %v7140 = vmul.f32 %v7136, %v7133
  %v7141 = vmul.f32 %v7137, %v7133
  %v7142 = vmax.f32 %v7138, 0.0
  %v7143 = vmax.f32 %v7139, 0.0
  %v7144 = vmax.f32 %v7140, 0.0
  %v7145 = vmax.f32 %v7141, 0.0
  %v7146 = vpack.c.bf16 %v7143, %v7142
  %v7147 = vpack.c.bf16 %v7145, %v7144
  %v7148 = vld [vmem:[%s39] sm:$0xf]
  %v7149 = vld [vmem:[%s39 + $0x4] sm:$0xf]
  %v7150 = vld [vmem:[%s39 + $0x8] sm:$0xf]
  %v7151 = vld [vmem:[%s39 + $0xc] sm:$0xf]
  %v7152 = vld [vmem:[%s39 + $0x10] sm:$0xf]
  %v7153 = vld [vmem:[%s39 + $0x14] sm:$0xf]
  %v7154 = vld [vmem:[%s39 + $0x18] sm:$0xf]
  %v7155 = vld [vmem:[%s39 + $0x1c] sm:$0xf]
  %v7156 = vld [vmem:[%s39 + $0x20] sm:$0xf]
  %v7157 = vld [vmem:[%s39 + $0x24] sm:$0xf]
  %v7158 = vld [vmem:[%s39 + $0x28] sm:$0xf]
  %v7159 = vld [vmem:[%s39 + $0x2c] sm:$0xf]
  %v7160 = vld [vmem:[%s39 + $0x30] sm:$0xf]
  %v7161 = vld [vmem:[%s39 + $0x34] sm:$0xf]
  %v7162 = vld [vmem:[%s39 + $0x38] sm:$0xf]
  %v7163 = vld [vmem:[%s39 + $0x3c] sm:$0xf]
  %v7180 = vunpack.c.l.b16 %v7148
  %v7181 = vunpack.c.l.b16 %v7149
  %v7182 = vunpack.c.l.b16 %v7150
  %v7183 = vunpack.c.l.b16 %v7151
  %v7184 = vunpack.c.l.b16 %v7152
  %v7185 = vunpack.c.l.b16 %v7153
  %v7186 = vunpack.c.l.b16 %v7154
  %v7187 = vunpack.c.l.b16 %v7155
  %v7188 = vunpack.c.l.b16 %v7156
  %v7189 = vunpack.c.l.b16 %v7157
  %v7190 = vunpack.c.l.b16 %v7158
  %v7191 = vunpack.c.l.b16 %v7159
  %v7192 = vunpack.c.l.b16 %v7160
  %v7193 = vunpack.c.l.b16 %v7161
  %v7194 = vunpack.c.l.b16 %v7162
  %v7195 = vunpack.c.l.b16 %v7163
  %v7196 = vpack.c.b16 %v7181, %v7180
  %v7197 = vpack.c.b16 %v7183, %v7182
  %v7198 = vpack.c.b16 %v7185, %v7184
  %v7199 = vpack.c.b16 %v7187, %v7186
  %v7200 = vpack.c.b16 %v7189, %v7188
  %v7201 = vpack.c.b16 %v7191, %v7190
  %v7202 = vpack.c.b16 %v7193, %v7192
  %v7203 = vpack.c.b16 %v7195, %v7194
  %7212 = vmatprep.subr.bf16.mxu0 0
  %7213 = vmatpush1.bf16.msra.mxu0 %v7196
  %7214 = vmatprep.subr.bf16.mxu0 0
  %7215 = vmatpush1.bf16.msra.mxu0 %v7197
  %7216 = vmatprep.subr.bf16.mxu0 0
  %7217 = vmatpush1.bf16.msra.mxu0 %v7198
  %7218 = vmatprep.subr.bf16.mxu0 0
  %7219 = vmatpush1.bf16.msra.mxu0 %v7199
  %7220 = vmatprep.subr.bf16.mxu0 0
  %7221 = vmatpush1.bf16.msra.mxu0 %v7200
  %7222 = vmatprep.subr.bf16.mxu0 0
  %7223 = vmatpush1.bf16.msra.mxu0 %v7201
  %7224 = vmatprep.subr.bf16.mxu0 0
  %7225 = vmatpush1.bf16.msra.mxu0 %v7202
  %7226 = vmatprep.subr.bf16.mxu0 0
  %7227 = vmatpush1.bf16.msra.mxu0 %v7203
  %7228 = vmatprep.subr.bf16.mxu0 0
  %7229 = vmatpush1.bf16.msra.mxu0 0
  %7230 = vmatprep.subr.bf16.mxu0 0
  %7231 = vmatpush1.bf16.msra.mxu0 0
  %7232 = vmatprep.subr.bf16.mxu0 0
  %7233 = vmatpush1.bf16.msra.mxu0 0
  %7234 = vmatprep.subr.bf16.mxu0 0
  %7235 = vmatpush1.bf16.msra.mxu0 0
  %7236 = vmatprep.subr.bf16.mxu0 0
  %7237 = vmatpush1.bf16.msra.mxu0 0
  %7238 = vmatprep.subr.bf16.mxu0 0
  %7239 = vmatpush1.bf16.msra.mxu0 0
  %7240 = vmatprep.subr.bf16.mxu0 0
  %7241 = vmatpush1.bf16.msra.mxu0 0
  %7242 = vmatprep.subr.bf16.mxu0 0
  %7243 = vmatpush1.bf16.msra.mxu0 0
  %7244 = vmatprep.mubr.bf16.mxu0 0
  %7245 = vmatmul.mubr.bf16.gmra.mrb[0].mxu0 %v7146
  %v7246 = vpop.f32.mrb[0].mxu0
  %v7247 = vadd.f32 0.0, %v7246
  %v7248 = vpop.f32.mrb[0].mxu0
  %v7249 = vpop.f32.mrb[0].mxu0
  %v7250 = vadd.f32 0.0, %v7249
  %v7251 = vpop.f32.mrb[0].mxu0
  %7252 = vmatprep.mubr.bf16.mxu0 0
  %7253 = vmatmul.mubr.bf16.gmra.mrb[0].mxu0 %v7147
  %v7254 = vpop.f32.mrb[0].mxu0
  %v7255 = vadd.f32 0.0, %v7254
  %v7256 = vpop.f32.mrb[0].mxu0
  %v7257 = vpop.f32.mrb[0].mxu0
  %v7258 = vadd.f32 0.0, %v7257
  %v7259 = vpop.f32.mrb[0].mxu0
  %7260 = vdwg.mxu0
  %v7261 = vld [vmem:[%s39 + $0x40] sm:$0xf]
  %v7262 = vld [vmem:[%s39 + $0x44] sm:$0xf]
  %v7263 = vld [vmem:[%s39 + $0x48] sm:$0xf]
  %v7264 = vld [vmem:[%s39 + $0x4c] sm:$0xf]
  %v7265 = vld [vmem:[%s39 + $0x50] sm:$0xf]
  %v7266 = vld [vmem:[%s39 + $0x54] sm:$0xf]
  %v7267 = vld [vmem:[%s39 + $0x58] sm:$0xf]
  %v7268 = vld [vmem:[%s39 + $0x5c] sm:$0xf]
  %v7269 = vld [vmem:[%s39 + $0x60] sm:$0xf]
  %v7270 = vld [vmem:[%s39 + $0x64] sm:$0xf]
  %v7271 = vld [vmem:[%s39 + $0x68] sm:$0xf]
  %v7272 = vld [vmem:[%s39 + $0x6c] sm:$0xf]
  %v7273 = vld [vmem:[%s39 + $0x70] sm:$0xf]
  %v7274 = vld [vmem:[%s39 + $0x74] sm:$0xf]
  %v7275 = vld [vmem:[%s39 + $0x78] sm:$0xf]
  %v7276 = vld [vmem:[%s39 + $0x7c] sm:$0xf]
  %v7293 = vunpack.c.l.b16 %v7261
  %v7294 = vunpack.c.l.b16 %v7262
  %v7295 = vunpack.c.l.b16 %v7263
  %v7296 = vunpack.c.l.b16 %v7264
  %v7297 = vunpack.c.l.b16 %v7265
  %v7298 = vunpack.c.l.b16 %v7266
  %v7299 = vunpack.c.l.b16 %v7267
  %v7300 = vunpack.c.l.b16 %v7268
  %v7301 = vunpack.c.l.b16 %v7269
  %v7302 = vunpack.c.l.b16 %v7270
  %v7303 = vunpack.c.l.b16 %v7271
  %v7304 = vunpack.c.l.b16 %v7272
  %v7305 = vunpack.c.l.b16 %v7273
  %v7306 = vunpack.c.l.b16 %v7274
  %v7307 = vunpack.c.l.b16 %v7275
  %v7308 = vunpack.c.l.b16 %v7276
  %v7309 = vpack.c.b16 %v7294, %v7293
  %v7310 = vpack.c.b16 %v7296, %v7295
  %v7311 = vpack.c.b16 %v7298, %v7297
  %v7312 = vpack.c.b16 %v7300, %v7299
  %v7313 = vpack.c.b16 %v7302, %v7301
  %v7314 = vpack.c.b16 %v7304, %v7303
  %v7315 = vpack.c.b16 %v7306, %v7305
  %v7316 = vpack.c.b16 %v7308, %v7307
  %7325 = vmatprep.subr.bf16.mxu0 0
  %7326 = vmatpush1.bf16.msra.mxu0 %v7309
  %7327 = vmatprep.subr.bf16.mxu0 0
  %7328 = vmatpush1.bf16.msra.mxu0 %v7310
  %7329 = vmatprep.subr.bf16.mxu0 0
  %7330 = vmatpush1.bf16.msra.mxu0 %v7311
  %7331 = vmatprep.subr.bf16.mxu0 0
  %7332 = vmatpush1.bf16.msra.mxu0 %v7312
  %7333 = vmatprep.subr.bf16.mxu0 0
  %7334 = vmatpush1.bf16.msra.mxu0 %v7313
  %7335 = vmatprep.subr.bf16.mxu0 0
  %7336 = vmatpush1.bf16.msra.mxu0 %v7314
  %7337 = vmatprep.subr.bf16.mxu0 0
  %7338 = vmatpush1.bf16.msra.mxu0 %v7315
  %7339 = vmatprep.subr.bf16.mxu0 0
  %7340 = vmatpush1.bf16.msra.mxu0 %v7316
  %7341 = vmatprep.subr.bf16.mxu0 0
  %7342 = vmatpush1.bf16.msra.mxu0 0
  %7343 = vmatprep.subr.bf16.mxu0 0
  %7344 = vmatpush1.bf16.msra.mxu0 0
  %7345 = vmatprep.subr.bf16.mxu0 0
  %7346 = vmatpush1.bf16.msra.mxu0 0
  %7347 = vmatprep.subr.bf16.mxu0 0
  %7348 = vmatpush1.bf16.msra.mxu0 0
  %7349 = vmatprep.subr.bf16.mxu0 0
  %7350 = vmatpush1.bf16.msra.mxu0 0
  %7351 = vmatprep.subr.bf16.mxu0 0
  %7352 = vmatpush1.bf16.msra.mxu0 0
  %7353 = vmatprep.subr.bf16.mxu0 0
  %7354 = vmatpush1.bf16.msra.mxu0 0
  %7355 = vmatprep.subr.bf16.mxu0 0
  %7356 = vmatpush1.bf16.msra.mxu0 0
  %7357 = vmatprep.mubr.bf16.mxu0 0
  %7358 = vmatmul.mubr.bf16.gmra.mrb[0].mxu0 %v7146
  %v7359 = vpop.f32.mrb[0].mxu0
  %v7360 = vadd.f32 0.0, %v7359
  %v7361 = vpop.f32.mrb[0].mxu0
  %v7362 = vpop.f32.mrb[0].mxu0
  %v7363 = vadd.f32 0.0, %v7362
  %v7364 = vpop.f32.mrb[0].mxu0
  %7365 = vmatprep.mubr.bf16.mxu0 0
  %7366 = vmatmul.mubr.bf16.gmra.mrb[0].mxu0 %v7147
  %v7367 = vpop.f32.mrb[0].mxu0
  %v7368 = vadd.f32 0.0, %v7367
  %v7369 = vpop.f32.mrb[0].mxu0
  %v7370 = vpop.f32.mrb[0].mxu0
  %v7371 = vadd.f32 0.0, %v7370
  %v7372 = vpop.f32.mrb[0].mxu0
  %7373 = vdwg.mxu0
  %v7374 = vld [vmem:[%s39 + $0x80] sm:$0xf]
  %v7375 = vld [vmem:[%s39 + $0x84] sm:$0xf]
  %v7376 = vld [vmem:[%s39 + $0x88] sm:$0xf]
  %v7377 = vld [vmem:[%s39 + $0x8c] sm:$0xf]
  %v7378 = vld [vmem:[%s39 + $0x90] sm:$0xf]
  %v7379 = vld [vmem:[%s39 + $0x94] sm:$0xf]
  %v7380 = vld [vmem:[%s39 + $0x98] sm:$0xf]
  %v7381 = vld [vmem:[%s39 + $0x9c] sm:$0xf]
  %v7382 = vld [vmem:[%s39 + $0xa0] sm:$0xf]
  %v7383 = vld [vmem:[%s39 + $0xa4] sm:$0xf]
  %v7384 = vld [vmem:[%s39 + $0xa8] sm:$0xf]
  %v7385 = vld [vmem:[%s39 + $0xac] sm:$0xf]
  %v7386 = vld [vmem:[%s39 + $0xb0] sm:$0xf]
  %v7387 = vld [vmem:[%s39 + $0xb4] sm:$0xf]
  %v7388 = vld [vmem:[%s39 + $0xb8] sm:$0xf]
  %v7389 = vld [vmem:[%s39 + $0xbc] sm:$0xf]
  %v7406 = vunpack.c.l.b16 %v7374
  %v7407 = vunpack.c.l.b16 %v7375
  %v7408 = vunpack.c.l.b16 %v7376
  %v7409 = vunpack.c.l.b16 %v7377
  %v7410 = vunpack.c.l.b16 %v7378
  %v7411 = vunpack.c.l.b16 %v7379
  %v7412 = vunpack.c.l.b16 %v7380
  %v7413 = vunpack.c.l.b16 %v7381
  %v7414 = vunpack.c.l.b16 %v7382
  %v7415 = vunpack.c.l.b16 %v7383
  %v7416 = vunpack.c.l.b16 %v7384
  %v7417 = vunpack.c.l.b16 %v7385
  %v7418 = vunpack.c.l.b16 %v7386
  %v7419 = vunpack.c.l.b16 %v7387
  %v7420 = vunpack.c.l.b16 %v7388
  %v7421 = vunpack.c.l.b16 %v7389
  %v7422 = vpack.c.b16 %v7407, %v7406
  %v7423 = vpack.c.b16 %v7409, %v7408
  %v7424 = vpack.c.b16 %v7411, %v7410
  %v7425 = vpack.c.b16 %v7413, %v7412
  %v7426 = vpack.c.b16 %v7415, %v7414
  %v7427 = vpack.c.b16 %v7417, %v7416
  %v7428 = vpack.c.b16 %v7419, %v7418
  %v7429 = vpack.c.b16 %v7421, %v7420
  %7438 = vmatprep.subr.bf16.mxu0 0
  %7439 = vmatpush1.bf16.msra.mxu0 %v7422
  %7440 = vmatprep.subr.bf16.mxu0 0
  %7441 = vmatpush1.bf16.msra.mxu0 %v7423
  %7442 = vmatprep.subr.bf16.mxu0 0
  %7443 = vmatpush1.bf16.msra.mxu0 %v7424
  %7444 = vmatprep.subr.bf16.mxu0 0
  %7445 = vmatpush1.bf16.msra.mxu0 %v7425
  %7446 = vmatprep.subr.bf16.mxu0 0
  %7447 = vmatpush1.bf16.msra.mxu0 %v7426
  %7448 = vmatprep.subr.bf16.mxu0 0
  %7449 = vmatpush1.bf16.msra.mxu0 %v7427
  %7450 = vmatprep.subr.bf16.mxu0 0
  %7451 = vmatpush1.bf16.msra.mxu0 %v7428
  %7452 = vmatprep.subr.bf16.mxu0 0
  %7453 = vmatpush1.bf16.msra.mxu0 %v7429
  %7454 = vmatprep.subr.bf16.mxu0 0
  %7455 = vmatpush1.bf16.msra.mxu0 0
  %7456 = vmatprep.subr.bf16.mxu0 0
  %7457 = vmatpush1.bf16.msra.mxu0 0
  %7458 = vmatprep.subr.bf16.mxu0 0
  %7459 = vmatpush1.bf16.msra.mxu0 0
  %7460 = vmatprep.subr.bf16.mxu0 0
  %7461 = vmatpush1.bf16.msra.mxu0 0
  %7462 = vmatprep.subr.bf16.mxu0 0
  %7463 = vmatpush1.bf16.msra.mxu0 0
  %7464 = vmatprep.subr.bf16.mxu0 0
  %7465 = vmatpush1.bf16.msra.mxu0 0
  %7466 = vmatprep.subr.bf16.mxu0 0
  %7467 = vmatpush1.bf16.msra.mxu0 0
  %7468 = vmatprep.subr.bf16.mxu0 0
  %7469 = vmatpush1.bf16.msra.mxu0 0
  %7470 = vmatprep.mubr.bf16.mxu0 0
  %7471 = vmatmul.mubr.bf16.gmra.mrb[0].mxu0 %v7146
  %v7472 = vpop.f32.mrb[0].mxu0
  %v7473 = vadd.f32 0.0, %v7472
  %v7474 = vpop.f32.mrb[0].mxu0
  %v7475 = vpop.f32.mrb[0].mxu0
  %v7476 = vadd.f32 0.0, %v7475
  %v7477 = vpop.f32.mrb[0].mxu0
  %7478 = vmatprep.mubr.bf16.mxu0 0
  %7479 = vmatmul.mubr.bf16.gmra.mrb[0].mxu0 %v7147
  %v7480 = vpop.f32.mrb[0].mxu0
  %v7481 = vadd.f32 0.0, %v7480
  %v7482 = vpop.f32.mrb[0].mxu0
  %v7483 = vpop.f32.mrb[0].mxu0
  %v7484 = vadd.f32 0.0, %v7483
  %v7485 = vpop.f32.mrb[0].mxu0
  %7486 = vdwg.mxu0
  %v7489 = vrot.slane %v7360, 1
  %v7490 = vrot.slane %v7363, 1
  %v7491 = vsel %vm595, %v7489, %v7490
  %v7494 = vadd.f32 %v7247, %v7491
  %v7495 = vadd.f32 %v7250, %v7490
  %v7498 = vrot.slane %v7473, 2
  %v7499 = vrot.slane %v7476, 2
  %v7500 = vsel %vm650, %v7498, %v7499
  %v7503 = vadd.f32 %v7494, %v7500
  %v7504 = vadd.f32 %v7495, %v7499
  %v7507 = vrot.slane %v7368, 1
  %v7508 = vrot.slane %v7371, 1
  %v7509 = vsel %vm595, %v7507, %v7508
  %v7512 = vadd.f32 %v7255, %v7509
  %v7513 = vadd.f32 %v7258, %v7508
  %v7516 = vrot.slane %v7481, 2
  %v7517 = vrot.slane %v7484, 2
  %v7518 = vsel %vm650, %v7516, %v7517
  %v7521 = vadd.f32 %v7512, %v7518
  %v7522 = vadd.f32 %v7513, %v7517
  %v7525 = vrot.slane %v7521, 2
  %v7526 = vrot.slane %v7522, 2
  %v7527 = vsel %vm650, %v7525, %v7526
  %v7531 = vsel %vm650, %v7504, %v7525
  %v7534 = vrot.slane %v7142, 1
  %v7535 = vrot.slane %v7143, 1
  %v7536 = vsel %vm595, %v7534, %v7535
  %v7541 = vrot.slane %v7144, 3
  %v7542 = vrot.slane %v7145, 3
  %v7543 = vsel %vm2035, %v7541, %v7542
  %v7547 = vsel %vm650, %v7535, %v7541
  %v7548 = vpack.c.bf16 %v7531, %v7503
  %v7549 = vpack.c.bf16 %v7526, %v7527
  %v7550 = vld [vmem:[%s41] sm:$0xf]
  %v7551 = vld [vmem:[%s41 + $0x4] sm:$0xf]
  %v7552 = vld [vmem:[%s41 + $0x8] sm:$0xf]
  %v7553 = vld [vmem:[%s41 + $0xc] sm:$0xf]
  %v7554 = vmul.f32 %v7536, 0.66
  %v7555 = vmul.f32 %v7547, 0.66
  %v7556 = vmul.f32 %v7543, 0.66
  %v7557 = vmul.f32 %v7542, 0.66
  %v7562 = vunpack.c.l.b16 %v7550
  %v7563 = vunpack.c.l.b16 %v7551
  %v7564 = vunpack.c.l.b16 %v7552
  %v7565 = vunpack.c.l.b16 %v7553
  %v7566 = vpack.c.b16 %v7563, %v7562
  %v7567 = vpack.c.b16 %v7565, %v7564
  %v7571 = vsel %vm870, %v7548, 0
  %v7574 = vsel %vm870, %v7549, 0
  %7576 = vmatprep.subr.bf16.mxu0 0
  %7577 = vmatpush1.bf16.msra.mxu0 %v7566
  %7578 = vmatprep.subr.bf16.mxu0 0
  %7579 = vmatpush1.bf16.msra.mxu0 %v7567
  %7580 = vmatprep.subr.bf16.mxu0 0
  %7581 = vmatpush1.bf16.msra.mxu0 0
  %7582 = vmatprep.subr.bf16.mxu0 0
  %7583 = vmatpush1.bf16.msra.mxu0 0
  %7584 = vmatprep.subr.bf16.mxu0 0
  %7585 = vmatpush1.bf16.msra.mxu0 0
  %7586 = vmatprep.subr.bf16.mxu0 0
  %7587 = vmatpush1.bf16.msra.mxu0 0
  %7588 = vmatprep.subr.bf16.mxu0 0
  %7589 = vmatpush1.bf16.msra.mxu0 0
  %7590 = vmatprep.subr.bf16.mxu0 0
  %7591 = vmatpush1.bf16.msra.mxu0 0
  %7592 = vmatprep.subr.bf16.mxu0 0
  %7593 = vmatpush1.bf16.msra.mxu0 0
  %7594 = vmatprep.subr.bf16.mxu0 0
  %7595 = vmatpush1.bf16.msra.mxu0 0
  %7596 = vmatprep.subr.bf16.mxu0 0
  %7597 = vmatpush1.bf16.msra.mxu0 0
  %7598 = vmatprep.subr.bf16.mxu0 0
  %7599 = vmatpush1.bf16.msra.mxu0 0
  %7600 = vmatprep.subr.bf16.mxu0 0
  %7601 = vmatpush1.bf16.msra.mxu0 0
  %7602 = vmatprep.subr.bf16.mxu0 0
  %7603 = vmatpush1.bf16.msra.mxu0 0
  %7604 = vmatprep.subr.bf16.mxu0 0
  %7605 = vmatpush1.bf16.msra.mxu0 0
  %7606 = vmatprep.subr.bf16.mxu0 0
  %7607 = vmatpush1.bf16.msra.mxu0 0
  %7608 = vmatprep.mubr.bf16.mxu0 0
  %7609 = vmatmul.mubr.bf16.gmra.mrb[0].mxu0 %v7571
  %v7610 = vpop.f32.mrb[0].mxu0
  %v7611 = vadd.f32 %v7554, %v7610
  %v7612 = vpop.f32.mrb[0].mxu0
  %v7613 = vpop.f32.mrb[0].mxu0
  %v7614 = vadd.f32 %v7555, %v7613
  %v7615 = vpop.f32.mrb[0].mxu0
  %7616 = vmatprep.mubr.bf16.mxu0 0
  %7617 = vmatmul.mubr.bf16.gmra.mrb[0].mxu0 %v7574
  %v7618 = vpop.f32.mrb[0].mxu0
  %v7619 = vadd.f32 %v7556, %v7618
  %v7620 = vpop.f32.mrb[0].mxu0
  %v7621 = vpop.f32.mrb[0].mxu0
  %v7622 = vadd.f32 %v7557, %v7621
  %v7623 = vpop.f32.mrb[0].mxu0
  %7624 = vdwg.mxu0
  %v7625 = vadd.f32 %v7611, %v7614
  %v7626 = vadd.f32 %v7625, %v7619
  %v7627 = vsel %vm1043, %v7622, 0.0
  %v7628 = vadd.f32 %v7626, %v7627
  %v7629 = vrot.slane %v7628, 4
  %v7630 = vadd.f32 %v7628, %v7629
  %v7631 = vrot.slane %v7630, 2
  %v7632 = vadd.f32 %v7630, %v7631
  %v7633 = vrot.slane %v7632, 1
  %v7634 = vadd.f32 %v7632, %v7633
  %v7635 = vmul.f32 %v7611, %v7611
  %v7636 = vmul.f32 %v7614, %v7614
  %v7637 = vmul.f32 %v7619, %v7619
  %v7638 = vmul.f32 %v7622, %v7622
  %v7639 = vadd.f32 %v7635, %v7636
  %v7640 = vadd.f32 %v7639, %v7637
  %v7641 = vsel %vm1043, %v7638, 0.0
  %v7642 = vadd.f32 %v7640, %v7641
  %v7643 = vrot.slane %v7642, 4
  %v7644 = vadd.f32 %v7642, %v7643
  %v7645 = vrot.slane %v7644, 2
  %v7646 = vadd.f32 %v7644, %v7645
  %v7647 = vrot.slane %v7646, 1
  %v7648 = vadd.f32 %v7646, %v7647
  %v7649 = vmul.f32 %v7634, 0.035714287
  %v7650 = vmul.f32 %v7648, 0.035714287
  %v7651 = vmul.f32 %v7649, %v7649
  %v7652 = vsub.f32 %v7650, %v7651
  %v7653 = vmax.f32 %v7652, 0.0
  %v7654 = vadd.f32 %v7653, 1e-05
  %v7655 = vrsqrt.pop %v7654
  %v7656 = vsub.f32 %v7611, %v7649
  %v7657 = vsub.f32 %v7614, %v7649
  %v7658 = vsub.f32 %v7619, %v7649
  %v7659 = vsub.f32 %v7622, %v7649
  %v7660 = vmul.f32 %v7656, %v7655
  %v7661 = vmul.f32 %v7657, %v7655
  %v7662 = vmul.f32 %v7658, %v7655
  %v7663 = vmul.f32 %v7659, %v7655
  %v7664 = vmax.f32 %v7660, 0.0
  %v7665 = vmax.f32 %v7661, 0.0
  %v7666 = vmax.f32 %v7662, 0.0
  %v7667 = vmax.f32 %v7663, 0.0
  %v7668 = vpack.c.bf16 %v7665, %v7664
  %v7669 = vpack.c.bf16 %v7667, %v7666
  %v7670 = vld [vmem:[%s43] sm:$0xf]
  %v7671 = vld [vmem:[%s43 + $0x4] sm:$0xf]
  %v7672 = vld [vmem:[%s43 + $0x8] sm:$0xf]
  %v7673 = vld [vmem:[%s43 + $0xc] sm:$0xf]
  %v7674 = vld [vmem:[%s43 + $0x10] sm:$0xf]
  %v7675 = vld [vmem:[%s43 + $0x14] sm:$0xf]
  %v7676 = vld [vmem:[%s43 + $0x18] sm:$0xf]
  %v7677 = vld [vmem:[%s43 + $0x1c] sm:$0xf]
  %v7678 = vld [vmem:[%s43 + $0x20] sm:$0xf]
  %v7679 = vld [vmem:[%s43 + $0x24] sm:$0xf]
  %v7680 = vld [vmem:[%s43 + $0x28] sm:$0xf]
  %v7681 = vld [vmem:[%s43 + $0x2c] sm:$0xf]
  %v7682 = vld [vmem:[%s43 + $0x30] sm:$0xf]
  %v7683 = vld [vmem:[%s43 + $0x34] sm:$0xf]
  %v7684 = vld [vmem:[%s43 + $0x38] sm:$0xf]
  %v7685 = vld [vmem:[%s43 + $0x3c] sm:$0xf]
  %v7702 = vunpack.c.l.b16 %v7670
  %v7703 = vunpack.c.l.b16 %v7671
  %v7704 = vunpack.c.l.b16 %v7672
  %v7705 = vunpack.c.l.b16 %v7673
  %v7706 = vunpack.c.l.b16 %v7674
  %v7707 = vunpack.c.l.b16 %v7675
  %v7708 = vunpack.c.l.b16 %v7676
  %v7709 = vunpack.c.l.b16 %v7677
  %v7710 = vunpack.c.l.b16 %v7678
  %v7711 = vunpack.c.l.b16 %v7679
  %v7712 = vunpack.c.l.b16 %v7680
  %v7713 = vunpack.c.l.b16 %v7681
  %v7714 = vunpack.c.l.b16 %v7682
  %v7715 = vunpack.c.l.b16 %v7683
  %v7716 = vunpack.c.l.b16 %v7684
  %v7717 = vunpack.c.l.b16 %v7685
  %v7718 = vpack.c.b16 %v7703, %v7702
  %v7719 = vpack.c.b16 %v7705, %v7704
  %v7720 = vpack.c.b16 %v7707, %v7706
  %v7721 = vpack.c.b16 %v7709, %v7708
  %v7722 = vpack.c.b16 %v7711, %v7710
  %v7723 = vpack.c.b16 %v7713, %v7712
  %v7724 = vpack.c.b16 %v7715, %v7714
  %v7725 = vpack.c.b16 %v7717, %v7716
  %7734 = vmatprep.subr.bf16.mxu0 0
  %7735 = vmatpush1.bf16.msra.mxu0 %v7718
  %7736 = vmatprep.subr.bf16.mxu0 0
  %7737 = vmatpush1.bf16.msra.mxu0 %v7719
  %7738 = vmatprep.subr.bf16.mxu0 0
  %7739 = vmatpush1.bf16.msra.mxu0 %v7720
  %7740 = vmatprep.subr.bf16.mxu0 0
  %7741 = vmatpush1.bf16.msra.mxu0 %v7721
  %7742 = vmatprep.subr.bf16.mxu0 0
  %7743 = vmatpush1.bf16.msra.mxu0 %v7722
  %7744 = vmatprep.subr.bf16.mxu0 0
  %7745 = vmatpush1.bf16.msra.mxu0 %v7723
  %7746 = vmatprep.subr.bf16.mxu0 0
  %7747 = vmatpush1.bf16.msra.mxu0 %v7724
  %7748 = vmatprep.subr.bf16.mxu0 0
  %7749 = vmatpush1.bf16.msra.mxu0 %v7725
  %7750 = vmatprep.subr.bf16.mxu0 0
  %7751 = vmatpush1.bf16.msra.mxu0 0
  %7752 = vmatprep.subr.bf16.mxu0 0
  %7753 = vmatpush1.bf16.msra.mxu0 0
  %7754 = vmatprep.subr.bf16.mxu0 0
  %7755 = vmatpush1.bf16.msra.mxu0 0
  %7756 = vmatprep.subr.bf16.mxu0 0
  %7757 = vmatpush1.bf16.msra.mxu0 0
  %7758 = vmatprep.subr.bf16.mxu0 0
  %7759 = vmatpush1.bf16.msra.mxu0 0
  %7760 = vmatprep.subr.bf16.mxu0 0
  %7761 = vmatpush1.bf16.msra.mxu0 0
  %7762 = vmatprep.subr.bf16.mxu0 0
  %7763 = vmatpush1.bf16.msra.mxu0 0
  %7764 = vmatprep.subr.bf16.mxu0 0
  %7765 = vmatpush1.bf16.msra.mxu0 0
  %7766 = vmatprep.mubr.bf16.mxu0 0
  %7767 = vmatmul.mubr.bf16.gmra.mrb[0].mxu0 %v7668
  %v7768 = vpop.f32.mrb[0].mxu0
  %v7769 = vadd.f32 0.0, %v7768
  %v7770 = vpop.f32.mrb[0].mxu0
  %v7771 = vpop.f32.mrb[0].mxu0
  %v7772 = vadd.f32 0.0, %v7771
  %v7773 = vpop.f32.mrb[0].mxu0
  %7774 = vmatprep.mubr.bf16.mxu0 0
  %7775 = vmatmul.mubr.bf16.gmra.mrb[0].mxu0 %v7669
  %v7776 = vpop.f32.mrb[0].mxu0
  %v7777 = vadd.f32 0.0, %v7776
  %v7778 = vpop.f32.mrb[0].mxu0
  %v7779 = vpop.f32.mrb[0].mxu0
  %v7780 = vadd.f32 0.0, %v7779
  %v7781 = vpop.f32.mrb[0].mxu0
  %7782 = vdwg.mxu0
  %v7783 = vld [vmem:[%s43 + $0x40] sm:$0xf]
  %v7784 = vld [vmem:[%s43 + $0x44] sm:$0xf]
  %v7785 = vld [vmem:[%s43 + $0x48] sm:$0xf]
  %v7786 = vld [vmem:[%s43 + $0x4c] sm:$0xf]
  %v7787 = vld [vmem:[%s43 + $0x50] sm:$0xf]
  %v7788 = vld [vmem:[%s43 + $0x54] sm:$0xf]
  %v7789 = vld [vmem:[%s43 + $0x58] sm:$0xf]
  %v7790 = vld [vmem:[%s43 + $0x5c] sm:$0xf]
  %v7791 = vld [vmem:[%s43 + $0x60] sm:$0xf]
  %v7792 = vld [vmem:[%s43 + $0x64] sm:$0xf]
  %v7793 = vld [vmem:[%s43 + $0x68] sm:$0xf]
  %v7794 = vld [vmem:[%s43 + $0x6c] sm:$0xf]
  %v7795 = vld [vmem:[%s43 + $0x70] sm:$0xf]
  %v7796 = vld [vmem:[%s43 + $0x74] sm:$0xf]
  %v7797 = vld [vmem:[%s43 + $0x78] sm:$0xf]
  %v7798 = vld [vmem:[%s43 + $0x7c] sm:$0xf]
  %v7815 = vunpack.c.l.b16 %v7783
  %v7816 = vunpack.c.l.b16 %v7784
  %v7817 = vunpack.c.l.b16 %v7785
  %v7818 = vunpack.c.l.b16 %v7786
  %v7819 = vunpack.c.l.b16 %v7787
  %v7820 = vunpack.c.l.b16 %v7788
  %v7821 = vunpack.c.l.b16 %v7789
  %v7822 = vunpack.c.l.b16 %v7790
  %v7823 = vunpack.c.l.b16 %v7791
  %v7824 = vunpack.c.l.b16 %v7792
  %v7825 = vunpack.c.l.b16 %v7793
  %v7826 = vunpack.c.l.b16 %v7794
  %v7827 = vunpack.c.l.b16 %v7795
  %v7828 = vunpack.c.l.b16 %v7796
  %v7829 = vunpack.c.l.b16 %v7797
  %v7830 = vunpack.c.l.b16 %v7798
  %v7831 = vpack.c.b16 %v7816, %v7815
  %v7832 = vpack.c.b16 %v7818, %v7817
  %v7833 = vpack.c.b16 %v7820, %v7819
  %v7834 = vpack.c.b16 %v7822, %v7821
  %v7835 = vpack.c.b16 %v7824, %v7823
  %v7836 = vpack.c.b16 %v7826, %v7825
  %v7837 = vpack.c.b16 %v7828, %v7827
  %v7838 = vpack.c.b16 %v7830, %v7829
  %7847 = vmatprep.subr.bf16.mxu0 0
  %7848 = vmatpush1.bf16.msra.mxu0 %v7831
  %7849 = vmatprep.subr.bf16.mxu0 0
  %7850 = vmatpush1.bf16.msra.mxu0 %v7832
  %7851 = vmatprep.subr.bf16.mxu0 0
  %7852 = vmatpush1.bf16.msra.mxu0 %v7833
  %7853 = vmatprep.subr.bf16.mxu0 0
  %7854 = vmatpush1.bf16.msra.mxu0 %v7834
  %7855 = vmatprep.subr.bf16.mxu0 0
  %7856 = vmatpush1.bf16.msra.mxu0 %v7835
  %7857 = vmatprep.subr.bf16.mxu0 0
  %7858 = vmatpush1.bf16.msra.mxu0 %v7836
  %7859 = vmatprep.subr.bf16.mxu0 0
  %7860 = vmatpush1.bf16.msra.mxu0 %v7837
  %7861 = vmatprep.subr.bf16.mxu0 0
  %7862 = vmatpush1.bf16.msra.mxu0 %v7838
  %7863 = vmatprep.subr.bf16.mxu0 0
  %7864 = vmatpush1.bf16.msra.mxu0 0
  %7865 = vmatprep.subr.bf16.mxu0 0
  %7866 = vmatpush1.bf16.msra.mxu0 0
  %7867 = vmatprep.subr.bf16.mxu0 0
  %7868 = vmatpush1.bf16.msra.mxu0 0
  %7869 = vmatprep.subr.bf16.mxu0 0
  %7870 = vmatpush1.bf16.msra.mxu0 0
  %7871 = vmatprep.subr.bf16.mxu0 0
  %7872 = vmatpush1.bf16.msra.mxu0 0
  %7873 = vmatprep.subr.bf16.mxu0 0
  %7874 = vmatpush1.bf16.msra.mxu0 0
  %7875 = vmatprep.subr.bf16.mxu0 0
  %7876 = vmatpush1.bf16.msra.mxu0 0
  %7877 = vmatprep.subr.bf16.mxu0 0
  %7878 = vmatpush1.bf16.msra.mxu0 0
  %7879 = vmatprep.mubr.bf16.mxu0 0
  %7880 = vmatmul.mubr.bf16.gmra.mrb[0].mxu0 %v7668
  %v7881 = vpop.f32.mrb[0].mxu0
  %v7882 = vadd.f32 0.0, %v7881
  %v7883 = vpop.f32.mrb[0].mxu0
  %v7884 = vpop.f32.mrb[0].mxu0
  %v7885 = vadd.f32 0.0, %v7884
  %v7886 = vpop.f32.mrb[0].mxu0
  %7887 = vmatprep.mubr.bf16.mxu0 0
  %7888 = vmatmul.mubr.bf16.gmra.mrb[0].mxu0 %v7669
  %v7889 = vpop.f32.mrb[0].mxu0
  %v7890 = vadd.f32 0.0, %v7889
  %v7891 = vpop.f32.mrb[0].mxu0
  %v7892 = vpop.f32.mrb[0].mxu0
  %v7893 = vadd.f32 0.0, %v7892
  %v7894 = vpop.f32.mrb[0].mxu0
  %7895 = vdwg.mxu0
  %v7896 = vld [vmem:[%s43 + $0x80] sm:$0xf]
  %v7897 = vld [vmem:[%s43 + $0x84] sm:$0xf]
  %v7898 = vld [vmem:[%s43 + $0x88] sm:$0xf]
  %v7899 = vld [vmem:[%s43 + $0x8c] sm:$0xf]
  %v7900 = vld [vmem:[%s43 + $0x90] sm:$0xf]
  %v7901 = vld [vmem:[%s43 + $0x94] sm:$0xf]
  %v7902 = vld [vmem:[%s43 + $0x98] sm:$0xf]
  %v7903 = vld [vmem:[%s43 + $0x9c] sm:$0xf]
  %v7904 = vld [vmem:[%s43 + $0xa0] sm:$0xf]
  %v7905 = vld [vmem:[%s43 + $0xa4] sm:$0xf]
  %v7906 = vld [vmem:[%s43 + $0xa8] sm:$0xf]
  %v7907 = vld [vmem:[%s43 + $0xac] sm:$0xf]
  %v7908 = vld [vmem:[%s43 + $0xb0] sm:$0xf]
  %v7909 = vld [vmem:[%s43 + $0xb4] sm:$0xf]
  %v7910 = vld [vmem:[%s43 + $0xb8] sm:$0xf]
  %v7911 = vld [vmem:[%s43 + $0xbc] sm:$0xf]
  %v7928 = vunpack.c.l.b16 %v7896
  %v7929 = vunpack.c.l.b16 %v7897
  %v7930 = vunpack.c.l.b16 %v7898
  %v7931 = vunpack.c.l.b16 %v7899
  %v7932 = vunpack.c.l.b16 %v7900
  %v7933 = vunpack.c.l.b16 %v7901
  %v7934 = vunpack.c.l.b16 %v7902
  %v7935 = vunpack.c.l.b16 %v7903
  %v7936 = vunpack.c.l.b16 %v7904
  %v7937 = vunpack.c.l.b16 %v7905
  %v7938 = vunpack.c.l.b16 %v7906
  %v7939 = vunpack.c.l.b16 %v7907
  %v7940 = vunpack.c.l.b16 %v7908
  %v7941 = vunpack.c.l.b16 %v7909
  %v7942 = vunpack.c.l.b16 %v7910
  %v7943 = vunpack.c.l.b16 %v7911
  %v7944 = vpack.c.b16 %v7929, %v7928
  %v7945 = vpack.c.b16 %v7931, %v7930
  %v7946 = vpack.c.b16 %v7933, %v7932
  %v7947 = vpack.c.b16 %v7935, %v7934
  %v7948 = vpack.c.b16 %v7937, %v7936
  %v7949 = vpack.c.b16 %v7939, %v7938
  %v7950 = vpack.c.b16 %v7941, %v7940
  %v7951 = vpack.c.b16 %v7943, %v7942
  %7960 = vmatprep.subr.bf16.mxu0 0
  %7961 = vmatpush1.bf16.msra.mxu0 %v7944
  %7962 = vmatprep.subr.bf16.mxu0 0
  %7963 = vmatpush1.bf16.msra.mxu0 %v7945
  %7964 = vmatprep.subr.bf16.mxu0 0
  %7965 = vmatpush1.bf16.msra.mxu0 %v7946
  %7966 = vmatprep.subr.bf16.mxu0 0
  %7967 = vmatpush1.bf16.msra.mxu0 %v7947
  %7968 = vmatprep.subr.bf16.mxu0 0
  %7969 = vmatpush1.bf16.msra.mxu0 %v7948
  %7970 = vmatprep.subr.bf16.mxu0 0
  %7971 = vmatpush1.bf16.msra.mxu0 %v7949
  %7972 = vmatprep.subr.bf16.mxu0 0
  %7973 = vmatpush1.bf16.msra.mxu0 %v7950
  %7974 = vmatprep.subr.bf16.mxu0 0
  %7975 = vmatpush1.bf16.msra.mxu0 %v7951
  %7976 = vmatprep.subr.bf16.mxu0 0
  %7977 = vmatpush1.bf16.msra.mxu0 0
  %7978 = vmatprep.subr.bf16.mxu0 0
  %7979 = vmatpush1.bf16.msra.mxu0 0
  %7980 = vmatprep.subr.bf16.mxu0 0
  %7981 = vmatpush1.bf16.msra.mxu0 0
  %7982 = vmatprep.subr.bf16.mxu0 0
  %7983 = vmatpush1.bf16.msra.mxu0 0
  %7984 = vmatprep.subr.bf16.mxu0 0
  %7985 = vmatpush1.bf16.msra.mxu0 0
  %7986 = vmatprep.subr.bf16.mxu0 0
  %7987 = vmatpush1.bf16.msra.mxu0 0
  %7988 = vmatprep.subr.bf16.mxu0 0
  %7989 = vmatpush1.bf16.msra.mxu0 0
  %7990 = vmatprep.subr.bf16.mxu0 0
  %7991 = vmatpush1.bf16.msra.mxu0 0
  %7992 = vmatprep.mubr.bf16.mxu0 0
  %7993 = vmatmul.mubr.bf16.gmra.mrb[0].mxu0 %v7668
  %v7994 = vpop.f32.mrb[0].mxu0
  %v7995 = vadd.f32 0.0, %v7994
  %v7996 = vpop.f32.mrb[0].mxu0
  %v7997 = vpop.f32.mrb[0].mxu0
  %v7998 = vadd.f32 0.0, %v7997
  %v7999 = vpop.f32.mrb[0].mxu0
  %8000 = vmatprep.mubr.bf16.mxu0 0
  %8001 = vmatmul.mubr.bf16.gmra.mrb[0].mxu0 %v7669
  %v8002 = vpop.f32.mrb[0].mxu0
  %v8003 = vadd.f32 0.0, %v8002
  %v8004 = vpop.f32.mrb[0].mxu0
  %v8005 = vpop.f32.mrb[0].mxu0
  %v8006 = vadd.f32 0.0, %v8005
  %v8007 = vpop.f32.mrb[0].mxu0
  %8008 = vdwg.mxu0
  %v8011 = vrot.slane %v7882, 1
  %v8012 = vrot.slane %v7885, 1
  %v8013 = vsel %vm595, %v8011, %v8012
  %v8016 = vadd.f32 %v7769, %v8013
  %v8017 = vadd.f32 %v7772, %v8012
  %v8020 = vrot.slane %v7995, 2
  %v8021 = vrot.slane %v7998, 2
  %v8022 = vsel %vm650, %v8020, %v8021
  %v8025 = vadd.f32 %v8016, %v8022
  %v8026 = vadd.f32 %v8017, %v8021
  %v8029 = vrot.slane %v7890, 1
  %v8030 = vsel %vm595, %v8012, %v8029
  %v8031 = vrot.slane %v7893, 1
  %v8032 = vsel %vm595, %v8029, %v8031
  %v8036 = vadd.f32 %v7772, %v8030
  %v8037 = vadd.f32 %v7777, %v8032
  %v8038 = vadd.f32 %v7780, %v8031
  %v8041 = vrot.slane %v8003, 2
  %v8042 = vrot.slane %v8006, 2
  %v8043 = vsel %vm650, %v8041, %v8042
  %v8047 = vadd.f32 %v8036, %v8041
  %v8048 = vadd.f32 %v8037, %v8043
  %v8049 = vadd.f32 %v8038, %v8042
  %v8053 = vrot.slane %v8047, 2
  %v8054 = vrot.slane %v8048, 2
  %v8055 = vsel %vm650, %v8053, %v8054
  %v8056 = vrot.slane %v8049, 2
  %v8057 = vsel %vm650, %v8054, %v8056
  %v8060 = vsel %vm1043, %v8026, %v8055
  %v8063 = vrot.slane %v7664, 1
  %v8064 = vrot.slane %v7665, 1
  %v8065 = vsel %vm595, %v8063, %v8064
  %v8070 = vrot.slane %v7665, 3
  %v8071 = vrot.slane %v7666, 3
  %v8072 = vsel %vm2035, %v8070, %v8071
  %v8073 = vrot.slane %v7667, 3
  %v8074 = vsel %vm2035, %v8071, %v8073
  %v8077 = vsel %vm1043, %v8064, %v8072
  %v8078 = vpack.c.bf16 %v8060, %v8025
  %v8079 = vpack.c.bf16 %v8057, %v8057
  %v8080 = vld [vmem:[%s45] sm:$0xf]
  %v8081 = vld [vmem:[%s45 + $0x4] sm:$0xf]
  %v8082 = vld [vmem:[%s45 + $0x8] sm:$0xf]
  %v8083 = vld [vmem:[%s45 + $0xc] sm:$0xf]
  %v8084 = vmul.f32 %v8065, 0.66
  %v8085 = vmul.f32 %v8077, 0.66
  %v8086 = vmul.f32 %v8074, 0.66
  %v8091 = vunpack.c.l.b16 %v8080
  %v8092 = vunpack.c.l.b16 %v8081
  %v8093 = vunpack.c.l.b16 %v8082
  %v8094 = vunpack.c.l.b16 %v8083
  %v8095 = vpack.c.b16 %v8092, %v8091
  %v8096 = vpack.c.b16 %v8094, %v8093
  %v8100 = vsel %vm870, %v8078, 0
  %v8103 = vsel %vm870, %v8079, 0
  %8105 = vmatprep.subr.bf16.mxu0 0
  %8106 = vmatpush1.bf16.msra.mxu0 %v8095
  %8107 = vmatprep.subr.bf16.mxu0 0
  %8108 = vmatpush1.bf16.msra.mxu0 %v8096
  %8109 = vmatprep.subr.bf16.mxu0 0
  %8110 = vmatpush1.bf16.msra.mxu0 0
  %8111 = vmatprep.subr.bf16.mxu0 0
  %8112 = vmatpush1.bf16.msra.mxu0 0
  %8113 = vmatprep.subr.bf16.mxu0 0
  %8114 = vmatpush1.bf16.msra.mxu0 0
  %8115 = vmatprep.subr.bf16.mxu0 0
  %8116 = vmatpush1.bf16.msra.mxu0 0
  %8117 = vmatprep.subr.bf16.mxu0 0
  %8118 = vmatpush1.bf16.msra.mxu0 0
  %8119 = vmatprep.subr.bf16.mxu0 0
  %8120 = vmatpush1.bf16.msra.mxu0 0
  %8121 = vmatprep.subr.bf16.mxu0 0
  %8122 = vmatpush1.bf16.msra.mxu0 0
  %8123 = vmatprep.subr.bf16.mxu0 0
  %8124 = vmatpush1.bf16.msra.mxu0 0
  %8125 = vmatprep.subr.bf16.mxu0 0
  %8126 = vmatpush1.bf16.msra.mxu0 0
  %8127 = vmatprep.subr.bf16.mxu0 0
  %8128 = vmatpush1.bf16.msra.mxu0 0
  %8129 = vmatprep.subr.bf16.mxu0 0
  %8130 = vmatpush1.bf16.msra.mxu0 0
  %8131 = vmatprep.subr.bf16.mxu0 0
  %8132 = vmatpush1.bf16.msra.mxu0 0
  %8133 = vmatprep.subr.bf16.mxu0 0
  %8134 = vmatpush1.bf16.msra.mxu0 0
  %8135 = vmatprep.subr.bf16.mxu0 0
  %8136 = vmatpush1.bf16.msra.mxu0 0
  %8137 = vmatprep.mubr.bf16.mxu0 0
  %8138 = vmatmul.mubr.bf16.gmra.mrb[0].mxu0 %v8100
  %v8139 = vpop.f32.mrb[0].mxu0
  %v8140 = vadd.f32 %v8084, %v8139
  %v8141 = vpop.f32.mrb[0].mxu0
  %v8142 = vpop.f32.mrb[0].mxu0
  %v8143 = vadd.f32 %v8085, %v8142
  %v8144 = vpop.f32.mrb[0].mxu0
  %8145 = vmatprep.mubr.bf16.mxu0 0
  %8146 = vmatmul.mubr.bf16.gmra.mrb[0].mxu0 %v8103
  %v8147 = vpop.f32.mrb[0].mxu0
  %v8148 = vadd.f32 %v8086, %v8147
  %v8149 = vpop.f32.mrb[0].mxu0
  %v8150 = vpop.f32.mrb[0].mxu0
  %v8151 = vpop.f32.mrb[0].mxu0
  %8152 = vdwg.mxu0
  %v8153 = vadd.f32 %v8140, %v8143
  %v8154 = vadd.f32 %v8153, %v8148
  %v8155 = vrot.slane %v8154, 4
  %v8156 = vadd.f32 %v8154, %v8155
  %v8157 = vrot.slane %v8156, 2
  %v8158 = vadd.f32 %v8156, %v8157
  %v8159 = vrot.slane %v8158, 1
  %v8160 = vadd.f32 %v8158, %v8159
  %v8161 = vmul.f32 %v8140, %v8140
  %v8162 = vmul.f32 %v8143, %v8143
  %v8163 = vmul.f32 %v8148, %v8148
  %v8164 = vadd.f32 %v8161, %v8162
  %v8165 = vadd.f32 %v8164, %v8163
  %v8166 = vrot.slane %v8165, 4
  %v8167 = vadd.f32 %v8165, %v8166
  %v8168 = vrot.slane %v8167, 2
  %v8169 = vadd.f32 %v8167, %v8168
  %v8170 = vrot.slane %v8169, 1
  %v8171 = vadd.f32 %v8169, %v8170
  %v8172 = vmul.f32 %v8160, 0.041666668
  %v8173 = vmul.f32 %v8171, 0.041666668
  %v8174 = vmul.f32 %v8172, %v8172
  %v8175 = vsub.f32 %v8173, %v8174
  %v8176 = vmax.f32 %v8175, 0.0
  %v8177 = vadd.f32 %v8176, 1e-05
  %v8178 = vrsqrt.pop %v8177
  %v8179 = vsub.f32 %v8140, %v8172
  %v8180 = vsub.f32 %v8143, %v8172
  %v8181 = vsub.f32 %v8148, %v8172
  %v8182 = vmul.f32 %v8179, %v8178
  %v8183 = vmul.f32 %v8180, %v8178
  %v8184 = vmul.f32 %v8181, %v8178
  %v8185 = vmax.f32 %v8182, 0.0
  %v8186 = vmax.f32 %v8183, 0.0
  %v8187 = vmax.f32 %v8184, 0.0
  %v8188 = vpack.c.bf16 %v8186, %v8185
  %v8189 = vpack.c.bf16 %v8187, %v8187
  %v8190 = vld [vmem:[%s47] sm:$0xf]
  %v8191 = vld [vmem:[%s47 + $0x4] sm:$0xf]
  %v8192 = vld [vmem:[%s47 + $0x8] sm:$0xf]
  %v8193 = vld [vmem:[%s47 + $0xc] sm:$0xf]
  %v8194 = vld [vmem:[%s47 + $0x10] sm:$0xf]
  %v8195 = vld [vmem:[%s47 + $0x14] sm:$0xf]
  %v8196 = vld [vmem:[%s47 + $0x18] sm:$0xf]
  %v8197 = vld [vmem:[%s47 + $0x1c] sm:$0xf]
  %v8198 = vld [vmem:[%s47 + $0x20] sm:$0xf]
  %v8199 = vld [vmem:[%s47 + $0x24] sm:$0xf]
  %v8200 = vld [vmem:[%s47 + $0x28] sm:$0xf]
  %v8201 = vld [vmem:[%s47 + $0x2c] sm:$0xf]
  %v8202 = vld [vmem:[%s47 + $0x30] sm:$0xf]
  %v8203 = vld [vmem:[%s47 + $0x34] sm:$0xf]
  %v8204 = vld [vmem:[%s47 + $0x38] sm:$0xf]
  %v8205 = vld [vmem:[%s47 + $0x3c] sm:$0xf]
  %v8222 = vunpack.c.l.b16 %v8190
  %v8223 = vunpack.c.l.b16 %v8191
  %v8224 = vunpack.c.l.b16 %v8192
  %v8225 = vunpack.c.l.b16 %v8193
  %v8226 = vunpack.c.l.b16 %v8194
  %v8227 = vunpack.c.l.b16 %v8195
  %v8228 = vunpack.c.l.b16 %v8196
  %v8229 = vunpack.c.l.b16 %v8197
  %v8230 = vunpack.c.l.b16 %v8198
  %v8231 = vunpack.c.l.b16 %v8199
  %v8232 = vunpack.c.l.b16 %v8200
  %v8233 = vunpack.c.l.b16 %v8201
  %v8234 = vunpack.c.l.b16 %v8202
  %v8235 = vunpack.c.l.b16 %v8203
  %v8236 = vunpack.c.l.b16 %v8204
  %v8237 = vunpack.c.l.b16 %v8205
  %v8238 = vpack.c.b16 %v8223, %v8222
  %v8239 = vpack.c.b16 %v8225, %v8224
  %v8240 = vpack.c.b16 %v8227, %v8226
  %v8241 = vpack.c.b16 %v8229, %v8228
  %v8242 = vpack.c.b16 %v8231, %v8230
  %v8243 = vpack.c.b16 %v8233, %v8232
  %v8244 = vpack.c.b16 %v8235, %v8234
  %v8245 = vpack.c.b16 %v8237, %v8236
  %8254 = vmatprep.subr.bf16.mxu0 0
  %8255 = vmatpush1.bf16.msra.mxu0 %v8238
  %8256 = vmatprep.subr.bf16.mxu0 0
  %8257 = vmatpush1.bf16.msra.mxu0 %v8239
  %8258 = vmatprep.subr.bf16.mxu0 0
  %8259 = vmatpush1.bf16.msra.mxu0 %v8240
  %8260 = vmatprep.subr.bf16.mxu0 0
  %8261 = vmatpush1.bf16.msra.mxu0 %v8241
  %8262 = vmatprep.subr.bf16.mxu0 0
  %8263 = vmatpush1.bf16.msra.mxu0 %v8242
  %8264 = vmatprep.subr.bf16.mxu0 0
  %8265 = vmatpush1.bf16.msra.mxu0 %v8243
  %8266 = vmatprep.subr.bf16.mxu0 0
  %8267 = vmatpush1.bf16.msra.mxu0 %v8244
  %8268 = vmatprep.subr.bf16.mxu0 0
  %8269 = vmatpush1.bf16.msra.mxu0 %v8245
  %8270 = vmatprep.subr.bf16.mxu0 0
  %8271 = vmatpush1.bf16.msra.mxu0 0
  %8272 = vmatprep.subr.bf16.mxu0 0
  %8273 = vmatpush1.bf16.msra.mxu0 0
  %8274 = vmatprep.subr.bf16.mxu0 0
  %8275 = vmatpush1.bf16.msra.mxu0 0
  %8276 = vmatprep.subr.bf16.mxu0 0
  %8277 = vmatpush1.bf16.msra.mxu0 0
  %8278 = vmatprep.subr.bf16.mxu0 0
  %8279 = vmatpush1.bf16.msra.mxu0 0
  %8280 = vmatprep.subr.bf16.mxu0 0
  %8281 = vmatpush1.bf16.msra.mxu0 0
  %8282 = vmatprep.subr.bf16.mxu0 0
  %8283 = vmatpush1.bf16.msra.mxu0 0
  %8284 = vmatprep.subr.bf16.mxu0 0
  %8285 = vmatpush1.bf16.msra.mxu0 0
  %8286 = vmatprep.mubr.bf16.mxu0 0
  %8287 = vmatmul.mubr.bf16.gmra.mrb[0].mxu0 %v8188
  %v8288 = vpop.f32.mrb[0].mxu0
  %v8289 = vadd.f32 0.0, %v8288
  %v8290 = vpop.f32.mrb[0].mxu0
  %v8291 = vpop.f32.mrb[0].mxu0
  %v8292 = vadd.f32 0.0, %v8291
  %v8293 = vpop.f32.mrb[0].mxu0
  %8294 = vmatprep.mubr.bf16.mxu0 0
  %8295 = vmatmul.mubr.bf16.gmra.mrb[0].mxu0 %v8189
  %v8296 = vpop.f32.mrb[0].mxu0
  %v8297 = vadd.f32 0.0, %v8296
  %v8298 = vpop.f32.mrb[0].mxu0
  %v8299 = vpop.f32.mrb[0].mxu0
  %v8300 = vpop.f32.mrb[0].mxu0
  %8301 = vdwg.mxu0
  %v8302 = vld [vmem:[%s47 + $0x40] sm:$0xf]
  %v8303 = vld [vmem:[%s47 + $0x44] sm:$0xf]
  %v8304 = vld [vmem:[%s47 + $0x48] sm:$0xf]
  %v8305 = vld [vmem:[%s47 + $0x4c] sm:$0xf]
  %v8306 = vld [vmem:[%s47 + $0x50] sm:$0xf]
  %v8307 = vld [vmem:[%s47 + $0x54] sm:$0xf]
  %v8308 = vld [vmem:[%s47 + $0x58] sm:$0xf]
  %v8309 = vld [vmem:[%s47 + $0x5c] sm:$0xf]
  %v8310 = vld [vmem:[%s47 + $0x60] sm:$0xf]
  %v8311 = vld [vmem:[%s47 + $0x64] sm:$0xf]
  %v8312 = vld [vmem:[%s47 + $0x68] sm:$0xf]
  %v8313 = vld [vmem:[%s47 + $0x6c] sm:$0xf]
  %v8314 = vld [vmem:[%s47 + $0x70] sm:$0xf]
  %v8315 = vld [vmem:[%s47 + $0x74] sm:$0xf]
  %v8316 = vld [vmem:[%s47 + $0x78] sm:$0xf]
  %v8317 = vld [vmem:[%s47 + $0x7c] sm:$0xf]
  %v8334 = vunpack.c.l.b16 %v8302
  %v8335 = vunpack.c.l.b16 %v8303
  %v8336 = vunpack.c.l.b16 %v8304
  %v8337 = vunpack.c.l.b16 %v8305
  %v8338 = vunpack.c.l.b16 %v8306
  %v8339 = vunpack.c.l.b16 %v8307
  %v8340 = vunpack.c.l.b16 %v8308
  %v8341 = vunpack.c.l.b16 %v8309
  %v8342 = vunpack.c.l.b16 %v8310
  %v8343 = vunpack.c.l.b16 %v8311
  %v8344 = vunpack.c.l.b16 %v8312
  %v8345 = vunpack.c.l.b16 %v8313
  %v8346 = vunpack.c.l.b16 %v8314
  %v8347 = vunpack.c.l.b16 %v8315
  %v8348 = vunpack.c.l.b16 %v8316
  %v8349 = vunpack.c.l.b16 %v8317
  %v8350 = vpack.c.b16 %v8335, %v8334
  %v8351 = vpack.c.b16 %v8337, %v8336
  %v8352 = vpack.c.b16 %v8339, %v8338
  %v8353 = vpack.c.b16 %v8341, %v8340
  %v8354 = vpack.c.b16 %v8343, %v8342
  %v8355 = vpack.c.b16 %v8345, %v8344
  %v8356 = vpack.c.b16 %v8347, %v8346
  %v8357 = vpack.c.b16 %v8349, %v8348
  %8366 = vmatprep.subr.bf16.mxu0 0
  %8367 = vmatpush1.bf16.msra.mxu0 %v8350
  %8368 = vmatprep.subr.bf16.mxu0 0
  %8369 = vmatpush1.bf16.msra.mxu0 %v8351
  %8370 = vmatprep.subr.bf16.mxu0 0
  %8371 = vmatpush1.bf16.msra.mxu0 %v8352
  %8372 = vmatprep.subr.bf16.mxu0 0
  %8373 = vmatpush1.bf16.msra.mxu0 %v8353
  %8374 = vmatprep.subr.bf16.mxu0 0
  %8375 = vmatpush1.bf16.msra.mxu0 %v8354
  %8376 = vmatprep.subr.bf16.mxu0 0
  %8377 = vmatpush1.bf16.msra.mxu0 %v8355
  %8378 = vmatprep.subr.bf16.mxu0 0
  %8379 = vmatpush1.bf16.msra.mxu0 %v8356
  %8380 = vmatprep.subr.bf16.mxu0 0
  %8381 = vmatpush1.bf16.msra.mxu0 %v8357
  %8382 = vmatprep.subr.bf16.mxu0 0
  %8383 = vmatpush1.bf16.msra.mxu0 0
  %8384 = vmatprep.subr.bf16.mxu0 0
  %8385 = vmatpush1.bf16.msra.mxu0 0
  %8386 = vmatprep.subr.bf16.mxu0 0
  %8387 = vmatpush1.bf16.msra.mxu0 0
  %8388 = vmatprep.subr.bf16.mxu0 0
  %8389 = vmatpush1.bf16.msra.mxu0 0
  %8390 = vmatprep.subr.bf16.mxu0 0
  %8391 = vmatpush1.bf16.msra.mxu0 0
  %8392 = vmatprep.subr.bf16.mxu0 0
  %8393 = vmatpush1.bf16.msra.mxu0 0
  %8394 = vmatprep.subr.bf16.mxu0 0
  %8395 = vmatpush1.bf16.msra.mxu0 0
  %8396 = vmatprep.subr.bf16.mxu0 0
  %8397 = vmatpush1.bf16.msra.mxu0 0
  %8398 = vmatprep.mubr.bf16.mxu0 0
  %8399 = vmatmul.mubr.bf16.gmra.mrb[0].mxu0 %v8188
  %v8400 = vpop.f32.mrb[0].mxu0
  %v8401 = vadd.f32 0.0, %v8400
  %v8402 = vpop.f32.mrb[0].mxu0
  %v8403 = vpop.f32.mrb[0].mxu0
  %v8404 = vadd.f32 0.0, %v8403
  %v8405 = vpop.f32.mrb[0].mxu0
  %8406 = vmatprep.mubr.bf16.mxu0 0
  %8407 = vmatmul.mubr.bf16.gmra.mrb[0].mxu0 %v8189
  %v8408 = vpop.f32.mrb[0].mxu0
  %v8409 = vadd.f32 0.0, %v8408
  %v8410 = vpop.f32.mrb[0].mxu0
  %v8411 = vpop.f32.mrb[0].mxu0
  %v8412 = vpop.f32.mrb[0].mxu0
  %8413 = vdwg.mxu0
  %v8414 = vld [vmem:[%s47 + $0x80] sm:$0xf]
  %v8415 = vld [vmem:[%s47 + $0x84] sm:$0xf]
  %v8416 = vld [vmem:[%s47 + $0x88] sm:$0xf]
  %v8417 = vld [vmem:[%s47 + $0x8c] sm:$0xf]
  %v8418 = vld [vmem:[%s47 + $0x90] sm:$0xf]
  %v8419 = vld [vmem:[%s47 + $0x94] sm:$0xf]
  %v8420 = vld [vmem:[%s47 + $0x98] sm:$0xf]
  %v8421 = vld [vmem:[%s47 + $0x9c] sm:$0xf]
  %v8422 = vld [vmem:[%s47 + $0xa0] sm:$0xf]
  %v8423 = vld [vmem:[%s47 + $0xa4] sm:$0xf]
  %v8424 = vld [vmem:[%s47 + $0xa8] sm:$0xf]
  %v8425 = vld [vmem:[%s47 + $0xac] sm:$0xf]
  %v8426 = vld [vmem:[%s47 + $0xb0] sm:$0xf]
  %v8427 = vld [vmem:[%s47 + $0xb4] sm:$0xf]
  %v8428 = vld [vmem:[%s47 + $0xb8] sm:$0xf]
  %v8429 = vld [vmem:[%s47 + $0xbc] sm:$0xf]
  %v8446 = vunpack.c.l.b16 %v8414
  %v8447 = vunpack.c.l.b16 %v8415
  %v8448 = vunpack.c.l.b16 %v8416
  %v8449 = vunpack.c.l.b16 %v8417
  %v8450 = vunpack.c.l.b16 %v8418
  %v8451 = vunpack.c.l.b16 %v8419
  %v8452 = vunpack.c.l.b16 %v8420
  %v8453 = vunpack.c.l.b16 %v8421
  %v8454 = vunpack.c.l.b16 %v8422
  %v8455 = vunpack.c.l.b16 %v8423
  %v8456 = vunpack.c.l.b16 %v8424
  %v8457 = vunpack.c.l.b16 %v8425
  %v8458 = vunpack.c.l.b16 %v8426
  %v8459 = vunpack.c.l.b16 %v8427
  %v8460 = vunpack.c.l.b16 %v8428
  %v8461 = vunpack.c.l.b16 %v8429
  %v8462 = vpack.c.b16 %v8447, %v8446
  %v8463 = vpack.c.b16 %v8449, %v8448
  %v8464 = vpack.c.b16 %v8451, %v8450
  %v8465 = vpack.c.b16 %v8453, %v8452
  %v8466 = vpack.c.b16 %v8455, %v8454
  %v8467 = vpack.c.b16 %v8457, %v8456
  %v8468 = vpack.c.b16 %v8459, %v8458
  %v8469 = vpack.c.b16 %v8461, %v8460
  %8478 = vmatprep.subr.bf16.mxu0 0
  %8479 = vmatpush1.bf16.msra.mxu0 %v8462
  %8480 = vmatprep.subr.bf16.mxu0 0
  %8481 = vmatpush1.bf16.msra.mxu0 %v8463
  %8482 = vmatprep.subr.bf16.mxu0 0
  %8483 = vmatpush1.bf16.msra.mxu0 %v8464
  %8484 = vmatprep.subr.bf16.mxu0 0
  %8485 = vmatpush1.bf16.msra.mxu0 %v8465
  %8486 = vmatprep.subr.bf16.mxu0 0
  %8487 = vmatpush1.bf16.msra.mxu0 %v8466
  %8488 = vmatprep.subr.bf16.mxu0 0
  %8489 = vmatpush1.bf16.msra.mxu0 %v8467
  %8490 = vmatprep.subr.bf16.mxu0 0
  %8491 = vmatpush1.bf16.msra.mxu0 %v8468
  %8492 = vmatprep.subr.bf16.mxu0 0
  %8493 = vmatpush1.bf16.msra.mxu0 %v8469
  %8494 = vmatprep.subr.bf16.mxu0 0
  %8495 = vmatpush1.bf16.msra.mxu0 0
  %8496 = vmatprep.subr.bf16.mxu0 0
  %8497 = vmatpush1.bf16.msra.mxu0 0
  %8498 = vmatprep.subr.bf16.mxu0 0
  %8499 = vmatpush1.bf16.msra.mxu0 0
  %8500 = vmatprep.subr.bf16.mxu0 0
  %8501 = vmatpush1.bf16.msra.mxu0 0
  %8502 = vmatprep.subr.bf16.mxu0 0
  %8503 = vmatpush1.bf16.msra.mxu0 0
  %8504 = vmatprep.subr.bf16.mxu0 0
  %8505 = vmatpush1.bf16.msra.mxu0 0
  %8506 = vmatprep.subr.bf16.mxu0 0
  %8507 = vmatpush1.bf16.msra.mxu0 0
  %8508 = vmatprep.subr.bf16.mxu0 0
  %8509 = vmatpush1.bf16.msra.mxu0 0
  %8510 = vmatprep.mubr.bf16.mxu0 0
  %8511 = vmatmul.mubr.bf16.gmra.mrb[0].mxu0 %v8188
  %v8512 = vpop.f32.mrb[0].mxu0
  %v8513 = vadd.f32 0.0, %v8512
  %v8514 = vpop.f32.mrb[0].mxu0
  %v8515 = vpop.f32.mrb[0].mxu0
  %v8516 = vadd.f32 0.0, %v8515
  %v8517 = vpop.f32.mrb[0].mxu0
  %8518 = vmatprep.mubr.bf16.mxu0 0
  %8519 = vmatmul.mubr.bf16.gmra.mrb[0].mxu0 %v8189
  %v8520 = vpop.f32.mrb[0].mxu0
  %v8521 = vadd.f32 0.0, %v8520
  %v8522 = vpop.f32.mrb[0].mxu0
  %v8523 = vpop.f32.mrb[0].mxu0
  %v8524 = vpop.f32.mrb[0].mxu0
  %8525 = vdwg.mxu0
  %v8528 = vrot.slane %v8401, 1
  %v8529 = vrot.slane %v8404, 1
  %v8530 = vsel %vm595, %v8528, %v8529
  %v8533 = vadd.f32 %v8289, %v8530
  %v8534 = vadd.f32 %v8292, %v8529
  %v8537 = vrot.slane %v8513, 2
  %v8538 = vrot.slane %v8516, 2
  %v8539 = vsel %vm650, %v8537, %v8538
  %v8542 = vadd.f32 %v8533, %v8539
  %v8543 = vadd.f32 %v8534, %v8538
  %v8545 = vrot.slane %v8409, 1
  %v8546 = vsel %vm595, %v8529, %v8545
  %v8549 = vadd.f32 %v8292, %v8546
  %v8550 = vadd.f32 %v8297, %v8545
  %v8552 = vrot.slane %v8521, 2
  %v8553 = vsel %vm650, %v8538, %v8552
  %v8556 = vadd.f32 %v8549, %v8553
  %v8557 = vadd.f32 %v8550, %v8552
  %v8560 = vrot.slane %v8556, 2
  %v8561 = vrot.slane %v8557, 2
  %v8562 = vsel %vm650, %v8560, %v8561
  %v8565 = vsel %vm841, %v8543, %v8562
  %v8568 = vrot.slane %v8185, 1
  %v8569 = vrot.slane %v8186, 1
  %v8570 = vsel %vm595, %v8568, %v8569
  %v8574 = vrot.slane %v8186, 3
  %v8575 = vrot.slane %v8187, 3
  %v8576 = vsel %vm2035, %v8574, %v8575
  %v8579 = vsel %vm841, %v8569, %v8576
  %v8580 = vpack.c.bf16 %v8565, %v8542
  %v8581 = vpack.c.bf16 %v8561, %v8561
  %v8582 = vld [vmem:[%s49] sm:$0xf]
  %v8583 = vld [vmem:[%s49 + $0x4] sm:$0xf]
  %v8584 = vld [vmem:[%s49 + $0x8] sm:$0xf]
  %v8585 = vld [vmem:[%s49 + $0xc] sm:$0xf]
  %v8586 = vmul.f32 %v8570, 0.66
  %v8587 = vmul.f32 %v8579, 0.66
  %v8588 = vmul.f32 %v8575, 0.66
  %v8593 = vunpack.c.l.b16 %v8582
  %v8594 = vunpack.c.l.b16 %v8583
  %v8595 = vunpack.c.l.b16 %v8584
  %v8596 = vunpack.c.l.b16 %v8585
  %v8597 = vpack.c.b16 %v8594, %v8593
  %v8598 = vpack.c.b16 %v8596, %v8595
  %v8602 = vsel %vm870, %v8580, 0
  %v8605 = vsel %vm870, %v8581, 0
  %8607 = vmatprep.subr.bf16.mxu0 0
  %8608 = vmatpush1.bf16.msra.mxu0 %v8597
  %8609 = vmatprep.subr.bf16.mxu0 0
  %8610 = vmatpush1.bf16.msra.mxu0 %v8598
  %8611 = vmatprep.subr.bf16.mxu0 0
  %8612 = vmatpush1.bf16.msra.mxu0 0
  %8613 = vmatprep.subr.bf16.mxu0 0
  %8614 = vmatpush1.bf16.msra.mxu0 0
  %8615 = vmatprep.subr.bf16.mxu0 0
  %8616 = vmatpush1.bf16.msra.mxu0 0
  %8617 = vmatprep.subr.bf16.mxu0 0
  %8618 = vmatpush1.bf16.msra.mxu0 0
  %8619 = vmatprep.subr.bf16.mxu0 0
  %8620 = vmatpush1.bf16.msra.mxu0 0
  %8621 = vmatprep.subr.bf16.mxu0 0
  %8622 = vmatpush1.bf16.msra.mxu0 0
  %8623 = vmatprep.subr.bf16.mxu0 0
  %8624 = vmatpush1.bf16.msra.mxu0 0
  %8625 = vmatprep.subr.bf16.mxu0 0
  %8626 = vmatpush1.bf16.msra.mxu0 0
  %8627 = vmatprep.subr.bf16.mxu0 0
  %8628 = vmatpush1.bf16.msra.mxu0 0
  %8629 = vmatprep.subr.bf16.mxu0 0
  %8630 = vmatpush1.bf16.msra.mxu0 0
  %8631 = vmatprep.subr.bf16.mxu0 0
  %8632 = vmatpush1.bf16.msra.mxu0 0
  %8633 = vmatprep.subr.bf16.mxu0 0
  %8634 = vmatpush1.bf16.msra.mxu0 0
  %8635 = vmatprep.subr.bf16.mxu0 0
  %8636 = vmatpush1.bf16.msra.mxu0 0
  %8637 = vmatprep.subr.bf16.mxu0 0
  %8638 = vmatpush1.bf16.msra.mxu0 0
  %8639 = vmatprep.mubr.bf16.mxu0 0
  %8640 = vmatmul.mubr.bf16.gmra.mrb[0].mxu0 %v8602
  %v8641 = vpop.f32.mrb[0].mxu0
  %v8642 = vadd.f32 %v8586, %v8641
  %v8643 = vpop.f32.mrb[0].mxu0
  %v8644 = vpop.f32.mrb[0].mxu0
  %v8645 = vadd.f32 %v8587, %v8644
  %v8646 = vpop.f32.mrb[0].mxu0
  %8647 = vmatprep.mubr.bf16.mxu0 0
  %8648 = vmatmul.mubr.bf16.gmra.mrb[0].mxu0 %v8605
  %v8649 = vpop.f32.mrb[0].mxu0
  %v8650 = vadd.f32 %v8588, %v8649
  %v8651 = vpop.f32.mrb[0].mxu0
  %v8652 = vpop.f32.mrb[0].mxu0
  %v8653 = vpop.f32.mrb[0].mxu0
  %8654 = vdwg.mxu0
  %v8655 = vadd.f32 %v8642, %v8645
  %v8656 = vsel %vm1043, %v8650, 0.0
  %v8657 = vadd.f32 %v8655, %v8656
  %v8658 = vrot.slane %v8657, 4
  %v8659 = vadd.f32 %v8657, %v8658
  %v8660 = vrot.slane %v8659, 2
  %v8661 = vadd.f32 %v8659, %v8660
  %v8662 = vrot.slane %v8661, 1
  %v8663 = vadd.f32 %v8661, %v8662
  %v8664 = vmul.f32 %v8642, %v8642
  %v8665 = vmul.f32 %v8645, %v8645
  %v8666 = vmul.f32 %v8650, %v8650
  %v8667 = vadd.f32 %v8664, %v8665
  %v8668 = vsel %vm1043, %v8666, 0.0
  %v8669 = vadd.f32 %v8667, %v8668
  %v8670 = vrot.slane %v8669, 4
  %v8671 = vadd.f32 %v8669, %v8670
  %v8672 = vrot.slane %v8671, 2
  %v8673 = vadd.f32 %v8671, %v8672
  %v8674 = vrot.slane %v8673, 1
  %v8675 = vadd.f32 %v8673, %v8674
  %v8676 = vmul.f32 %v8663, 0.05
  %v8677 = vmul.f32 %v8675, 0.05
  %v8678 = vmul.f32 %v8676, %v8676
  %v8679 = vsub.f32 %v8677, %v8678
  %v8680 = vmax.f32 %v8679, 0.0
  %v8681 = vadd.f32 %v8680, 1e-05
  %v8682 = vrsqrt.pop %v8681
  %v8683 = vsub.f32 %v8642, %v8676
  %v8684 = vsub.f32 %v8645, %v8676
  %v8685 = vsub.f32 %v8650, %v8676
  %v8686 = vmul.f32 %v8683, %v8682
  %v8687 = vmul.f32 %v8684, %v8682
  %v8688 = vmul.f32 %v8685, %v8682
  %v8689 = vmax.f32 %v8686, 0.0
  %v8690 = vmax.f32 %v8687, 0.0
  %v8691 = vmax.f32 %v8688, 0.0
  %v8692 = vpack.c.bf16 %v8690, %v8689
  %v8693 = vpack.c.bf16 %v8691, %v8691
  %v8694 = vld [vmem:[%s51] sm:$0xf]
  %v8695 = vld [vmem:[%s51 + $0x4] sm:$0xf]
  %v8696 = vld [vmem:[%s51 + $0x8] sm:$0xf]
  %v8697 = vld [vmem:[%s51 + $0xc] sm:$0xf]
  %v8698 = vld [vmem:[%s51 + $0x10] sm:$0xf]
  %v8699 = vld [vmem:[%s51 + $0x14] sm:$0xf]
  %v8700 = vld [vmem:[%s51 + $0x18] sm:$0xf]
  %v8701 = vld [vmem:[%s51 + $0x1c] sm:$0xf]
  %v8702 = vld [vmem:[%s51 + $0x20] sm:$0xf]
  %v8703 = vld [vmem:[%s51 + $0x24] sm:$0xf]
  %v8704 = vld [vmem:[%s51 + $0x28] sm:$0xf]
  %v8705 = vld [vmem:[%s51 + $0x2c] sm:$0xf]
  %v8706 = vld [vmem:[%s51 + $0x30] sm:$0xf]
  %v8707 = vld [vmem:[%s51 + $0x34] sm:$0xf]
  %v8708 = vld [vmem:[%s51 + $0x38] sm:$0xf]
  %v8709 = vld [vmem:[%s51 + $0x3c] sm:$0xf]
  %v8726 = vunpack.c.l.b16 %v8694
  %v8727 = vunpack.c.l.b16 %v8695
  %v8728 = vunpack.c.l.b16 %v8696
  %v8729 = vunpack.c.l.b16 %v8697
  %v8730 = vunpack.c.l.b16 %v8698
  %v8731 = vunpack.c.l.b16 %v8699
  %v8732 = vunpack.c.l.b16 %v8700
  %v8733 = vunpack.c.l.b16 %v8701
  %v8734 = vunpack.c.l.b16 %v8702
  %v8735 = vunpack.c.l.b16 %v8703
  %v8736 = vunpack.c.l.b16 %v8704
  %v8737 = vunpack.c.l.b16 %v8705
  %v8738 = vunpack.c.l.b16 %v8706
  %v8739 = vunpack.c.l.b16 %v8707
  %v8740 = vunpack.c.l.b16 %v8708
  %v8741 = vunpack.c.l.b16 %v8709
  %v8742 = vpack.c.b16 %v8727, %v8726
  %v8743 = vpack.c.b16 %v8729, %v8728
  %v8744 = vpack.c.b16 %v8731, %v8730
  %v8745 = vpack.c.b16 %v8733, %v8732
  %v8746 = vpack.c.b16 %v8735, %v8734
  %v8747 = vpack.c.b16 %v8737, %v8736
  %v8748 = vpack.c.b16 %v8739, %v8738
  %v8749 = vpack.c.b16 %v8741, %v8740
  %8758 = vmatprep.subr.bf16.mxu0 0
  %8759 = vmatpush1.bf16.msra.mxu0 %v8742
  %8760 = vmatprep.subr.bf16.mxu0 0
  %8761 = vmatpush1.bf16.msra.mxu0 %v8743
  %8762 = vmatprep.subr.bf16.mxu0 0
  %8763 = vmatpush1.bf16.msra.mxu0 %v8744
  %8764 = vmatprep.subr.bf16.mxu0 0
  %8765 = vmatpush1.bf16.msra.mxu0 %v8745
  %8766 = vmatprep.subr.bf16.mxu0 0
  %8767 = vmatpush1.bf16.msra.mxu0 %v8746
  %8768 = vmatprep.subr.bf16.mxu0 0
  %8769 = vmatpush1.bf16.msra.mxu0 %v8747
  %8770 = vmatprep.subr.bf16.mxu0 0
  %8771 = vmatpush1.bf16.msra.mxu0 %v8748
  %8772 = vmatprep.subr.bf16.mxu0 0
  %8773 = vmatpush1.bf16.msra.mxu0 %v8749
  %8774 = vmatprep.subr.bf16.mxu0 0
  %8775 = vmatpush1.bf16.msra.mxu0 0
  %8776 = vmatprep.subr.bf16.mxu0 0
  %8777 = vmatpush1.bf16.msra.mxu0 0
  %8778 = vmatprep.subr.bf16.mxu0 0
  %8779 = vmatpush1.bf16.msra.mxu0 0
  %8780 = vmatprep.subr.bf16.mxu0 0
  %8781 = vmatpush1.bf16.msra.mxu0 0
  %8782 = vmatprep.subr.bf16.mxu0 0
  %8783 = vmatpush1.bf16.msra.mxu0 0
  %8784 = vmatprep.subr.bf16.mxu0 0
  %8785 = vmatpush1.bf16.msra.mxu0 0
  %8786 = vmatprep.subr.bf16.mxu0 0
  %8787 = vmatpush1.bf16.msra.mxu0 0
  %8788 = vmatprep.subr.bf16.mxu0 0
  %8789 = vmatpush1.bf16.msra.mxu0 0
  %8790 = vmatprep.mubr.bf16.mxu0 0
  %8791 = vmatmul.mubr.bf16.gmra.mrb[0].mxu0 %v8692
  %v8792 = vpop.f32.mrb[0].mxu0
  %v8793 = vadd.f32 0.0, %v8792
  %v8794 = vpop.f32.mrb[0].mxu0
  %v8795 = vpop.f32.mrb[0].mxu0
  %v8796 = vadd.f32 0.0, %v8795
  %v8797 = vpop.f32.mrb[0].mxu0
  %8798 = vmatprep.mubr.bf16.mxu0 0
  %8799 = vmatmul.mubr.bf16.gmra.mrb[0].mxu0 %v8693
  %v8800 = vpop.f32.mrb[0].mxu0
  %v8801 = vadd.f32 0.0, %v8800
  %v8802 = vpop.f32.mrb[0].mxu0
  %v8803 = vpop.f32.mrb[0].mxu0
  %v8804 = vpop.f32.mrb[0].mxu0
  %8805 = vdwg.mxu0
  %v8806 = vpack.c.bf16 %v8796, %v8793
  %v8807 = vpack.c.bf16 %v8801, %v8801
  %v8808 = vld [vmem:[%s53] sm:$0xff]
  %v8809 = vld [vmem:[%s53 + $0x8] sm:$0xff]
  %v8810 = vld [vmem:[%s53 + $0x10] sm:$0xff]
  %v8811 = vld [vmem:[%s53 + $0x18] sm:$0xff]
  %v8812 = vld [vmem:[%s53 + $0x20] sm:$0xff]
  %v8813 = vld [vmem:[%s53 + $0x28] sm:$0xff]
  %v8814 = vld [vmem:[%s53 + $0x30] sm:$0xff]
  %v8815 = vld [vmem:[%s53 + $0x38] sm:$0xff]
  %v8816 = vld [vmem:[%s53 + $0x40] sm:$0xff]
  %v8817 = vld [vmem:[%s53 + $0x48] sm:$0xff]
  %v8818 = vld [vmem:[%s53 + $0x50] sm:$0xff]
  %v8819 = vld [vmem:[%s53 + $0x58] sm:$0xff]
  %v8820 = vld [vmem:[%s53 + $0x60] sm:$0xff]
  %v8821 = vld [vmem:[%s53 + $0x68] sm:$0xff]
  %v8822 = vld [vmem:[%s53 + $0x70] sm:$0xff]
  %v8823 = vld [vmem:[%s53 + $0x78] sm:$0xff]
  %v8824 = vmul.f32 %v8689, 0.66
  %v8825 = vmul.f32 %v8690, 0.66
  %v8826 = vmul.f32 %v8691, 0.66
  %v8843 = vunpack.c.l.b16 %v8808
  %v8844 = vunpack.c.h.b16 %v8808
  %v8845 = vunpack.c.l.b16 %v8809
  %v8846 = vunpack.c.h.b16 %v8809
  %v8847 = vunpack.c.l.b16 %v8810
  %v8848 = vunpack.c.h.b16 %v8810
  %v8849 = vunpack.c.l.b16 %v8811
  %v8850 = vunpack.c.h.b16 %v8811
  %v8851 = vunpack.c.l.b16 %v8812
  %v8852 = vunpack.c.h.b16 %v8812
  %v8853 = vunpack.c.l.b16 %v8813
  %v8854 = vunpack.c.h.b16 %v8813
  %v8855 = vunpack.c.l.b16 %v8814
  %v8856 = vunpack.c.h.b16 %v8814
  %v8857 = vunpack.c.l.b16 %v8815
  %v8858 = vunpack.c.h.b16 %v8815
  %v8859 = vunpack.c.l.b16 %v8816
  %v8860 = vunpack.c.h.b16 %v8816
  %v8861 = vunpack.c.l.b16 %v8817
  %v8862 = vunpack.c.h.b16 %v8817
  %v8863 = vunpack.c.l.b16 %v8818
  %v8864 = vunpack.c.h.b16 %v8818
  %v8865 = vunpack.c.l.b16 %v8819
  %v8866 = vunpack.c.h.b16 %v8819
  %v8867 = vunpack.c.l.b16 %v8820
  %v8868 = vunpack.c.h.b16 %v8820
  %v8869 = vunpack.c.l.b16 %v8821
  %v8870 = vunpack.c.h.b16 %v8821
  %v8871 = vunpack.c.l.b16 %v8822
  %v8872 = vunpack.c.h.b16 %v8822
  %v8873 = vunpack.c.l.b16 %v8823
  %v8874 = vunpack.c.h.b16 %v8823
  %v8875 = vpack.c.b16 %v8845, %v8843
  %v8876 = vpack.c.b16 %v8846, %v8844
  %v8877 = vpack.c.b16 %v8849, %v8847
  %v8878 = vpack.c.b16 %v8850, %v8848
  %v8879 = vpack.c.b16 %v8853, %v8851
  %v8880 = vpack.c.b16 %v8854, %v8852
  %v8881 = vpack.c.b16 %v8857, %v8855
  %v8882 = vpack.c.b16 %v8858, %v8856
  %v8883 = vpack.c.b16 %v8861, %v8859
  %v8884 = vpack.c.b16 %v8862, %v8860
  %v8885 = vpack.c.b16 %v8865, %v8863
  %v8886 = vpack.c.b16 %v8866, %v8864
  %v8887 = vpack.c.b16 %v8869, %v8867
  %v8888 = vpack.c.b16 %v8870, %v8868
  %v8889 = vpack.c.b16 %v8873, %v8871
  %v8890 = vpack.c.b16 %v8874, %v8872
  %8907 = vmatprep.subr.bf16.mxu0 %v8876
  %8908 = vmatpush1.bf16.msra.mxu0 %v8875
  %8909 = vmatprep.subr.bf16.mxu0 %v8878
  %8910 = vmatpush1.bf16.msra.mxu0 %v8877
  %8911 = vmatprep.subr.bf16.mxu0 %v8880
  %8912 = vmatpush1.bf16.msra.mxu0 %v8879
  %8913 = vmatprep.subr.bf16.mxu0 %v8882
  %8914 = vmatpush1.bf16.msra.mxu0 %v8881
  %8915 = vmatprep.subr.bf16.mxu0 %v8884
  %8916 = vmatpush1.bf16.msra.mxu0 %v8883
  %8917 = vmatprep.subr.bf16.mxu0 %v8886
  %8918 = vmatpush1.bf16.msra.mxu0 %v8885
  %8919 = vmatprep.subr.bf16.mxu0 %v8888
  %8920 = vmatpush1.bf16.msra.mxu0 %v8887
  %8921 = vmatprep.subr.bf16.mxu0 %v8890
  %8922 = vmatpush1.bf16.msra.mxu0 %v8889
  %8923 = vmatprep.subr.bf16.mxu0 0
  %8924 = vmatpush1.bf16.msra.mxu0 0
  %8925 = vmatprep.subr.bf16.mxu0 0
  %8926 = vmatpush1.bf16.msra.mxu0 0
  %8927 = vmatprep.subr.bf16.mxu0 0
  %8928 = vmatpush1.bf16.msra.mxu0 0
  %8929 = vmatprep.subr.bf16.mxu0 0
  %8930 = vmatpush1.bf16.msra.mxu0 0
  %8931 = vmatprep.subr.bf16.mxu0 0
  %8932 = vmatpush1.bf16.msra.mxu0 0
  %8933 = vmatprep.subr.bf16.mxu0 0
  %8934 = vmatpush1.bf16.msra.mxu0 0
  %8935 = vmatprep.subr.bf16.mxu0 0
  %8936 = vmatpush1.bf16.msra.mxu0 0
  %8937 = vmatprep.subr.bf16.mxu0 0
  %8938 = vmatpush1.bf16.msra.mxu0 0
  %8939 = vmatprep.mubr.bf16.mxu0 0
  %8940 = vmatmul.mubr.bf16.gmra.mrb[0].mxu0 %v8806
  %v8941 = vpop.f32.mrb[0].mxu0
  %v8942 = vadd.f32 %v8824, %v8941
  %v8943 = vpop.f32.mrb[0].mxu0
  %v8944 = vadd.f32 %v8824, %v8943
  %v8945 = vpop.f32.mrb[0].mxu0
  %v8946 = vadd.f32 %v8825, %v8945
  %v8947 = vpop.f32.mrb[0].mxu0
  %v8948 = vadd.f32 %v8825, %v8947
  %8949 = vmatprep.mubr.bf16.mxu0 0
  %8950 = vmatmul.mubr.bf16.gmra.mrb[0].mxu0 %v8807
  %v8951 = vpop.f32.mrb[0].mxu0
  %v8952 = vadd.f32 %v8826, %v8951
  %v8953 = vpop.f32.mrb[0].mxu0
  %v8954 = vadd.f32 %v8826, %v8953
  %v8955 = vpop.f32.mrb[0].mxu0
  %v8956 = vpop.f32.mrb[0].mxu0
  %8957 = vdwg.mxu0
  %v8958 = vadd.f32 %v8942, %v8946
  %v8959 = vsel %vm1043, %v8952, 0.0
  %v8960 = vadd.f32 %v8958, %v8959
  %v8961 = vrot.slane %v8960, 4
  %v8962 = vadd.f32 %v8960, %v8961
  %v8963 = vrot.slane %v8962, 2
  %v8964 = vadd.f32 %v8962, %v8963
  %v8965 = vrot.slane %v8964, 1
  %v8966 = vadd.f32 %v8964, %v8965
  %v8967 = vadd.f32 %v8944, %v8948
  %v8968 = vsel %vm1043, %v8954, 0.0
  %v8969 = vadd.f32 %v8967, %v8968
  %v8970 = vrot.slane %v8969, 4
  %v8971 = vadd.f32 %v8969, %v8970
  %v8972 = vrot.slane %v8971, 2
  %v8973 = vadd.f32 %v8971, %v8972
  %v8974 = vrot.slane %v8973, 1
  %v8975 = vadd.f32 %v8973, %v8974
  %v8976 = vmul.f32 %v8942, %v8942
  %v8977 = vmul.f32 %v8944, %v8944
  %v8978 = vmul.f32 %v8946, %v8946
  %v8979 = vmul.f32 %v8948, %v8948
  %v8980 = vmul.f32 %v8952, %v8952
  %v8981 = vmul.f32 %v8954, %v8954
  %v8982 = vadd.f32 %v8976, %v8978
  %v8983 = vsel %vm1043, %v8980, 0.0
  %v8984 = vadd.f32 %v8982, %v8983
  %v8985 = vrot.slane %v8984, 4
  %v8986 = vadd.f32 %v8984, %v8985
  %v8987 = vrot.slane %v8986, 2
  %v8988 = vadd.f32 %v8986, %v8987
  %v8989 = vrot.slane %v8988, 1
  %v8990 = vadd.f32 %v8988, %v8989
  %v8991 = vadd.f32 %v8977, %v8979
  %v8992 = vsel %vm1043, %v8981, 0.0
  %v8993 = vadd.f32 %v8991, %v8992
  %v8994 = vrot.slane %v8993, 4
  %v8995 = vadd.f32 %v8993, %v8994
  %v8996 = vrot.slane %v8995, 2
  %v8997 = vadd.f32 %v8995, %v8996
  %v8998 = vrot.slane %v8997, 1
  %v8999 = vadd.f32 %v8997, %v8998
  %v9000 = vmul.f32 %v8966, 0.05
  %v9001 = vmul.f32 %v8975, 0.05
  %v9002 = vmul.f32 %v8990, 0.05
  %v9003 = vmul.f32 %v8999, 0.05
  %v9004 = vmul.f32 %v9000, %v9000
  %v9005 = vmul.f32 %v9001, %v9001
  %v9006 = vsub.f32 %v9002, %v9004
  %v9007 = vsub.f32 %v9003, %v9005
  %v9008 = vmax.f32 %v9006, 0.0
  %v9009 = vmax.f32 %v9007, 0.0
  %v9010 = vadd.f32 %v9008, 1e-05
  %v9011 = vadd.f32 %v9009, 1e-05
  %v9012 = vrsqrt.pop %v9010
  %v9013 = vrsqrt.pop %v9011
  %v9014 = vsub.f32 %v8942, %v9000
  %v9015 = vsub.f32 %v8944, %v9001
  %v9016 = vsub.f32 %v8946, %v9000
  %v9017 = vsub.f32 %v8948, %v9001
  %v9018 = vsub.f32 %v8952, %v9000
  %v9019 = vsub.f32 %v8954, %v9001
  %v9020 = vmul.f32 %v9014, %v9012
  %v9021 = vmul.f32 %v9015, %v9013
  %v9022 = vmul.f32 %v9016, %v9012
  %v9023 = vmul.f32 %v9017, %v9013
  %v9024 = vmul.f32 %v9018, %v9012
  %v9025 = vmul.f32 %v9019, %v9013
  %v9026 = vmax.f32 %v9020, 0.0
  %v9027 = vmax.f32 %v9021, 0.0
  %v9028 = vmax.f32 %v9022, 0.0
  %v9029 = vmax.f32 %v9023, 0.0
  %v9030 = vmax.f32 %v9024, 0.0
  %v9031 = vmax.f32 %v9025, 0.0
  %v9032 = vpack.c.bf16 %v9028, %v9026
  %v9033 = vpack.c.bf16 %v9030, %v9030
  %v9034 = vld [vmem:[%s55] sm:$0xf]
  %v9035 = vld [vmem:[%s55 + $0x4] sm:$0xf]
  %v9036 = vld [vmem:[%s55 + $0x8] sm:$0xf]
  %v9037 = vld [vmem:[%s55 + $0xc] sm:$0xf]
  %v9038 = vld [vmem:[%s55 + $0x10] sm:$0xf]
  %v9039 = vld [vmem:[%s55 + $0x14] sm:$0xf]
  %v9040 = vld [vmem:[%s55 + $0x18] sm:$0xf]
  %v9041 = vld [vmem:[%s55 + $0x1c] sm:$0xf]
  %v9042 = vld [vmem:[%s55 + $0x20] sm:$0xf]
  %v9043 = vld [vmem:[%s55 + $0x24] sm:$0xf]
  %v9044 = vld [vmem:[%s55 + $0x28] sm:$0xf]
  %v9045 = vld [vmem:[%s55 + $0x2c] sm:$0xf]
  %v9046 = vld [vmem:[%s55 + $0x30] sm:$0xf]
  %v9047 = vld [vmem:[%s55 + $0x34] sm:$0xf]
  %v9048 = vld [vmem:[%s55 + $0x38] sm:$0xf]
  %v9049 = vld [vmem:[%s55 + $0x3c] sm:$0xf]
  %v9050 = vld [vmem:[%s57] sm:$0x1]
  %v9052 = vlaneseq
  %v9053 = vshrl.u32 %v9052, 7
  %v9054 = vsub.s32 0, %v9053
  %v9055 = vrot.slane %v9050, %v9054
  %v9073 = vunpack.c.l.b16 %v9034
  %v9074 = vunpack.c.l.b16 %v9035
  %v9075 = vunpack.c.l.b16 %v9036
  %v9076 = vunpack.c.l.b16 %v9037
  %v9077 = vunpack.c.l.b16 %v9038
  %v9078 = vunpack.c.l.b16 %v9039
  %v9079 = vunpack.c.l.b16 %v9040
  %v9080 = vunpack.c.l.b16 %v9041
  %v9081 = vunpack.c.l.b16 %v9042
  %v9082 = vunpack.c.l.b16 %v9043
  %v9083 = vunpack.c.l.b16 %v9044
  %v9084 = vunpack.c.l.b16 %v9045
  %v9085 = vunpack.c.l.b16 %v9046
  %v9086 = vunpack.c.l.b16 %v9047
  %v9087 = vunpack.c.l.b16 %v9048
  %v9088 = vunpack.c.l.b16 %v9049
  %v9089 = vpack.c.b16 %v9074, %v9073
  %v9090 = vpack.c.b16 %v9076, %v9075
  %v9091 = vpack.c.b16 %v9078, %v9077
  %v9092 = vpack.c.b16 %v9080, %v9079
  %v9093 = vpack.c.b16 %v9082, %v9081
  %v9094 = vpack.c.b16 %v9084, %v9083
  %v9095 = vpack.c.b16 %v9086, %v9085
  %v9096 = vpack.c.b16 %v9088, %v9087
  %9105 = vmatprep.subr.bf16.mxu0 0
  %9106 = vmatpush1.bf16.msra.mxu0 %v9089
  %9107 = vmatprep.subr.bf16.mxu0 0
  %9108 = vmatpush1.bf16.msra.mxu0 %v9090
  %9109 = vmatprep.subr.bf16.mxu0 0
  %9110 = vmatpush1.bf16.msra.mxu0 %v9091
  %9111 = vmatprep.subr.bf16.mxu0 0
  %9112 = vmatpush1.bf16.msra.mxu0 %v9092
  %9113 = vmatprep.subr.bf16.mxu0 0
  %9114 = vmatpush1.bf16.msra.mxu0 %v9093
  %9115 = vmatprep.subr.bf16.mxu0 0
  %9116 = vmatpush1.bf16.msra.mxu0 %v9094
  %9117 = vmatprep.subr.bf16.mxu0 0
  %9118 = vmatpush1.bf16.msra.mxu0 %v9095
  %9119 = vmatprep.subr.bf16.mxu0 0
  %9120 = vmatpush1.bf16.msra.mxu0 %v9096
  %9121 = vmatprep.subr.bf16.mxu0 0
  %9122 = vmatpush1.bf16.msra.mxu0 0
  %9123 = vmatprep.subr.bf16.mxu0 0
  %9124 = vmatpush1.bf16.msra.mxu0 0
  %9125 = vmatprep.subr.bf16.mxu0 0
  %9126 = vmatpush1.bf16.msra.mxu0 0
  %9127 = vmatprep.subr.bf16.mxu0 0
  %9128 = vmatpush1.bf16.msra.mxu0 0
  %9129 = vmatprep.subr.bf16.mxu0 0
  %9130 = vmatpush1.bf16.msra.mxu0 0
  %9131 = vmatprep.subr.bf16.mxu0 0
  %9132 = vmatpush1.bf16.msra.mxu0 0
  %9133 = vmatprep.subr.bf16.mxu0 0
  %9134 = vmatpush1.bf16.msra.mxu0 0
  %9135 = vmatprep.subr.bf16.mxu0 0
  %9136 = vmatpush1.bf16.msra.mxu0 0
  %9137 = vmatprep.mubr.bf16.mxu0 0
  %9138 = vmatmul.mubr.bf16.gmra.mrb[0].mxu0 %v9032
  %v9139 = vpop.f32.mrb[0].mxu0
  %v9140 = vadd.f32 %v9055, %v9139
  %v9141 = vpop.f32.mrb[0].mxu0
  %v9142 = vpop.f32.mrb[0].mxu0
  %v9143 = vadd.f32 %v9055, %v9142
  %v9144 = vpop.f32.mrb[0].mxu0
  %9145 = vmatprep.mubr.bf16.mxu0 0
  %9146 = vmatmul.mubr.bf16.gmra.mrb[0].mxu0 %v9033
  %v9147 = vpop.f32.mrb[0].mxu0
  %v9148 = vadd.f32 %v9055, %v9147
  %v9149 = vpop.f32.mrb[0].mxu0
  %v9150 = vpop.f32.mrb[0].mxu0
  %v9151 = vpop.f32.mrb[0].mxu0
  %9152 = vdwg.mxu0
  %9153 = vst.msk [vmem:[%s63] sm:$0xff] %vm870, %v9140
  %9154 = vst.msk [vmem:[%s63 + $0x8] sm:$0xff] %vm870, %v9143
  %vm9155 = vcmask 257024
  %9156 = vst.msk [vmem:[%s63 + $0x10] sm:$0xf] %vm9155, %v9148
  %v9157 = vpack.c.bf16 %v9029, %v9027
  %v9158 = vpack.c.bf16 %v9031, %v9031
  %v9159 = vld [vmem:[%s59] sm:$0xf]
  %v9160 = vld [vmem:[%s59 + $0x4] sm:$0xf]
  %v9161 = vld [vmem:[%s59 + $0x8] sm:$0xf]
  %v9162 = vld [vmem:[%s59 + $0xc] sm:$0xf]
  %v9163 = vld [vmem:[%s59 + $0x10] sm:$0xf]
  %v9164 = vld [vmem:[%s59 + $0x14] sm:$0xf]
  %v9165 = vld [vmem:[%s59 + $0x18] sm:$0xf]
  %v9166 = vld [vmem:[%s59 + $0x1c] sm:$0xf]
  %v9167 = vld [vmem:[%s59 + $0x20] sm:$0xf]
  %v9168 = vld [vmem:[%s59 + $0x24] sm:$0xf]
  %v9169 = vld [vmem:[%s59 + $0x28] sm:$0xf]
  %v9170 = vld [vmem:[%s59 + $0x2c] sm:$0xf]
  %v9171 = vld [vmem:[%s59 + $0x30] sm:$0xf]
  %v9172 = vld [vmem:[%s59 + $0x34] sm:$0xf]
  %v9173 = vld [vmem:[%s59 + $0x38] sm:$0xf]
  %v9174 = vld [vmem:[%s59 + $0x3c] sm:$0xf]
  %v9175 = vld [vmem:[%s61] sm:$0x1]
  %v9177 = vlaneseq
  %v9178 = vshrl.u32 %v9177, 7
  %v9179 = vsub.s32 0, %v9178
  %v9180 = vrot.slane %v9175, %v9179
  %v9198 = vunpack.c.l.b16 %v9159
  %v9199 = vunpack.c.l.b16 %v9160
  %v9200 = vunpack.c.l.b16 %v9161
  %v9201 = vunpack.c.l.b16 %v9162
  %v9202 = vunpack.c.l.b16 %v9163
  %v9203 = vunpack.c.l.b16 %v9164
  %v9204 = vunpack.c.l.b16 %v9165
  %v9205 = vunpack.c.l.b16 %v9166
  %v9206 = vunpack.c.l.b16 %v9167
  %v9207 = vunpack.c.l.b16 %v9168
  %v9208 = vunpack.c.l.b16 %v9169
  %v9209 = vunpack.c.l.b16 %v9170
  %v9210 = vunpack.c.l.b16 %v9171
  %v9211 = vunpack.c.l.b16 %v9172
  %v9212 = vunpack.c.l.b16 %v9173
  %v9213 = vunpack.c.l.b16 %v9174
  %v9214 = vpack.c.b16 %v9199, %v9198
  %v9215 = vpack.c.b16 %v9201, %v9200
  %v9216 = vpack.c.b16 %v9203, %v9202
  %v9217 = vpack.c.b16 %v9205, %v9204
  %v9218 = vpack.c.b16 %v9207, %v9206
  %v9219 = vpack.c.b16 %v9209, %v9208
  %v9220 = vpack.c.b16 %v9211, %v9210
  %v9221 = vpack.c.b16 %v9213, %v9212
  %9230 = vmatprep.subr.bf16.mxu0 0
  %9231 = vmatpush1.bf16.msra.mxu0 %v9214
  %9232 = vmatprep.subr.bf16.mxu0 0
  %9233 = vmatpush1.bf16.msra.mxu0 %v9215
  %9234 = vmatprep.subr.bf16.mxu0 0
  %9235 = vmatpush1.bf16.msra.mxu0 %v9216
  %9236 = vmatprep.subr.bf16.mxu0 0
  %9237 = vmatpush1.bf16.msra.mxu0 %v9217
  %9238 = vmatprep.subr.bf16.mxu0 0
  %9239 = vmatpush1.bf16.msra.mxu0 %v9218
  %9240 = vmatprep.subr.bf16.mxu0 0
  %9241 = vmatpush1.bf16.msra.mxu0 %v9219
  %9242 = vmatprep.subr.bf16.mxu0 0
  %9243 = vmatpush1.bf16.msra.mxu0 %v9220
  %9244 = vmatprep.subr.bf16.mxu0 0
  %9245 = vmatpush1.bf16.msra.mxu0 %v9221
  %9246 = vmatprep.subr.bf16.mxu0 0
  %9247 = vmatpush1.bf16.msra.mxu0 0
  %9248 = vmatprep.subr.bf16.mxu0 0
  %9249 = vmatpush1.bf16.msra.mxu0 0
  %9250 = vmatprep.subr.bf16.mxu0 0
  %9251 = vmatpush1.bf16.msra.mxu0 0
  %9252 = vmatprep.subr.bf16.mxu0 0
  %9253 = vmatpush1.bf16.msra.mxu0 0
  %9254 = vmatprep.subr.bf16.mxu0 0
  %9255 = vmatpush1.bf16.msra.mxu0 0
  %9256 = vmatprep.subr.bf16.mxu0 0
  %9257 = vmatpush1.bf16.msra.mxu0 0
  %9258 = vmatprep.subr.bf16.mxu0 0
  %9259 = vmatpush1.bf16.msra.mxu0 0
  %9260 = vmatprep.subr.bf16.mxu0 0
  %9261 = vmatpush1.bf16.msra.mxu0 0
  %9262 = vmatprep.mubr.bf16.mxu0 0
  %9263 = vmatmul.mubr.bf16.gmra.mrb[0].mxu0 %v9157
  %v9264 = vpop.f32.mrb[0].mxu0
  %v9265 = vadd.f32 %v9180, %v9264
  %v9266 = vpop.f32.mrb[0].mxu0
  %v9267 = vpop.f32.mrb[0].mxu0
  %v9268 = vadd.f32 %v9180, %v9267
  %v9269 = vpop.f32.mrb[0].mxu0
  %9270 = vmatprep.mubr.bf16.mxu0 0
  %9271 = vmatmul.mubr.bf16.gmra.mrb[0].mxu0 %v9158
  %v9272 = vpop.f32.mrb[0].mxu0
  %v9273 = vadd.f32 %v9180, %v9272
  %v9274 = vpop.f32.mrb[0].mxu0
  %v9275 = vpop.f32.mrb[0].mxu0
  %v9276 = vpop.f32.mrb[0].mxu0
  %9277 = vdwg.mxu0
  %v9278 = vsel %vm870, %v9265, -inf
  %9279 = vmax.xlane.f32.xlu0 %v9278
  %v9280 = vpop.xlane.xlu0 %9279
  %v9281 = vsel %vm870, %v9268, -inf
  %9282 = vmax.xlane.f32.xlu0 %v9281
  %v9283 = vpop.xlane.xlu0 %9282
  %v9284 = vsel %vm9155, %v9273, -inf
  %9285 = vmax.xlane.f32.xlu0 %v9284
  %v9286 = vpop.xlane.xlu0 %9285
  %v9287 = vsub.f32 %v9265, %v9280
  %v9288 = vsub.f32 %v9268, %v9283
  %v9289 = vsub.f32 %v9273, %v9286
  %v9290 = vmul.f32 %v9287, 1.442695
  %v9291 = vpow.pop %v9290
  %v9292 = vmul.f32 %v9288, 1.442695
  %v9293 = vpow.pop %v9292
  %v9294 = vmul.f32 %v9289, 1.442695
  %v9295 = vpow.pop %v9294
  %v9296 = vsel %vm870, %v9291, 0.0
  %9297 = vadd.xlane.f32.xlu0 %v9296
  %v9298 = vpop.xlane.xlu0 %9297
  %v9299 = vsel %vm870, %v9293, 0.0
  %9300 = vadd.xlane.f32.xlu0 %v9299
  %v9301 = vpop.xlane.xlu0 %9300
  %v9302 = vsel %vm9155, %v9295, 0.0
  %9303 = vadd.xlane.f32.xlu0 %v9302
  %v9304 = vpop.xlane.xlu0 %9303
  %v9305 = vlog2.pop %v9298
  %v9306 = vmul.f32 %v9305, 0.6931472
  %v9307 = vlog2.pop %v9301
  %v9308 = vmul.f32 %v9307, 0.6931472
  %v9309 = vlog2.pop %v9304
  %v9310 = vmul.f32 %v9309, 0.6931472
  %v9311 = vsub.f32 %v9287, %v9306
  %v9312 = vsub.f32 %v9288, %v9308
  %v9313 = vsub.f32 %v9289, %v9310
  %9314 = vst.msk [vmem:[%s65] sm:$0xff] %vm870, %v9311
  %9315 = vst.msk [vmem:[%s65 + $0x8] sm:$0xff] %vm870, %v9312
  %9316 = vst.msk [vmem:[%s65 + $0x10] sm:$0xf] %vm9155, %v9313
  // Predicated region
  $region126: #{net_forward.1} parent=0 // pred_check
    _
  $region127: #{net_forward.1} parent=0 // pred_check_branch
    %9318 = sbr.rel (0) target = $region129
  $region128: #{net_forward.1} parent=0 // pred_region
    _
  $region129: #{net_forward.1} parent=0 // pred_fallthru
    _
  // Predicated region
  $region130: #{net_forward.1} parent=0 // pred_check
    _
  $region131: #{net_forward.1} parent=0 // pred_check_branch
    %9320 = sbr.rel (0) target = $region133
  $region132: #{net_forward.1} parent=0 // pred_region
    _
  $region133: #{net_forward.1} parent=0 // pred_fallthru
    _
  // Predicated region
  $region134: #{net_forward.1} parent=0 // pred_check
    _
  $region135: #{net_forward.1} parent=0 // pred_check_branch
    %9322 = sbr.rel (0) target = $region137
  $region136: #{net_forward.1} parent=0 // pred_region
    _
  $region137: #{net_forward.1} parent=0 // pred_fallthru
    _
  // Predicated region
  $region138: #{net_forward.1} parent=0 // pred_check
    _
  $region139: #{net_forward.1} parent=0 // pred_check_branch
    %9324 = sbr.rel (0) target = $region141
  $region140: #{net_forward.1} parent=0 // pred_region
    _
  $region141: #{net_forward.1} parent=0 // pred_fallthru
    _

</llo_original>
